<compile_context>
chip_gen: v7x
topology: tpu7x:2x2x1
jax: 0.10.0
libtpu: 0.0.40
codegen_flags: <defaults>
</compile_context>

<pallas_src>
import functools

import jax
import jax.numpy as jnp
from jax.experimental import pallas as pl
from jax.experimental.pallas import tpu as pltpu


_VMEM = pl.BlockSpec(memory_space=pltpu.MemorySpace.VMEM)
_CP = pltpu.CompilerParams(vmem_limit_bytes=64 * 1024 * 1024)
_EPS = 1e-5


# ----------------------------------------------------------------------------
# In-kernel helpers
# ----------------------------------------------------------------------------
def _batch_stats(flat):
    """Biased (training-mode) per-channel batch stats. flat: (N, C) f32."""
    mean = jnp.mean(flat, axis=0, keepdims=True)
    var = jnp.mean(jnp.square(flat - mean), axis=0, keepdims=True)
    return mean, var


def _bn_scale_shift(mean, var, gamma, beta, eps):
    scale = gamma * jax.lax.rsqrt(var + eps)          # (1, C)
    return scale, beta - mean * scale                 # (1, C), (1, C)


def _pad_conv3x3(x, w2):
    """3x3 'same' conv: in-kernel zero halo + one im2col MXU matmul.

    x: (B, H, W, Cin) f32; w2: (9*Cin, Cout).  Returns (B*H*W, Cout) f32.
    """
    B, H, W, Cin = x.shape
    zr = jnp.zeros((B, 1, W, Cin), jnp.float32)
    zc = jnp.zeros((B, H + 2, 1, Cin), jnp.float32)
    xp = jnp.concatenate([zr, x, zr], axis=1)          # pad H (leading dim)
    xp = jnp.concatenate([zc, xp, zc], axis=2)         # pad W (sublane dim)
    cols = [xp[:, dh:dh + H, dw:dw + W, :].reshape(B * H * W, Cin)
            for dh in range(3) for dw in range(3)]
    slab = jnp.concatenate(cols, axis=-1).astype(jnp.bfloat16)   # (N, 9*Cin)
    return jnp.dot(slab, w2.astype(jnp.bfloat16),
                   preferred_element_type=jnp.float32)           # (N, Cout)


def _maybe_input_bn(x, ig, ib, apply_in_bn, eps):
    if not apply_in_bn:
        return x
    B, H, W, C = x.shape
    mean, var = _batch_stats(x.reshape(B * H * W, C))
    scale, shift = _bn_scale_shift(mean, var, ig, ib, eps)
    return x * scale + shift


# ----------------------------------------------------------------------------
# Kernel 1: Linear  (z @ W + b), bf16 MXU operands, f32 accumulation
# ----------------------------------------------------------------------------
def _linear_kernel(z_ref, w_ref, b_ref, o_ref):
    z = z_ref[...].astype(jnp.bfloat16)
    w = w_ref[...].astype(jnp.bfloat16)
    o_ref[...] = jnp.dot(z, w, preferred_element_type=jnp.float32) + b_ref[...]


def linear(z, w, b):
    B, D = z.shape[0], w.shape[1]
    return pl.pallas_call(
        _linear_kernel,
        out_shape=jax.ShapeDtypeStruct((B, D), jnp.float32),
        in_specs=[_VMEM, _VMEM, _VMEM],
        out_specs=_VMEM,
        compiler_params=_CP,
    )(z, w, b.reshape(1, D))


# ----------------------------------------------------------------------------
# Kernel 2: fused mid block
#   [input BN (= conv_blocks0's BN, first block only)] -> pad -> conv3x3
#   (single im2col matmul) -> train-mode BN -> LeakyReLU(0.2)
# ----------------------------------------------------------------------------
def _mid_block_kernel(x_ref, w_ref, ig_ref, ib_ref, g_ref, b_ref, o_ref, *,
                      apply_in_bn, eps):
    x = _maybe_input_bn(x_ref[...], ig_ref[...], ib_ref[...], apply_in_bn, eps)
    y = _pad_conv3x3(x, w_ref[...])                    # (B*H*W, Cout)
    # The conv bias is exactly absorbed by the training-mode BN below (it only
    # shifts the per-channel batch mean), so it is intentionally skipped.
    mean, var = _batch_stats(y)
    scale, shift = _bn_scale_shift(mean, var, g_ref[...], b_ref[...], eps)
    y = y * scale + shift
    o_ref[...] = jnp.where(y > 0, y, 0.2 * y)          # LeakyReLU(0.2)


def mid_block(x, w_hwio, gamma, beta, in_gamma=None, in_beta=None, eps=_EPS):
    """x: NHWC input, already 2x nearest-upsampled."""
    B, H, W, Cin = x.shape
    Cout = w_hwio.shape[-1]
    apply_in_bn = in_gamma is not None
    if not apply_in_bn:
        in_gamma = jnp.ones((Cin,), jnp.float32)
        in_beta = jnp.zeros((Cin,), jnp.float32)
    kern = functools.partial(_mid_block_kernel, apply_in_bn=apply_in_bn,
                             eps=eps)
    out = pl.pallas_call(
        kern,
        out_shape=jax.ShapeDtypeStruct((B * H * W, Cout), jnp.float32),
        in_specs=[_VMEM] * 6,
        out_specs=_VMEM,
        compiler_params=_CP,
    )(x, w_hwio.reshape(9 * Cin, Cout),
      in_gamma.reshape(1, Cin), in_beta.reshape(1, Cin),
      gamma.reshape(1, Cout), beta.reshape(1, Cout))
    return out.reshape(B, H, W, Cout)                  # free row-major reshape


# ----------------------------------------------------------------------------
# Kernel 3: fused output block
#   [input BN, only when num_conv == 0] -> pad -> conv3x3 + bias -> tanh
#   -> BatchNorm2d(affine=False)
# ----------------------------------------------------------------------------
def _out_block_kernel(x_ref, w_ref, cb_ref, ig_ref, ib_ref, o_ref, *,
                      apply_in_bn, eps):
    x = _maybe_input_bn(x_ref[...], ig_ref[...], ib_ref[...], apply_in_bn, eps)
    y = _pad_conv3x3(x, w_ref[...]) + cb_ref[...]
    y = jnp.tanh(y)
    mean, var = _batch_stats(y)                        # affine=False: normalize
    o_ref[...] = (y - mean) * jax.lax.rsqrt(var + eps)


def out_block(x, w_hwio, bias, in_gamma=None, in_beta=None, eps=_EPS):
    B, H, W, Cin = x.shape
    Cout = w_hwio.shape[-1]
    apply_in_bn = in_gamma is not None
    if not apply_in_bn:
        in_gamma = jnp.ones((Cin,), jnp.float32)
        in_beta = jnp.zeros((Cin,), jnp.float32)
    kern = functools.partial(_out_block_kernel, apply_in_bn=apply_in_bn,
                             eps=eps)
    out = pl.pallas_call(
        kern,
        out_shape=jax.ShapeDtypeStruct((B * H * W, Cout), jnp.float32),
        in_specs=[_VMEM] * 5,
        out_specs=_VMEM,
        compiler_params=_CP,
    )(x, w_hwio.reshape(9 * Cin, Cout), bias.reshape(1, Cout),
      in_gamma.reshape(1, Cin), in_beta.reshape(1, Cin))
    return out.reshape(B, H, W, Cout)


# ----------------------------------------------------------------------------
# GeneratorB config / params / forward
# ----------------------------------------------------------------------------
def _derive_arch(img_size):
    for base in (5, 6, 7, 8):
        sizes = [base * (2 ** k) for k in range(6)]
        if img_size in sizes:
            return base, sizes.index(img_size)
    raise ValueError(f"unsupported img_size {img_size}")


def init_params(key, *, nz, ngf, nc, init_size, num_conv):
    def nrm(k, shape, scale=0.1):
        return scale * jax.random.normal(k, shape, dtype=jnp.float32)

    params = {}
    c0 = ngf * 2 if num_conv > 0 else ngf
    keys = jax.random.split(key, 4 + 2 * num_conv)
    ki = iter(range(len(keys)))

    # l1: Linear(nz, c0*init^2).  Columns are stored in NHWC (h, w, c)
    # flattening order so the post-linear view is a free reshape; when porting
    # torch weights, permute columns from torch's (c, h, w) flattening.
    params["l1_w"] = nrm(keys[next(ki)], (nz, c0 * init_size * init_size))
    params["l1_b"] = nrm(keys[next(ki)], (c0 * init_size * init_size,))
    # conv_blocks0: BatchNorm2d(c0)
    params["bn0_g"] = jnp.ones((c0,), jnp.float32)
    params["bn0_b"] = jnp.zeros((c0,), jnp.float32)
    # mid conv blocks: Conv2d(ngf*2 -> cout, 3, pad=1) + BN + LeakyReLU(0.2)
    for i in range(num_conv):
        cout = ngf if i + 1 == num_conv else ngf * 2
        params[f"conv{i}_w"] = nrm(keys[next(ki)], (3, 3, ngf * 2, cout))  # HWIO
        # Kept for state parity; mathematically absorbed by the train-mode BN.
        params[f"conv{i}_b"] = nrm(keys[next(ki)], (cout,))
        params[f"bn{i + 1}_g"] = jnp.ones((cout,), jnp.float32)
        params[f"bn{i + 1}_b"] = jnp.zeros((cout,), jnp.float32)
    # conv_out: Conv2d(ngf -> nc, 3, pad=1) + Tanh + BN(affine=False)
    params["convo_w"] = nrm(keys[next(ki)], (3, 3, ngf, nc))
    params["convo_b"] = nrm(keys[next(ki)], (nc,))
    return params


def generator_b_forward(z, params, *, ngf, nc, init_size, num_conv, img_size):
    B = z.shape[0]
    c0 = ngf * 2 if num_conv > 0 else ngf

    # l1 + view to NHWC (free reshape, no transpose: see init_params)
    out = linear(z.reshape(B, -1), params["l1_w"], params["l1_b"])
    img = out.reshape(B, init_size, init_size, c0)

    # mid blocks: nearest x2 upsample (wrapper) -> fused pad+conv+BN+LeakyReLU.
    # conv_blocks0's BN commutes exactly with nearest upsampling, so it is
    # applied inside the first block's kernel.
    for i in range(num_conv):
        img = jnp.repeat(jnp.repeat(img, 2, axis=1), 2, axis=2)
        img = mid_block(
            img, params[f"conv{i}_w"],
            params[f"bn{i + 1}_g"], params[f"bn{i + 1}_b"],
            in_gamma=params["bn0_g"] if i == 0 else None,
            in_beta=params["bn0_b"] if i == 0 else None)

    # conv_out: fused pad + conv + bias + tanh + BN(affine=False)
    img = out_block(
        img, params["convo_w"], params["convo_b"],
        in_gamma=params["bn0_g"] if num_conv == 0 else None,
        in_beta=params["bn0_b"] if num_conv == 0 else None)

    assert img.shape[1] == img_size and img.shape[2] == img_size, img.shape
    return jnp.transpose(img, (0, 3, 1, 2))            # NHWC -> NCHW (free nc=1)


if __name__ == "__main__":
    # Small but structure-preserving config: img_size=16 -> init_size=8,
    # one mid conv block (upsample 8->16).
    nz, ngf, nc, img_size, batch = 32, 8, 1, 16, 2
    init_size, num_conv = _derive_arch(img_size)

    key = jax.random.PRNGKey(0)
    kp, kz = jax.random.split(key)
    params = init_params(kp, nz=nz, ngf=ngf, nc=nc,
                         init_size=init_size, num_conv=num_conv)
    z = jax.random.normal(kz, (batch, nz), dtype=jnp.float32)

    fwd = jax.jit(functools.partial(generator_b_forward, ngf=ngf, nc=nc,
                                    init_size=init_size, num_conv=num_conv,
                                    img_size=img_size))
    img = jax.block_until_ready(fwd(z, params))

    assert img.shape == (batch, nc, img_size, img_size), img.shape
    assert bool(jnp.all(jnp.isfinite(img)))
    print("KERNEL_OK")
</pallas_src>

<mosaic_0001>
module attributes {stable_mosaic.version = 11 : i64} {
  func.func @_linear_kernel(%arg0: memref<2x32xf32, #tpu.memory_space<vmem>>, %arg1: memref<32x1024xf32, #tpu.memory_space<vmem>>, %arg2: memref<1x1024xf32, #tpu.memory_space<vmem>>, %arg3: memref<2x1024xf32, #tpu.memory_space<vmem>>) attributes {dimension_semantics = [], scalar_prefetch = 0 : i64, scratch_operands = 0 : i64, tpu.core_type = #tpu.core_type<tc>} {
    %c0 = arith.constant 0 : index
    %c0_0 = arith.constant 0 : index
    %0 = vector.load %arg0[%c0, %c0_0] : memref<2x32xf32, #tpu.memory_space<vmem>>, vector<2x32xf32>
    %1 = arith.truncf %0 : vector<2x32xf32> to vector<2x32xbf16>
    %c0_1 = arith.constant 0 : index
    %c0_2 = arith.constant 0 : index
    %2 = vector.load %arg1[%c0_1, %c0_2] : memref<32x1024xf32, #tpu.memory_space<vmem>>, vector<32x1024xf32>
    %3 = arith.truncf %2 : vector<32x1024xf32> to vector<32x1024xbf16>
    %cst = arith.constant dense<0.000000e+00> : vector<2x1024xf32>
    %4 = tpu.matmul %1, %3, %cst {dimension_numbers = #tpu.dot_dimension_numbers<[1], [0], [0], [1], [0, 0, 1, 1], [], []>} : vector<2x32xbf16>, vector<32x1024xbf16>, vector<2x1024xf32> -> vector<2x1024xf32>
    %c0_3 = arith.constant 0 : index
    %c0_4 = arith.constant 0 : index
    %5 = vector.load %arg2[%c0_3, %c0_4] : memref<1x1024xf32, #tpu.memory_space<vmem>>, vector<1x1024xf32>
    %6 = vector.broadcast %5 : vector<1x1024xf32> to vector<2x1024xf32>
    %7 = arith.addf %4, %6 : vector<2x1024xf32>
    %c0_5 = arith.constant 0 : index
    %c0_6 = arith.constant 0 : index
    %8 = vector.load %arg3[%c0_5, %c0_6] : memref<2x1024xf32, #tpu.memory_space<vmem>>, vector<2x1024xf32>
    tpu.vector_store %arg3[%c0_5, %c0_6], %7 {strides = array<i32>} : memref<2x1024xf32, #tpu.memory_space<vmem>>, vector<2x1024xf32>,
    return
  }
}

module attributes {stable_mosaic.version = 11 : i64} {
  func.func @_mid_block_kernel(%arg0: memref<2x16x16x16xf32, #tpu.memory_space<vmem>>, %arg1: memref<144x8xf32, #tpu.memory_space<vmem>>, %arg2: memref<1x16xf32, #tpu.memory_space<vmem>>, %arg3: memref<1x16xf32, #tpu.memory_space<vmem>>, %arg4: memref<1x8xf32, #tpu.memory_space<vmem>>, %arg5: memref<1x8xf32, #tpu.memory_space<vmem>>, %arg6: memref<512x8xf32, #tpu.memory_space<vmem>>) attributes {dimension_semantics = [], scalar_prefetch = 0 : i64, scratch_operands = 0 : i64, tpu.core_type = #tpu.core_type<tc>} {
    %c0 = arith.constant 0 : index
    %c0_0 = arith.constant 0 : index
    %c0_1 = arith.constant 0 : index
    %c0_2 = arith.constant 0 : index
    %0 = vector.load %arg0[%c0, %c0_0, %c0_1, %c0_2] : memref<2x16x16x16xf32, #tpu.memory_space<vmem>>, vector<2x16x16x16xf32>
    %c0_3 = arith.constant 0 : index
    %c0_4 = arith.constant 0 : index
    %1 = vector.load %arg2[%c0_3, %c0_4] : memref<1x16xf32, #tpu.memory_space<vmem>>, vector<1x16xf32>
    %c0_5 = arith.constant 0 : index
    %c0_6 = arith.constant 0 : index
    %2 = vector.load %arg3[%c0_5, %c0_6] : memref<1x16xf32, #tpu.memory_space<vmem>>, vector<1x16xf32>
    %3 = vector.shape_cast %0 : vector<2x16x16x16xf32> to vector<512x16xf32>
    %cst = arith.constant dense<0.000000e+00> : vector<16xf32>
    %4 = vector.multi_reduction <add>, %3, %cst [0] : vector<512x16xf32> to vector<16xf32>
    %5 = vector.shape_cast %4 : vector<16xf32> to vector<1x16xf32>
    %cst_7 = arith.constant 5.120000e+02 : f32
    %6 = vector.broadcast %cst_7 : f32 to vector<1x16xf32>
    %7 = arith.divf %5, %6 : vector<1x16xf32>
    %8 = vector.broadcast %7 : vector<1x16xf32> to vector<512x16xf32>
    %9 = arith.subf %3, %8 : vector<512x16xf32>
    %10 = arith.mulf %9, %9 : vector<512x16xf32>
    %cst_8 = arith.constant dense<0.000000e+00> : vector<16xf32>
    %11 = vector.multi_reduction <add>, %10, %cst_8 [0] : vector<512x16xf32> to vector<16xf32>
    %12 = vector.shape_cast %11 : vector<16xf32> to vector<1x16xf32>
    %cst_9 = arith.constant 5.120000e+02 : f32
    %13 = vector.broadcast %cst_9 : f32 to vector<1x16xf32>
    %14 = arith.divf %12, %13 : vector<1x16xf32>
    %cst_10 = arith.constant 9.99999974E-6 : f32
    %15 = vector.broadcast %cst_10 : f32 to vector<1x16xf32>
    %16 = arith.addf %14, %15 : vector<1x16xf32>
    %17 = math.rsqrt %16 : vector<1x16xf32>
    %18 = arith.mulf %1, %17 : vector<1x16xf32>
    %19 = arith.mulf %7, %18 : vector<1x16xf32>
    %20 = arith.subf %2, %19 : vector<1x16xf32>
    %21 = vector.shape_cast %18 : vector<1x16xf32> to vector<1x1x1x16xf32>
    %22 = vector.broadcast %21 : vector<1x1x1x16xf32> to vector<2x16x16x16xf32>
    %23 = arith.mulf %0, %22 : vector<2x16x16x16xf32>
    %24 = vector.shape_cast %20 : vector<1x16xf32> to vector<1x1x1x16xf32>
    %25 = vector.broadcast %24 : vector<1x1x1x16xf32> to vector<2x16x16x16xf32>
    %26 = arith.addf %23, %25 : vector<2x16x16x16xf32>
    %c0_11 = arith.constant 0 : index
    %c0_12 = arith.constant 0 : index
    %27 = vector.load %arg1[%c0_11, %c0_12] : memref<144x8xf32, #tpu.memory_space<vmem>>, vector<144x8xf32>
    %cst_13 = arith.constant 0.000000e+00 : f32
    %28 = vector.broadcast %cst_13 : f32 to vector<2x1x16x16xf32>
    %cst_14 = arith.constant 0.000000e+00 : f32
    %29 = vector.broadcast %cst_14 : f32 to vector<2x18x1x16xf32>
    %30 = tpu.concatenate %28, %26, %28 in 1 : vector<2x1x16x16xf32>, vector<2x16x16x16xf32>, vector<2x1x16x16xf32> -> vector<2x18x16x16xf32>
    %31 = tpu.concatenate %29, %30, %29 in 2 : vector<2x18x1x16xf32>, vector<2x18x16x16xf32>, vector<2x18x1x16xf32> -> vector<2x18x18x16xf32>
    %32 = vector.extract_strided_slice %31 {offsets = [0, 0, 0, 0], sizes = [2, 16, 16, 16], strides = [1, 1, 1, 1]} : vector<2x18x18x16xf32> to vector<2x16x16x16xf32>
    %33 = vector.shape_cast %32 : vector<2x16x16x16xf32> to vector<512x16xf32>
    %34 = vector.extract_strided_slice %31 {offsets = [0, 0, 1, 0], sizes = [2, 16, 16, 16], strides = [1, 1, 1, 1]} : vector<2x18x18x16xf32> to vector<2x16x16x16xf32>
    %35 = vector.shape_cast %34 : vector<2x16x16x16xf32> to vector<512x16xf32>
    %36 = vector.extract_strided_slice %31 {offsets = [0, 0, 2, 0], sizes = [2, 16, 16, 16], strides = [1, 1, 1, 1]} : vector<2x18x18x16xf32> to vector<2x16x16x16xf32>
    %37 = vector.shape_cast %36 : vector<2x16x16x16xf32> to vector<512x16xf32>
    %38 = vector.extract_strided_slice %31 {offsets = [0, 1, 0, 0], sizes = [2, 16, 16, 16], strides = [1, 1, 1, 1]} : vector<2x18x18x16xf32> to vector<2x16x16x16xf32>
    %39 = vector.shape_cast %38 : vector<2x16x16x16xf32> to vector<512x16xf32>
    %40 = vector.extract_strided_slice %31 {offsets = [0, 1, 1, 0], sizes = [2, 16, 16, 16], strides = [1, 1, 1, 1]} : vector<2x18x18x16xf32> to vector<2x16x16x16xf32>
    %41 = vector.shape_cast %40 : vector<2x16x16x16xf32> to vector<512x16xf32>
    %42 = vector.extract_strided_slice %31 {offsets = [0, 1, 2, 0], sizes = [2, 16, 16, 16], strides = [1, 1, 1, 1]} : vector<2x18x18x16xf32> to vector<2x16x16x16xf32>
    %43 = vector.shape_cast %42 : vector<2x16x16x16xf32> to vector<512x16xf32>
    %44 = vector.extract_strided_slice %31 {offsets = [0, 2, 0, 0], sizes = [2, 16, 16, 16], strides = [1, 1, 1, 1]} : vector<2x18x18x16xf32> to vector<2x16x16x16xf32>
    %45 = vector.shape_cast %44 : vector<2x16x16x16xf32> to vector<512x16xf32>
    %46 = vector.extract_strided_slice %31 {offsets = [0, 2, 1, 0], sizes = [2, 16, 16, 16], strides = [1, 1, 1, 1]} : vector<2x18x18x16xf32> to vector<2x16x16x16xf32>
    %47 = vector.shape_cast %46 : vector<2x16x16x16xf32> to vector<512x16xf32>
    %48 = vector.extract_strided_slice %31 {offsets = [0, 2, 2, 0], sizes = [2, 16, 16, 16], strides = [1, 1, 1, 1]} : vector<2x18x18x16xf32> to vector<2x16x16x16xf32>
    %49 = vector.shape_cast %48 : vector<2x16x16x16xf32> to vector<512x16xf32>
    %50 = tpu.concatenate %33, %35, %37, %39, %41, %43, %45, %47, %49 in 1 : vector<512x16xf32>, vector<512x16xf32>, vector<512x16xf32>, vector<512x16xf32>, vector<512x16xf32>, vector<512x16xf32>, vector<512x16xf32>, vector<512x16xf32>, vector<512x16xf32> -> vector<512x144xf32>
    %51 = arith.truncf %50 : vector<512x144xf32> to vector<512x144xbf16>
    %52 = arith.truncf %27 : vector<144x8xf32> to vector<144x8xbf16>
    %cst_15 = arith.constant dense<0.000000e+00> : vector<512x8xf32>
    %53 = tpu.matmul %51, %52, %cst_15 {dimension_numbers = #tpu.dot_dimension_numbers<[1], [0], [0], [1], [0, 0, 1, 1], [], []>} : vector<512x144xbf16>, vector<144x8xbf16>, vector<512x8xf32> -> vector<512x8xf32>
    %cst_16 = arith.constant dense<0.000000e+00> : vector<8xf32>
    %54 = vector.multi_reduction <add>, %53, %cst_16 [0] : vector<512x8xf32> to vector<8xf32>
    %55 = vector.shape_cast %54 : vector<8xf32> to vector<1x8xf32>
    %cst_17 = arith.constant 5.120000e+02 : f32
    %56 = vector.broadcast %cst_17 : f32 to vector<1x8xf32>
    %57 = arith.divf %55, %56 : vector<1x8xf32>
    %58 = vector.broadcast %57 : vector<1x8xf32> to vector<512x8xf32>
    %59 = arith.subf %53, %58 : vector<512x8xf32>
    %60 = arith.mulf %59, %59 : vector<512x8xf32>
    %cst_18 = arith.constant dense<0.000000e+00> : vector<8xf32>
    %61 = vector.multi_reduction <add>, %60, %cst_18 [0] : vector<512x8xf32> to vector<8xf32>
    %62 = vector.shape_cast %61 : vector<8xf32> to vector<1x8xf32>
    %cst_19 = arith.constant 5.120000e+02 : f32
    %63 = vector.broadcast %cst_19 : f32 to vector<1x8xf32>
    %64 = arith.divf %62, %63 : vector<1x8xf32>
    %c0_20 = arith.constant 0 : index
    %c0_21 = arith.constant 0 : index
    %65 = vector.load %arg4[%c0_20, %c0_21] : memref<1x8xf32, #tpu.memory_space<vmem>>, vector<1x8xf32>
    %c0_22 = arith.constant 0 : index
    %c0_23 = arith.constant 0 : index
    %66 = vector.load %arg5[%c0_22, %c0_23] : memref<1x8xf32, #tpu.memory_space<vmem>>, vector<1x8xf32>
    %cst_24 = arith.constant 9.99999974E-6 : f32
    %67 = vector.broadcast %cst_24 : f32 to vector<1x8xf32>
    %68 = arith.addf %64, %67 : vector<1x8xf32>
    %69 = math.rsqrt %68 : vector<1x8xf32>
    %70 = arith.mulf %65, %69 : vector<1x8xf32>
    %71 = arith.mulf %57, %70 : vector<1x8xf32>
    %72 = arith.subf %66, %71 : vector<1x8xf32>
    %73 = vector.broadcast %70 : vector<1x8xf32> to vector<512x8xf32>
    %74 = arith.mulf %53, %73 : vector<512x8xf32>
    %75 = vector.broadcast %72 : vector<1x8xf32> to vector<512x8xf32>
    %76 = arith.addf %74, %75 : vector<512x8xf32>
    %cst_25 = arith.constant 0.000000e+00 : f32
    %77 = vector.broadcast %cst_25 : f32 to vector<512x8xf32>
    %78 = arith.cmpf ogt, %76, %77 : vector<512x8xf32>
    %cst_26 = arith.constant 2.000000e-01 : f32
    %79 = vector.broadcast %cst_26 : f32 to vector<512x8xf32>
    %80 = arith.mulf %79, %76 : vector<512x8xf32>
    %81 = arith.select %78, %76, %80 : vector<512x8xi1>, vector<512x8xf32>
    %c0_27 = arith.constant 0 : index
    %c0_28 = arith.constant 0 : index
    %82 = vector.load %arg6[%c0_27, %c0_28] : memref<512x8xf32, #tpu.memory_space<vmem>>, vector<512x8xf32>
    tpu.vector_store %arg6[%c0_27, %c0_28], %81 {strides = array<i32>} : memref<512x8xf32, #tpu.memory_space<vmem>>, vector<512x8xf32>,
    return
  }
}

module attributes {stable_mosaic.version = 11 : i64} {
  func.func @_out_block_kernel(%arg0: memref<2x16x16x8xf32, #tpu.memory_space<vmem>>, %arg1: memref<72x1xf32, #tpu.memory_space<vmem>>, %arg2: memref<1x1xf32, #tpu.memory_space<vmem>>, %arg3: memref<1x8xf32, #tpu.memory_space<vmem>>, %arg4: memref<1x8xf32, #tpu.memory_space<vmem>>, %arg5: memref<512x1xf32, #tpu.memory_space<vmem>>) attributes {dimension_semantics = [], scalar_prefetch = 0 : i64, scratch_operands = 0 : i64, tpu.core_type = #tpu.core_type<tc>} {
    %c0 = arith.constant 0 : index
    %c0_0 = arith.constant 0 : index
    %c0_1 = arith.constant 0 : index
    %c0_2 = arith.constant 0 : index
    %0 = vector.load %arg0[%c0, %c0_0, %c0_1, %c0_2] : memref<2x16x16x8xf32, #tpu.memory_space<vmem>>, vector<2x16x16x8xf32>
    %c0_3 = arith.constant 0 : index
    %c0_4 = arith.constant 0 : index
    %1 = vector.load %arg1[%c0_3, %c0_4] : memref<72x1xf32, #tpu.memory_space<vmem>>, vector<72x1xf32>
    %cst = arith.constant 0.000000e+00 : f32
    %2 = vector.broadcast %cst : f32 to vector<2x1x16x8xf32>
    %cst_5 = arith.constant 0.000000e+00 : f32
    %3 = vector.broadcast %cst_5 : f32 to vector<2x18x1x8xf32>
    %4 = tpu.concatenate %2, %0, %2 in 1 : vector<2x1x16x8xf32>, vector<2x16x16x8xf32>, vector<2x1x16x8xf32> -> vector<2x18x16x8xf32>
    %5 = tpu.concatenate %3, %4, %3 in 2 : vector<2x18x1x8xf32>, vector<2x18x16x8xf32>, vector<2x18x1x8xf32> -> vector<2x18x18x8xf32>
    %6 = vector.extract_strided_slice %5 {offsets = [0, 0, 0, 0], sizes = [2, 16, 16, 8], strides = [1, 1, 1, 1]} : vector<2x18x18x8xf32> to vector<2x16x16x8xf32>
    %7 = vector.shape_cast %6 : vector<2x16x16x8xf32> to vector<512x8xf32>
    %8 = vector.extract_strided_slice %5 {offsets = [0, 0, 1, 0], sizes = [2, 16, 16, 8], strides = [1, 1, 1, 1]} : vector<2x18x18x8xf32> to vector<2x16x16x8xf32>
    %9 = vector.shape_cast %8 : vector<2x16x16x8xf32> to vector<512x8xf32>
    %10 = vector.extract_strided_slice %5 {offsets = [0, 0, 2, 0], sizes = [2, 16, 16, 8], strides = [1, 1, 1, 1]} : vector<2x18x18x8xf32> to vector<2x16x16x8xf32>
    %11 = vector.shape_cast %10 : vector<2x16x16x8xf32> to vector<512x8xf32>
    %12 = vector.extract_strided_slice %5 {offsets = [0, 1, 0, 0], sizes = [2, 16, 16, 8], strides = [1, 1, 1, 1]} : vector<2x18x18x8xf32> to vector<2x16x16x8xf32>
    %13 = vector.shape_cast %12 : vector<2x16x16x8xf32> to vector<512x8xf32>
    %14 = vector.extract_strided_slice %5 {offsets = [0, 1, 1, 0], sizes = [2, 16, 16, 8], strides = [1, 1, 1, 1]} : vector<2x18x18x8xf32> to vector<2x16x16x8xf32>
    %15 = vector.shape_cast %14 : vector<2x16x16x8xf32> to vector<512x8xf32>
    %16 = vector.extract_strided_slice %5 {offsets = [0, 1, 2, 0], sizes = [2, 16, 16, 8], strides = [1, 1, 1, 1]} : vector<2x18x18x8xf32> to vector<2x16x16x8xf32>
    %17 = vector.shape_cast %16 : vector<2x16x16x8xf32> to vector<512x8xf32>
    %18 = vector.extract_strided_slice %5 {offsets = [0, 2, 0, 0], sizes = [2, 16, 16, 8], strides = [1, 1, 1, 1]} : vector<2x18x18x8xf32> to vector<2x16x16x8xf32>
    %19 = vector.shape_cast %18 : vector<2x16x16x8xf32> to vector<512x8xf32>
    %20 = vector.extract_strided_slice %5 {offsets = [0, 2, 1, 0], sizes = [2, 16, 16, 8], strides = [1, 1, 1, 1]} : vector<2x18x18x8xf32> to vector<2x16x16x8xf32>
    %21 = vector.shape_cast %20 : vector<2x16x16x8xf32> to vector<512x8xf32>
    %22 = vector.extract_strided_slice %5 {offsets = [0, 2, 2, 0], sizes = [2, 16, 16, 8], strides = [1, 1, 1, 1]} : vector<2x18x18x8xf32> to vector<2x16x16x8xf32>
    %23 = vector.shape_cast %22 : vector<2x16x16x8xf32> to vector<512x8xf32>
    %24 = tpu.concatenate %7, %9, %11, %13, %15, %17, %19, %21, %23 in 1 : vector<512x8xf32>, vector<512x8xf32>, vector<512x8xf32>, vector<512x8xf32>, vector<512x8xf32>, vector<512x8xf32>, vector<512x8xf32>, vector<512x8xf32>, vector<512x8xf32> -> vector<512x72xf32>
    %25 = arith.truncf %24 : vector<512x72xf32> to vector<512x72xbf16>
    %26 = arith.truncf %1 : vector<72x1xf32> to vector<72x1xbf16>
    %cst_6 = arith.constant dense<0.000000e+00> : vector<512x1xf32>
    %27 = tpu.matmul %25, %26, %cst_6 {dimension_numbers = #tpu.dot_dimension_numbers<[1], [0], [0], [1], [0, 0, 1, 1], [], []>} : vector<512x72xbf16>, vector<72x1xbf16>, vector<512x1xf32> -> vector<512x1xf32>
    %c0_7 = arith.constant 0 : index
    %c0_8 = arith.constant 0 : index
    %28 = vector.load %arg2[%c0_7, %c0_8] : memref<1x1xf32, #tpu.memory_space<vmem>>, vector<1x1xf32>
    %29 = vector.broadcast %28 : vector<1x1xf32> to vector<512x1xf32>
    %30 = arith.addf %27, %29 : vector<512x1xf32>
    %31 = math.tanh %30 : vector<512x1xf32>
    %cst_9 = arith.constant dense<0.000000e+00> : vector<1xf32>
    %32 = vector.multi_reduction <add>, %31, %cst_9 [0] : vector<512x1xf32> to vector<1xf32>
    %33 = vector.shape_cast %32 : vector<1xf32> to vector<1x1xf32>
    %cst_10 = arith.constant 5.120000e+02 : f32
    %34 = vector.broadcast %cst_10 : f32 to vector<1x1xf32>
    %35 = arith.divf %33, %34 : vector<1x1xf32>
    %36 = vector.broadcast %35 : vector<1x1xf32> to vector<512x1xf32>
    %37 = arith.subf %31, %36 : vector<512x1xf32>
    %38 = arith.mulf %37, %37 : vector<512x1xf32>
    %cst_11 = arith.constant dense<0.000000e+00> : vector<1xf32>
    %39 = vector.multi_reduction <add>, %38, %cst_11 [0] : vector<512x1xf32> to vector<1xf32>
    %40 = vector.shape_cast %39 : vector<1xf32> to vector<1x1xf32>
    %cst_12 = arith.constant 5.120000e+02 : f32
    %41 = vector.broadcast %cst_12 : f32 to vector<1x1xf32>
    %42 = arith.divf %40, %41 : vector<1x1xf32>
    %43 = vector.broadcast %35 : vector<1x1xf32> to vector<512x1xf32>
    %44 = arith.subf %31, %43 : vector<512x1xf32>
    %cst_13 = arith.constant 9.99999974E-6 : f32
    %45 = vector.broadcast %cst_13 : f32 to vector<1x1xf32>
    %46 = arith.addf %42, %45 : vector<1x1xf32>
    %47 = math.rsqrt %46 : vector<1x1xf32>
    %48 = vector.broadcast %47 : vector<1x1xf32> to vector<512x1xf32>
    %49 = arith.mulf %44, %48 : vector<512x1xf32>
    %c0_14 = arith.constant 0 : index
    %c0_15 = arith.constant 0 : index
    %50 = vector.load %arg5[%c0_14, %c0_15] : memref<512x1xf32, #tpu.memory_space<vmem>>, vector<512x1xf32>
    tpu.vector_store %arg5[%c0_14, %c0_15], %49 {strides = array<i32>} : memref<512x1xf32, #tpu.memory_space<vmem>>, vector<512x1xf32>,
    return
  }
}

</mosaic_0001>

<llo_original>
// kernel: generator_b_forward.3
$region0: #{generator_b_forward.3}
  #allocation0 [shape = 'u32[]', space=smem, size = 0x4, offset = 0x4, fixed_abs, tag = 'smem constant byte address 0x4 - core index']
  #allocation1 [shape = 'u32[144,128]{1,0:T(1,128)}', space=vmem, size = 0x12000, scoped, tag = 'internal scratch']
  %s0 = inlined_call_operand.hbm [shape: f32[2,32], index: 0, kind: input, shape index: {}]
  %s1 = inlined_call_operand.hbm [shape: f32[32,1024], index: 1, kind: input, shape index: {}]
  %s2 = inlined_call_operand.hbm [shape: f32[1,1024], index: 2, kind: input, shape index: {}]
  %s3 = inlined_call_operand.hbm [shape: f32[2,1024], index: 3, kind: output, shape index: {}]
  %s4 = sld [smem:[#allocation0]]
  $region34: #{generator_b_forward.3} parent=0
    _
  %s6 = ssub.s32 1, %s4
  %s7 = scalar_select 0, %s6, %s4
  $region1: #{generator_b_forward.3} parent=0
    #allocation2 [shape = 'u8[1024]{0}', space=vmem, size = 0x400, scoped, tag = 'input window, operand 0, single buffered']
    #allocation3 [shape = 's32[1]{0}', space=sflag, size = 0x4, scoped, tag = 'scoped memory for generator_b_forward.3']
    #allocation4 [shape = 's32[1]{0}', space=sflag, size = 0x4, scoped, tag = 'scoped memory for generator_b_forward.3']
    #allocation5 [shape = 'u8[131072]{0}', space=vmem, size = 0x20000, scoped, tag = 'input window, operand 1, single buffered']
    #allocation6 [shape = 's32[1]{0}', space=sflag, size = 0x4, scoped, tag = 'scoped memory for generator_b_forward.3']
    #allocation7 [shape = 'u8[4096]{0}', space=vmem, size = 0x1000, scoped, tag = 'input window, operand 2, single buffered']
    #allocation8 [shape = 'u8[8192]{0}', space=vmem, size = 0x2000, scoped, tag = 'output window, operand 0, single buffered']
    %8 = vsyncpa [#allocation3], 0
    %9 = vsyncpa [#allocation6], 0
    %10 = vsyncpa [#allocation4], 0
    // Predicated region
    $region2: #{generator_b_forward.3} parent=1 // pred_check
      _
    $region3: #{generator_b_forward.3} parent=1 // pred_check_branch
      %12 = sbr.rel (0) target = $region5
    $region4: #{generator_b_forward.3} parent=1 // pred_region
      %s14 = ssub.s32 32, 32
      %15 = vsyncadd [#allocation3], %s14
      %s17 = sshll.u32 [#allocation2], 4
      %s18 = int_to_ptr.vmem [resolvable:$true] %s17
      %20 = dma.hbm_to_vmem [thread:$0]  %s0, 32, %s18, [#allocation3]
    $region5: #{generator_b_forward.3} parent=1 // pred_fallthru
      _
    // Predicated region
    $region6: #{generator_b_forward.3} parent=1 // pred_check
      _
    $region7: #{generator_b_forward.3} parent=1 // pred_check_branch
      %22 = sbr.rel (0) target = $region9
    $region8: #{generator_b_forward.3} parent=1 // pred_region
      %s24 = ssub.s32 4096, 4096
      %25 = vsyncadd [#allocation6], %s24
      %s26 = sshll.u32 [#allocation5], 4
      %s27 = int_to_ptr.vmem [resolvable:$true] %s26
      %32 = dma.hbm_to_vmem [thread:$0]  %s1, 4096, %s27, [#allocation6], 1024, 1024, 64
    $region9: #{generator_b_forward.3} parent=1 // pred_fallthru
      _
    // Predicated region
    $region10: #{generator_b_forward.3} parent=1 // pred_check
      _
    $region11: #{generator_b_forward.3} parent=1 // pred_check_branch
      %34 = sbr.rel (0) target = $region13
    $region12: #{generator_b_forward.3} parent=1 // pred_region
      %s36 = ssub.s32 128, 128
      %37 = vsyncadd [#allocation6], %s36
      %s39 = sshll.u32 [#allocation7], 4
      %s40 = int_to_ptr.vmem [resolvable:$true] %s39
      %42 = dma.hbm_to_vmem [thread:$0]  %s2, 128, %s40, [#allocation6]
    $region13: #{generator_b_forward.3} parent=1 // pred_fallthru
      _
    // Predicated region
    $region14: #{generator_b_forward.3} parent=1 // pred_check
      _
    $region15: #{generator_b_forward.3} parent=1 // pred_check_branch
      %44 = sbr.rel (0) target = $region17
    $region16: #{generator_b_forward.3} parent=1 // pred_region
      %45 = dma.done [#allocation3], 32
    $region17: #{generator_b_forward.3} parent=1 // pred_fallthru
      _
    // Predicated region
    $region18: #{generator_b_forward.3} parent=1 // pred_check
      _
    $region19: #{generator_b_forward.3} parent=1 // pred_check_branch
      %47 = sbr.rel (0) target = $region21
    $region20: #{generator_b_forward.3} parent=1 // pred_region
      %48 = dma.done [#allocation6], 4096
    $region21: #{generator_b_forward.3} parent=1 // pred_fallthru
      _
    // Predicated region
    $region22: #{generator_b_forward.3} parent=1 // pred_check
      _
    $region23: #{generator_b_forward.3} parent=1 // pred_check_branch
      %50 = sbr.rel (0) target = $region25
    $region24: #{generator_b_forward.3} parent=1 // pred_region
      %51 = dma.done [#allocation6], 128
    $region25: #{generator_b_forward.3} parent=1 // pred_fallthru
      _
    %v53 = vld [vmem:[#allocation2] sm:$0x3]
    %v54 = vpack.c.bf16 %v53, %v53
    %v55 = vld [vmem:[#allocation5] sm:$0xff]
    %v56 = vld [vmem:[#allocation5 + $0x8] sm:$0xff]
    %v57 = vld [vmem:[#allocation5 + $0x10] sm:$0xff]
    %v58 = vld [vmem:[#allocation5 + $0x18] sm:$0xff]
    %v59 = vld [vmem:[#allocation5 + $0x20] sm:$0xff]
    %v60 = vld [vmem:[#allocation5 + $0x28] sm:$0xff]
    %v61 = vld [vmem:[#allocation5 + $0x30] sm:$0xff]
    %v62 = vld [vmem:[#allocation5 + $0x38] sm:$0xff]
    %v63 = vld [vmem:[#allocation5 + $0x40] sm:$0xff]
    %v64 = vld [vmem:[#allocation5 + $0x48] sm:$0xff]
    %v65 = vld [vmem:[#allocation5 + $0x50] sm:$0xff]
    %v66 = vld [vmem:[#allocation5 + $0x58] sm:$0xff]
    %v67 = vld [vmem:[#allocation5 + $0x60] sm:$0xff]
    %v68 = vld [vmem:[#allocation5 + $0x68] sm:$0xff]
    %v69 = vld [vmem:[#allocation5 + $0x70] sm:$0xff]
    %v70 = vld [vmem:[#allocation5 + $0x78] sm:$0xff]
    %v71 = vld [vmem:[#allocation5 + $0x80] sm:$0xff]
    %v72 = vld [vmem:[#allocation5 + $0x88] sm:$0xff]
    %v73 = vld [vmem:[#allocation5 + $0x90] sm:$0xff]
    %v74 = vld [vmem:[#allocation5 + $0x98] sm:$0xff]
    %v75 = vld [vmem:[#allocation5 + $0xa0] sm:$0xff]
    %v76 = vld [vmem:[#allocation5 + $0xa8] sm:$0xff]
    %v77 = vld [vmem:[#allocation5 + $0xb0] sm:$0xff]
    %v78 = vld [vmem:[#allocation5 + $0xb8] sm:$0xff]
    %v79 = vld [vmem:[#allocation5 + $0xc0] sm:$0xff]
    %v80 = vld [vmem:[#allocation5 + $0xc8] sm:$0xff]
    %v81 = vld [vmem:[#allocation5 + $0xd0] sm:$0xff]
    %v82 = vld [vmem:[#allocation5 + $0xd8] sm:$0xff]
    %v83 = vld [vmem:[#allocation5 + $0xe0] sm:$0xff]
    %v84 = vld [vmem:[#allocation5 + $0xe8] sm:$0xff]
    %v85 = vld [vmem:[#allocation5 + $0xf0] sm:$0xff]
    %v86 = vld [vmem:[#allocation5 + $0xf8] sm:$0xff]
    %v87 = vpack.c.bf16 %v63, %v55
    %v88 = vpack.c.bf16 %v64, %v56
    %v89 = vpack.c.bf16 %v65, %v57
    %v90 = vpack.c.bf16 %v66, %v58
    %v91 = vpack.c.bf16 %v67, %v59
    %v92 = vpack.c.bf16 %v68, %v60
    %v93 = vpack.c.bf16 %v69, %v61
    %v94 = vpack.c.bf16 %v70, %v62
    %v95 = vpack.c.bf16 %v79, %v71
    %v96 = vpack.c.bf16 %v80, %v72
    %v97 = vpack.c.bf16 %v81, %v73
    %v98 = vpack.c.bf16 %v82, %v74
    %v99 = vpack.c.bf16 %v83, %v75
    %v100 = vpack.c.bf16 %v84, %v76
    %v101 = vpack.c.bf16 %v85, %v77
    %v102 = vpack.c.bf16 %v86, %v78
    %v103 = vld [vmem:[#allocation7] sm:$0xff]
    %v105 = vlaneseq
    %v106 = vshrl.u32 %v105, 7
    %v107 = vsub.s32 0, %v106
    %v108 = vrot.slane %v103, %v107
    %v109 = vlaneseq
    %v110 = vshrl.u32 %v109, 7
    %v111 = vsub.s32 1, %v110
    %v112 = vrot.slane %v103, %v111
    %v113 = vlaneseq
    %v114 = vshrl.u32 %v113, 7
    %v115 = vsub.s32 2, %v114
    %v116 = vrot.slane %v103, %v115
    %v117 = vlaneseq
    %v118 = vshrl.u32 %v117, 7
    %v119 = vsub.s32 3, %v118
    %v120 = vrot.slane %v103, %v119
    %v121 = vlaneseq
    %v122 = vshrl.u32 %v121, 7
    %v123 = vsub.s32 4, %v122
    %v124 = vrot.slane %v103, %v123
    %v125 = vlaneseq
    %v126 = vshrl.u32 %v125, 7
    %v127 = vsub.s32 5, %v126
    %v128 = vrot.slane %v103, %v127
    %v129 = vlaneseq
    %v130 = vshrl.u32 %v129, 7
    %v131 = vsub.s32 6, %v130
    %v132 = vrot.slane %v103, %v131
    %v133 = vlaneseq
    %v134 = vshrl.u32 %v133, 7
    %v135 = vsub.s32 7, %v134
    %v136 = vrot.slane %v103, %v135
    %vm145 = vcmask 261120
    %v147 = vsel %vm145, %v54, 0
    %149 = vmatprep.subr.bf16.mxu0 %v88
    %150 = vmatpush1.bf16.msra.mxu0 %v87
    %151 = vmatprep.subr.bf16.mxu0 %v96
    %152 = vmatpush1.bf16.msra.mxu0 %v95
    %153 = vmatprep.subr.bf16.mxu0 0
    %154 = vmatpush1.bf16.msra.mxu0 0
    %155 = vmatprep.subr.bf16.mxu0 0
    %156 = vmatpush1.bf16.msra.mxu0 0
    %157 = vmatprep.subr.bf16.mxu0 0
    %158 = vmatpush1.bf16.msra.mxu0 0
    %159 = vmatprep.subr.bf16.mxu0 0
    %160 = vmatpush1.bf16.msra.mxu0 0
    %161 = vmatprep.subr.bf16.mxu0 0
    %162 = vmatpush1.bf16.msra.mxu0 0
    %163 = vmatprep.subr.bf16.mxu0 0
    %164 = vmatpush1.bf16.msra.mxu0 0
    %165 = vmatprep.subr.bf16.mxu0 0
    %166 = vmatpush1.bf16.msra.mxu0 0
    %167 = vmatprep.subr.bf16.mxu0 0
    %168 = vmatpush1.bf16.msra.mxu0 0
    %169 = vmatprep.subr.bf16.mxu0 0
    %170 = vmatpush1.bf16.msra.mxu0 0
    %171 = vmatprep.subr.bf16.mxu0 0
    %172 = vmatpush1.bf16.msra.mxu0 0
    %173 = vmatprep.subr.bf16.mxu0 0
    %174 = vmatpush1.bf16.msra.mxu0 0
    %175 = vmatprep.subr.bf16.mxu0 0
    %176 = vmatpush1.bf16.msra.mxu0 0
    %177 = vmatprep.subr.bf16.mxu0 0
    %178 = vmatpush1.bf16.msra.mxu0 0
    %179 = vmatprep.subr.bf16.mxu0 0
    %180 = vmatpush1.bf16.msra.mxu0 0
    %181 = vmatprep.mubr.bf16.mxu0 0
    %182 = vmatmul.mubr.bf16.gmra.mrb[0].mxu0 %v147
    %v183 = vpop.f32.mrb[0].mxu0
    %v184 = vadd.f32 %v108, %v183
    %v185 = vpop.f32.mrb[0].mxu0
    %v186 = vadd.f32 %v112, %v185
    %v187 = vpop.f32.mrb[0].mxu0
    %v188 = vpop.f32.mrb[0].mxu0
    %189 = vdwg.mxu0
    %190 = vmatprep.subr.bf16.mxu0 %v90
    %191 = vmatpush1.bf16.msra.mxu0 %v89
    %192 = vmatprep.subr.bf16.mxu0 %v98
    %193 = vmatpush1.bf16.msra.mxu0 %v97
    %194 = vmatprep.subr.bf16.mxu0 0
    %195 = vmatpush1.bf16.msra.mxu0 0
    %196 = vmatprep.subr.bf16.mxu0 0
    %197 = vmatpush1.bf16.msra.mxu0 0
    %198 = vmatprep.subr.bf16.mxu0 0
    %199 = vmatpush1.bf16.msra.mxu0 0
    %200 = vmatprep.subr.bf16.mxu0 0
    %201 = vmatpush1.bf16.msra.mxu0 0
    %202 = vmatprep.subr.bf16.mxu0 0
    %203 = vmatpush1.bf16.msra.mxu0 0
    %204 = vmatprep.subr.bf16.mxu0 0
    %205 = vmatpush1.bf16.msra.mxu0 0
    %206 = vmatprep.subr.bf16.mxu0 0
    %207 = vmatpush1.bf16.msra.mxu0 0
    %208 = vmatprep.subr.bf16.mxu0 0
    %209 = vmatpush1.bf16.msra.mxu0 0
    %210 = vmatprep.subr.bf16.mxu0 0
    %211 = vmatpush1.bf16.msra.mxu0 0
    %212 = vmatprep.subr.bf16.mxu0 0
    %213 = vmatpush1.bf16.msra.mxu0 0
    %214 = vmatprep.subr.bf16.mxu0 0
    %215 = vmatpush1.bf16.msra.mxu0 0
    %216 = vmatprep.subr.bf16.mxu0 0
    %217 = vmatpush1.bf16.msra.mxu0 0
    %218 = vmatprep.subr.bf16.mxu0 0
    %219 = vmatpush1.bf16.msra.mxu0 0
    %220 = vmatprep.subr.bf16.mxu0 0
    %221 = vmatpush1.bf16.msra.mxu0 0
    %222 = vmatprep.mubr.bf16.mxu0 0
    %223 = vmatmul.mubr.bf16.gmra.mrb[0].mxu0 %v147
    %v224 = vpop.f32.mrb[0].mxu0
    %v225 = vadd.f32 %v116, %v224
    %v226 = vpop.f32.mrb[0].mxu0
    %v227 = vadd.f32 %v120, %v226
    %v228 = vpop.f32.mrb[0].mxu0
    %v229 = vpop.f32.mrb[0].mxu0
    %230 = vdwg.mxu0
    %231 = vmatprep.subr.bf16.mxu0 %v92
    %232 = vmatpush1.bf16.msra.mxu0 %v91
    %233 = vmatprep.subr.bf16.mxu0 %v100
    %234 = vmatpush1.bf16.msra.mxu0 %v99
    %235 = vmatprep.subr.bf16.mxu0 0
    %236 = vmatpush1.bf16.msra.mxu0 0
    %237 = vmatprep.subr.bf16.mxu0 0
    %238 = vmatpush1.bf16.msra.mxu0 0
    %239 = vmatprep.subr.bf16.mxu0 0
    %240 = vmatpush1.bf16.msra.mxu0 0
    %241 = vmatprep.subr.bf16.mxu0 0
    %242 = vmatpush1.bf16.msra.mxu0 0
    %243 = vmatprep.subr.bf16.mxu0 0
    %244 = vmatpush1.bf16.msra.mxu0 0
    %245 = vmatprep.subr.bf16.mxu0 0
    %246 = vmatpush1.bf16.msra.mxu0 0
    %247 = vmatprep.subr.bf16.mxu0 0
    %248 = vmatpush1.bf16.msra.mxu0 0
    %249 = vmatprep.subr.bf16.mxu0 0
    %250 = vmatpush1.bf16.msra.mxu0 0
    %251 = vmatprep.subr.bf16.mxu0 0
    %252 = vmatpush1.bf16.msra.mxu0 0
    %253 = vmatprep.subr.bf16.mxu0 0
    %254 = vmatpush1.bf16.msra.mxu0 0
    %255 = vmatprep.subr.bf16.mxu0 0
    %256 = vmatpush1.bf16.msra.mxu0 0
    %257 = vmatprep.subr.bf16.mxu0 0
    %258 = vmatpush1.bf16.msra.mxu0 0
    %259 = vmatprep.subr.bf16.mxu0 0
    %260 = vmatpush1.bf16.msra.mxu0 0
    %261 = vmatprep.subr.bf16.mxu0 0
    %262 = vmatpush1.bf16.msra.mxu0 0
    %263 = vmatprep.mubr.bf16.mxu0 0
    %264 = vmatmul.mubr.bf16.gmra.mrb[0].mxu0 %v147
    %v265 = vpop.f32.mrb[0].mxu0
    %v266 = vadd.f32 %v124, %v265
    %v267 = vpop.f32.mrb[0].mxu0
    %v268 = vadd.f32 %v128, %v267
    %v269 = vpop.f32.mrb[0].mxu0
    %v270 = vpop.f32.mrb[0].mxu0
    %271 = vdwg.mxu0
    %272 = vmatprep.subr.bf16.mxu0 %v94
    %273 = vmatpush1.bf16.msra.mxu0 %v93
    %274 = vmatprep.subr.bf16.mxu0 %v102
    %275 = vmatpush1.bf16.msra.mxu0 %v101
    %276 = vmatprep.subr.bf16.mxu0 0
    %277 = vmatpush1.bf16.msra.mxu0 0
    %278 = vmatprep.subr.bf16.mxu0 0
    %279 = vmatpush1.bf16.msra.mxu0 0
    %280 = vmatprep.subr.bf16.mxu0 0
    %281 = vmatpush1.bf16.msra.mxu0 0
    %282 = vmatprep.subr.bf16.mxu0 0
    %283 = vmatpush1.bf16.msra.mxu0 0
    %284 = vmatprep.subr.bf16.mxu0 0
    %285 = vmatpush1.bf16.msra.mxu0 0
    %286 = vmatprep.subr.bf16.mxu0 0
    %287 = vmatpush1.bf16.msra.mxu0 0
    %288 = vmatprep.subr.bf16.mxu0 0
    %289 = vmatpush1.bf16.msra.mxu0 0
    %290 = vmatprep.subr.bf16.mxu0 0
    %291 = vmatpush1.bf16.msra.mxu0 0
    %292 = vmatprep.subr.bf16.mxu0 0
    %293 = vmatpush1.bf16.msra.mxu0 0
    %294 = vmatprep.subr.bf16.mxu0 0
    %295 = vmatpush1.bf16.msra.mxu0 0
    %296 = vmatprep.subr.bf16.mxu0 0
    %297 = vmatpush1.bf16.msra.mxu0 0
    %298 = vmatprep.subr.bf16.mxu0 0
    %299 = vmatpush1.bf16.msra.mxu0 0
    %300 = vmatprep.subr.bf16.mxu0 0
    %301 = vmatpush1.bf16.msra.mxu0 0
    %302 = vmatprep.subr.bf16.mxu0 0
    %303 = vmatpush1.bf16.msra.mxu0 0
    %304 = vmatprep.mubr.bf16.mxu0 0
    %305 = vmatmul.mubr.bf16.gmra.mrb[0].mxu0 %v147
    %v306 = vpop.f32.mrb[0].mxu0
    %v307 = vadd.f32 %v132, %v306
    %v308 = vpop.f32.mrb[0].mxu0
    %v309 = vadd.f32 %v136, %v308
    %v310 = vpop.f32.mrb[0].mxu0
    %v311 = vpop.f32.mrb[0].mxu0
    %312 = vdwg.mxu0
    %v321 = vcombine.low %v184, %v186
    %v322 = vcombine.low %v225, %v227
    %v324 = vunpack.c.l.s4 1983009808
    %v325 = vunpack.c.0.s8 %v324
    %v326 = vlaneseq
    %v327 = vshrl.u32 %v326, 7
    %v328 = vsub.s32 %v325, %v327
    %v329 = vrot.slane %v321, %v328
    %v331 = vunpack.c.l.s4 1983009808
    %v332 = vunpack.c.0.s8 %v331
    %v333 = vlaneseq
    %v334 = vshrl.u32 %v333, 7
    %v335 = vsub.s32 %v332, %v334
    %v336 = vrot.slane %v322, %v335
    %v337 = vcombine.low %v329, %v336
    %v338 = vcombine.low %v266, %v268
    %v339 = vcombine.low %v307, %v309
    %v341 = vunpack.c.l.s4 1983009808
    %v342 = vunpack.c.0.s8 %v341
    %v343 = vlaneseq
    %v344 = vshrl.u32 %v343, 7
    %v345 = vsub.s32 %v342, %v344
    %v346 = vrot.slane %v338, %v345
    %v348 = vunpack.c.l.s4 1983009808
    %v349 = vunpack.c.0.s8 %v348
    %v350 = vlaneseq
    %v351 = vshrl.u32 %v350, 7
    %v352 = vsub.s32 %v349, %v351
    %v353 = vrot.slane %v339, %v352
    %v354 = vcombine.low %v346, %v353
    %357 = vst [vmem:[#allocation8] sm:$0xff] %v337
    %358 = vst [vmem:[#allocation8 + $0x8] sm:$0xff] %v354
    // Predicated region
    $region26: #{generator_b_forward.3} parent=1 // pred_check
      _
    $region27: #{generator_b_forward.3} parent=1 // pred_check_branch
      %360 = sbr.rel (0) target = $region29
    $region28: #{generator_b_forward.3} parent=1 // pred_region
      %s362 = ssub.s32 256, 256
      %363 = vsyncadd [#allocation4], %s362
      %s365 = sshll.u32 [#allocation8], 4
      %s366 = int_to_ptr.vmem [resolvable:$true] %s365
      %368 = dma.vmem_to_hbm [thread:$0]  %s366, 256, %s3, [#allocation4]
    $region29: #{generator_b_forward.3} parent=1 // pred_fallthru
      _
    // Predicated region
    $region30: #{generator_b_forward.3} parent=1 // pred_check
      _
    $region31: #{generator_b_forward.3} parent=1 // pred_check_branch
      %370 = sbr.rel (0) target = $region33
    $region32: #{generator_b_forward.3} parent=1 // pred_region
      %371 = dma.done [#allocation4], 256
    $region33: #{generator_b_forward.3} parent=1 // pred_fallthru
      _
    %372 = vsyncpa [#allocation3], 1
    %373 = vsyncpa [#allocation6], 1
    %374 = vsyncpa [#allocation4], 1

// kernel: generator_b_forward.5
$region0: #{generator_b_forward.5}
  #allocation0 [shape = 'u32[]', space=smem, size = 0x4, offset = 0x4, fixed_abs, tag = 'smem constant byte address 0x4 - core index']
  #allocation1 [shape = 'u32[144,128]{1,0:T(1,128)}', space=vmem, size = 0x12000, scoped, tag = 'internal scratch']
  #allocation2 [shape = 'f32[1,1]{1,0:T(1,128)S(1)}', space=vmem, size = 0x200, scoped, tag = 'scoped memory for generator_b_forward.5']
  %s0 = inlined_call_operand.hbm [shape: f32[2,16,16,8], index: 0, kind: input, shape index: {}]
  %s1 = inlined_call_operand.hbm [shape: f32[72,1], index: 1, kind: input, shape index: {}]
  %s2 = inlined_call_operand.<no memory space> [shape: f32[1,1], index: 2, kind: input, shape index: {}]
  %s3 = inlined_call_operand.hbm [shape: f32[1,8], index: 3, kind: input, shape index: {}]
  %s4 = inlined_call_operand.hbm [shape: f32[1,8], index: 4, kind: input, shape index: {}]
  %s5 = inlined_call_operand.hbm [shape: f32[512,1], index: 5, kind: output, shape index: {}]
  %s6 = sld [smem:[#allocation0]]
  $region46: #{generator_b_forward.5} parent=0
    _
  %s8 = ssub.s32 1, %s6
  %s9 = scalar_select 0, %s8, %s6
  %v10 = vstv %s2
  %11 = vst [vmem:[#allocation2] sm:$0x1] %v10
  $region1: #{generator_b_forward.5} parent=0
    #allocation3 [shape = 'u8[262144]{0}', space=vmem, size = 0x40000, scoped, tag = 'input window, operand 0, single buffered']
    #allocation4 [shape = 's32[1]{0}', space=sflag, size = 0x4, scoped, tag = 'scoped memory for generator_b_forward.5']
    #allocation5 [shape = 's32[1]{0}', space=sflag, size = 0x4, scoped, tag = 'scoped memory for generator_b_forward.5']
    #allocation6 [shape = 'u8[36864]{0}', space=vmem, size = 0x9000, scoped, tag = 'input window, operand 1, single buffered']
    #allocation7 [shape = 's32[1]{0}', space=sflag, size = 0x4, scoped, tag = 'scoped memory for generator_b_forward.5']
    #allocation8 [shape = 'u8[512]{0}', space=vmem, size = 0x400, scoped, tag = 'input window, operand 3, single buffered']
    #allocation9 [shape = 'u8[512]{0}', space=vmem, size = 0x400, scoped, tag = 'input window, operand 4, single buffered']
    #allocation10 [shape = 's32[1]{0}', space=sflag, size = 0x4, scoped, tag = 'scoped memory for generator_b_forward.5']
    #allocation11 [shape = 'u8[262144]{0}', space=vmem, size = 0x40000, scoped, tag = 'output window, operand 0, single buffered']
    %12 = vsyncpa [#allocation4], 0
    %13 = vsyncpa [#allocation7], 0
    %14 = vsyncpa [#allocation10], 0
    %15 = vsyncpa [#allocation5], 0
    // Predicated region
    $region2: #{generator_b_forward.5} parent=1 // pred_check
      _
    $region3: #{generator_b_forward.5} parent=1 // pred_check_branch
      %17 = sbr.rel (0) target = $region5
    $region4: #{generator_b_forward.5} parent=1 // pred_region
      %s19 = ssub.s32 8192, 8192
      %20 = vsyncadd [#allocation4], %s19
      %s21 = sshll.u32 [#allocation3], 4
      %s22 = int_to_ptr.vmem [resolvable:$true] %s21
      %27 = dma.hbm_to_vmem [thread:$0]  %s0, 8192, %s22, [#allocation4], 128, 128, 8
    $region5: #{generator_b_forward.5} parent=1 // pred_fallthru
      _
    // Predicated region
    $region6: #{generator_b_forward.5} parent=1 // pred_check
      _
    $region7: #{generator_b_forward.5} parent=1 // pred_check_branch
      %29 = sbr.rel (0) target = $region9
    $region8: #{generator_b_forward.5} parent=1 // pred_region
      %s31 = ssub.s32 1152, 1152
      %32 = vsyncadd [#allocation7], %s31
      %s33 = sshll.u32 [#allocation6], 4
      %s34 = int_to_ptr.vmem [resolvable:$true] %s33
      %39 = dma.hbm_to_vmem [thread:$0]  %s1, 1152, %s34, [#allocation7], 128, 128, 8
    $region9: #{generator_b_forward.5} parent=1 // pred_fallthru
      _
    // Predicated region
    $region10: #{generator_b_forward.5} parent=1 // pred_check
      _
    $region11: #{generator_b_forward.5} parent=1 // pred_check_branch
      %41 = sbr.rel (0) target = $region13
    $region12: #{generator_b_forward.5} parent=1 // pred_region
      _
    $region13: #{generator_b_forward.5} parent=1 // pred_fallthru
      _
    // Predicated region
    $region14: #{generator_b_forward.5} parent=1 // pred_check
      _
    $region15: #{generator_b_forward.5} parent=1 // pred_check_branch
      %43 = sbr.rel (0) target = $region17
    $region16: #{generator_b_forward.5} parent=1 // pred_region
      %s45 = ssub.s32 16, 16
      %46 = vsyncadd [#allocation7], %s45
      %s48 = sshll.u32 [#allocation8], 4
      %s49 = int_to_ptr.vmem [resolvable:$true] %s48
      %51 = dma.hbm_to_vmem [thread:$0]  %s3, 16, %s49, [#allocation7]
    $region17: #{generator_b_forward.5} parent=1 // pred_fallthru
      _
    // Predicated region
    $region18: #{generator_b_forward.5} parent=1 // pred_check
      _
    $region19: #{generator_b_forward.5} parent=1 // pred_check_branch
      %53 = sbr.rel (0) target = $region21
    $region20: #{generator_b_forward.5} parent=1 // pred_region
      %s55 = ssub.s32 16, 16
      %56 = vsyncadd [#allocation10], %s55
      %s58 = sshll.u32 [#allocation9], 4
      %s59 = int_to_ptr.vmem [resolvable:$true] %s58
      %61 = dma.hbm_to_vmem [thread:$0]  %s4, 16, %s59, [#allocation10]
    $region21: #{generator_b_forward.5} parent=1 // pred_fallthru
      _
    // Predicated region
    $region22: #{generator_b_forward.5} parent=1 // pred_check
      _
    $region23: #{generator_b_forward.5} parent=1 // pred_check_branch
      %63 = sbr.rel (0) target = $region25
    $region24: #{generator_b_forward.5} parent=1 // pred_region
      %64 = dma.done [#allocation4], 8192
    $region25: #{generator_b_forward.5} parent=1 // pred_fallthru
      _
    // Predicated region
    $region26: #{generator_b_forward.5} parent=1 // pred_check
      _
    $region27: #{generator_b_forward.5} parent=1 // pred_check_branch
      %66 = sbr.rel (0) target = $region29
    $region28: #{generator_b_forward.5} parent=1 // pred_region
      %67 = dma.done [#allocation7], 1152
    $region29: #{generator_b_forward.5} parent=1 // pred_fallthru
      _
    // Predicated region
    $region30: #{generator_b_forward.5} parent=1 // pred_check
      _
    $region31: #{generator_b_forward.5} parent=1 // pred_check_branch
      %69 = sbr.rel (0) target = $region33
    $region32: #{generator_b_forward.5} parent=1 // pred_region
      %70 = dma.done [#allocation7], 16
    $region33: #{generator_b_forward.5} parent=1 // pred_fallthru
      _
    // Predicated region
    $region34: #{generator_b_forward.5} parent=1 // pred_check
      _
    $region35: #{generator_b_forward.5} parent=1 // pred_check_branch
      %72 = sbr.rel (0) target = $region37
    $region36: #{generator_b_forward.5} parent=1 // pred_region
      %73 = dma.done [#allocation10], 16
    $region37: #{generator_b_forward.5} parent=1 // pred_fallthru
      _
    %v75 = vld [vmem:[#allocation3] sm:$0xff]
    %v76 = vld [vmem:[#allocation3 + $0x8] sm:$0xff]
    %v77 = vld [vmem:[#allocation3 + $0x10] sm:$0xff]
    %v78 = vld [vmem:[#allocation3 + $0x18] sm:$0xff]
    %v79 = vld [vmem:[#allocation3 + $0x20] sm:$0xff]
    %v80 = vld [vmem:[#allocation3 + $0x28] sm:$0xff]
    %v81 = vld [vmem:[#allocation3 + $0x30] sm:$0xff]
    %v82 = vld [vmem:[#allocation3 + $0x38] sm:$0xff]
    %v83 = vld [vmem:[#allocation3 + $0x40] sm:$0xff]
    %v84 = vld [vmem:[#allocation3 + $0x48] sm:$0xff]
    %v85 = vld [vmem:[#allocation3 + $0x50] sm:$0xff]
    %v86 = vld [vmem:[#allocation3 + $0x58] sm:$0xff]
    %v87 = vld [vmem:[#allocation3 + $0x60] sm:$0xff]
    %v88 = vld [vmem:[#allocation3 + $0x68] sm:$0xff]
    %v89 = vld [vmem:[#allocation3 + $0x70] sm:$0xff]
    %v90 = vld [vmem:[#allocation3 + $0x78] sm:$0xff]
    %v91 = vld [vmem:[#allocation3 + $0x80] sm:$0xff]
    %v92 = vld [vmem:[#allocation3 + $0x88] sm:$0xff]
    %v93 = vld [vmem:[#allocation3 + $0x90] sm:$0xff]
    %v94 = vld [vmem:[#allocation3 + $0x98] sm:$0xff]
    %v95 = vld [vmem:[#allocation3 + $0xa0] sm:$0xff]
    %v96 = vld [vmem:[#allocation3 + $0xa8] sm:$0xff]
    %v97 = vld [vmem:[#allocation3 + $0xb0] sm:$0xff]
    %v98 = vld [vmem:[#allocation3 + $0xb8] sm:$0xff]
    %v99 = vld [vmem:[#allocation3 + $0xc0] sm:$0xff]
    %v100 = vld [vmem:[#allocation3 + $0xc8] sm:$0xff]
    %v101 = vld [vmem:[#allocation3 + $0xd0] sm:$0xff]
    %v102 = vld [vmem:[#allocation3 + $0xd8] sm:$0xff]
    %v103 = vld [vmem:[#allocation3 + $0xe0] sm:$0xff]
    %v104 = vld [vmem:[#allocation3 + $0xe8] sm:$0xff]
    %v105 = vld [vmem:[#allocation3 + $0xf0] sm:$0xff]
    %v106 = vld [vmem:[#allocation3 + $0xf8] sm:$0xff]
    %v107 = vld [vmem:[#allocation3 + $0x100] sm:$0xff]
    %v108 = vld [vmem:[#allocation3 + $0x108] sm:$0xff]
    %v109 = vld [vmem:[#allocation3 + $0x110] sm:$0xff]
    %v110 = vld [vmem:[#allocation3 + $0x118] sm:$0xff]
    %v111 = vld [vmem:[#allocation3 + $0x120] sm:$0xff]
    %v112 = vld [vmem:[#allocation3 + $0x128] sm:$0xff]
    %v113 = vld [vmem:[#allocation3 + $0x130] sm:$0xff]
    %v114 = vld [vmem:[#allocation3 + $0x138] sm:$0xff]
    %v115 = vld [vmem:[#allocation3 + $0x140] sm:$0xff]
    %v116 = vld [vmem:[#allocation3 + $0x148] sm:$0xff]
    %v117 = vld [vmem:[#allocation3 + $0x150] sm:$0xff]
    %v118 = vld [vmem:[#allocation3 + $0x158] sm:$0xff]
    %v119 = vld [vmem:[#allocation3 + $0x160] sm:$0xff]
    %v120 = vld [vmem:[#allocation3 + $0x168] sm:$0xff]
    %v121 = vld [vmem:[#allocation3 + $0x170] sm:$0xff]
    %v122 = vld [vmem:[#allocation3 + $0x178] sm:$0xff]
    %v123 = vld [vmem:[#allocation3 + $0x180] sm:$0xff]
    %v124 = vld [vmem:[#allocation3 + $0x188] sm:$0xff]
    %v125 = vld [vmem:[#allocation3 + $0x190] sm:$0xff]
    %v126 = vld [vmem:[#allocation3 + $0x198] sm:$0xff]
    %v127 = vld [vmem:[#allocation3 + $0x1a0] sm:$0xff]
    %v128 = vld [vmem:[#allocation3 + $0x1a8] sm:$0xff]
    %v129 = vld [vmem:[#allocation3 + $0x1b0] sm:$0xff]
    %v130 = vld [vmem:[#allocation3 + $0x1b8] sm:$0xff]
    %v131 = vld [vmem:[#allocation3 + $0x1c0] sm:$0xff]
    %v132 = vld [vmem:[#allocation3 + $0x1c8] sm:$0xff]
    %v133 = vld [vmem:[#allocation3 + $0x1d0] sm:$0xff]
    %v134 = vld [vmem:[#allocation3 + $0x1d8] sm:$0xff]
    %v135 = vld [vmem:[#allocation3 + $0x1e0] sm:$0xff]
    %v136 = vld [vmem:[#allocation3 + $0x1e8] sm:$0xff]
    %v137 = vld [vmem:[#allocation3 + $0x1f0] sm:$0xff]
    %v138 = vld [vmem:[#allocation3 + $0x1f8] sm:$0xff]
    %v139 = vld [vmem:[#allocation6] sm:$0xff]
    %v140 = vld [vmem:[#allocation6 + $0x8] sm:$0xff]
    %v141 = vld [vmem:[#allocation6 + $0x10] sm:$0xff]
    %v142 = vld [vmem:[#allocation6 + $0x18] sm:$0xff]
    %v143 = vld [vmem:[#allocation6 + $0x20] sm:$0xff]
    %v144 = vld [vmem:[#allocation6 + $0x28] sm:$0xff]
    %v145 = vld [vmem:[#allocation6 + $0x30] sm:$0xff]
    %v146 = vld [vmem:[#allocation6 + $0x38] sm:$0xff]
    %v147 = vld [vmem:[#allocation6 + $0x40] sm:$0xff]
    %vm213 = vcmask 1040384
    %v214 = vrot.slane 0.0, 7
    %v215 = vsel %vm213, %v214, %v214
    %v216 = vrot.slane %v75, 7
    %v217 = vrot.slane %v76, 7
    %v218 = vsel %vm213, %v216, %v217
    %v219 = vrot.slane %v77, 7
    %v220 = vrot.slane %v78, 7
    %v221 = vsel %vm213, %v219, %v220
    %v222 = vrot.slane %v79, 7
    %v223 = vrot.slane %v80, 7
    %v224 = vsel %vm213, %v222, %v223
    %v225 = vrot.slane %v81, 7
    %v226 = vrot.slane %v82, 7
    %v227 = vsel %vm213, %v225, %v226
    %v228 = vrot.slane %v83, 7
    %v229 = vrot.slane %v84, 7
    %v230 = vsel %vm213, %v228, %v229
    %v231 = vrot.slane %v85, 7
    %v232 = vrot.slane %v86, 7
    %v233 = vsel %vm213, %v231, %v232
    %v234 = vrot.slane %v87, 7
    %v235 = vrot.slane %v88, 7
    %v236 = vsel %vm213, %v234, %v235
    %v237 = vrot.slane %v89, 7
    %v238 = vrot.slane %v90, 7
    %v239 = vsel %vm213, %v237, %v238
    %v240 = vrot.slane %v91, 7
    %v241 = vrot.slane %v92, 7
    %v242 = vsel %vm213, %v240, %v241
    %v243 = vrot.slane %v93, 7
    %v244 = vrot.slane %v94, 7
    %v245 = vsel %vm213, %v243, %v244
    %v246 = vrot.slane %v95, 7
    %v247 = vrot.slane %v96, 7
    %v248 = vsel %vm213, %v246, %v247
    %v249 = vrot.slane %v97, 7
    %v250 = vrot.slane %v98, 7
    %v251 = vsel %vm213, %v249, %v250
    %v252 = vrot.slane %v99, 7
    %v253 = vrot.slane %v100, 7
    %v254 = vsel %vm213, %v252, %v253
    %v255 = vrot.slane %v101, 7
    %v256 = vrot.slane %v102, 7
    %v257 = vsel %vm213, %v255, %v256
    %v258 = vrot.slane %v103, 7
    %v259 = vrot.slane %v104, 7
    %v260 = vsel %vm213, %v258, %v259
    %v261 = vrot.slane %v105, 7
    %v262 = vrot.slane %v106, 7
    %v263 = vsel %vm213, %v261, %v262
    %v264 = vrot.slane %v107, 7
    %v265 = vrot.slane %v108, 7
    %v266 = vsel %vm213, %v264, %v265
    %v267 = vrot.slane %v109, 7
    %v268 = vrot.slane %v110, 7
    %v269 = vsel %vm213, %v267, %v268
    %v270 = vrot.slane %v111, 7
    %v271 = vrot.slane %v112, 7
    %v272 = vsel %vm213, %v270, %v271
    %v273 = vrot.slane %v113, 7
    %v274 = vrot.slane %v114, 7
    %v275 = vsel %vm213, %v273, %v274
    %v276 = vrot.slane %v115, 7
    %v277 = vrot.slane %v116, 7
    %v278 = vsel %vm213, %v276, %v277
    %v279 = vrot.slane %v117, 7
    %v280 = vrot.slane %v118, 7
    %v281 = vsel %vm213, %v279, %v280
    %v282 = vrot.slane %v119, 7
    %v283 = vrot.slane %v120, 7
    %v284 = vsel %vm213, %v282, %v283
    %v285 = vrot.slane %v121, 7
    %v286 = vrot.slane %v122, 7
    %v287 = vsel %vm213, %v285, %v286
    %v288 = vrot.slane %v123, 7
    %v289 = vrot.slane %v124, 7
    %v290 = vsel %vm213, %v288, %v289
    %v291 = vrot.slane %v125, 7
    %v292 = vrot.slane %v126, 7
    %v293 = vsel %vm213, %v291, %v292
    %v294 = vrot.slane %v127, 7
    %v295 = vrot.slane %v128, 7
    %v296 = vsel %vm213, %v294, %v295
    %v297 = vrot.slane %v129, 7
    %v298 = vrot.slane %v130, 7
    %v299 = vsel %vm213, %v297, %v298
    %v300 = vrot.slane %v131, 7
    %v301 = vrot.slane %v132, 7
    %v302 = vsel %vm213, %v300, %v301
    %v303 = vrot.slane %v133, 7
    %v304 = vrot.slane %v134, 7
    %v305 = vsel %vm213, %v303, %v304
    %v306 = vrot.slane %v135, 7
    %v307 = vrot.slane %v136, 7
    %v308 = vsel %vm213, %v306, %v307
    %v309 = vrot.slane %v137, 7
    %v310 = vrot.slane %v138, 7
    %v311 = vsel %vm213, %v309, %v310
    %v408 = vsel %vm213, 0.0, %v214
    %v409 = vsel %vm213, 0.0, %v216
    %v410 = vsel %vm213, 0.0, %v219
    %v411 = vsel %vm213, 0.0, %v222
    %v412 = vsel %vm213, 0.0, %v225
    %v413 = vsel %vm213, 0.0, %v228
    %v414 = vsel %vm213, 0.0, %v231
    %v415 = vsel %vm213, 0.0, %v234
    %v416 = vsel %vm213, 0.0, %v237
    %v417 = vsel %vm213, 0.0, %v240
    %v418 = vsel %vm213, 0.0, %v243
    %v419 = vsel %vm213, 0.0, %v246
    %v420 = vsel %vm213, 0.0, %v249
    %v421 = vsel %vm213, 0.0, %v252
    %v422 = vsel %vm213, 0.0, %v255
    %v423 = vsel %vm213, 0.0, %v258
    %v424 = vsel %vm213, 0.0, %v261
    %v425 = vsel %vm213, 0.0, %v264
    %v426 = vsel %vm213, 0.0, %v267
    %v427 = vsel %vm213, 0.0, %v270
    %v428 = vsel %vm213, 0.0, %v273
    %v429 = vsel %vm213, 0.0, %v276
    %v430 = vsel %vm213, 0.0, %v279
    %v431 = vsel %vm213, 0.0, %v282
    %v432 = vsel %vm213, 0.0, %v285
    %v433 = vsel %vm213, 0.0, %v288
    %v434 = vsel %vm213, 0.0, %v291
    %v435 = vsel %vm213, 0.0, %v294
    %v436 = vsel %vm213, 0.0, %v297
    %v437 = vsel %vm213, 0.0, %v300
    %v438 = vsel %vm213, 0.0, %v303
    %v439 = vsel %vm213, 0.0, %v306
    %v440 = vsel %vm213, 0.0, %v309
    %v441 = vsel %vm213, %v214, 0.0
    %v442 = vsel %vm213, %v217, 0.0
    %v443 = vsel %vm213, %v220, 0.0
    %v444 = vsel %vm213, %v223, 0.0
    %v445 = vsel %vm213, %v226, 0.0
    %v446 = vsel %vm213, %v229, 0.0
    %v447 = vsel %vm213, %v232, 0.0
    %v448 = vsel %vm213, %v235, 0.0
    %v449 = vsel %vm213, %v238, 0.0
    %v450 = vsel %vm213, %v241, 0.0
    %v451 = vsel %vm213, %v244, 0.0
    %v452 = vsel %vm213, %v247, 0.0
    %v453 = vsel %vm213, %v250, 0.0
    %v454 = vsel %vm213, %v253, 0.0
    %v455 = vsel %vm213, %v256, 0.0
    %v456 = vsel %vm213, %v259, 0.0
    %v457 = vsel %vm213, %v262, 0.0
    %v458 = vsel %vm213, %v265, 0.0
    %v459 = vsel %vm213, %v268, 0.0
    %v460 = vsel %vm213, %v271, 0.0
    %v461 = vsel %vm213, %v274, 0.0
    %v462 = vsel %vm213, %v277, 0.0
    %v463 = vsel %vm213, %v280, 0.0
    %v464 = vsel %vm213, %v283, 0.0
    %v465 = vsel %vm213, %v286, 0.0
    %v466 = vsel %vm213, %v289, 0.0
    %v467 = vsel %vm213, %v292, 0.0
    %v468 = vsel %vm213, %v295, 0.0
    %v469 = vsel %vm213, %v298, 0.0
    %v470 = vsel %vm213, %v301, 0.0
    %v471 = vsel %vm213, %v304, 0.0
    %v472 = vsel %vm213, %v307, 0.0
    %v473 = vsel %vm213, %v310, 0.0
    %vm536 = vcmask 1046528
    %v537 = vrot.slane %v408, 1
    %v538 = vrot.slane %v215, 1
    %v539 = vsel %vm536, %v537, %v538
    %v540 = vrot.slane %v441, 1
    %v541 = vsel %vm536, %v538, %v540
    %v542 = vrot.slane %v409, 1
    %v543 = vrot.slane %v218, 1
    %v544 = vsel %vm536, %v542, %v543
    %v545 = vrot.slane %v442, 1
    %v546 = vsel %vm536, %v543, %v545
    %v547 = vrot.slane %v410, 1
    %v548 = vrot.slane %v221, 1
    %v549 = vsel %vm536, %v547, %v548
    %v550 = vrot.slane %v443, 1
    %v551 = vsel %vm536, %v548, %v550
    %v552 = vrot.slane %v411, 1
    %v553 = vrot.slane %v224, 1
    %v554 = vsel %vm536, %v552, %v553
    %v555 = vrot.slane %v444, 1
    %v556 = vsel %vm536, %v553, %v555
    %v557 = vrot.slane %v412, 1
    %v558 = vrot.slane %v227, 1
    %v559 = vsel %vm536, %v557, %v558
    %v560 = vrot.slane %v445, 1
    %v561 = vsel %vm536, %v558, %v560
    %v562 = vrot.slane %v413, 1
    %v563 = vrot.slane %v230, 1
    %v564 = vsel %vm536, %v562, %v563
    %v565 = vrot.slane %v446, 1
    %v566 = vsel %vm536, %v563, %v565
    %v567 = vrot.slane %v414, 1
    %v568 = vrot.slane %v233, 1
    %v569 = vsel %vm536, %v567, %v568
    %v570 = vrot.slane %v447, 1
    %v571 = vsel %vm536, %v568, %v570
    %v572 = vrot.slane %v415, 1
    %v573 = vrot.slane %v236, 1
    %v574 = vsel %vm536, %v572, %v573
    %v575 = vrot.slane %v448, 1
    %v576 = vsel %vm536, %v573, %v575
    %v577 = vrot.slane %v416, 1
    %v578 = vrot.slane %v239, 1
    %v579 = vsel %vm536, %v577, %v578
    %v580 = vrot.slane %v449, 1
    %v581 = vsel %vm536, %v578, %v580
    %v582 = vrot.slane %v417, 1
    %v583 = vrot.slane %v242, 1
    %v584 = vsel %vm536, %v582, %v583
    %v585 = vrot.slane %v450, 1
    %v586 = vsel %vm536, %v583, %v585
    %v587 = vrot.slane %v418, 1
    %v588 = vrot.slane %v245, 1
    %v589 = vsel %vm536, %v587, %v588
    %v590 = vrot.slane %v451, 1
    %v591 = vsel %vm536, %v588, %v590
    %v592 = vrot.slane %v419, 1
    %v593 = vrot.slane %v248, 1
    %v594 = vsel %vm536, %v592, %v593
    %v595 = vrot.slane %v452, 1
    %v596 = vsel %vm536, %v593, %v595
    %v597 = vrot.slane %v420, 1
    %v598 = vrot.slane %v251, 1
    %v599 = vsel %vm536, %v597, %v598
    %v600 = vrot.slane %v453, 1
    %v601 = vsel %vm536, %v598, %v600
    %v602 = vrot.slane %v421, 1
    %v603 = vrot.slane %v254, 1
    %v604 = vsel %vm536, %v602, %v603
    %v605 = vrot.slane %v454, 1
    %v606 = vsel %vm536, %v603, %v605
    %v607 = vrot.slane %v422, 1
    %v608 = vrot.slane %v257, 1
    %v609 = vsel %vm536, %v607, %v608
    %v610 = vrot.slane %v455, 1
    %v611 = vsel %vm536, %v608, %v610
    %v612 = vrot.slane %v423, 1
    %v613 = vrot.slane %v260, 1
    %v614 = vsel %vm536, %v612, %v613
    %v615 = vrot.slane %v456, 1
    %v616 = vsel %vm536, %v613, %v615
    %v617 = vrot.slane %v425, 1
    %v618 = vrot.slane %v266, 1
    %v619 = vsel %vm536, %v617, %v618
    %v620 = vrot.slane %v458, 1
    %v621 = vsel %vm536, %v618, %v620
    %v622 = vrot.slane %v426, 1
    %v623 = vrot.slane %v269, 1
    %v624 = vsel %vm536, %v622, %v623
    %v625 = vrot.slane %v459, 1
    %v626 = vsel %vm536, %v623, %v625
    %v627 = vrot.slane %v427, 1
    %v628 = vrot.slane %v272, 1
    %v629 = vsel %vm536, %v627, %v628
    %v630 = vrot.slane %v460, 1
    %v631 = vsel %vm536, %v628, %v630
    %v632 = vrot.slane %v428, 1
    %v633 = vrot.slane %v275, 1
    %v634 = vsel %vm536, %v632, %v633
    %v635 = vrot.slane %v461, 1
    %v636 = vsel %vm536, %v633, %v635
    %v637 = vrot.slane %v429, 1
    %v638 = vrot.slane %v278, 1
    %v639 = vsel %vm536, %v637, %v638
    %v640 = vrot.slane %v462, 1
    %v641 = vsel %vm536, %v638, %v640
    %v642 = vrot.slane %v430, 1
    %v643 = vrot.slane %v281, 1
    %v644 = vsel %vm536, %v642, %v643
    %v645 = vrot.slane %v463, 1
    %v646 = vsel %vm536, %v643, %v645
    %v647 = vrot.slane %v431, 1
    %v648 = vrot.slane %v284, 1
    %v649 = vsel %vm536, %v647, %v648
    %v650 = vrot.slane %v464, 1
    %v651 = vsel %vm536, %v648, %v650
    %v652 = vrot.slane %v432, 1
    %v653 = vrot.slane %v287, 1
    %v654 = vsel %vm536, %v652, %v653
    %v655 = vrot.slane %v465, 1
    %v656 = vsel %vm536, %v653, %v655
    %v657 = vrot.slane %v433, 1
    %v658 = vrot.slane %v290, 1
    %v659 = vsel %vm536, %v657, %v658
    %v660 = vrot.slane %v466, 1
    %v661 = vsel %vm536, %v658, %v660
    %v662 = vrot.slane %v434, 1
    %v663 = vrot.slane %v293, 1
    %v664 = vsel %vm536, %v662, %v663
    %v665 = vrot.slane %v467, 1
    %v666 = vsel %vm536, %v663, %v665
    %v667 = vrot.slane %v435, 1
    %v668 = vrot.slane %v296, 1
    %v669 = vsel %vm536, %v667, %v668
    %v670 = vrot.slane %v468, 1
    %v671 = vsel %vm536, %v668, %v670
    %v672 = vrot.slane %v436, 1
    %v673 = vrot.slane %v299, 1
    %v674 = vsel %vm536, %v672, %v673
    %v675 = vrot.slane %v469, 1
    %v676 = vsel %vm536, %v673, %v675
    %v677 = vrot.slane %v437, 1
    %v678 = vrot.slane %v302, 1
    %v679 = vsel %vm536, %v677, %v678
    %v680 = vrot.slane %v470, 1
    %v681 = vsel %vm536, %v678, %v680
    %v682 = vrot.slane %v438, 1
    %v683 = vrot.slane %v305, 1
    %v684 = vsel %vm536, %v682, %v683
    %v685 = vrot.slane %v471, 1
    %v686 = vsel %vm536, %v683, %v685
    %v687 = vrot.slane %v439, 1
    %v688 = vrot.slane %v308, 1
    %v689 = vsel %vm536, %v687, %v688
    %v690 = vrot.slane %v472, 1
    %v691 = vsel %vm536, %v688, %v690
    %vm692 = vcmask 1045504
    %v693 = vrot.slane %v408, 2
    %v694 = vrot.slane %v215, 2
    %v695 = vsel %vm692, %v693, %v694
    %v696 = vrot.slane %v441, 2
    %v697 = vsel %vm692, %v694, %v696
    %v698 = vrot.slane %v409, 2
    %v699 = vrot.slane %v218, 2
    %v700 = vsel %vm692, %v698, %v699
    %v701 = vrot.slane %v442, 2
    %v702 = vsel %vm692, %v699, %v701
    %v703 = vrot.slane %v410, 2
    %v704 = vrot.slane %v221, 2
    %v705 = vsel %vm692, %v703, %v704
    %v706 = vrot.slane %v443, 2
    %v707 = vsel %vm692, %v704, %v706
    %v708 = vrot.slane %v411, 2
    %v709 = vrot.slane %v224, 2
    %v710 = vsel %vm692, %v708, %v709
    %v711 = vrot.slane %v444, 2
    %v712 = vsel %vm692, %v709, %v711
    %v713 = vrot.slane %v412, 2
    %v714 = vrot.slane %v227, 2
    %v715 = vsel %vm692, %v713, %v714
    %v716 = vrot.slane %v445, 2
    %v717 = vsel %vm692, %v714, %v716
    %v718 = vrot.slane %v413, 2
    %v719 = vrot.slane %v230, 2
    %v720 = vsel %vm692, %v718, %v719
    %v721 = vrot.slane %v446, 2
    %v722 = vsel %vm692, %v719, %v721
    %v723 = vrot.slane %v414, 2
    %v724 = vrot.slane %v233, 2
    %v725 = vsel %vm692, %v723, %v724
    %v726 = vrot.slane %v447, 2
    %v727 = vsel %vm692, %v724, %v726
    %v728 = vrot.slane %v415, 2
    %v729 = vrot.slane %v236, 2
    %v730 = vsel %vm692, %v728, %v729
    %v731 = vrot.slane %v448, 2
    %v732 = vsel %vm692, %v729, %v731
    %v733 = vrot.slane %v416, 2
    %v734 = vrot.slane %v239, 2
    %v735 = vsel %vm692, %v733, %v734
    %v736 = vrot.slane %v449, 2
    %v737 = vsel %vm692, %v734, %v736
    %v738 = vrot.slane %v417, 2
    %v739 = vrot.slane %v242, 2
    %v740 = vsel %vm692, %v738, %v739
    %v741 = vrot.slane %v450, 2
    %v742 = vsel %vm692, %v739, %v741
    %v743 = vrot.slane %v418, 2
    %v744 = vrot.slane %v245, 2
    %v745 = vsel %vm692, %v743, %v744
    %v746 = vrot.slane %v451, 2
    %v747 = vsel %vm692, %v744, %v746
    %v748 = vrot.slane %v419, 2
    %v749 = vrot.slane %v248, 2
    %v750 = vsel %vm692, %v748, %v749
    %v751 = vrot.slane %v452, 2
    %v752 = vsel %vm692, %v749, %v751
    %v753 = vrot.slane %v420, 2
    %v754 = vrot.slane %v251, 2
    %v755 = vsel %vm692, %v753, %v754
    %v756 = vrot.slane %v453, 2
    %v757 = vsel %vm692, %v754, %v756
    %v758 = vrot.slane %v421, 2
    %v759 = vrot.slane %v254, 2
    %v760 = vsel %vm692, %v758, %v759
    %v761 = vrot.slane %v454, 2
    %v762 = vsel %vm692, %v759, %v761
    %v763 = vrot.slane %v422, 2
    %v764 = vrot.slane %v257, 2
    %v765 = vsel %vm692, %v763, %v764
    %v766 = vrot.slane %v455, 2
    %v767 = vsel %vm692, %v764, %v766
    %v768 = vrot.slane %v423, 2
    %v769 = vrot.slane %v260, 2
    %v770 = vsel %vm692, %v768, %v769
    %v771 = vrot.slane %v456, 2
    %v772 = vsel %vm692, %v769, %v771
    %v773 = vrot.slane %v425, 2
    %v774 = vrot.slane %v266, 2
    %v775 = vsel %vm692, %v773, %v774
    %v776 = vrot.slane %v458, 2
    %v777 = vsel %vm692, %v774, %v776
    %v778 = vrot.slane %v426, 2
    %v779 = vrot.slane %v269, 2
    %v780 = vsel %vm692, %v778, %v779
    %v781 = vrot.slane %v459, 2
    %v782 = vsel %vm692, %v779, %v781
    %v783 = vrot.slane %v427, 2
    %v784 = vrot.slane %v272, 2
    %v785 = vsel %vm692, %v783, %v784
    %v786 = vrot.slane %v460, 2
    %v787 = vsel %vm692, %v784, %v786
    %v788 = vrot.slane %v428, 2
    %v789 = vrot.slane %v275, 2
    %v790 = vsel %vm692, %v788, %v789
    %v791 = vrot.slane %v461, 2
    %v792 = vsel %vm692, %v789, %v791
    %v793 = vrot.slane %v429, 2
    %v794 = vrot.slane %v278, 2
    %v795 = vsel %vm692, %v793, %v794
    %v796 = vrot.slane %v462, 2
    %v797 = vsel %vm692, %v794, %v796
    %v798 = vrot.slane %v430, 2
    %v799 = vrot.slane %v281, 2
    %v800 = vsel %vm692, %v798, %v799
    %v801 = vrot.slane %v463, 2
    %v802 = vsel %vm692, %v799, %v801
    %v803 = vrot.slane %v431, 2
    %v804 = vrot.slane %v284, 2
    %v805 = vsel %vm692, %v803, %v804
    %v806 = vrot.slane %v464, 2
    %v807 = vsel %vm692, %v804, %v806
    %v808 = vrot.slane %v432, 2
    %v809 = vrot.slane %v287, 2
    %v810 = vsel %vm692, %v808, %v809
    %v811 = vrot.slane %v465, 2
    %v812 = vsel %vm692, %v809, %v811
    %v813 = vrot.slane %v433, 2
    %v814 = vrot.slane %v290, 2
    %v815 = vsel %vm692, %v813, %v814
    %v816 = vrot.slane %v466, 2
    %v817 = vsel %vm692, %v814, %v816
    %v818 = vrot.slane %v434, 2
    %v819 = vrot.slane %v293, 2
    %v820 = vsel %vm692, %v818, %v819
    %v821 = vrot.slane %v467, 2
    %v822 = vsel %vm692, %v819, %v821
    %v823 = vrot.slane %v435, 2
    %v824 = vrot.slane %v296, 2
    %v825 = vsel %vm692, %v823, %v824
    %v826 = vrot.slane %v468, 2
    %v827 = vsel %vm692, %v824, %v826
    %v828 = vrot.slane %v436, 2
    %v829 = vrot.slane %v299, 2
    %v830 = vsel %vm692, %v828, %v829
    %v831 = vrot.slane %v469, 2
    %v832 = vsel %vm692, %v829, %v831
    %v833 = vrot.slane %v437, 2
    %v834 = vrot.slane %v302, 2
    %v835 = vsel %vm692, %v833, %v834
    %v836 = vrot.slane %v470, 2
    %v837 = vsel %vm692, %v834, %v836
    %v838 = vrot.slane %v438, 2
    %v839 = vrot.slane %v305, 2
    %v840 = vsel %vm692, %v838, %v839
    %v841 = vrot.slane %v471, 2
    %v842 = vsel %vm692, %v839, %v841
    %v843 = vrot.slane %v439, 2
    %v844 = vrot.slane %v308, 2
    %v845 = vsel %vm692, %v843, %v844
    %v846 = vrot.slane %v472, 2
    %v847 = vsel %vm692, %v844, %v846
    %v852 = vrot.slane %v424, 1
    %v853 = vrot.slane %v263, 1
    %v854 = vsel %vm536, %v852, %v853
    %v855 = vrot.slane %v457, 1
    %v856 = vsel %vm536, %v853, %v855
    %v857 = vrot.slane %v440, 1
    %v858 = vrot.slane %v311, 1
    %v859 = vsel %vm536, %v857, %v858
    %v860 = vrot.slane %v473, 1
    %v861 = vsel %vm536, %v858, %v860
    %v862 = vrot.slane %v424, 2
    %v863 = vrot.slane %v263, 2
    %v864 = vsel %vm692, %v862, %v863
    %v865 = vrot.slane %v457, 2
    %v866 = vsel %vm692, %v863, %v865
    %v867 = vrot.slane %v440, 2
    %v868 = vrot.slane %v311, 2
    %v869 = vsel %vm692, %v867, %v868
    %v870 = vrot.slane %v473, 2
    %v871 = vsel %vm692, %v868, %v870
    %872 = vrot.lane.b32.xlu0 %v539, 8
    %v873 = vpop.permute.xlu0 %872
    %874 = vrot.lane.b32.xlu0 %v541, 8
    %v875 = vpop.permute.xlu0 %874
    %876 = vrot.lane.b32.xlu0 %v544, 8
    %v877 = vpop.permute.xlu0 %876
    %878 = vrot.lane.b32.xlu0 %v546, 8
    %v879 = vpop.permute.xlu0 %878
    %880 = vrot.lane.b32.xlu0 %v549, 8
    %v881 = vpop.permute.xlu0 %880
    %882 = vrot.lane.b32.xlu0 %v551, 8
    %v883 = vpop.permute.xlu0 %882
    %884 = vrot.lane.b32.xlu0 %v554, 8
    %v885 = vpop.permute.xlu0 %884
    %886 = vrot.lane.b32.xlu0 %v556, 8
    %v887 = vpop.permute.xlu0 %886
    %888 = vrot.lane.b32.xlu0 %v559, 8
    %v889 = vpop.permute.xlu0 %888
    %890 = vrot.lane.b32.xlu0 %v561, 8
    %v891 = vpop.permute.xlu0 %890
    %892 = vrot.lane.b32.xlu0 %v564, 8
    %v893 = vpop.permute.xlu0 %892
    %894 = vrot.lane.b32.xlu0 %v566, 8
    %v895 = vpop.permute.xlu0 %894
    %896 = vrot.lane.b32.xlu0 %v569, 8
    %v897 = vpop.permute.xlu0 %896
    %898 = vrot.lane.b32.xlu0 %v571, 8
    %v899 = vpop.permute.xlu0 %898
    %900 = vrot.lane.b32.xlu0 %v574, 8
    %v901 = vpop.permute.xlu0 %900
    %902 = vrot.lane.b32.xlu0 %v576, 8
    %v903 = vpop.permute.xlu0 %902
    %904 = vrot.lane.b32.xlu0 %v579, 8
    %v905 = vpop.permute.xlu0 %904
    %906 = vrot.lane.b32.xlu0 %v581, 8
    %v907 = vpop.permute.xlu0 %906
    %908 = vrot.lane.b32.xlu0 %v584, 8
    %v909 = vpop.permute.xlu0 %908
    %910 = vrot.lane.b32.xlu0 %v586, 8
    %v911 = vpop.permute.xlu0 %910
    %912 = vrot.lane.b32.xlu0 %v589, 8
    %v913 = vpop.permute.xlu0 %912
    %914 = vrot.lane.b32.xlu0 %v591, 8
    %v915 = vpop.permute.xlu0 %914
    %916 = vrot.lane.b32.xlu0 %v594, 8
    %v917 = vpop.permute.xlu0 %916
    %918 = vrot.lane.b32.xlu0 %v596, 8
    %v919 = vpop.permute.xlu0 %918
    %920 = vrot.lane.b32.xlu0 %v599, 8
    %v921 = vpop.permute.xlu0 %920
    %922 = vrot.lane.b32.xlu0 %v601, 8
    %v923 = vpop.permute.xlu0 %922
    %924 = vrot.lane.b32.xlu0 %v604, 8
    %v925 = vpop.permute.xlu0 %924
    %926 = vrot.lane.b32.xlu0 %v606, 8
    %v927 = vpop.permute.xlu0 %926
    %928 = vrot.lane.b32.xlu0 %v609, 8
    %v929 = vpop.permute.xlu0 %928
    %930 = vrot.lane.b32.xlu0 %v611, 8
    %v931 = vpop.permute.xlu0 %930
    %932 = vrot.lane.b32.xlu0 %v614, 8
    %v933 = vpop.permute.xlu0 %932
    %934 = vrot.lane.b32.xlu0 %v616, 8
    %v935 = vpop.permute.xlu0 %934
    %936 = vrot.lane.b32.xlu0 %v619, 8
    %v937 = vpop.permute.xlu0 %936
    %938 = vrot.lane.b32.xlu0 %v621, 8
    %v939 = vpop.permute.xlu0 %938
    %940 = vrot.lane.b32.xlu0 %v624, 8
    %v941 = vpop.permute.xlu0 %940
    %942 = vrot.lane.b32.xlu0 %v626, 8
    %v943 = vpop.permute.xlu0 %942
    %944 = vrot.lane.b32.xlu0 %v629, 8
    %v945 = vpop.permute.xlu0 %944
    %946 = vrot.lane.b32.xlu0 %v631, 8
    %v947 = vpop.permute.xlu0 %946
    %948 = vrot.lane.b32.xlu0 %v634, 8
    %v949 = vpop.permute.xlu0 %948
    %950 = vrot.lane.b32.xlu0 %v636, 8
    %v951 = vpop.permute.xlu0 %950
    %952 = vrot.lane.b32.xlu0 %v639, 8
    %v953 = vpop.permute.xlu0 %952
    %954 = vrot.lane.b32.xlu0 %v641, 8
    %v955 = vpop.permute.xlu0 %954
    %956 = vrot.lane.b32.xlu0 %v644, 8
    %v957 = vpop.permute.xlu0 %956
    %958 = vrot.lane.b32.xlu0 %v646, 8
    %v959 = vpop.permute.xlu0 %958
    %960 = vrot.lane.b32.xlu0 %v649, 8
    %v961 = vpop.permute.xlu0 %960
    %962 = vrot.lane.b32.xlu0 %v651, 8
    %v963 = vpop.permute.xlu0 %962
    %964 = vrot.lane.b32.xlu0 %v654, 8
    %v965 = vpop.permute.xlu0 %964
    %966 = vrot.lane.b32.xlu0 %v656, 8
    %v967 = vpop.permute.xlu0 %966
    %968 = vrot.lane.b32.xlu0 %v659, 8
    %v969 = vpop.permute.xlu0 %968
    %970 = vrot.lane.b32.xlu0 %v661, 8
    %v971 = vpop.permute.xlu0 %970
    %972 = vrot.lane.b32.xlu0 %v664, 8
    %v973 = vpop.permute.xlu0 %972
    %974 = vrot.lane.b32.xlu0 %v666, 8
    %v975 = vpop.permute.xlu0 %974
    %976 = vrot.lane.b32.xlu0 %v669, 8
    %v977 = vpop.permute.xlu0 %976
    %978 = vrot.lane.b32.xlu0 %v671, 8
    %v979 = vpop.permute.xlu0 %978
    %980 = vrot.lane.b32.xlu0 %v674, 8
    %v981 = vpop.permute.xlu0 %980
    %982 = vrot.lane.b32.xlu0 %v676, 8
    %v983 = vpop.permute.xlu0 %982
    %984 = vrot.lane.b32.xlu0 %v679, 8
    %v985 = vpop.permute.xlu0 %984
    %986 = vrot.lane.b32.xlu0 %v681, 8
    %v987 = vpop.permute.xlu0 %986
    %988 = vrot.lane.b32.xlu0 %v684, 8
    %v989 = vpop.permute.xlu0 %988
    %990 = vrot.lane.b32.xlu0 %v686, 8
    %v991 = vpop.permute.xlu0 %990
    %992 = vrot.lane.b32.xlu0 %v689, 8
    %v993 = vpop.permute.xlu0 %992
    %994 = vrot.lane.b32.xlu0 %v691, 8
    %v995 = vpop.permute.xlu0 %994
    %1058 = vrot.lane.b32.xlu0 %v695, 16
    %v1059 = vpop.permute.xlu0 %1058
    %1060 = vrot.lane.b32.xlu0 %v697, 16
    %v1061 = vpop.permute.xlu0 %1060
    %1062 = vrot.lane.b32.xlu0 %v700, 16
    %v1063 = vpop.permute.xlu0 %1062
    %1064 = vrot.lane.b32.xlu0 %v702, 16
    %v1065 = vpop.permute.xlu0 %1064
    %1066 = vrot.lane.b32.xlu0 %v705, 16
    %v1067 = vpop.permute.xlu0 %1066
    %1068 = vrot.lane.b32.xlu0 %v707, 16
    %v1069 = vpop.permute.xlu0 %1068
    %1070 = vrot.lane.b32.xlu0 %v710, 16
    %v1071 = vpop.permute.xlu0 %1070
    %1072 = vrot.lane.b32.xlu0 %v712, 16
    %v1073 = vpop.permute.xlu0 %1072
    %1074 = vrot.lane.b32.xlu0 %v715, 16
    %v1075 = vpop.permute.xlu0 %1074
    %1076 = vrot.lane.b32.xlu0 %v717, 16
    %v1077 = vpop.permute.xlu0 %1076
    %1078 = vrot.lane.b32.xlu0 %v720, 16
    %v1079 = vpop.permute.xlu0 %1078
    %1080 = vrot.lane.b32.xlu0 %v722, 16
    %v1081 = vpop.permute.xlu0 %1080
    %1082 = vrot.lane.b32.xlu0 %v725, 16
    %v1083 = vpop.permute.xlu0 %1082
    %1084 = vrot.lane.b32.xlu0 %v727, 16
    %v1085 = vpop.permute.xlu0 %1084
    %1086 = vrot.lane.b32.xlu0 %v730, 16
    %v1087 = vpop.permute.xlu0 %1086
    %1088 = vrot.lane.b32.xlu0 %v732, 16
    %v1089 = vpop.permute.xlu0 %1088
    %1090 = vrot.lane.b32.xlu0 %v735, 16
    %v1091 = vpop.permute.xlu0 %1090
    %1092 = vrot.lane.b32.xlu0 %v737, 16
    %v1093 = vpop.permute.xlu0 %1092
    %1094 = vrot.lane.b32.xlu0 %v740, 16
    %v1095 = vpop.permute.xlu0 %1094
    %1096 = vrot.lane.b32.xlu0 %v742, 16
    %v1097 = vpop.permute.xlu0 %1096
    %1098 = vrot.lane.b32.xlu0 %v745, 16
    %v1099 = vpop.permute.xlu0 %1098
    %1100 = vrot.lane.b32.xlu0 %v747, 16
    %v1101 = vpop.permute.xlu0 %1100
    %1102 = vrot.lane.b32.xlu0 %v750, 16
    %v1103 = vpop.permute.xlu0 %1102
    %1104 = vrot.lane.b32.xlu0 %v752, 16
    %v1105 = vpop.permute.xlu0 %1104
    %1106 = vrot.lane.b32.xlu0 %v755, 16
    %v1107 = vpop.permute.xlu0 %1106
    %1108 = vrot.lane.b32.xlu0 %v757, 16
    %v1109 = vpop.permute.xlu0 %1108
    %1110 = vrot.lane.b32.xlu0 %v760, 16
    %v1111 = vpop.permute.xlu0 %1110
    %1112 = vrot.lane.b32.xlu0 %v762, 16
    %v1113 = vpop.permute.xlu0 %1112
    %1114 = vrot.lane.b32.xlu0 %v765, 16
    %v1115 = vpop.permute.xlu0 %1114
    %1116 = vrot.lane.b32.xlu0 %v767, 16
    %v1117 = vpop.permute.xlu0 %1116
    %1118 = vrot.lane.b32.xlu0 %v770, 16
    %v1119 = vpop.permute.xlu0 %1118
    %1120 = vrot.lane.b32.xlu0 %v772, 16
    %v1121 = vpop.permute.xlu0 %1120
    %1122 = vrot.lane.b32.xlu0 %v775, 16
    %v1123 = vpop.permute.xlu0 %1122
    %1124 = vrot.lane.b32.xlu0 %v777, 16
    %v1125 = vpop.permute.xlu0 %1124
    %1126 = vrot.lane.b32.xlu0 %v780, 16
    %v1127 = vpop.permute.xlu0 %1126
    %1128 = vrot.lane.b32.xlu0 %v782, 16
    %v1129 = vpop.permute.xlu0 %1128
    %1130 = vrot.lane.b32.xlu0 %v785, 16
    %v1131 = vpop.permute.xlu0 %1130
    %1132 = vrot.lane.b32.xlu0 %v787, 16
    %v1133 = vpop.permute.xlu0 %1132
    %1134 = vrot.lane.b32.xlu0 %v790, 16
    %v1135 = vpop.permute.xlu0 %1134
    %1136 = vrot.lane.b32.xlu0 %v792, 16
    %v1137 = vpop.permute.xlu0 %1136
    %1138 = vrot.lane.b32.xlu0 %v795, 16
    %v1139 = vpop.permute.xlu0 %1138
    %1140 = vrot.lane.b32.xlu0 %v797, 16
    %v1141 = vpop.permute.xlu0 %1140
    %1142 = vrot.lane.b32.xlu0 %v800, 16
    %v1143 = vpop.permute.xlu0 %1142
    %1144 = vrot.lane.b32.xlu0 %v802, 16
    %v1145 = vpop.permute.xlu0 %1144
    %1146 = vrot.lane.b32.xlu0 %v805, 16
    %v1147 = vpop.permute.xlu0 %1146
    %1148 = vrot.lane.b32.xlu0 %v807, 16
    %v1149 = vpop.permute.xlu0 %1148
    %1150 = vrot.lane.b32.xlu0 %v810, 16
    %v1151 = vpop.permute.xlu0 %1150
    %1152 = vrot.lane.b32.xlu0 %v812, 16
    %v1153 = vpop.permute.xlu0 %1152
    %1154 = vrot.lane.b32.xlu0 %v815, 16
    %v1155 = vpop.permute.xlu0 %1154
    %1156 = vrot.lane.b32.xlu0 %v817, 16
    %v1157 = vpop.permute.xlu0 %1156
    %1158 = vrot.lane.b32.xlu0 %v820, 16
    %v1159 = vpop.permute.xlu0 %1158
    %1160 = vrot.lane.b32.xlu0 %v822, 16
    %v1161 = vpop.permute.xlu0 %1160
    %1162 = vrot.lane.b32.xlu0 %v825, 16
    %v1163 = vpop.permute.xlu0 %1162
    %1164 = vrot.lane.b32.xlu0 %v827, 16
    %v1165 = vpop.permute.xlu0 %1164
    %1166 = vrot.lane.b32.xlu0 %v830, 16
    %v1167 = vpop.permute.xlu0 %1166
    %1168 = vrot.lane.b32.xlu0 %v832, 16
    %v1169 = vpop.permute.xlu0 %1168
    %1170 = vrot.lane.b32.xlu0 %v835, 16
    %v1171 = vpop.permute.xlu0 %1170
    %1172 = vrot.lane.b32.xlu0 %v837, 16
    %v1173 = vpop.permute.xlu0 %1172
    %1174 = vrot.lane.b32.xlu0 %v840, 16
    %v1175 = vpop.permute.xlu0 %1174
    %1176 = vrot.lane.b32.xlu0 %v842, 16
    %v1177 = vpop.permute.xlu0 %1176
    %1178 = vrot.lane.b32.xlu0 %v845, 16
    %v1179 = vpop.permute.xlu0 %1178
    %1180 = vrot.lane.b32.xlu0 %v847, 16
    %v1181 = vpop.permute.xlu0 %1180
    %1244 = vrot.lane.b32.xlu0 %v409, 24
    %v1245 = vpop.permute.xlu0 %1244
    %1246 = vrot.lane.b32.xlu0 %v218, 24
    %v1247 = vpop.permute.xlu0 %1246
    %1248 = vrot.lane.b32.xlu0 %v410, 24
    %v1249 = vpop.permute.xlu0 %1248
    %1250 = vrot.lane.b32.xlu0 %v221, 24
    %v1251 = vpop.permute.xlu0 %1250
    %1252 = vrot.lane.b32.xlu0 %v411, 24
    %v1253 = vpop.permute.xlu0 %1252
    %1254 = vrot.lane.b32.xlu0 %v224, 24
    %v1255 = vpop.permute.xlu0 %1254
    %1256 = vrot.lane.b32.xlu0 %v412, 24
    %v1257 = vpop.permute.xlu0 %1256
    %1258 = vrot.lane.b32.xlu0 %v227, 24
    %v1259 = vpop.permute.xlu0 %1258
    %1260 = vrot.lane.b32.xlu0 %v413, 24
    %v1261 = vpop.permute.xlu0 %1260
    %1262 = vrot.lane.b32.xlu0 %v230, 24
    %v1263 = vpop.permute.xlu0 %1262
    %1264 = vrot.lane.b32.xlu0 %v414, 24
    %v1265 = vpop.permute.xlu0 %1264
    %1266 = vrot.lane.b32.xlu0 %v233, 24
    %v1267 = vpop.permute.xlu0 %1266
    %1268 = vrot.lane.b32.xlu0 %v415, 24
    %v1269 = vpop.permute.xlu0 %1268
    %1270 = vrot.lane.b32.xlu0 %v236, 24
    %v1271 = vpop.permute.xlu0 %1270
    %1272 = vrot.lane.b32.xlu0 %v416, 24
    %v1273 = vpop.permute.xlu0 %1272
    %1274 = vrot.lane.b32.xlu0 %v239, 24
    %v1275 = vpop.permute.xlu0 %1274
    %1276 = vrot.lane.b32.xlu0 %v417, 24
    %v1277 = vpop.permute.xlu0 %1276
    %1278 = vrot.lane.b32.xlu0 %v242, 24
    %v1279 = vpop.permute.xlu0 %1278
    %1280 = vrot.lane.b32.xlu0 %v418, 24
    %v1281 = vpop.permute.xlu0 %1280
    %1282 = vrot.lane.b32.xlu0 %v245, 24
    %v1283 = vpop.permute.xlu0 %1282
    %1284 = vrot.lane.b32.xlu0 %v419, 24
    %v1285 = vpop.permute.xlu0 %1284
    %1286 = vrot.lane.b32.xlu0 %v248, 24
    %v1287 = vpop.permute.xlu0 %1286
    %1288 = vrot.lane.b32.xlu0 %v420, 24
    %v1289 = vpop.permute.xlu0 %1288
    %1290 = vrot.lane.b32.xlu0 %v251, 24
    %v1291 = vpop.permute.xlu0 %1290
    %1292 = vrot.lane.b32.xlu0 %v421, 24
    %v1293 = vpop.permute.xlu0 %1292
    %1294 = vrot.lane.b32.xlu0 %v254, 24
    %v1295 = vpop.permute.xlu0 %1294
    %1296 = vrot.lane.b32.xlu0 %v422, 24
    %v1297 = vpop.permute.xlu0 %1296
    %1298 = vrot.lane.b32.xlu0 %v257, 24
    %v1299 = vpop.permute.xlu0 %1298
    %1300 = vrot.lane.b32.xlu0 %v423, 24
    %v1301 = vpop.permute.xlu0 %1300
    %1302 = vrot.lane.b32.xlu0 %v260, 24
    %v1303 = vpop.permute.xlu0 %1302
    %1304 = vrot.lane.b32.xlu0 %v424, 24
    %v1305 = vpop.permute.xlu0 %1304
    %1306 = vrot.lane.b32.xlu0 %v263, 24
    %v1307 = vpop.permute.xlu0 %1306
    %1308 = vrot.lane.b32.xlu0 %v425, 24
    %v1309 = vpop.permute.xlu0 %1308
    %1310 = vrot.lane.b32.xlu0 %v266, 24
    %v1311 = vpop.permute.xlu0 %1310
    %1312 = vrot.lane.b32.xlu0 %v426, 24
    %v1313 = vpop.permute.xlu0 %1312
    %1314 = vrot.lane.b32.xlu0 %v269, 24
    %v1315 = vpop.permute.xlu0 %1314
    %1316 = vrot.lane.b32.xlu0 %v427, 24
    %v1317 = vpop.permute.xlu0 %1316
    %1318 = vrot.lane.b32.xlu0 %v272, 24
    %v1319 = vpop.permute.xlu0 %1318
    %1320 = vrot.lane.b32.xlu0 %v428, 24
    %v1321 = vpop.permute.xlu0 %1320
    %1322 = vrot.lane.b32.xlu0 %v275, 24
    %v1323 = vpop.permute.xlu0 %1322
    %1324 = vrot.lane.b32.xlu0 %v429, 24
    %v1325 = vpop.permute.xlu0 %1324
    %1326 = vrot.lane.b32.xlu0 %v278, 24
    %v1327 = vpop.permute.xlu0 %1326
    %1328 = vrot.lane.b32.xlu0 %v430, 24
    %v1329 = vpop.permute.xlu0 %1328
    %1330 = vrot.lane.b32.xlu0 %v281, 24
    %v1331 = vpop.permute.xlu0 %1330
    %1332 = vrot.lane.b32.xlu0 %v431, 24
    %v1333 = vpop.permute.xlu0 %1332
    %1334 = vrot.lane.b32.xlu0 %v284, 24
    %v1335 = vpop.permute.xlu0 %1334
    %1336 = vrot.lane.b32.xlu0 %v432, 24
    %v1337 = vpop.permute.xlu0 %1336
    %1338 = vrot.lane.b32.xlu0 %v287, 24
    %v1339 = vpop.permute.xlu0 %1338
    %1340 = vrot.lane.b32.xlu0 %v433, 24
    %v1341 = vpop.permute.xlu0 %1340
    %1342 = vrot.lane.b32.xlu0 %v290, 24
    %v1343 = vpop.permute.xlu0 %1342
    %1344 = vrot.lane.b32.xlu0 %v434, 24
    %v1345 = vpop.permute.xlu0 %1344
    %1346 = vrot.lane.b32.xlu0 %v293, 24
    %v1347 = vpop.permute.xlu0 %1346
    %1348 = vrot.lane.b32.xlu0 %v435, 24
    %v1349 = vpop.permute.xlu0 %1348
    %1350 = vrot.lane.b32.xlu0 %v296, 24
    %v1351 = vpop.permute.xlu0 %1350
    %1352 = vrot.lane.b32.xlu0 %v436, 24
    %v1353 = vpop.permute.xlu0 %1352
    %1354 = vrot.lane.b32.xlu0 %v299, 24
    %v1355 = vpop.permute.xlu0 %1354
    %1356 = vrot.lane.b32.xlu0 %v437, 24
    %v1357 = vpop.permute.xlu0 %1356
    %1358 = vrot.lane.b32.xlu0 %v302, 24
    %v1359 = vpop.permute.xlu0 %1358
    %1360 = vrot.lane.b32.xlu0 %v438, 24
    %v1361 = vpop.permute.xlu0 %1360
    %1362 = vrot.lane.b32.xlu0 %v305, 24
    %v1363 = vpop.permute.xlu0 %1362
    %1364 = vrot.lane.b32.xlu0 %v439, 24
    %v1365 = vpop.permute.xlu0 %1364
    %1366 = vrot.lane.b32.xlu0 %v308, 24
    %v1367 = vpop.permute.xlu0 %1366
    %1368 = vrot.lane.b32.xlu0 %v440, 24
    %v1369 = vpop.permute.xlu0 %1368
    %1370 = vrot.lane.b32.xlu0 %v311, 24
    %v1371 = vpop.permute.xlu0 %1370
    %1436 = vrot.lane.b32.xlu0 %v544, 32
    %v1437 = vpop.permute.xlu0 %1436
    %1438 = vrot.lane.b32.xlu0 %v546, 32
    %v1439 = vpop.permute.xlu0 %1438
    %1440 = vrot.lane.b32.xlu0 %v549, 32
    %v1441 = vpop.permute.xlu0 %1440
    %1442 = vrot.lane.b32.xlu0 %v551, 32
    %v1443 = vpop.permute.xlu0 %1442
    %1444 = vrot.lane.b32.xlu0 %v554, 32
    %v1445 = vpop.permute.xlu0 %1444
    %1446 = vrot.lane.b32.xlu0 %v556, 32
    %v1447 = vpop.permute.xlu0 %1446
    %1448 = vrot.lane.b32.xlu0 %v559, 32
    %v1449 = vpop.permute.xlu0 %1448
    %1450 = vrot.lane.b32.xlu0 %v561, 32
    %v1451 = vpop.permute.xlu0 %1450
    %1452 = vrot.lane.b32.xlu0 %v564, 32
    %v1453 = vpop.permute.xlu0 %1452
    %1454 = vrot.lane.b32.xlu0 %v566, 32
    %v1455 = vpop.permute.xlu0 %1454
    %1456 = vrot.lane.b32.xlu0 %v569, 32
    %v1457 = vpop.permute.xlu0 %1456
    %1458 = vrot.lane.b32.xlu0 %v571, 32
    %v1459 = vpop.permute.xlu0 %1458
    %1460 = vrot.lane.b32.xlu0 %v574, 32
    %v1461 = vpop.permute.xlu0 %1460
    %1462 = vrot.lane.b32.xlu0 %v576, 32
    %v1463 = vpop.permute.xlu0 %1462
    %1464 = vrot.lane.b32.xlu0 %v579, 32
    %v1465 = vpop.permute.xlu0 %1464
    %1466 = vrot.lane.b32.xlu0 %v581, 32
    %v1467 = vpop.permute.xlu0 %1466
    %1468 = vrot.lane.b32.xlu0 %v584, 32
    %v1469 = vpop.permute.xlu0 %1468
    %1470 = vrot.lane.b32.xlu0 %v586, 32
    %v1471 = vpop.permute.xlu0 %1470
    %1472 = vrot.lane.b32.xlu0 %v589, 32
    %v1473 = vpop.permute.xlu0 %1472
    %1474 = vrot.lane.b32.xlu0 %v591, 32
    %v1475 = vpop.permute.xlu0 %1474
    %1476 = vrot.lane.b32.xlu0 %v594, 32
    %v1477 = vpop.permute.xlu0 %1476
    %1478 = vrot.lane.b32.xlu0 %v596, 32
    %v1479 = vpop.permute.xlu0 %1478
    %1480 = vrot.lane.b32.xlu0 %v599, 32
    %v1481 = vpop.permute.xlu0 %1480
    %1482 = vrot.lane.b32.xlu0 %v601, 32
    %v1483 = vpop.permute.xlu0 %1482
    %1484 = vrot.lane.b32.xlu0 %v604, 32
    %v1485 = vpop.permute.xlu0 %1484
    %1486 = vrot.lane.b32.xlu0 %v606, 32
    %v1487 = vpop.permute.xlu0 %1486
    %1488 = vrot.lane.b32.xlu0 %v609, 32
    %v1489 = vpop.permute.xlu0 %1488
    %1490 = vrot.lane.b32.xlu0 %v611, 32
    %v1491 = vpop.permute.xlu0 %1490
    %1492 = vrot.lane.b32.xlu0 %v614, 32
    %v1493 = vpop.permute.xlu0 %1492
    %1494 = vrot.lane.b32.xlu0 %v616, 32
    %v1495 = vpop.permute.xlu0 %1494
    %1496 = vrot.lane.b32.xlu0 %v854, 32
    %v1497 = vpop.permute.xlu0 %1496
    %1498 = vrot.lane.b32.xlu0 %v856, 32
    %v1499 = vpop.permute.xlu0 %1498
    %1500 = vrot.lane.b32.xlu0 %v619, 32
    %v1501 = vpop.permute.xlu0 %1500
    %1502 = vrot.lane.b32.xlu0 %v621, 32
    %v1503 = vpop.permute.xlu0 %1502
    %1504 = vrot.lane.b32.xlu0 %v624, 32
    %v1505 = vpop.permute.xlu0 %1504
    %1506 = vrot.lane.b32.xlu0 %v626, 32
    %v1507 = vpop.permute.xlu0 %1506
    %1508 = vrot.lane.b32.xlu0 %v629, 32
    %v1509 = vpop.permute.xlu0 %1508
    %1510 = vrot.lane.b32.xlu0 %v631, 32
    %v1511 = vpop.permute.xlu0 %1510
    %1512 = vrot.lane.b32.xlu0 %v634, 32
    %v1513 = vpop.permute.xlu0 %1512
    %1514 = vrot.lane.b32.xlu0 %v636, 32
    %v1515 = vpop.permute.xlu0 %1514
    %1516 = vrot.lane.b32.xlu0 %v639, 32
    %v1517 = vpop.permute.xlu0 %1516
    %1518 = vrot.lane.b32.xlu0 %v641, 32
    %v1519 = vpop.permute.xlu0 %1518
    %1520 = vrot.lane.b32.xlu0 %v644, 32
    %v1521 = vpop.permute.xlu0 %1520
    %1522 = vrot.lane.b32.xlu0 %v646, 32
    %v1523 = vpop.permute.xlu0 %1522
    %1524 = vrot.lane.b32.xlu0 %v649, 32
    %v1525 = vpop.permute.xlu0 %1524
    %1526 = vrot.lane.b32.xlu0 %v651, 32
    %v1527 = vpop.permute.xlu0 %1526
    %1528 = vrot.lane.b32.xlu0 %v654, 32
    %v1529 = vpop.permute.xlu0 %1528
    %1530 = vrot.lane.b32.xlu0 %v656, 32
    %v1531 = vpop.permute.xlu0 %1530
    %1532 = vrot.lane.b32.xlu0 %v659, 32
    %v1533 = vpop.permute.xlu0 %1532
    %1534 = vrot.lane.b32.xlu0 %v661, 32
    %v1535 = vpop.permute.xlu0 %1534
    %1536 = vrot.lane.b32.xlu0 %v664, 32
    %v1537 = vpop.permute.xlu0 %1536
    %1538 = vrot.lane.b32.xlu0 %v666, 32
    %v1539 = vpop.permute.xlu0 %1538
    %1540 = vrot.lane.b32.xlu0 %v669, 32
    %v1541 = vpop.permute.xlu0 %1540
    %1542 = vrot.lane.b32.xlu0 %v671, 32
    %v1543 = vpop.permute.xlu0 %1542
    %1544 = vrot.lane.b32.xlu0 %v674, 32
    %v1545 = vpop.permute.xlu0 %1544
    %1546 = vrot.lane.b32.xlu0 %v676, 32
    %v1547 = vpop.permute.xlu0 %1546
    %1548 = vrot.lane.b32.xlu0 %v679, 32
    %v1549 = vpop.permute.xlu0 %1548
    %1550 = vrot.lane.b32.xlu0 %v681, 32
    %v1551 = vpop.permute.xlu0 %1550
    %1552 = vrot.lane.b32.xlu0 %v684, 32
    %v1553 = vpop.permute.xlu0 %1552
    %1554 = vrot.lane.b32.xlu0 %v686, 32
    %v1555 = vpop.permute.xlu0 %1554
    %1556 = vrot.lane.b32.xlu0 %v689, 32
    %v1557 = vpop.permute.xlu0 %1556
    %1558 = vrot.lane.b32.xlu0 %v691, 32
    %v1559 = vpop.permute.xlu0 %1558
    %1560 = vrot.lane.b32.xlu0 %v859, 32
    %v1561 = vpop.permute.xlu0 %1560
    %1562 = vrot.lane.b32.xlu0 %v861, 32
    %v1563 = vpop.permute.xlu0 %1562
    %1628 = vrot.lane.b32.xlu0 %v700, 40
    %v1629 = vpop.permute.xlu0 %1628
    %1630 = vrot.lane.b32.xlu0 %v702, 40
    %v1631 = vpop.permute.xlu0 %1630
    %1632 = vrot.lane.b32.xlu0 %v705, 40
    %v1633 = vpop.permute.xlu0 %1632
    %1634 = vrot.lane.b32.xlu0 %v707, 40
    %v1635 = vpop.permute.xlu0 %1634
    %1636 = vrot.lane.b32.xlu0 %v710, 40
    %v1637 = vpop.permute.xlu0 %1636
    %1638 = vrot.lane.b32.xlu0 %v712, 40
    %v1639 = vpop.permute.xlu0 %1638
    %1640 = vrot.lane.b32.xlu0 %v715, 40
    %v1641 = vpop.permute.xlu0 %1640
    %1642 = vrot.lane.b32.xlu0 %v717, 40
    %v1643 = vpop.permute.xlu0 %1642
    %1644 = vrot.lane.b32.xlu0 %v720, 40
    %v1645 = vpop.permute.xlu0 %1644
    %1646 = vrot.lane.b32.xlu0 %v722, 40
    %v1647 = vpop.permute.xlu0 %1646
    %1648 = vrot.lane.b32.xlu0 %v725, 40
    %v1649 = vpop.permute.xlu0 %1648
    %1650 = vrot.lane.b32.xlu0 %v727, 40
    %v1651 = vpop.permute.xlu0 %1650
    %1652 = vrot.lane.b32.xlu0 %v730, 40
    %v1653 = vpop.permute.xlu0 %1652
    %1654 = vrot.lane.b32.xlu0 %v732, 40
    %v1655 = vpop.permute.xlu0 %1654
    %1656 = vrot.lane.b32.xlu0 %v735, 40
    %v1657 = vpop.permute.xlu0 %1656
    %1658 = vrot.lane.b32.xlu0 %v737, 40
    %v1659 = vpop.permute.xlu0 %1658
    %1660 = vrot.lane.b32.xlu0 %v740, 40
    %v1661 = vpop.permute.xlu0 %1660
    %1662 = vrot.lane.b32.xlu0 %v742, 40
    %v1663 = vpop.permute.xlu0 %1662
    %1664 = vrot.lane.b32.xlu0 %v745, 40
    %v1665 = vpop.permute.xlu0 %1664
    %1666 = vrot.lane.b32.xlu0 %v747, 40
    %v1667 = vpop.permute.xlu0 %1666
    %1668 = vrot.lane.b32.xlu0 %v750, 40
    %v1669 = vpop.permute.xlu0 %1668
    %1670 = vrot.lane.b32.xlu0 %v752, 40
    %v1671 = vpop.permute.xlu0 %1670
    %1672 = vrot.lane.b32.xlu0 %v755, 40
    %v1673 = vpop.permute.xlu0 %1672
    %1674 = vrot.lane.b32.xlu0 %v757, 40
    %v1675 = vpop.permute.xlu0 %1674
    %1676 = vrot.lane.b32.xlu0 %v760, 40
    %v1677 = vpop.permute.xlu0 %1676
    %1678 = vrot.lane.b32.xlu0 %v762, 40
    %v1679 = vpop.permute.xlu0 %1678
    %1680 = vrot.lane.b32.xlu0 %v765, 40
    %v1681 = vpop.permute.xlu0 %1680
    %1682 = vrot.lane.b32.xlu0 %v767, 40
    %v1683 = vpop.permute.xlu0 %1682
    %1684 = vrot.lane.b32.xlu0 %v770, 40
    %v1685 = vpop.permute.xlu0 %1684
    %1686 = vrot.lane.b32.xlu0 %v772, 40
    %v1687 = vpop.permute.xlu0 %1686
    %1688 = vrot.lane.b32.xlu0 %v864, 40
    %v1689 = vpop.permute.xlu0 %1688
    %1690 = vrot.lane.b32.xlu0 %v866, 40
    %v1691 = vpop.permute.xlu0 %1690
    %1692 = vrot.lane.b32.xlu0 %v775, 40
    %v1693 = vpop.permute.xlu0 %1692
    %1694 = vrot.lane.b32.xlu0 %v777, 40
    %v1695 = vpop.permute.xlu0 %1694
    %1696 = vrot.lane.b32.xlu0 %v780, 40
    %v1697 = vpop.permute.xlu0 %1696
    %1698 = vrot.lane.b32.xlu0 %v782, 40
    %v1699 = vpop.permute.xlu0 %1698
    %1700 = vrot.lane.b32.xlu0 %v785, 40
    %v1701 = vpop.permute.xlu0 %1700
    %1702 = vrot.lane.b32.xlu0 %v787, 40
    %v1703 = vpop.permute.xlu0 %1702
    %1704 = vrot.lane.b32.xlu0 %v790, 40
    %v1705 = vpop.permute.xlu0 %1704
    %1706 = vrot.lane.b32.xlu0 %v792, 40
    %v1707 = vpop.permute.xlu0 %1706
    %1708 = vrot.lane.b32.xlu0 %v795, 40
    %v1709 = vpop.permute.xlu0 %1708
    %1710 = vrot.lane.b32.xlu0 %v797, 40
    %v1711 = vpop.permute.xlu0 %1710
    %1712 = vrot.lane.b32.xlu0 %v800, 40
    %v1713 = vpop.permute.xlu0 %1712
    %1714 = vrot.lane.b32.xlu0 %v802, 40
    %v1715 = vpop.permute.xlu0 %1714
    %1716 = vrot.lane.b32.xlu0 %v805, 40
    %v1717 = vpop.permute.xlu0 %1716
    %1718 = vrot.lane.b32.xlu0 %v807, 40
    %v1719 = vpop.permute.xlu0 %1718
    %1720 = vrot.lane.b32.xlu0 %v810, 40
    %v1721 = vpop.permute.xlu0 %1720
    %1722 = vrot.lane.b32.xlu0 %v812, 40
    %v1723 = vpop.permute.xlu0 %1722
    %1724 = vrot.lane.b32.xlu0 %v815, 40
    %v1725 = vpop.permute.xlu0 %1724
    %1726 = vrot.lane.b32.xlu0 %v817, 40
    %v1727 = vpop.permute.xlu0 %1726
    %1728 = vrot.lane.b32.xlu0 %v820, 40
    %v1729 = vpop.permute.xlu0 %1728
    %1730 = vrot.lane.b32.xlu0 %v822, 40
    %v1731 = vpop.permute.xlu0 %1730
    %1732 = vrot.lane.b32.xlu0 %v825, 40
    %v1733 = vpop.permute.xlu0 %1732
    %1734 = vrot.lane.b32.xlu0 %v827, 40
    %v1735 = vpop.permute.xlu0 %1734
    %1736 = vrot.lane.b32.xlu0 %v830, 40
    %v1737 = vpop.permute.xlu0 %1736
    %1738 = vrot.lane.b32.xlu0 %v832, 40
    %v1739 = vpop.permute.xlu0 %1738
    %1740 = vrot.lane.b32.xlu0 %v835, 40
    %v1741 = vpop.permute.xlu0 %1740
    %1742 = vrot.lane.b32.xlu0 %v837, 40
    %v1743 = vpop.permute.xlu0 %1742
    %1744 = vrot.lane.b32.xlu0 %v840, 40
    %v1745 = vpop.permute.xlu0 %1744
    %1746 = vrot.lane.b32.xlu0 %v842, 40
    %v1747 = vpop.permute.xlu0 %1746
    %1748 = vrot.lane.b32.xlu0 %v845, 40
    %v1749 = vpop.permute.xlu0 %1748
    %1750 = vrot.lane.b32.xlu0 %v847, 40
    %v1751 = vpop.permute.xlu0 %1750
    %1752 = vrot.lane.b32.xlu0 %v869, 40
    %v1753 = vpop.permute.xlu0 %1752
    %1754 = vrot.lane.b32.xlu0 %v871, 40
    %v1755 = vpop.permute.xlu0 %1754
    %1820 = vrot.lane.b32.xlu0 %v410, 48
    %v1821 = vpop.permute.xlu0 %1820
    %1822 = vrot.lane.b32.xlu0 %v221, 48
    %v1823 = vpop.permute.xlu0 %1822
    %1824 = vrot.lane.b32.xlu0 %v411, 48
    %v1825 = vpop.permute.xlu0 %1824
    %1826 = vrot.lane.b32.xlu0 %v224, 48
    %v1827 = vpop.permute.xlu0 %1826
    %1828 = vrot.lane.b32.xlu0 %v412, 48
    %v1829 = vpop.permute.xlu0 %1828
    %1830 = vrot.lane.b32.xlu0 %v227, 48
    %v1831 = vpop.permute.xlu0 %1830
    %1832 = vrot.lane.b32.xlu0 %v413, 48
    %v1833 = vpop.permute.xlu0 %1832
    %1834 = vrot.lane.b32.xlu0 %v230, 48
    %v1835 = vpop.permute.xlu0 %1834
    %1836 = vrot.lane.b32.xlu0 %v414, 48
    %v1837 = vpop.permute.xlu0 %1836
    %1838 = vrot.lane.b32.xlu0 %v233, 48
    %v1839 = vpop.permute.xlu0 %1838
    %1840 = vrot.lane.b32.xlu0 %v415, 48
    %v1841 = vpop.permute.xlu0 %1840
    %1842 = vrot.lane.b32.xlu0 %v236, 48
    %v1843 = vpop.permute.xlu0 %1842
    %1844 = vrot.lane.b32.xlu0 %v416, 48
    %v1845 = vpop.permute.xlu0 %1844
    %1846 = vrot.lane.b32.xlu0 %v239, 48
    %v1847 = vpop.permute.xlu0 %1846
    %1848 = vrot.lane.b32.xlu0 %v417, 48
    %v1849 = vpop.permute.xlu0 %1848
    %1850 = vrot.lane.b32.xlu0 %v242, 48
    %v1851 = vpop.permute.xlu0 %1850
    %1852 = vrot.lane.b32.xlu0 %v418, 48
    %v1853 = vpop.permute.xlu0 %1852
    %1854 = vrot.lane.b32.xlu0 %v245, 48
    %v1855 = vpop.permute.xlu0 %1854
    %1856 = vrot.lane.b32.xlu0 %v419, 48
    %v1857 = vpop.permute.xlu0 %1856
    %1858 = vrot.lane.b32.xlu0 %v248, 48
    %v1859 = vpop.permute.xlu0 %1858
    %1860 = vrot.lane.b32.xlu0 %v420, 48
    %v1861 = vpop.permute.xlu0 %1860
    %1862 = vrot.lane.b32.xlu0 %v251, 48
    %v1863 = vpop.permute.xlu0 %1862
    %1864 = vrot.lane.b32.xlu0 %v421, 48
    %v1865 = vpop.permute.xlu0 %1864
    %1866 = vrot.lane.b32.xlu0 %v254, 48
    %v1867 = vpop.permute.xlu0 %1866
    %1868 = vrot.lane.b32.xlu0 %v422, 48
    %v1869 = vpop.permute.xlu0 %1868
    %1870 = vrot.lane.b32.xlu0 %v257, 48
    %v1871 = vpop.permute.xlu0 %1870
    %1872 = vrot.lane.b32.xlu0 %v423, 48
    %v1873 = vpop.permute.xlu0 %1872
    %1874 = vrot.lane.b32.xlu0 %v260, 48
    %v1875 = vpop.permute.xlu0 %1874
    %1876 = vrot.lane.b32.xlu0 %v424, 48
    %v1877 = vpop.permute.xlu0 %1876
    %1878 = vrot.lane.b32.xlu0 %v263, 48
    %v1879 = vpop.permute.xlu0 %1878
    %1880 = vrot.lane.b32.xlu0 %v408, 48
    %v1881 = vpop.permute.xlu0 %1880
    %1882 = vrot.lane.b32.xlu0 %v215, 48
    %v1883 = vpop.permute.xlu0 %1882
    %1884 = vrot.lane.b32.xlu0 %v426, 48
    %v1885 = vpop.permute.xlu0 %1884
    %1886 = vrot.lane.b32.xlu0 %v269, 48
    %v1887 = vpop.permute.xlu0 %1886
    %1888 = vrot.lane.b32.xlu0 %v427, 48
    %v1889 = vpop.permute.xlu0 %1888
    %1890 = vrot.lane.b32.xlu0 %v272, 48
    %v1891 = vpop.permute.xlu0 %1890
    %1892 = vrot.lane.b32.xlu0 %v428, 48
    %v1893 = vpop.permute.xlu0 %1892
    %1894 = vrot.lane.b32.xlu0 %v275, 48
    %v1895 = vpop.permute.xlu0 %1894
    %1896 = vrot.lane.b32.xlu0 %v429, 48
    %v1897 = vpop.permute.xlu0 %1896
    %1898 = vrot.lane.b32.xlu0 %v278, 48
    %v1899 = vpop.permute.xlu0 %1898
    %1900 = vrot.lane.b32.xlu0 %v430, 48
    %v1901 = vpop.permute.xlu0 %1900
    %1902 = vrot.lane.b32.xlu0 %v281, 48
    %v1903 = vpop.permute.xlu0 %1902
    %1904 = vrot.lane.b32.xlu0 %v431, 48
    %v1905 = vpop.permute.xlu0 %1904
    %1906 = vrot.lane.b32.xlu0 %v284, 48
    %v1907 = vpop.permute.xlu0 %1906
    %1908 = vrot.lane.b32.xlu0 %v432, 48
    %v1909 = vpop.permute.xlu0 %1908
    %1910 = vrot.lane.b32.xlu0 %v287, 48
    %v1911 = vpop.permute.xlu0 %1910
    %1912 = vrot.lane.b32.xlu0 %v433, 48
    %v1913 = vpop.permute.xlu0 %1912
    %1914 = vrot.lane.b32.xlu0 %v290, 48
    %v1915 = vpop.permute.xlu0 %1914
    %1916 = vrot.lane.b32.xlu0 %v434, 48
    %v1917 = vpop.permute.xlu0 %1916
    %1918 = vrot.lane.b32.xlu0 %v293, 48
    %v1919 = vpop.permute.xlu0 %1918
    %1920 = vrot.lane.b32.xlu0 %v435, 48
    %v1921 = vpop.permute.xlu0 %1920
    %1922 = vrot.lane.b32.xlu0 %v296, 48
    %v1923 = vpop.permute.xlu0 %1922
    %1924 = vrot.lane.b32.xlu0 %v436, 48
    %v1925 = vpop.permute.xlu0 %1924
    %1926 = vrot.lane.b32.xlu0 %v299, 48
    %v1927 = vpop.permute.xlu0 %1926
    %1928 = vrot.lane.b32.xlu0 %v437, 48
    %v1929 = vpop.permute.xlu0 %1928
    %1930 = vrot.lane.b32.xlu0 %v302, 48
    %v1931 = vpop.permute.xlu0 %1930
    %1932 = vrot.lane.b32.xlu0 %v438, 48
    %v1933 = vpop.permute.xlu0 %1932
    %1934 = vrot.lane.b32.xlu0 %v305, 48
    %v1935 = vpop.permute.xlu0 %1934
    %1936 = vrot.lane.b32.xlu0 %v439, 48
    %v1937 = vpop.permute.xlu0 %1936
    %1938 = vrot.lane.b32.xlu0 %v308, 48
    %v1939 = vpop.permute.xlu0 %1938
    %1940 = vrot.lane.b32.xlu0 %v440, 48
    %v1941 = vpop.permute.xlu0 %1940
    %1942 = vrot.lane.b32.xlu0 %v311, 48
    %v1943 = vpop.permute.xlu0 %1942
    %2006 = vrot.lane.b32.xlu0 %v549, 56
    %v2007 = vpop.permute.xlu0 %2006
    %2008 = vrot.lane.b32.xlu0 %v551, 56
    %v2009 = vpop.permute.xlu0 %2008
    %2010 = vrot.lane.b32.xlu0 %v554, 56
    %v2011 = vpop.permute.xlu0 %2010
    %2012 = vrot.lane.b32.xlu0 %v556, 56
    %v2013 = vpop.permute.xlu0 %2012
    %2014 = vrot.lane.b32.xlu0 %v559, 56
    %v2015 = vpop.permute.xlu0 %2014
    %2016 = vrot.lane.b32.xlu0 %v561, 56
    %v2017 = vpop.permute.xlu0 %2016
    %2018 = vrot.lane.b32.xlu0 %v564, 56
    %v2019 = vpop.permute.xlu0 %2018
    %2020 = vrot.lane.b32.xlu0 %v566, 56
    %v2021 = vpop.permute.xlu0 %2020
    %2022 = vrot.lane.b32.xlu0 %v569, 56
    %v2023 = vpop.permute.xlu0 %2022
    %2024 = vrot.lane.b32.xlu0 %v571, 56
    %v2025 = vpop.permute.xlu0 %2024
    %2026 = vrot.lane.b32.xlu0 %v574, 56
    %v2027 = vpop.permute.xlu0 %2026
    %2028 = vrot.lane.b32.xlu0 %v576, 56
    %v2029 = vpop.permute.xlu0 %2028
    %2030 = vrot.lane.b32.xlu0 %v579, 56
    %v2031 = vpop.permute.xlu0 %2030
    %2032 = vrot.lane.b32.xlu0 %v581, 56
    %v2033 = vpop.permute.xlu0 %2032
    %2034 = vrot.lane.b32.xlu0 %v584, 56
    %v2035 = vpop.permute.xlu0 %2034
    %2036 = vrot.lane.b32.xlu0 %v586, 56
    %v2037 = vpop.permute.xlu0 %2036
    %2038 = vrot.lane.b32.xlu0 %v589, 56
    %v2039 = vpop.permute.xlu0 %2038
    %2040 = vrot.lane.b32.xlu0 %v591, 56
    %v2041 = vpop.permute.xlu0 %2040
    %2042 = vrot.lane.b32.xlu0 %v594, 56
    %v2043 = vpop.permute.xlu0 %2042
    %2044 = vrot.lane.b32.xlu0 %v596, 56
    %v2045 = vpop.permute.xlu0 %2044
    %2046 = vrot.lane.b32.xlu0 %v599, 56
    %v2047 = vpop.permute.xlu0 %2046
    %2048 = vrot.lane.b32.xlu0 %v601, 56
    %v2049 = vpop.permute.xlu0 %2048
    %2050 = vrot.lane.b32.xlu0 %v604, 56
    %v2051 = vpop.permute.xlu0 %2050
    %2052 = vrot.lane.b32.xlu0 %v606, 56
    %v2053 = vpop.permute.xlu0 %2052
    %2054 = vrot.lane.b32.xlu0 %v609, 56
    %v2055 = vpop.permute.xlu0 %2054
    %2056 = vrot.lane.b32.xlu0 %v611, 56
    %v2057 = vpop.permute.xlu0 %2056
    %2058 = vrot.lane.b32.xlu0 %v614, 56
    %v2059 = vpop.permute.xlu0 %2058
    %2060 = vrot.lane.b32.xlu0 %v616, 56
    %v2061 = vpop.permute.xlu0 %2060
    %2062 = vrot.lane.b32.xlu0 %v854, 56
    %v2063 = vpop.permute.xlu0 %2062
    %2064 = vrot.lane.b32.xlu0 %v856, 56
    %v2065 = vpop.permute.xlu0 %2064
    %2066 = vrot.lane.b32.xlu0 %v539, 56
    %v2067 = vpop.permute.xlu0 %2066
    %2068 = vrot.lane.b32.xlu0 %v541, 56
    %v2069 = vpop.permute.xlu0 %2068
    %2070 = vrot.lane.b32.xlu0 %v624, 56
    %v2071 = vpop.permute.xlu0 %2070
    %2072 = vrot.lane.b32.xlu0 %v626, 56
    %v2073 = vpop.permute.xlu0 %2072
    %2074 = vrot.lane.b32.xlu0 %v629, 56
    %v2075 = vpop.permute.xlu0 %2074
    %2076 = vrot.lane.b32.xlu0 %v631, 56
    %v2077 = vpop.permute.xlu0 %2076
    %2078 = vrot.lane.b32.xlu0 %v634, 56
    %v2079 = vpop.permute.xlu0 %2078
    %2080 = vrot.lane.b32.xlu0 %v636, 56
    %v2081 = vpop.permute.xlu0 %2080
    %2082 = vrot.lane.b32.xlu0 %v639, 56
    %v2083 = vpop.permute.xlu0 %2082
    %2084 = vrot.lane.b32.xlu0 %v641, 56
    %v2085 = vpop.permute.xlu0 %2084
    %2086 = vrot.lane.b32.xlu0 %v644, 56
    %v2087 = vpop.permute.xlu0 %2086
    %2088 = vrot.lane.b32.xlu0 %v646, 56
    %v2089 = vpop.permute.xlu0 %2088
    %2090 = vrot.lane.b32.xlu0 %v649, 56
    %v2091 = vpop.permute.xlu0 %2090
    %2092 = vrot.lane.b32.xlu0 %v651, 56
    %v2093 = vpop.permute.xlu0 %2092
    %2094 = vrot.lane.b32.xlu0 %v654, 56
    %v2095 = vpop.permute.xlu0 %2094
    %2096 = vrot.lane.b32.xlu0 %v656, 56
    %v2097 = vpop.permute.xlu0 %2096
    %2098 = vrot.lane.b32.xlu0 %v659, 56
    %v2099 = vpop.permute.xlu0 %2098
    %2100 = vrot.lane.b32.xlu0 %v661, 56
    %v2101 = vpop.permute.xlu0 %2100
    %2102 = vrot.lane.b32.xlu0 %v664, 56
    %v2103 = vpop.permute.xlu0 %2102
    %2104 = vrot.lane.b32.xlu0 %v666, 56
    %v2105 = vpop.permute.xlu0 %2104
    %2106 = vrot.lane.b32.xlu0 %v669, 56
    %v2107 = vpop.permute.xlu0 %2106
    %2108 = vrot.lane.b32.xlu0 %v671, 56
    %v2109 = vpop.permute.xlu0 %2108
    %2110 = vrot.lane.b32.xlu0 %v674, 56
    %v2111 = vpop.permute.xlu0 %2110
    %2112 = vrot.lane.b32.xlu0 %v676, 56
    %v2113 = vpop.permute.xlu0 %2112
    %2114 = vrot.lane.b32.xlu0 %v679, 56
    %v2115 = vpop.permute.xlu0 %2114
    %2116 = vrot.lane.b32.xlu0 %v681, 56
    %v2117 = vpop.permute.xlu0 %2116
    %2118 = vrot.lane.b32.xlu0 %v684, 56
    %v2119 = vpop.permute.xlu0 %2118
    %2120 = vrot.lane.b32.xlu0 %v686, 56
    %v2121 = vpop.permute.xlu0 %2120
    %2122 = vrot.lane.b32.xlu0 %v689, 56
    %v2123 = vpop.permute.xlu0 %2122
    %2124 = vrot.lane.b32.xlu0 %v691, 56
    %v2125 = vpop.permute.xlu0 %2124
    %2126 = vrot.lane.b32.xlu0 %v859, 56
    %v2127 = vpop.permute.xlu0 %2126
    %2128 = vrot.lane.b32.xlu0 %v861, 56
    %v2129 = vpop.permute.xlu0 %2128
    %2192 = vrot.lane.b32.xlu0 %v705, 64
    %v2193 = vpop.permute.xlu0 %2192
    %2194 = vrot.lane.b32.xlu0 %v707, 64
    %v2195 = vpop.permute.xlu0 %2194
    %2196 = vrot.lane.b32.xlu0 %v710, 64
    %v2197 = vpop.permute.xlu0 %2196
    %2198 = vrot.lane.b32.xlu0 %v712, 64
    %v2199 = vpop.permute.xlu0 %2198
    %2200 = vrot.lane.b32.xlu0 %v715, 64
    %v2201 = vpop.permute.xlu0 %2200
    %2202 = vrot.lane.b32.xlu0 %v717, 64
    %v2203 = vpop.permute.xlu0 %2202
    %2204 = vrot.lane.b32.xlu0 %v720, 64
    %v2205 = vpop.permute.xlu0 %2204
    %2206 = vrot.lane.b32.xlu0 %v722, 64
    %v2207 = vpop.permute.xlu0 %2206
    %2208 = vrot.lane.b32.xlu0 %v725, 64
    %v2209 = vpop.permute.xlu0 %2208
    %2210 = vrot.lane.b32.xlu0 %v727, 64
    %v2211 = vpop.permute.xlu0 %2210
    %2212 = vrot.lane.b32.xlu0 %v730, 64
    %v2213 = vpop.permute.xlu0 %2212
    %2214 = vrot.lane.b32.xlu0 %v732, 64
    %v2215 = vpop.permute.xlu0 %2214
    %2216 = vrot.lane.b32.xlu0 %v735, 64
    %v2217 = vpop.permute.xlu0 %2216
    %2218 = vrot.lane.b32.xlu0 %v737, 64
    %v2219 = vpop.permute.xlu0 %2218
    %2220 = vrot.lane.b32.xlu0 %v740, 64
    %v2221 = vpop.permute.xlu0 %2220
    %2222 = vrot.lane.b32.xlu0 %v742, 64
    %v2223 = vpop.permute.xlu0 %2222
    %2224 = vrot.lane.b32.xlu0 %v745, 64
    %v2225 = vpop.permute.xlu0 %2224
    %2226 = vrot.lane.b32.xlu0 %v747, 64
    %v2227 = vpop.permute.xlu0 %2226
    %2228 = vrot.lane.b32.xlu0 %v750, 64
    %v2229 = vpop.permute.xlu0 %2228
    %2230 = vrot.lane.b32.xlu0 %v752, 64
    %v2231 = vpop.permute.xlu0 %2230
    %2232 = vrot.lane.b32.xlu0 %v755, 64
    %v2233 = vpop.permute.xlu0 %2232
    %2234 = vrot.lane.b32.xlu0 %v757, 64
    %v2235 = vpop.permute.xlu0 %2234
    %2236 = vrot.lane.b32.xlu0 %v760, 64
    %v2237 = vpop.permute.xlu0 %2236
    %2238 = vrot.lane.b32.xlu0 %v762, 64
    %v2239 = vpop.permute.xlu0 %2238
    %2240 = vrot.lane.b32.xlu0 %v765, 64
    %v2241 = vpop.permute.xlu0 %2240
    %2242 = vrot.lane.b32.xlu0 %v767, 64
    %v2243 = vpop.permute.xlu0 %2242
    %2244 = vrot.lane.b32.xlu0 %v770, 64
    %v2245 = vpop.permute.xlu0 %2244
    %2246 = vrot.lane.b32.xlu0 %v772, 64
    %v2247 = vpop.permute.xlu0 %2246
    %2248 = vrot.lane.b32.xlu0 %v864, 64
    %v2249 = vpop.permute.xlu0 %2248
    %2250 = vrot.lane.b32.xlu0 %v866, 64
    %v2251 = vpop.permute.xlu0 %2250
    %2252 = vrot.lane.b32.xlu0 %v695, 64
    %v2253 = vpop.permute.xlu0 %2252
    %2254 = vrot.lane.b32.xlu0 %v697, 64
    %v2255 = vpop.permute.xlu0 %2254
    %2256 = vrot.lane.b32.xlu0 %v780, 64
    %v2257 = vpop.permute.xlu0 %2256
    %2258 = vrot.lane.b32.xlu0 %v782, 64
    %v2259 = vpop.permute.xlu0 %2258
    %2260 = vrot.lane.b32.xlu0 %v785, 64
    %v2261 = vpop.permute.xlu0 %2260
    %2262 = vrot.lane.b32.xlu0 %v787, 64
    %v2263 = vpop.permute.xlu0 %2262
    %2264 = vrot.lane.b32.xlu0 %v790, 64
    %v2265 = vpop.permute.xlu0 %2264
    %2266 = vrot.lane.b32.xlu0 %v792, 64
    %v2267 = vpop.permute.xlu0 %2266
    %2268 = vrot.lane.b32.xlu0 %v795, 64
    %v2269 = vpop.permute.xlu0 %2268
    %2270 = vrot.lane.b32.xlu0 %v797, 64
    %v2271 = vpop.permute.xlu0 %2270
    %2272 = vrot.lane.b32.xlu0 %v800, 64
    %v2273 = vpop.permute.xlu0 %2272
    %2274 = vrot.lane.b32.xlu0 %v802, 64
    %v2275 = vpop.permute.xlu0 %2274
    %2276 = vrot.lane.b32.xlu0 %v805, 64
    %v2277 = vpop.permute.xlu0 %2276
    %2278 = vrot.lane.b32.xlu0 %v807, 64
    %v2279 = vpop.permute.xlu0 %2278
    %2280 = vrot.lane.b32.xlu0 %v810, 64
    %v2281 = vpop.permute.xlu0 %2280
    %2282 = vrot.lane.b32.xlu0 %v812, 64
    %v2283 = vpop.permute.xlu0 %2282
    %2284 = vrot.lane.b32.xlu0 %v815, 64
    %v2285 = vpop.permute.xlu0 %2284
    %2286 = vrot.lane.b32.xlu0 %v817, 64
    %v2287 = vpop.permute.xlu0 %2286
    %2288 = vrot.lane.b32.xlu0 %v820, 64
    %v2289 = vpop.permute.xlu0 %2288
    %2290 = vrot.lane.b32.xlu0 %v822, 64
    %v2291 = vpop.permute.xlu0 %2290
    %2292 = vrot.lane.b32.xlu0 %v825, 64
    %v2293 = vpop.permute.xlu0 %2292
    %2294 = vrot.lane.b32.xlu0 %v827, 64
    %v2295 = vpop.permute.xlu0 %2294
    %2296 = vrot.lane.b32.xlu0 %v830, 64
    %v2297 = vpop.permute.xlu0 %2296
    %2298 = vrot.lane.b32.xlu0 %v832, 64
    %v2299 = vpop.permute.xlu0 %2298
    %2300 = vrot.lane.b32.xlu0 %v835, 64
    %v2301 = vpop.permute.xlu0 %2300
    %2302 = vrot.lane.b32.xlu0 %v837, 64
    %v2303 = vpop.permute.xlu0 %2302
    %2304 = vrot.lane.b32.xlu0 %v840, 64
    %v2305 = vpop.permute.xlu0 %2304
    %2306 = vrot.lane.b32.xlu0 %v842, 64
    %v2307 = vpop.permute.xlu0 %2306
    %2308 = vrot.lane.b32.xlu0 %v845, 64
    %v2309 = vpop.permute.xlu0 %2308
    %2310 = vrot.lane.b32.xlu0 %v847, 64
    %v2311 = vpop.permute.xlu0 %2310
    %2312 = vrot.lane.b32.xlu0 %v869, 64
    %v2313 = vpop.permute.xlu0 %2312
    %2314 = vrot.lane.b32.xlu0 %v871, 64
    %v2315 = vpop.permute.xlu0 %2314
    %vm2378 = vcmask 64512
    %v2379 = vsel %vm2378, %v408, %v873
    %v2380 = vsel %vm2378, %v215, %v875
    %v2381 = vsel %vm2378, %v409, %v877
    %v2382 = vsel %vm2378, %v218, %v879
    %v2383 = vsel %vm2378, %v410, %v881
    %v2384 = vsel %vm2378, %v221, %v883
    %v2385 = vsel %vm2378, %v411, %v885
    %v2386 = vsel %vm2378, %v224, %v887
    %v2387 = vsel %vm2378, %v412, %v889
    %v2388 = vsel %vm2378, %v227, %v891
    %v2389 = vsel %vm2378, %v413, %v893
    %v2390 = vsel %vm2378, %v230, %v895
    %v2391 = vsel %vm2378, %v414, %v897
    %v2392 = vsel %vm2378, %v233, %v899
    %v2393 = vsel %vm2378, %v415, %v901
    %v2394 = vsel %vm2378, %v236, %v903
    %v2395 = vsel %vm2378, %v416, %v905
    %v2396 = vsel %vm2378, %v239, %v907
    %v2397 = vsel %vm2378, %v417, %v909
    %v2398 = vsel %vm2378, %v242, %v911
    %v2399 = vsel %vm2378, %v418, %v913
    %v2400 = vsel %vm2378, %v245, %v915
    %v2401 = vsel %vm2378, %v419, %v917
    %v2402 = vsel %vm2378, %v248, %v919
    %v2403 = vsel %vm2378, %v420, %v921
    %v2404 = vsel %vm2378, %v251, %v923
    %v2405 = vsel %vm2378, %v421, %v925
    %v2406 = vsel %vm2378, %v254, %v927
    %v2407 = vsel %vm2378, %v422, %v929
    %v2408 = vsel %vm2378, %v257, %v931
    %v2409 = vsel %vm2378, %v423, %v933
    %v2410 = vsel %vm2378, %v260, %v935
    %v2411 = vsel %vm2378, %v425, %v937
    %v2412 = vsel %vm2378, %v266, %v939
    %v2413 = vsel %vm2378, %v426, %v941
    %v2414 = vsel %vm2378, %v269, %v943
    %v2415 = vsel %vm2378, %v427, %v945
    %v2416 = vsel %vm2378, %v272, %v947
    %v2417 = vsel %vm2378, %v428, %v949
    %v2418 = vsel %vm2378, %v275, %v951
    %v2419 = vsel %vm2378, %v429, %v953
    %v2420 = vsel %vm2378, %v278, %v955
    %v2421 = vsel %vm2378, %v430, %v957
    %v2422 = vsel %vm2378, %v281, %v959
    %v2423 = vsel %vm2378, %v431, %v961
    %v2424 = vsel %vm2378, %v284, %v963
    %v2425 = vsel %vm2378, %v432, %v965
    %v2426 = vsel %vm2378, %v287, %v967
    %v2427 = vsel %vm2378, %v433, %v969
    %v2428 = vsel %vm2378, %v290, %v971
    %v2429 = vsel %vm2378, %v434, %v973
    %v2430 = vsel %vm2378, %v293, %v975
    %v2431 = vsel %vm2378, %v435, %v977
    %v2432 = vsel %vm2378, %v296, %v979
    %v2433 = vsel %vm2378, %v436, %v981
    %v2434 = vsel %vm2378, %v299, %v983
    %v2435 = vsel %vm2378, %v437, %v985
    %v2436 = vsel %vm2378, %v302, %v987
    %v2437 = vsel %vm2378, %v438, %v989
    %v2438 = vsel %vm2378, %v305, %v991
    %v2439 = vsel %vm2378, %v439, %v993
    %v2440 = vsel %vm2378, %v308, %v995
    %vm2441 = vcmask 130048
    %v2442 = vsel %vm2441, %v2379, %v1059
    %v2443 = vsel %vm2441, %v2380, %v1061
    %v2444 = vsel %vm2441, %v2381, %v1063
    %v2445 = vsel %vm2441, %v2382, %v1065
    %v2446 = vsel %vm2441, %v2383, %v1067
    %v2447 = vsel %vm2441, %v2384, %v1069
    %v2448 = vsel %vm2441, %v2385, %v1071
    %v2449 = vsel %vm2441, %v2386, %v1073
    %v2450 = vsel %vm2441, %v2387, %v1075
    %v2451 = vsel %vm2441, %v2388, %v1077
    %v2452 = vsel %vm2441, %v2389, %v1079
    %v2453 = vsel %vm2441, %v2390, %v1081
    %v2454 = vsel %vm2441, %v2391, %v1083
    %v2455 = vsel %vm2441, %v2392, %v1085
    %v2456 = vsel %vm2441, %v2393, %v1087
    %v2457 = vsel %vm2441, %v2394, %v1089
    %v2458 = vsel %vm2441, %v2395, %v1091
    %v2459 = vsel %vm2441, %v2396, %v1093
    %v2460 = vsel %vm2441, %v2397, %v1095
    %v2461 = vsel %vm2441, %v2398, %v1097
    %v2462 = vsel %vm2441, %v2399, %v1099
    %v2463 = vsel %vm2441, %v2400, %v1101
    %v2464 = vsel %vm2441, %v2401, %v1103
    %v2465 = vsel %vm2441, %v2402, %v1105
    %v2466 = vsel %vm2441, %v2403, %v1107
    %v2467 = vsel %vm2441, %v2404, %v1109
    %v2468 = vsel %vm2441, %v2405, %v1111
    %v2469 = vsel %vm2441, %v2406, %v1113
    %v2470 = vsel %vm2441, %v2407, %v1115
    %v2471 = vsel %vm2441, %v2408, %v1117
    %v2472 = vsel %vm2441, %v2409, %v1119
    %v2473 = vsel %vm2441, %v2410, %v1121
    %v2474 = vsel %vm2441, %v2411, %v1123
    %v2475 = vsel %vm2441, %v2412, %v1125
    %v2476 = vsel %vm2441, %v2413, %v1127
    %v2477 = vsel %vm2441, %v2414, %v1129
    %v2478 = vsel %vm2441, %v2415, %v1131
    %v2479 = vsel %vm2441, %v2416, %v1133
    %v2480 = vsel %vm2441, %v2417, %v1135
    %v2481 = vsel %vm2441, %v2418, %v1137
    %v2482 = vsel %vm2441, %v2419, %v1139
    %v2483 = vsel %vm2441, %v2420, %v1141
    %v2484 = vsel %vm2441, %v2421, %v1143
    %v2485 = vsel %vm2441, %v2422, %v1145
    %v2486 = vsel %vm2441, %v2423, %v1147
    %v2487 = vsel %vm2441, %v2424, %v1149
    %v2488 = vsel %vm2441, %v2425, %v1151
    %v2489 = vsel %vm2441, %v2426, %v1153
    %v2490 = vsel %vm2441, %v2427, %v1155
    %v2491 = vsel %vm2441, %v2428, %v1157
    %v2492 = vsel %vm2441, %v2429, %v1159
    %v2493 = vsel %vm2441, %v2430, %v1161
    %v2494 = vsel %vm2441, %v2431, %v1163
    %v2495 = vsel %vm2441, %v2432, %v1165
    %v2496 = vsel %vm2441, %v2433, %v1167
    %v2497 = vsel %vm2441, %v2434, %v1169
    %v2498 = vsel %vm2441, %v2435, %v1171
    %v2499 = vsel %vm2441, %v2436, %v1173
    %v2500 = vsel %vm2441, %v2437, %v1175
    %v2501 = vsel %vm2441, %v2438, %v1177
    %v2502 = vsel %vm2441, %v2439, %v1179
    %v2503 = vsel %vm2441, %v2440, %v1181
    %vm2504 = vcmask 195584
    %v2505 = vsel %vm2504, %v2442, %v1245
    %v2506 = vsel %vm2504, %v2443, %v1247
    %v2507 = vsel %vm2504, %v2444, %v1249
    %v2508 = vsel %vm2504, %v2445, %v1251
    %v2509 = vsel %vm2504, %v2446, %v1253
    %v2510 = vsel %vm2504, %v2447, %v1255
    %v2511 = vsel %vm2504, %v2448, %v1257
    %v2512 = vsel %vm2504, %v2449, %v1259
    %v2513 = vsel %vm2504, %v2450, %v1261
    %v2514 = vsel %vm2504, %v2451, %v1263
    %v2515 = vsel %vm2504, %v2452, %v1265
    %v2516 = vsel %vm2504, %v2453, %v1267
    %v2517 = vsel %vm2504, %v2454, %v1269
    %v2518 = vsel %vm2504, %v2455, %v1271
    %v2519 = vsel %vm2504, %v2456, %v1273
    %v2520 = vsel %vm2504, %v2457, %v1275
    %v2521 = vsel %vm2504, %v2458, %v1277
    %v2522 = vsel %vm2504, %v2459, %v1279
    %v2523 = vsel %vm2504, %v2460, %v1281
    %v2524 = vsel %vm2504, %v2461, %v1283
    %v2525 = vsel %vm2504, %v2462, %v1285
    %v2526 = vsel %vm2504, %v2463, %v1287
    %v2527 = vsel %vm2504, %v2464, %v1289
    %v2528 = vsel %vm2504, %v2465, %v1291
    %v2529 = vsel %vm2504, %v2466, %v1293
    %v2530 = vsel %vm2504, %v2467, %v1295
    %v2531 = vsel %vm2504, %v2468, %v1297
    %v2532 = vsel %vm2504, %v2469, %v1299
    %v2533 = vsel %vm2504, %v2470, %v1301
    %v2534 = vsel %vm2504, %v2471, %v1303
    %v2535 = vsel %vm2504, %v2472, %v1305
    %v2536 = vsel %vm2504, %v2473, %v1307
    %v2537 = vsel %vm2504, %v2442, %v1309
    %v2538 = vsel %vm2504, %v2443, %v1311
    %v2539 = vsel %vm2504, %v2474, %v1313
    %v2540 = vsel %vm2504, %v2475, %v1315
    %v2541 = vsel %vm2504, %v2476, %v1317
    %v2542 = vsel %vm2504, %v2477, %v1319
    %v2543 = vsel %vm2504, %v2478, %v1321
    %v2544 = vsel %vm2504, %v2479, %v1323
    %v2545 = vsel %vm2504, %v2480, %v1325
    %v2546 = vsel %vm2504, %v2481, %v1327
    %v2547 = vsel %vm2504, %v2482, %v1329
    %v2548 = vsel %vm2504, %v2483, %v1331
    %v2549 = vsel %vm2504, %v2484, %v1333
    %v2550 = vsel %vm2504, %v2485, %v1335
    %v2551 = vsel %vm2504, %v2486, %v1337
    %v2552 = vsel %vm2504, %v2487, %v1339
    %v2553 = vsel %vm2504, %v2488, %v1341
    %v2554 = vsel %vm2504, %v2489, %v1343
    %v2555 = vsel %vm2504, %v2490, %v1345
    %v2556 = vsel %vm2504, %v2491, %v1347
    %v2557 = vsel %vm2504, %v2492, %v1349
    %v2558 = vsel %vm2504, %v2493, %v1351
    %v2559 = vsel %vm2504, %v2494, %v1353
    %v2560 = vsel %vm2504, %v2495, %v1355
    %v2561 = vsel %vm2504, %v2496, %v1357
    %v2562 = vsel %vm2504, %v2497, %v1359
    %v2563 = vsel %vm2504, %v2498, %v1361
    %v2564 = vsel %vm2504, %v2499, %v1363
    %v2565 = vsel %vm2504, %v2500, %v1365
    %v2566 = vsel %vm2504, %v2501, %v1367
    %v2567 = vsel %vm2504, %v2502, %v1369
    %v2568 = vsel %vm2504, %v2503, %v1371
    %vm2569 = vcmask 261120
    %v2570 = vsel %vm2569, %v2505, %v1437
    %v2571 = vsel %vm2569, %v2506, %v1439
    %v2572 = vsel %vm2569, %v2507, %v1441
    %v2573 = vsel %vm2569, %v2508, %v1443
    %v2574 = vsel %vm2569, %v2509, %v1445
    %v2575 = vsel %vm2569, %v2510, %v1447
    %v2576 = vsel %vm2569, %v2511, %v1449
    %v2577 = vsel %vm2569, %v2512, %v1451
    %v2578 = vsel %vm2569, %v2513, %v1453
    %v2579 = vsel %vm2569, %v2514, %v1455
    %v2580 = vsel %vm2569, %v2515, %v1457
    %v2581 = vsel %vm2569, %v2516, %v1459
    %v2582 = vsel %vm2569, %v2517, %v1461
    %v2583 = vsel %vm2569, %v2518, %v1463
    %v2584 = vsel %vm2569, %v2519, %v1465
    %v2585 = vsel %vm2569, %v2520, %v1467
    %v2586 = vsel %vm2569, %v2521, %v1469
    %v2587 = vsel %vm2569, %v2522, %v1471
    %v2588 = vsel %vm2569, %v2523, %v1473
    %v2589 = vsel %vm2569, %v2524, %v1475
    %v2590 = vsel %vm2569, %v2525, %v1477
    %v2591 = vsel %vm2569, %v2526, %v1479
    %v2592 = vsel %vm2569, %v2527, %v1481
    %v2593 = vsel %vm2569, %v2528, %v1483
    %v2594 = vsel %vm2569, %v2529, %v1485
    %v2595 = vsel %vm2569, %v2530, %v1487
    %v2596 = vsel %vm2569, %v2531, %v1489
    %v2597 = vsel %vm2569, %v2532, %v1491
    %v2598 = vsel %vm2569, %v2533, %v1493
    %v2599 = vsel %vm2569, %v2534, %v1495
    %v2600 = vsel %vm2569, %v2535, %v1497
    %v2601 = vsel %vm2569, %v2536, %v1499
    %v2602 = vsel %vm2569, %v2537, %v1501
    %v2603 = vsel %vm2569, %v2538, %v1503
    %v2604 = vsel %vm2569, %v2539, %v1505
    %v2605 = vsel %vm2569, %v2540, %v1507
    %v2606 = vsel %vm2569, %v2541, %v1509
    %v2607 = vsel %vm2569, %v2542, %v1511
    %v2608 = vsel %vm2569, %v2543, %v1513
    %v2609 = vsel %vm2569, %v2544, %v1515
    %v2610 = vsel %vm2569, %v2545, %v1517
    %v2611 = vsel %vm2569, %v2546, %v1519
    %v2612 = vsel %vm2569, %v2547, %v1521
    %v2613 = vsel %vm2569, %v2548, %v1523
    %v2614 = vsel %vm2569, %v2549, %v1525
    %v2615 = vsel %vm2569, %v2550, %v1527
    %v2616 = vsel %vm2569, %v2551, %v1529
    %v2617 = vsel %vm2569, %v2552, %v1531
    %v2618 = vsel %vm2569, %v2553, %v1533
    %v2619 = vsel %vm2569, %v2554, %v1535
    %v2620 = vsel %vm2569, %v2555, %v1537
    %v2621 = vsel %vm2569, %v2556, %v1539
    %v2622 = vsel %vm2569, %v2557, %v1541
    %v2623 = vsel %vm2569, %v2558, %v1543
    %v2624 = vsel %vm2569, %v2559, %v1545
    %v2625 = vsel %vm2569, %v2560, %v1547
    %v2626 = vsel %vm2569, %v2561, %v1549
    %v2627 = vsel %vm2569, %v2562, %v1551
    %v2628 = vsel %vm2569, %v2563, %v1553
    %v2629 = vsel %vm2569, %v2564, %v1555
    %v2630 = vsel %vm2569, %v2565, %v1557
    %v2631 = vsel %vm2569, %v2566, %v1559
    %v2632 = vsel %vm2569, %v2567, %v1561
    %v2633 = vsel %vm2569, %v2568, %v1563
    %vm2634 = vcmask 326656
    %v2635 = vsel %vm2634, %v2570, %v1629
    %v2636 = vsel %vm2634, %v2571, %v1631
    %v2637 = vsel %vm2634, %v2572, %v1633
    %v2638 = vsel %vm2634, %v2573, %v1635
    %v2639 = vsel %vm2634, %v2574, %v1637
    %v2640 = vsel %vm2634, %v2575, %v1639
    %v2641 = vsel %vm2634, %v2576, %v1641
    %v2642 = vsel %vm2634, %v2577, %v1643
    %v2643 = vsel %vm2634, %v2578, %v1645
    %v2644 = vsel %vm2634, %v2579, %v1647
    %v2645 = vsel %vm2634, %v2580, %v1649
    %v2646 = vsel %vm2634, %v2581, %v1651
    %v2647 = vsel %vm2634, %v2582, %v1653
    %v2648 = vsel %vm2634, %v2583, %v1655
    %v2649 = vsel %vm2634, %v2584, %v1657
    %v2650 = vsel %vm2634, %v2585, %v1659
    %v2651 = vsel %vm2634, %v2586, %v1661
    %v2652 = vsel %vm2634, %v2587, %v1663
    %v2653 = vsel %vm2634, %v2588, %v1665
    %v2654 = vsel %vm2634, %v2589, %v1667
    %v2655 = vsel %vm2634, %v2590, %v1669
    %v2656 = vsel %vm2634, %v2591, %v1671
    %v2657 = vsel %vm2634, %v2592, %v1673
    %v2658 = vsel %vm2634, %v2593, %v1675
    %v2659 = vsel %vm2634, %v2594, %v1677
    %v2660 = vsel %vm2634, %v2595, %v1679
    %v2661 = vsel %vm2634, %v2596, %v1681
    %v2662 = vsel %vm2634, %v2597, %v1683
    %v2663 = vsel %vm2634, %v2598, %v1685
    %v2664 = vsel %vm2634, %v2599, %v1687
    %v2665 = vsel %vm2634, %v2600, %v1689
    %v2666 = vsel %vm2634, %v2601, %v1691
    %v2667 = vsel %vm2634, %v2602, %v1693
    %v2668 = vsel %vm2634, %v2603, %v1695
    %v2669 = vsel %vm2634, %v2604, %v1697
    %v2670 = vsel %vm2634, %v2605, %v1699
    %v2671 = vsel %vm2634, %v2606, %v1701
    %v2672 = vsel %vm2634, %v2607, %v1703
    %v2673 = vsel %vm2634, %v2608, %v1705
    %v2674 = vsel %vm2634, %v2609, %v1707
    %v2675 = vsel %vm2634, %v2610, %v1709
    %v2676 = vsel %vm2634, %v2611, %v1711
    %v2677 = vsel %vm2634, %v2612, %v1713
    %v2678 = vsel %vm2634, %v2613, %v1715
    %v2679 = vsel %vm2634, %v2614, %v1717
    %v2680 = vsel %vm2634, %v2615, %v1719
    %v2681 = vsel %vm2634, %v2616, %v1721
    %v2682 = vsel %vm2634, %v2617, %v1723
    %v2683 = vsel %vm2634, %v2618, %v1725
    %v2684 = vsel %vm2634, %v2619, %v1727
    %v2685 = vsel %vm2634, %v2620, %v1729
    %v2686 = vsel %vm2634, %v2621, %v1731
    %v2687 = vsel %vm2634, %v2622, %v1733
    %v2688 = vsel %vm2634, %v2623, %v1735
    %v2689 = vsel %vm2634, %v2624, %v1737
    %v2690 = vsel %vm2634, %v2625, %v1739
    %v2691 = vsel %vm2634, %v2626, %v1741
    %v2692 = vsel %vm2634, %v2627, %v1743
    %v2693 = vsel %vm2634, %v2628, %v1745
    %v2694 = vsel %vm2634, %v2629, %v1747
    %v2695 = vsel %vm2634, %v2630, %v1749
    %v2696 = vsel %vm2634, %v2631, %v1751
    %v2697 = vsel %vm2634, %v2632, %v1753
    %v2698 = vsel %vm2634, %v2633, %v1755
    %vm2699 = vcmask 392192
    %v2700 = vsel %vm2699, %v2635, %v1821
    %v2701 = vsel %vm2699, %v2636, %v1823
    %v2702 = vsel %vm2699, %v2637, %v1825
    %v2703 = vsel %vm2699, %v2638, %v1827
    %v2704 = vsel %vm2699, %v2639, %v1829
    %v2705 = vsel %vm2699, %v2640, %v1831
    %v2706 = vsel %vm2699, %v2641, %v1833
    %v2707 = vsel %vm2699, %v2642, %v1835
    %v2708 = vsel %vm2699, %v2643, %v1837
    %v2709 = vsel %vm2699, %v2644, %v1839
    %v2710 = vsel %vm2699, %v2645, %v1841
    %v2711 = vsel %vm2699, %v2646, %v1843
    %v2712 = vsel %vm2699, %v2647, %v1845
    %v2713 = vsel %vm2699, %v2648, %v1847
    %v2714 = vsel %vm2699, %v2649, %v1849
    %v2715 = vsel %vm2699, %v2650, %v1851
    %v2716 = vsel %vm2699, %v2651, %v1853
    %v2717 = vsel %vm2699, %v2652, %v1855
    %v2718 = vsel %vm2699, %v2653, %v1857
    %v2719 = vsel %vm2699, %v2654, %v1859
    %v2720 = vsel %vm2699, %v2655, %v1861
    %v2721 = vsel %vm2699, %v2656, %v1863
    %v2722 = vsel %vm2699, %v2657, %v1865
    %v2723 = vsel %vm2699, %v2658, %v1867
    %v2724 = vsel %vm2699, %v2659, %v1869
    %v2725 = vsel %vm2699, %v2660, %v1871
    %v2726 = vsel %vm2699, %v2661, %v1873
    %v2727 = vsel %vm2699, %v2662, %v1875
    %v2728 = vsel %vm2699, %v2663, %v1877
    %v2729 = vsel %vm2699, %v2664, %v1879
    %v2730 = vsel %vm2699, %v2665, %v1881
    %v2731 = vsel %vm2699, %v2666, %v1883
    %v2732 = vsel %vm2699, %v2667, %v1885
    %v2733 = vsel %vm2699, %v2668, %v1887
    %v2734 = vsel %vm2699, %v2669, %v1889
    %v2735 = vsel %vm2699, %v2670, %v1891
    %v2736 = vsel %vm2699, %v2671, %v1893
    %v2737 = vsel %vm2699, %v2672, %v1895
    %v2738 = vsel %vm2699, %v2673, %v1897
    %v2739 = vsel %vm2699, %v2674, %v1899
    %v2740 = vsel %vm2699, %v2675, %v1901
    %v2741 = vsel %vm2699, %v2676, %v1903
    %v2742 = vsel %vm2699, %v2677, %v1905
    %v2743 = vsel %vm2699, %v2678, %v1907
    %v2744 = vsel %vm2699, %v2679, %v1909
    %v2745 = vsel %vm2699, %v2680, %v1911
    %v2746 = vsel %vm2699, %v2681, %v1913
    %v2747 = vsel %vm2699, %v2682, %v1915
    %v2748 = vsel %vm2699, %v2683, %v1917
    %v2749 = vsel %vm2699, %v2684, %v1919
    %v2750 = vsel %vm2699, %v2685, %v1921
    %v2751 = vsel %vm2699, %v2686, %v1923
    %v2752 = vsel %vm2699, %v2687, %v1925
    %v2753 = vsel %vm2699, %v2688, %v1927
    %v2754 = vsel %vm2699, %v2689, %v1929
    %v2755 = vsel %vm2699, %v2690, %v1931
    %v2756 = vsel %vm2699, %v2691, %v1933
    %v2757 = vsel %vm2699, %v2692, %v1935
    %v2758 = vsel %vm2699, %v2693, %v1937
    %v2759 = vsel %vm2699, %v2694, %v1939
    %v2760 = vsel %vm2699, %v2695, %v1941
    %v2761 = vsel %vm2699, %v2696, %v1943
    %v2762 = vsel %vm2699, %v2697, %v1881
    %v2763 = vsel %vm2699, %v2698, %v1883
    %vm2764 = vcmask 457728
    %v2765 = vsel %vm2764, %v2700, %v2007
    %v2766 = vsel %vm2764, %v2701, %v2009
    %v2767 = vsel %vm2764, %v2702, %v2011
    %v2768 = vsel %vm2764, %v2703, %v2013
    %v2769 = vsel %vm2764, %v2704, %v2015
    %v2770 = vsel %vm2764, %v2705, %v2017
    %v2771 = vsel %vm2764, %v2706, %v2019
    %v2772 = vsel %vm2764, %v2707, %v2021
    %v2773 = vsel %vm2764, %v2708, %v2023
    %v2774 = vsel %vm2764, %v2709, %v2025
    %v2775 = vsel %vm2764, %v2710, %v2027
    %v2776 = vsel %vm2764, %v2711, %v2029
    %v2777 = vsel %vm2764, %v2712, %v2031
    %v2778 = vsel %vm2764, %v2713, %v2033
    %v2779 = vsel %vm2764, %v2714, %v2035
    %v2780 = vsel %vm2764, %v2715, %v2037
    %v2781 = vsel %vm2764, %v2716, %v2039
    %v2782 = vsel %vm2764, %v2717, %v2041
    %v2783 = vsel %vm2764, %v2718, %v2043
    %v2784 = vsel %vm2764, %v2719, %v2045
    %v2785 = vsel %vm2764, %v2720, %v2047
    %v2786 = vsel %vm2764, %v2721, %v2049
    %v2787 = vsel %vm2764, %v2722, %v2051
    %v2788 = vsel %vm2764, %v2723, %v2053
    %v2789 = vsel %vm2764, %v2724, %v2055
    %v2790 = vsel %vm2764, %v2725, %v2057
    %v2791 = vsel %vm2764, %v2726, %v2059
    %v2792 = vsel %vm2764, %v2727, %v2061
    %v2793 = vsel %vm2764, %v2728, %v2063
    %v2794 = vsel %vm2764, %v2729, %v2065
    %v2795 = vsel %vm2764, %v2730, %v2067
    %v2796 = vsel %vm2764, %v2731, %v2069
    %v2797 = vsel %vm2764, %v2732, %v2071
    %v2798 = vsel %vm2764, %v2733, %v2073
    %v2799 = vsel %vm2764, %v2734, %v2075
    %v2800 = vsel %vm2764, %v2735, %v2077
    %v2801 = vsel %vm2764, %v2736, %v2079
    %v2802 = vsel %vm2764, %v2737, %v2081
    %v2803 = vsel %vm2764, %v2738, %v2083
    %v2804 = vsel %vm2764, %v2739, %v2085
    %v2805 = vsel %vm2764, %v2740, %v2087
    %v2806 = vsel %vm2764, %v2741, %v2089
    %v2807 = vsel %vm2764, %v2742, %v2091
    %v2808 = vsel %vm2764, %v2743, %v2093
    %v2809 = vsel %vm2764, %v2744, %v2095
    %v2810 = vsel %vm2764, %v2745, %v2097
    %v2811 = vsel %vm2764, %v2746, %v2099
    %v2812 = vsel %vm2764, %v2747, %v2101
    %v2813 = vsel %vm2764, %v2748, %v2103
    %v2814 = vsel %vm2764, %v2749, %v2105
    %v2815 = vsel %vm2764, %v2750, %v2107
    %v2816 = vsel %vm2764, %v2751, %v2109
    %v2817 = vsel %vm2764, %v2752, %v2111
    %v2818 = vsel %vm2764, %v2753, %v2113
    %v2819 = vsel %vm2764, %v2754, %v2115
    %v2820 = vsel %vm2764, %v2755, %v2117
    %v2821 = vsel %vm2764, %v2756, %v2119
    %v2822 = vsel %vm2764, %v2757, %v2121
    %v2823 = vsel %vm2764, %v2758, %v2123
    %v2824 = vsel %vm2764, %v2759, %v2125
    %v2825 = vsel %vm2764, %v2760, %v2127
    %v2826 = vsel %vm2764, %v2761, %v2129
    %v2827 = vsel %vm2764, %v2762, %v2067
    %v2828 = vsel %vm2764, %v2763, %v2069
    %vm2829 = vcmask 523264
    %v2830 = vsel %vm2829, %v2765, %v2193
    %v2831 = vsel %vm2829, %v2766, %v2195
    %v2832 = vsel %vm2829, %v2767, %v2197
    %v2833 = vsel %vm2829, %v2768, %v2199
    %v2834 = vsel %vm2829, %v2769, %v2201
    %v2835 = vsel %vm2829, %v2770, %v2203
    %v2836 = vsel %vm2829, %v2771, %v2205
    %v2837 = vsel %vm2829, %v2772, %v2207
    %v2838 = vsel %vm2829, %v2773, %v2209
    %v2839 = vsel %vm2829, %v2774, %v2211
    %v2840 = vsel %vm2829, %v2775, %v2213
    %v2841 = vsel %vm2829, %v2776, %v2215
    %v2842 = vsel %vm2829, %v2777, %v2217
    %v2843 = vsel %vm2829, %v2778, %v2219
    %v2844 = vsel %vm2829, %v2779, %v2221
    %v2845 = vsel %vm2829, %v2780, %v2223
    %v2846 = vsel %vm2829, %v2781, %v2225
    %v2847 = vsel %vm2829, %v2782, %v2227
    %v2848 = vsel %vm2829, %v2783, %v2229
    %v2849 = vsel %vm2829, %v2784, %v2231
    %v2850 = vsel %vm2829, %v2785, %v2233
    %v2851 = vsel %vm2829, %v2786, %v2235
    %v2852 = vsel %vm2829, %v2787, %v2237
    %v2853 = vsel %vm2829, %v2788, %v2239
    %v2854 = vsel %vm2829, %v2789, %v2241
    %v2855 = vsel %vm2829, %v2790, %v2243
    %v2856 = vsel %vm2829, %v2791, %v2245
    %v2857 = vsel %vm2829, %v2792, %v2247
    %v2858 = vsel %vm2829, %v2793, %v2249
    %v2859 = vsel %vm2829, %v2794, %v2251
    %v2860 = vsel %vm2829, %v2795, %v2253
    %v2861 = vsel %vm2829, %v2796, %v2255
    %v2862 = vsel %vm2829, %v2797, %v2257
    %v2863 = vsel %vm2829, %v2798, %v2259
    %v2864 = vsel %vm2829, %v2799, %v2261
    %v2865 = vsel %vm2829, %v2800, %v2263
    %v2866 = vsel %vm2829, %v2801, %v2265
    %v2867 = vsel %vm2829, %v2802, %v2267
    %v2868 = vsel %vm2829, %v2803, %v2269
    %v2869 = vsel %vm2829, %v2804, %v2271
    %v2870 = vsel %vm2829, %v2805, %v2273
    %v2871 = vsel %vm2829, %v2806, %v2275
    %v2872 = vsel %vm2829, %v2807, %v2277
    %v2873 = vsel %vm2829, %v2808, %v2279
    %v2874 = vsel %vm2829, %v2809, %v2281
    %v2875 = vsel %vm2829, %v2810, %v2283
    %v2876 = vsel %vm2829, %v2811, %v2285
    %v2877 = vsel %vm2829, %v2812, %v2287
    %v2878 = vsel %vm2829, %v2813, %v2289
    %v2879 = vsel %vm2829, %v2814, %v2291
    %v2880 = vsel %vm2829, %v2815, %v2293
    %v2881 = vsel %vm2829, %v2816, %v2295
    %v2882 = vsel %vm2829, %v2817, %v2297
    %v2883 = vsel %vm2829, %v2818, %v2299
    %v2884 = vsel %vm2829, %v2819, %v2301
    %v2885 = vsel %vm2829, %v2820, %v2303
    %v2886 = vsel %vm2829, %v2821, %v2305
    %v2887 = vsel %vm2829, %v2822, %v2307
    %v2888 = vsel %vm2829, %v2823, %v2309
    %v2889 = vsel %vm2829, %v2824, %v2311
    %v2890 = vsel %vm2829, %v2825, %v2313
    %v2891 = vsel %vm2829, %v2826, %v2315
    %v2892 = vsel %vm2829, %v2827, %v2253
    %v2893 = vsel %vm2829, %v2828, %v2255
    %v2894 = vpack.c.bf16 %v2831, %v2830
    %v2895 = vpack.c.bf16 %v2833, %v2832
    %v2896 = vpack.c.bf16 %v2835, %v2834
    %v2897 = vpack.c.bf16 %v2837, %v2836
    %v2898 = vpack.c.bf16 %v2839, %v2838
    %v2899 = vpack.c.bf16 %v2841, %v2840
    %v2900 = vpack.c.bf16 %v2843, %v2842
    %v2901 = vpack.c.bf16 %v2845, %v2844
    %v2902 = vpack.c.bf16 %v2847, %v2846
    %v2903 = vpack.c.bf16 %v2849, %v2848
    %v2904 = vpack.c.bf16 %v2851, %v2850
    %v2905 = vpack.c.bf16 %v2853, %v2852
    %v2906 = vpack.c.bf16 %v2855, %v2854
    %v2907 = vpack.c.bf16 %v2857, %v2856
    %v2908 = vpack.c.bf16 %v2859, %v2858
    %v2909 = vpack.c.bf16 %v2861, %v2860
    %v2910 = vpack.c.bf16 %v2863, %v2862
    %v2911 = vpack.c.bf16 %v2865, %v2864
    %v2912 = vpack.c.bf16 %v2867, %v2866
    %v2913 = vpack.c.bf16 %v2869, %v2868
    %v2914 = vpack.c.bf16 %v2871, %v2870
    %v2915 = vpack.c.bf16 %v2873, %v2872
    %v2916 = vpack.c.bf16 %v2875, %v2874
    %v2917 = vpack.c.bf16 %v2877, %v2876
    %v2918 = vpack.c.bf16 %v2879, %v2878
    %v2919 = vpack.c.bf16 %v2881, %v2880
    %v2920 = vpack.c.bf16 %v2883, %v2882
    %v2921 = vpack.c.bf16 %v2885, %v2884
    %v2922 = vpack.c.bf16 %v2887, %v2886
    %v2923 = vpack.c.bf16 %v2889, %v2888
    %v2924 = vpack.c.bf16 %v2891, %v2890
    %v2925 = vpack.c.bf16 %v2893, %v2892
    %v2926 = vpack.c.bf16 %v140, %v139
    %v2927 = vpack.c.bf16 %v142, %v141
    %v2928 = vpack.c.bf16 %v144, %v143
    %v2929 = vpack.c.bf16 %v146, %v145
    %v2930 = vpack.c.bf16 %v147, %v147
    %v2931 = vld [vmem:[#allocation2] sm:$0x1]
    %v2933 = vlaneseq
    %v2934 = vshrl.u32 %v2933, 7
    %v2935 = vsub.s32 0, %v2934
    %v2936 = vrot.slane %v2931, %v2935
    %vm2938 = vcmask 588800
    %v2940 = vsel %vm2938, %v2894, 0
    %v2943 = vsel %vm2938, %v2895, 0
    %v2946 = vsel %vm2938, %v2896, 0
    %v2949 = vsel %vm2938, %v2897, 0
    %v2952 = vsel %vm2938, %v2898, 0
    %v2955 = vsel %vm2938, %v2899, 0
    %v2958 = vsel %vm2938, %v2900, 0
    %v2961 = vsel %vm2938, %v2901, 0
    %v2964 = vsel %vm2938, %v2902, 0
    %v2967 = vsel %vm2938, %v2903, 0
    %v2970 = vsel %vm2938, %v2904, 0
    %v2973 = vsel %vm2938, %v2905, 0
    %v2976 = vsel %vm2938, %v2906, 0
    %v2979 = vsel %vm2938, %v2907, 0
    %v2982 = vsel %vm2938, %v2908, 0
    %v2985 = vsel %vm2938, %v2909, 0
    %v2988 = vsel %vm2938, %v2910, 0
    %v2991 = vsel %vm2938, %v2911, 0
    %v2994 = vsel %vm2938, %v2912, 0
    %v2997 = vsel %vm2938, %v2913, 0
    %v3000 = vsel %vm2938, %v2914, 0
    %v3003 = vsel %vm2938, %v2915, 0
    %v3006 = vsel %vm2938, %v2916, 0
    %v3009 = vsel %vm2938, %v2917, 0
    %v3012 = vsel %vm2938, %v2918, 0
    %v3015 = vsel %vm2938, %v2919, 0
    %v3018 = vsel %vm2938, %v2920, 0
    %v3021 = vsel %vm2938, %v2921, 0
    %v3024 = vsel %vm2938, %v2922, 0
    %v3027 = vsel %vm2938, %v2923, 0
    %v3030 = vsel %vm2938, %v2924, 0
    %v3033 = vsel %vm2938, %v2925, 0
    %vm3035 = vcmask 1043456
    %v3037 = vsel %vm3035, %v2930, 0
    %3039 = vmatprep.subr.bf16.mxu0 0
    %3040 = vmatpush1.bf16.msra.mxu0 %v2926
    %3041 = vmatprep.subr.bf16.mxu0 0
    %3042 = vmatpush1.bf16.msra.mxu0 %v2927
    %3043 = vmatprep.subr.bf16.mxu0 0
    %3044 = vmatpush1.bf16.msra.mxu0 %v2928
    %3045 = vmatprep.subr.bf16.mxu0 0
    %3046 = vmatpush1.bf16.msra.mxu0 %v2929
    %3047 = vmatprep.subr.bf16.mxu0 0
    %3048 = vmatpush1.bf16.msra.mxu0 %v3037
    %3049 = vmatprep.subr.bf16.mxu0 0
    %3050 = vmatpush1.bf16.msra.mxu0 0
    %3051 = vmatprep.subr.bf16.mxu0 0
    %3052 = vmatpush1.bf16.msra.mxu0 0
    %3053 = vmatprep.subr.bf16.mxu0 0
    %3054 = vmatpush1.bf16.msra.mxu0 0
    %3055 = vmatprep.subr.bf16.mxu0 0
    %3056 = vmatpush1.bf16.msra.mxu0 0
    %3057 = vmatprep.subr.bf16.mxu0 0
    %3058 = vmatpush1.bf16.msra.mxu0 0
    %3059 = vmatprep.subr.bf16.mxu0 0
    %3060 = vmatpush1.bf16.msra.mxu0 0
    %3061 = vmatprep.subr.bf16.mxu0 0
    %3062 = vmatpush1.bf16.msra.mxu0 0
    %3063 = vmatprep.subr.bf16.mxu0 0
    %3064 = vmatpush1.bf16.msra.mxu0 0
    %3065 = vmatprep.subr.bf16.mxu0 0
    %3066 = vmatpush1.bf16.msra.mxu0 0
    %3067 = vmatprep.subr.bf16.mxu0 0
    %3068 = vmatpush1.bf16.msra.mxu0 0
    %3069 = vmatprep.subr.bf16.mxu0 0
    %3070 = vmatpush1.bf16.msra.mxu0 0
    %3071 = vmatprep.mubr.bf16.mxu0 0
    %3072 = vmatmul.mubr.bf16.gmra.mrb[0].mxu0 %v2940
    %v3073 = vpop.f32.mrb[0].mxu0
    %v3074 = vadd.f32 %v2936, %v3073
    %v3075 = vpop.f32.mrb[0].mxu0
    %v3076 = vpop.f32.mrb[0].mxu0
    %v3077 = vadd.f32 %v2936, %v3076
    %v3078 = vpop.f32.mrb[0].mxu0
    %3079 = vmatprep.mubr.bf16.mxu0 0
    %3080 = vmatmul.mubr.bf16.gmra.mrb[0].mxu0 %v2943
    %v3081 = vpop.f32.mrb[0].mxu0
    %v3082 = vadd.f32 %v2936, %v3081
    %v3083 = vpop.f32.mrb[0].mxu0
    %v3084 = vpop.f32.mrb[0].mxu0
    %v3085 = vadd.f32 %v2936, %v3084
    %v3086 = vpop.f32.mrb[0].mxu0
    %3087 = vmatprep.mubr.bf16.mxu0 0
    %3088 = vmatmul.mubr.bf16.gmra.mrb[0].mxu0 %v2946
    %v3089 = vpop.f32.mrb[0].mxu0
    %v3090 = vadd.f32 %v2936, %v3089
    %v3091 = vpop.f32.mrb[0].mxu0
    %v3092 = vpop.f32.mrb[0].mxu0
    %v3093 = vadd.f32 %v2936, %v3092
    %v3094 = vpop.f32.mrb[0].mxu0
    %3095 = vmatprep.mubr.bf16.mxu0 0
    %3096 = vmatmul.mubr.bf16.gmra.mrb[0].mxu0 %v2949
    %v3097 = vpop.f32.mrb[0].mxu0
    %v3098 = vadd.f32 %v2936, %v3097
    %v3099 = vpop.f32.mrb[0].mxu0
    %v3100 = vpop.f32.mrb[0].mxu0
    %v3101 = vadd.f32 %v2936, %v3100
    %v3102 = vpop.f32.mrb[0].mxu0
    %3103 = vmatprep.mubr.bf16.mxu0 0
    %3104 = vmatmul.mubr.bf16.gmra.mrb[0].mxu0 %v2952
    %v3105 = vpop.f32.mrb[0].mxu0
    %v3106 = vadd.f32 %v2936, %v3105
    %v3107 = vpop.f32.mrb[0].mxu0
    %v3108 = vpop.f32.mrb[0].mxu0
    %v3109 = vadd.f32 %v2936, %v3108
    %v3110 = vpop.f32.mrb[0].mxu0
    %3111 = vmatprep.mubr.bf16.mxu0 0
    %3112 = vmatmul.mubr.bf16.gmra.mrb[0].mxu0 %v2955
    %v3113 = vpop.f32.mrb[0].mxu0
    %v3114 = vadd.f32 %v2936, %v3113
    %v3115 = vpop.f32.mrb[0].mxu0
    %v3116 = vpop.f32.mrb[0].mxu0
    %v3117 = vadd.f32 %v2936, %v3116
    %v3118 = vpop.f32.mrb[0].mxu0
    %3119 = vmatprep.mubr.bf16.mxu0 0
    %3120 = vmatmul.mubr.bf16.gmra.mrb[0].mxu0 %v2958
    %v3121 = vpop.f32.mrb[0].mxu0
    %v3122 = vadd.f32 %v2936, %v3121
    %v3123 = vpop.f32.mrb[0].mxu0
    %v3124 = vpop.f32.mrb[0].mxu0
    %v3125 = vadd.f32 %v2936, %v3124
    %v3126 = vpop.f32.mrb[0].mxu0
    %3127 = vmatprep.mubr.bf16.mxu0 0
    %3128 = vmatmul.mubr.bf16.gmra.mrb[0].mxu0 %v2961
    %v3129 = vpop.f32.mrb[0].mxu0
    %v3130 = vadd.f32 %v2936, %v3129
    %v3131 = vpop.f32.mrb[0].mxu0
    %v3132 = vpop.f32.mrb[0].mxu0
    %v3133 = vadd.f32 %v2936, %v3132
    %v3134 = vpop.f32.mrb[0].mxu0
    %3135 = vmatprep.mubr.bf16.mxu0 0
    %3136 = vmatmul.mubr.bf16.gmra.mrb[0].mxu0 %v2964
    %v3137 = vpop.f32.mrb[0].mxu0
    %v3138 = vadd.f32 %v2936, %v3137
    %v3139 = vpop.f32.mrb[0].mxu0
    %v3140 = vpop.f32.mrb[0].mxu0
    %v3141 = vadd.f32 %v2936, %v3140
    %v3142 = vpop.f32.mrb[0].mxu0
    %3143 = vmatprep.mubr.bf16.mxu0 0
    %3144 = vmatmul.mubr.bf16.gmra.mrb[0].mxu0 %v2967
    %v3145 = vpop.f32.mrb[0].mxu0
    %v3146 = vadd.f32 %v2936, %v3145
    %v3147 = vpop.f32.mrb[0].mxu0
    %v3148 = vpop.f32.mrb[0].mxu0
    %v3149 = vadd.f32 %v2936, %v3148
    %v3150 = vpop.f32.mrb[0].mxu0
    %3151 = vmatprep.mubr.bf16.mxu0 0
    %3152 = vmatmul.mubr.bf16.gmra.mrb[0].mxu0 %v2970
    %v3153 = vpop.f32.mrb[0].mxu0
    %v3154 = vadd.f32 %v2936, %v3153
    %v3155 = vpop.f32.mrb[0].mxu0
    %v3156 = vpop.f32.mrb[0].mxu0
    %v3157 = vadd.f32 %v2936, %v3156
    %v3158 = vpop.f32.mrb[0].mxu0
    %3159 = vmatprep.mubr.bf16.mxu0 0
    %3160 = vmatmul.mubr.bf16.gmra.mrb[0].mxu0 %v2973
    %v3161 = vpop.f32.mrb[0].mxu0
    %v3162 = vadd.f32 %v2936, %v3161
    %v3163 = vpop.f32.mrb[0].mxu0
    %v3164 = vpop.f32.mrb[0].mxu0
    %v3165 = vadd.f32 %v2936, %v3164
    %v3166 = vpop.f32.mrb[0].mxu0
    %3167 = vmatprep.mubr.bf16.mxu0 0
    %3168 = vmatmul.mubr.bf16.gmra.mrb[0].mxu0 %v2976
    %v3169 = vpop.f32.mrb[0].mxu0
    %v3170 = vadd.f32 %v2936, %v3169
    %v3171 = vpop.f32.mrb[0].mxu0
    %v3172 = vpop.f32.mrb[0].mxu0
    %v3173 = vadd.f32 %v2936, %v3172
    %v3174 = vpop.f32.mrb[0].mxu0
    %3175 = vmatprep.mubr.bf16.mxu0 0
    %3176 = vmatmul.mubr.bf16.gmra.mrb[0].mxu0 %v2979
    %v3177 = vpop.f32.mrb[0].mxu0
    %v3178 = vadd.f32 %v2936, %v3177
    %v3179 = vpop.f32.mrb[0].mxu0
    %v3180 = vpop.f32.mrb[0].mxu0
    %v3181 = vadd.f32 %v2936, %v3180
    %v3182 = vpop.f32.mrb[0].mxu0
    %3183 = vmatprep.mubr.bf16.mxu0 0
    %3184 = vmatmul.mubr.bf16.gmra.mrb[0].mxu0 %v2982
    %v3185 = vpop.f32.mrb[0].mxu0
    %v3186 = vadd.f32 %v2936, %v3185
    %v3187 = vpop.f32.mrb[0].mxu0
    %v3188 = vpop.f32.mrb[0].mxu0
    %v3189 = vadd.f32 %v2936, %v3188
    %v3190 = vpop.f32.mrb[0].mxu0
    %3191 = vmatprep.mubr.bf16.mxu0 0
    %3192 = vmatmul.mubr.bf16.gmra.mrb[0].mxu0 %v2985
    %v3193 = vpop.f32.mrb[0].mxu0
    %v3194 = vadd.f32 %v2936, %v3193
    %v3195 = vpop.f32.mrb[0].mxu0
    %v3196 = vpop.f32.mrb[0].mxu0
    %v3197 = vadd.f32 %v2936, %v3196
    %v3198 = vpop.f32.mrb[0].mxu0
    %3199 = vmatprep.mubr.bf16.mxu0 0
    %3200 = vmatmul.mubr.bf16.gmra.mrb[0].mxu0 %v2988
    %v3201 = vpop.f32.mrb[0].mxu0
    %v3202 = vadd.f32 %v2936, %v3201
    %v3203 = vpop.f32.mrb[0].mxu0
    %v3204 = vpop.f32.mrb[0].mxu0
    %v3205 = vadd.f32 %v2936, %v3204
    %v3206 = vpop.f32.mrb[0].mxu0
    %3207 = vmatprep.mubr.bf16.mxu0 0
    %3208 = vmatmul.mubr.bf16.gmra.mrb[0].mxu0 %v2991
    %v3209 = vpop.f32.mrb[0].mxu0
    %v3210 = vadd.f32 %v2936, %v3209
    %v3211 = vpop.f32.mrb[0].mxu0
    %v3212 = vpop.f32.mrb[0].mxu0
    %v3213 = vadd.f32 %v2936, %v3212
    %v3214 = vpop.f32.mrb[0].mxu0
    %3215 = vmatprep.mubr.bf16.mxu0 0
    %3216 = vmatmul.mubr.bf16.gmra.mrb[0].mxu0 %v2994
    %v3217 = vpop.f32.mrb[0].mxu0
    %v3218 = vadd.f32 %v2936, %v3217
    %v3219 = vpop.f32.mrb[0].mxu0
    %v3220 = vpop.f32.mrb[0].mxu0
    %v3221 = vadd.f32 %v2936, %v3220
    %v3222 = vpop.f32.mrb[0].mxu0
    %3223 = vmatprep.mubr.bf16.mxu0 0
    %3224 = vmatmul.mubr.bf16.gmra.mrb[0].mxu0 %v2997
    %v3225 = vpop.f32.mrb[0].mxu0
    %v3226 = vadd.f32 %v2936, %v3225
    %v3227 = vpop.f32.mrb[0].mxu0
    %v3228 = vpop.f32.mrb[0].mxu0
    %v3229 = vadd.f32 %v2936, %v3228
    %v3230 = vpop.f32.mrb[0].mxu0
    %3231 = vmatprep.mubr.bf16.mxu0 0
    %3232 = vmatmul.mubr.bf16.gmra.mrb[0].mxu0 %v3000
    %v3233 = vpop.f32.mrb[0].mxu0
    %v3234 = vadd.f32 %v2936, %v3233
    %v3235 = vpop.f32.mrb[0].mxu0
    %v3236 = vpop.f32.mrb[0].mxu0
    %v3237 = vadd.f32 %v2936, %v3236
    %v3238 = vpop.f32.mrb[0].mxu0
    %3239 = vmatprep.mubr.bf16.mxu0 0
    %3240 = vmatmul.mubr.bf16.gmra.mrb[0].mxu0 %v3003
    %v3241 = vpop.f32.mrb[0].mxu0
    %v3242 = vadd.f32 %v2936, %v3241
    %v3243 = vpop.f32.mrb[0].mxu0
    %v3244 = vpop.f32.mrb[0].mxu0
    %v3245 = vadd.f32 %v2936, %v3244
    %v3246 = vpop.f32.mrb[0].mxu0
    %3247 = vmatprep.mubr.bf16.mxu0 0
    %3248 = vmatmul.mubr.bf16.gmra.mrb[0].mxu0 %v3006
    %v3249 = vpop.f32.mrb[0].mxu0
    %v3250 = vadd.f32 %v2936, %v3249
    %v3251 = vpop.f32.mrb[0].mxu0
    %v3252 = vpop.f32.mrb[0].mxu0
    %v3253 = vadd.f32 %v2936, %v3252
    %v3254 = vpop.f32.mrb[0].mxu0
    %3255 = vmatprep.mubr.bf16.mxu0 0
    %3256 = vmatmul.mubr.bf16.gmra.mrb[0].mxu0 %v3009
    %v3257 = vpop.f32.mrb[0].mxu0
    %v3258 = vadd.f32 %v2936, %v3257
    %v3259 = vpop.f32.mrb[0].mxu0
    %v3260 = vpop.f32.mrb[0].mxu0
    %v3261 = vadd.f32 %v2936, %v3260
    %v3262 = vpop.f32.mrb[0].mxu0
    %3263 = vmatprep.mubr.bf16.mxu0 0
    %3264 = vmatmul.mubr.bf16.gmra.mrb[0].mxu0 %v3012
    %v3265 = vpop.f32.mrb[0].mxu0
    %v3266 = vadd.f32 %v2936, %v3265
    %v3267 = vpop.f32.mrb[0].mxu0
    %v3268 = vpop.f32.mrb[0].mxu0
    %v3269 = vadd.f32 %v2936, %v3268
    %v3270 = vpop.f32.mrb[0].mxu0
    %3271 = vmatprep.mubr.bf16.mxu0 0
    %3272 = vmatmul.mubr.bf16.gmra.mrb[0].mxu0 %v3015
    %v3273 = vpop.f32.mrb[0].mxu0
    %v3274 = vadd.f32 %v2936, %v3273
    %v3275 = vpop.f32.mrb[0].mxu0
    %v3276 = vpop.f32.mrb[0].mxu0
    %v3277 = vadd.f32 %v2936, %v3276
    %v3278 = vpop.f32.mrb[0].mxu0
    %3279 = vmatprep.mubr.bf16.mxu0 0
    %3280 = vmatmul.mubr.bf16.gmra.mrb[0].mxu0 %v3018
    %v3281 = vpop.f32.mrb[0].mxu0
    %v3282 = vadd.f32 %v2936, %v3281
    %v3283 = vpop.f32.mrb[0].mxu0
    %v3284 = vpop.f32.mrb[0].mxu0
    %v3285 = vadd.f32 %v2936, %v3284
    %v3286 = vpop.f32.mrb[0].mxu0
    %3287 = vmatprep.mubr.bf16.mxu0 0
    %3288 = vmatmul.mubr.bf16.gmra.mrb[0].mxu0 %v3021
    %v3289 = vpop.f32.mrb[0].mxu0
    %v3290 = vadd.f32 %v2936, %v3289
    %v3291 = vpop.f32.mrb[0].mxu0
    %v3292 = vpop.f32.mrb[0].mxu0
    %v3293 = vadd.f32 %v2936, %v3292
    %v3294 = vpop.f32.mrb[0].mxu0
    %3295 = vmatprep.mubr.bf16.mxu0 0
    %3296 = vmatmul.mubr.bf16.gmra.mrb[0].mxu0 %v3024
    %v3297 = vpop.f32.mrb[0].mxu0
    %v3298 = vadd.f32 %v2936, %v3297
    %v3299 = vpop.f32.mrb[0].mxu0
    %v3300 = vpop.f32.mrb[0].mxu0
    %v3301 = vadd.f32 %v2936, %v3300
    %v3302 = vpop.f32.mrb[0].mxu0
    %3303 = vmatprep.mubr.bf16.mxu0 0
    %3304 = vmatmul.mubr.bf16.gmra.mrb[0].mxu0 %v3027
    %v3305 = vpop.f32.mrb[0].mxu0
    %v3306 = vadd.f32 %v2936, %v3305
    %v3307 = vpop.f32.mrb[0].mxu0
    %v3308 = vpop.f32.mrb[0].mxu0
    %v3309 = vadd.f32 %v2936, %v3308
    %v3310 = vpop.f32.mrb[0].mxu0
    %3311 = vmatprep.mubr.bf16.mxu0 0
    %3312 = vmatmul.mubr.bf16.gmra.mrb[0].mxu0 %v3030
    %v3313 = vpop.f32.mrb[0].mxu0
    %v3314 = vadd.f32 %v2936, %v3313
    %v3315 = vpop.f32.mrb[0].mxu0
    %v3316 = vpop.f32.mrb[0].mxu0
    %v3317 = vadd.f32 %v2936, %v3316
    %v3318 = vpop.f32.mrb[0].mxu0
    %3319 = vmatprep.mubr.bf16.mxu0 0
    %3320 = vmatmul.mubr.bf16.gmra.mrb[0].mxu0 %v3033
    %v3321 = vpop.f32.mrb[0].mxu0
    %v3322 = vadd.f32 %v2936, %v3321
    %v3323 = vpop.f32.mrb[0].mxu0
    %v3324 = vpop.f32.mrb[0].mxu0
    %v3325 = vadd.f32 %v2936, %v3324
    %v3326 = vpop.f32.mrb[0].mxu0
    %3327 = vdwg.mxu0
    %v3328 = vtanh.pop %v3074
    %v3329 = vtanh.pop %v3077
    %v3330 = vtanh.pop %v3082
    %v3331 = vtanh.pop %v3085
    %v3332 = vtanh.pop %v3090
    %v3333 = vtanh.pop %v3093
    %v3334 = vtanh.pop %v3098
    %v3335 = vtanh.pop %v3101
    %v3336 = vtanh.pop %v3106
    %v3337 = vtanh.pop %v3109
    %v3338 = vtanh.pop %v3114
    %v3339 = vtanh.pop %v3117
    %v3340 = vtanh.pop %v3122
    %v3341 = vtanh.pop %v3125
    %v3342 = vtanh.pop %v3130
    %v3343 = vtanh.pop %v3133
    %v3344 = vtanh.pop %v3138
    %v3345 = vtanh.pop %v3141
    %v3346 = vtanh.pop %v3146
    %v3347 = vtanh.pop %v3149
    %v3348 = vtanh.pop %v3154
    %v3349 = vtanh.pop %v3157
    %v3350 = vtanh.pop %v3162
    %v3351 = vtanh.pop %v3165
    %v3352 = vtanh.pop %v3170
    %v3353 = vtanh.pop %v3173
    %v3354 = vtanh.pop %v3178
    %v3355 = vtanh.pop %v3181
    %v3356 = vtanh.pop %v3186
    %v3357 = vtanh.pop %v3189
    %v3358 = vtanh.pop %v3194
    %v3359 = vtanh.pop %v3197
    %v3360 = vtanh.pop %v3202
    %v3361 = vtanh.pop %v3205
    %v3362 = vtanh.pop %v3210
    %v3363 = vtanh.pop %v3213
    %v3364 = vtanh.pop %v3218
    %v3365 = vtanh.pop %v3221
    %v3366 = vtanh.pop %v3226
    %v3367 = vtanh.pop %v3229
    %v3368 = vtanh.pop %v3234
    %v3369 = vtanh.pop %v3237
    %v3370 = vtanh.pop %v3242
    %v3371 = vtanh.pop %v3245
    %v3372 = vtanh.pop %v3250
    %v3373 = vtanh.pop %v3253
    %v3374 = vtanh.pop %v3258
    %v3375 = vtanh.pop %v3261
    %v3376 = vtanh.pop %v3266
    %v3377 = vtanh.pop %v3269
    %v3378 = vtanh.pop %v3274
    %v3379 = vtanh.pop %v3277
    %v3380 = vtanh.pop %v3282
    %v3381 = vtanh.pop %v3285
    %v3382 = vtanh.pop %v3290
    %v3383 = vtanh.pop %v3293
    %v3384 = vtanh.pop %v3298
    %v3385 = vtanh.pop %v3301
    %v3386 = vtanh.pop %v3306
    %v3387 = vtanh.pop %v3309
    %v3388 = vtanh.pop %v3314
    %v3389 = vtanh.pop %v3317
    %v3390 = vtanh.pop %v3322
    %v3391 = vtanh.pop %v3325
    %vm3392 = vcmask 7168
    %v3393 = vsel %vm3392, %v3328, 0.0
    %v3394 = vsel %vm3392, %v3329, 0.0
    %v3395 = vadd.f32 %v3393, %v3394
    %v3396 = vsel %vm3392, %v3330, 0.0
    %v3397 = vadd.f32 %v3395, %v3396
    %v3398 = vsel %vm3392, %v3331, 0.0
    %v3399 = vadd.f32 %v3397, %v3398
    %v3400 = vsel %vm3392, %v3332, 0.0
    %v3401 = vadd.f32 %v3399, %v3400
    %v3402 = vsel %vm3392, %v3333, 0.0
    %v3403 = vadd.f32 %v3401, %v3402
    %v3404 = vsel %vm3392, %v3334, 0.0
    %v3405 = vadd.f32 %v3403, %v3404
    %v3406 = vsel %vm3392, %v3335, 0.0
    %v3407 = vadd.f32 %v3405, %v3406
    %v3408 = vsel %vm3392, %v3336, 0.0
    %v3409 = vadd.f32 %v3407, %v3408
    %v3410 = vsel %vm3392, %v3337, 0.0
    %v3411 = vadd.f32 %v3409, %v3410
    %v3412 = vsel %vm3392, %v3338, 0.0
    %v3413 = vadd.f32 %v3411, %v3412
    %v3414 = vsel %vm3392, %v3339, 0.0
    %v3415 = vadd.f32 %v3413, %v3414
    %v3416 = vsel %vm3392, %v3340, 0.0
    %v3417 = vadd.f32 %v3415, %v3416
    %v3418 = vsel %vm3392, %v3341, 0.0
    %v3419 = vadd.f32 %v3417, %v3418
    %v3420 = vsel %vm3392, %v3342, 0.0
    %v3421 = vadd.f32 %v3419, %v3420
    %v3422 = vsel %vm3392, %v3343, 0.0
    %v3423 = vadd.f32 %v3421, %v3422
    %v3424 = vsel %vm3392, %v3344, 0.0
    %v3425 = vadd.f32 %v3423, %v3424
    %v3426 = vsel %vm3392, %v3345, 0.0
    %v3427 = vadd.f32 %v3425, %v3426
    %v3428 = vsel %vm3392, %v3346, 0.0
    %v3429 = vadd.f32 %v3427, %v3428
    %v3430 = vsel %vm3392, %v3347, 0.0
    %v3431 = vadd.f32 %v3429, %v3430
    %v3432 = vsel %vm3392, %v3348, 0.0
    %v3433 = vadd.f32 %v3431, %v3432
    %v3434 = vsel %vm3392, %v3349, 0.0
    %v3435 = vadd.f32 %v3433, %v3434
    %v3436 = vsel %vm3392, %v3350, 0.0
    %v3437 = vadd.f32 %v3435, %v3436
    %v3438 = vsel %vm3392, %v3351, 0.0
    %v3439 = vadd.f32 %v3437, %v3438
    %v3440 = vsel %vm3392, %v3352, 0.0
    %v3441 = vadd.f32 %v3439, %v3440
    %v3442 = vsel %vm3392, %v3353, 0.0
    %v3443 = vadd.f32 %v3441, %v3442
    %v3444 = vsel %vm3392, %v3354, 0.0
    %v3445 = vadd.f32 %v3443, %v3444
    %v3446 = vsel %vm3392, %v3355, 0.0
    %v3447 = vadd.f32 %v3445, %v3446
    %v3448 = vsel %vm3392, %v3356, 0.0
    %v3449 = vadd.f32 %v3447, %v3448
    %v3450 = vsel %vm3392, %v3357, 0.0
    %v3451 = vadd.f32 %v3449, %v3450
    %v3452 = vsel %vm3392, %v3358, 0.0
    %v3453 = vadd.f32 %v3451, %v3452
    %v3454 = vsel %vm3392, %v3359, 0.0
    %v3455 = vadd.f32 %v3453, %v3454
    %v3456 = vsel %vm3392, %v3360, 0.0
    %v3457 = vadd.f32 %v3455, %v3456
    %v3458 = vsel %vm3392, %v3361, 0.0
    %v3459 = vadd.f32 %v3457, %v3458
    %v3460 = vsel %vm3392, %v3362, 0.0
    %v3461 = vadd.f32 %v3459, %v3460
    %v3462 = vsel %vm3392, %v3363, 0.0
    %v3463 = vadd.f32 %v3461, %v3462
    %v3464 = vsel %vm3392, %v3364, 0.0
    %v3465 = vadd.f32 %v3463, %v3464
    %v3466 = vsel %vm3392, %v3365, 0.0
    %v3467 = vadd.f32 %v3465, %v3466
    %v3468 = vsel %vm3392, %v3366, 0.0
    %v3469 = vadd.f32 %v3467, %v3468
    %v3470 = vsel %vm3392, %v3367, 0.0
    %v3471 = vadd.f32 %v3469, %v3470
    %v3472 = vsel %vm3392, %v3368, 0.0
    %v3473 = vadd.f32 %v3471, %v3472
    %v3474 = vsel %vm3392, %v3369, 0.0
    %v3475 = vadd.f32 %v3473, %v3474
    %v3476 = vsel %vm3392, %v3370, 0.0
    %v3477 = vadd.f32 %v3475, %v3476
    %v3478 = vsel %vm3392, %v3371, 0.0
    %v3479 = vadd.f32 %v3477, %v3478
    %v3480 = vsel %vm3392, %v3372, 0.0
    %v3481 = vadd.f32 %v3479, %v3480
    %v3482 = vsel %vm3392, %v3373, 0.0
    %v3483 = vadd.f32 %v3481, %v3482
    %v3484 = vsel %vm3392, %v3374, 0.0
    %v3485 = vadd.f32 %v3483, %v3484
    %v3486 = vsel %vm3392, %v3375, 0.0
    %v3487 = vadd.f32 %v3485, %v3486
    %v3488 = vsel %vm3392, %v3376, 0.0
    %v3489 = vadd.f32 %v3487, %v3488
    %v3490 = vsel %vm3392, %v3377, 0.0
    %v3491 = vadd.f32 %v3489, %v3490
    %v3492 = vsel %vm3392, %v3378, 0.0
    %v3493 = vadd.f32 %v3491, %v3492
    %v3494 = vsel %vm3392, %v3379, 0.0
    %v3495 = vadd.f32 %v3493, %v3494
    %v3496 = vsel %vm3392, %v3380, 0.0
    %v3497 = vadd.f32 %v3495, %v3496
    %v3498 = vsel %vm3392, %v3381, 0.0
    %v3499 = vadd.f32 %v3497, %v3498
    %v3500 = vsel %vm3392, %v3382, 0.0
    %v3501 = vadd.f32 %v3499, %v3500
    %v3502 = vsel %vm3392, %v3383, 0.0
    %v3503 = vadd.f32 %v3501, %v3502
    %v3504 = vsel %vm3392, %v3384, 0.0
    %v3505 = vadd.f32 %v3503, %v3504
    %v3506 = vsel %vm3392, %v3385, 0.0
    %v3507 = vadd.f32 %v3505, %v3506
    %v3508 = vsel %vm3392, %v3386, 0.0
    %v3509 = vadd.f32 %v3507, %v3508
    %v3510 = vsel %vm3392, %v3387, 0.0
    %v3511 = vadd.f32 %v3509, %v3510
    %v3512 = vsel %vm3392, %v3388, 0.0
    %v3513 = vadd.f32 %v3511, %v3512
    %v3514 = vsel %vm3392, %v3389, 0.0
    %v3515 = vadd.f32 %v3513, %v3514
    %v3516 = vsel %vm3392, %v3390, 0.0
    %v3517 = vadd.f32 %v3515, %v3516
    %v3518 = vsel %vm3392, %v3391, 0.0
    %v3519 = vadd.f32 %v3517, %v3518
    %v3520 = vrot.slane %v3519, 4
    %v3521 = vadd.f32 %v3519, %v3520
    %v3522 = vrot.slane %v3521, 2
    %v3523 = vadd.f32 %v3521, %v3522
    %v3524 = vrot.slane %v3523, 1
    %v3525 = vadd.f32 %v3523, %v3524
    %v3526 = vrcp.pop 512.0
    %v3527 = vmul.f32 %v3525, %v3526
    %v3528 = vsub.f32 %v3328, %v3527
    %v3529 = vsub.f32 %v3329, %v3527
    %v3530 = vsub.f32 %v3330, %v3527
    %v3531 = vsub.f32 %v3331, %v3527
    %v3532 = vsub.f32 %v3332, %v3527
    %v3533 = vsub.f32 %v3333, %v3527
    %v3534 = vsub.f32 %v3334, %v3527
    %v3535 = vsub.f32 %v3335, %v3527
    %v3536 = vsub.f32 %v3336, %v3527
    %v3537 = vsub.f32 %v3337, %v3527
    %v3538 = vsub.f32 %v3338, %v3527
    %v3539 = vsub.f32 %v3339, %v3527
    %v3540 = vsub.f32 %v3340, %v3527
    %v3541 = vsub.f32 %v3341, %v3527
    %v3542 = vsub.f32 %v3342, %v3527
    %v3543 = vsub.f32 %v3343, %v3527
    %v3544 = vsub.f32 %v3344, %v3527
    %v3545 = vsub.f32 %v3345, %v3527
    %v3546 = vsub.f32 %v3346, %v3527
    %v3547 = vsub.f32 %v3347, %v3527
    %v3548 = vsub.f32 %v3348, %v3527
    %v3549 = vsub.f32 %v3349, %v3527
    %v3550 = vsub.f32 %v3350, %v3527
    %v3551 = vsub.f32 %v3351, %v3527
    %v3552 = vsub.f32 %v3352, %v3527
    %v3553 = vsub.f32 %v3353, %v3527
    %v3554 = vsub.f32 %v3354, %v3527
    %v3555 = vsub.f32 %v3355, %v3527
    %v3556 = vsub.f32 %v3356, %v3527
    %v3557 = vsub.f32 %v3357, %v3527
    %v3558 = vsub.f32 %v3358, %v3527
    %v3559 = vsub.f32 %v3359, %v3527
    %v3560 = vsub.f32 %v3360, %v3527
    %v3561 = vsub.f32 %v3361, %v3527
    %v3562 = vsub.f32 %v3362, %v3527
    %v3563 = vsub.f32 %v3363, %v3527
    %v3564 = vsub.f32 %v3364, %v3527
    %v3565 = vsub.f32 %v3365, %v3527
    %v3566 = vsub.f32 %v3366, %v3527
    %v3567 = vsub.f32 %v3367, %v3527
    %v3568 = vsub.f32 %v3368, %v3527
    %v3569 = vsub.f32 %v3369, %v3527
    %v3570 = vsub.f32 %v3370, %v3527
    %v3571 = vsub.f32 %v3371, %v3527
    %v3572 = vsub.f32 %v3372, %v3527
    %v3573 = vsub.f32 %v3373, %v3527
    %v3574 = vsub.f32 %v3374, %v3527
    %v3575 = vsub.f32 %v3375, %v3527
    %v3576 = vsub.f32 %v3376, %v3527
    %v3577 = vsub.f32 %v3377, %v3527
    %v3578 = vsub.f32 %v3378, %v3527
    %v3579 = vsub.f32 %v3379, %v3527
    %v3580 = vsub.f32 %v3380, %v3527
    %v3581 = vsub.f32 %v3381, %v3527
    %v3582 = vsub.f32 %v3382, %v3527
    %v3583 = vsub.f32 %v3383, %v3527
    %v3584 = vsub.f32 %v3384, %v3527
    %v3585 = vsub.f32 %v3385, %v3527
    %v3586 = vsub.f32 %v3386, %v3527
    %v3587 = vsub.f32 %v3387, %v3527
    %v3588 = vsub.f32 %v3388, %v3527
    %v3589 = vsub.f32 %v3389, %v3527
    %v3590 = vsub.f32 %v3390, %v3527
    %v3591 = vsub.f32 %v3391, %v3527
    %v3592 = vmul.f32 %v3528, %v3528
    %v3593 = vmul.f32 %v3529, %v3529
    %v3594 = vmul.f32 %v3530, %v3530
    %v3595 = vmul.f32 %v3531, %v3531
    %v3596 = vmul.f32 %v3532, %v3532
    %v3597 = vmul.f32 %v3533, %v3533
    %v3598 = vmul.f32 %v3534, %v3534
    %v3599 = vmul.f32 %v3535, %v3535
    %v3600 = vmul.f32 %v3536, %v3536
    %v3601 = vmul.f32 %v3537, %v3537
    %v3602 = vmul.f32 %v3538, %v3538
    %v3603 = vmul.f32 %v3539, %v3539
    %v3604 = vmul.f32 %v3540, %v3540
    %v3605 = vmul.f32 %v3541, %v3541
    %v3606 = vmul.f32 %v3542, %v3542
    %v3607 = vmul.f32 %v3543, %v3543
    %v3608 = vmul.f32 %v3544, %v3544
    %v3609 = vmul.f32 %v3545, %v3545
    %v3610 = vmul.f32 %v3546, %v3546
    %v3611 = vmul.f32 %v3547, %v3547
    %v3612 = vmul.f32 %v3548, %v3548
    %v3613 = vmul.f32 %v3549, %v3549
    %v3614 = vmul.f32 %v3550, %v3550
    %v3615 = vmul.f32 %v3551, %v3551
    %v3616 = vmul.f32 %v3552, %v3552
    %v3617 = vmul.f32 %v3553, %v3553
    %v3618 = vmul.f32 %v3554, %v3554
    %v3619 = vmul.f32 %v3555, %v3555
    %v3620 = vmul.f32 %v3556, %v3556
    %v3621 = vmul.f32 %v3557, %v3557
    %v3622 = vmul.f32 %v3558, %v3558
    %v3623 = vmul.f32 %v3559, %v3559
    %v3624 = vmul.f32 %v3560, %v3560
    %v3625 = vmul.f32 %v3561, %v3561
    %v3626 = vmul.f32 %v3562, %v3562
    %v3627 = vmul.f32 %v3563, %v3563
    %v3628 = vmul.f32 %v3564, %v3564
    %v3629 = vmul.f32 %v3565, %v3565
    %v3630 = vmul.f32 %v3566, %v3566
    %v3631 = vmul.f32 %v3567, %v3567
    %v3632 = vmul.f32 %v3568, %v3568
    %v3633 = vmul.f32 %v3569, %v3569
    %v3634 = vmul.f32 %v3570, %v3570
    %v3635 = vmul.f32 %v3571, %v3571
    %v3636 = vmul.f32 %v3572, %v3572
    %v3637 = vmul.f32 %v3573, %v3573
    %v3638 = vmul.f32 %v3574, %v3574
    %v3639 = vmul.f32 %v3575, %v3575
    %v3640 = vmul.f32 %v3576, %v3576
    %v3641 = vmul.f32 %v3577, %v3577
    %v3642 = vmul.f32 %v3578, %v3578
    %v3643 = vmul.f32 %v3579, %v3579
    %v3644 = vmul.f32 %v3580, %v3580
    %v3645 = vmul.f32 %v3581, %v3581
    %v3646 = vmul.f32 %v3582, %v3582
    %v3647 = vmul.f32 %v3583, %v3583
    %v3648 = vmul.f32 %v3584, %v3584
    %v3649 = vmul.f32 %v3585, %v3585
    %v3650 = vmul.f32 %v3586, %v3586
    %v3651 = vmul.f32 %v3587, %v3587
    %v3652 = vmul.f32 %v3588, %v3588
    %v3653 = vmul.f32 %v3589, %v3589
    %v3654 = vmul.f32 %v3590, %v3590
    %v3655 = vmul.f32 %v3591, %v3591
    %v3656 = vsel %vm3392, %v3592, 0.0
    %v3657 = vsel %vm3392, %v3593, 0.0
    %v3658 = vadd.f32 %v3656, %v3657
    %v3659 = vsel %vm3392, %v3594, 0.0
    %v3660 = vadd.f32 %v3658, %v3659
    %v3661 = vsel %vm3392, %v3595, 0.0
    %v3662 = vadd.f32 %v3660, %v3661
    %v3663 = vsel %vm3392, %v3596, 0.0
    %v3664 = vadd.f32 %v3662, %v3663
    %v3665 = vsel %vm3392, %v3597, 0.0
    %v3666 = vadd.f32 %v3664, %v3665
    %v3667 = vsel %vm3392, %v3598, 0.0
    %v3668 = vadd.f32 %v3666, %v3667
    %v3669 = vsel %vm3392, %v3599, 0.0
    %v3670 = vadd.f32 %v3668, %v3669
    %v3671 = vsel %vm3392, %v3600, 0.0
    %v3672 = vadd.f32 %v3670, %v3671
    %v3673 = vsel %vm3392, %v3601, 0.0
    %v3674 = vadd.f32 %v3672, %v3673
    %v3675 = vsel %vm3392, %v3602, 0.0
    %v3676 = vadd.f32 %v3674, %v3675
    %v3677 = vsel %vm3392, %v3603, 0.0
    %v3678 = vadd.f32 %v3676, %v3677
    %v3679 = vsel %vm3392, %v3604, 0.0
    %v3680 = vadd.f32 %v3678, %v3679
    %v3681 = vsel %vm3392, %v3605, 0.0
    %v3682 = vadd.f32 %v3680, %v3681
    %v3683 = vsel %vm3392, %v3606, 0.0
    %v3684 = vadd.f32 %v3682, %v3683
    %v3685 = vsel %vm3392, %v3607, 0.0
    %v3686 = vadd.f32 %v3684, %v3685
    %v3687 = vsel %vm3392, %v3608, 0.0
    %v3688 = vadd.f32 %v3686, %v3687
    %v3689 = vsel %vm3392, %v3609, 0.0
    %v3690 = vadd.f32 %v3688, %v3689
    %v3691 = vsel %vm3392, %v3610, 0.0
    %v3692 = vadd.f32 %v3690, %v3691
    %v3693 = vsel %vm3392, %v3611, 0.0
    %v3694 = vadd.f32 %v3692, %v3693
    %v3695 = vsel %vm3392, %v3612, 0.0
    %v3696 = vadd.f32 %v3694, %v3695
    %v3697 = vsel %vm3392, %v3613, 0.0
    %v3698 = vadd.f32 %v3696, %v3697
    %v3699 = vsel %vm3392, %v3614, 0.0
    %v3700 = vadd.f32 %v3698, %v3699
    %v3701 = vsel %vm3392, %v3615, 0.0
    %v3702 = vadd.f32 %v3700, %v3701
    %v3703 = vsel %vm3392, %v3616, 0.0
    %v3704 = vadd.f32 %v3702, %v3703
    %v3705 = vsel %vm3392, %v3617, 0.0
    %v3706 = vadd.f32 %v3704, %v3705
    %v3707 = vsel %vm3392, %v3618, 0.0
    %v3708 = vadd.f32 %v3706, %v3707
    %v3709 = vsel %vm3392, %v3619, 0.0
    %v3710 = vadd.f32 %v3708, %v3709
    %v3711 = vsel %vm3392, %v3620, 0.0
    %v3712 = vadd.f32 %v3710, %v3711
    %v3713 = vsel %vm3392, %v3621, 0.0
    %v3714 = vadd.f32 %v3712, %v3713
    %v3715 = vsel %vm3392, %v3622, 0.0
    %v3716 = vadd.f32 %v3714, %v3715
    %v3717 = vsel %vm3392, %v3623, 0.0
    %v3718 = vadd.f32 %v3716, %v3717
    %v3719 = vsel %vm3392, %v3624, 0.0
    %v3720 = vadd.f32 %v3718, %v3719
    %v3721 = vsel %vm3392, %v3625, 0.0
    %v3722 = vadd.f32 %v3720, %v3721
    %v3723 = vsel %vm3392, %v3626, 0.0
    %v3724 = vadd.f32 %v3722, %v3723
    %v3725 = vsel %vm3392, %v3627, 0.0
    %v3726 = vadd.f32 %v3724, %v3725
    %v3727 = vsel %vm3392, %v3628, 0.0
    %v3728 = vadd.f32 %v3726, %v3727
    %v3729 = vsel %vm3392, %v3629, 0.0
    %v3730 = vadd.f32 %v3728, %v3729
    %v3731 = vsel %vm3392, %v3630, 0.0
    %v3732 = vadd.f32 %v3730, %v3731
    %v3733 = vsel %vm3392, %v3631, 0.0
    %v3734 = vadd.f32 %v3732, %v3733
    %v3735 = vsel %vm3392, %v3632, 0.0
    %v3736 = vadd.f32 %v3734, %v3735
    %v3737 = vsel %vm3392, %v3633, 0.0
    %v3738 = vadd.f32 %v3736, %v3737
    %v3739 = vsel %vm3392, %v3634, 0.0
    %v3740 = vadd.f32 %v3738, %v3739
    %v3741 = vsel %vm3392, %v3635, 0.0
    %v3742 = vadd.f32 %v3740, %v3741
    %v3743 = vsel %vm3392, %v3636, 0.0
    %v3744 = vadd.f32 %v3742, %v3743
    %v3745 = vsel %vm3392, %v3637, 0.0
    %v3746 = vadd.f32 %v3744, %v3745
    %v3747 = vsel %vm3392, %v3638, 0.0
    %v3748 = vadd.f32 %v3746, %v3747
    %v3749 = vsel %vm3392, %v3639, 0.0
    %v3750 = vadd.f32 %v3748, %v3749
    %v3751 = vsel %vm3392, %v3640, 0.0
    %v3752 = vadd.f32 %v3750, %v3751
    %v3753 = vsel %vm3392, %v3641, 0.0
    %v3754 = vadd.f32 %v3752, %v3753
    %v3755 = vsel %vm3392, %v3642, 0.0
    %v3756 = vadd.f32 %v3754, %v3755
    %v3757 = vsel %vm3392, %v3643, 0.0
    %v3758 = vadd.f32 %v3756, %v3757
    %v3759 = vsel %vm3392, %v3644, 0.0
    %v3760 = vadd.f32 %v3758, %v3759
    %v3761 = vsel %vm3392, %v3645, 0.0
    %v3762 = vadd.f32 %v3760, %v3761
    %v3763 = vsel %vm3392, %v3646, 0.0
    %v3764 = vadd.f32 %v3762, %v3763
    %v3765 = vsel %vm3392, %v3647, 0.0
    %v3766 = vadd.f32 %v3764, %v3765
    %v3767 = vsel %vm3392, %v3648, 0.0
    %v3768 = vadd.f32 %v3766, %v3767
    %v3769 = vsel %vm3392, %v3649, 0.0
    %v3770 = vadd.f32 %v3768, %v3769
    %v3771 = vsel %vm3392, %v3650, 0.0
    %v3772 = vadd.f32 %v3770, %v3771
    %v3773 = vsel %vm3392, %v3651, 0.0
    %v3774 = vadd.f32 %v3772, %v3773
    %v3775 = vsel %vm3392, %v3652, 0.0
    %v3776 = vadd.f32 %v3774, %v3775
    %v3777 = vsel %vm3392, %v3653, 0.0
    %v3778 = vadd.f32 %v3776, %v3777
    %v3779 = vsel %vm3392, %v3654, 0.0
    %v3780 = vadd.f32 %v3778, %v3779
    %v3781 = vsel %vm3392, %v3655, 0.0
    %v3782 = vadd.f32 %v3780, %v3781
    %v3783 = vrot.slane %v3782, 4
    %v3784 = vadd.f32 %v3782, %v3783
    %v3785 = vrot.slane %v3784, 2
    %v3786 = vadd.f32 %v3784, %v3785
    %v3787 = vrot.slane %v3786, 1
    %v3788 = vadd.f32 %v3786, %v3787
    %v3789 = vmul.f32 %v3788, %v3526
    %v3790 = vadd.f32 %v3789, 1e-05
    %v3791 = vrsqrt.pop %v3790
    %v3792 = vmul.f32 %v3528, %v3791
    %v3793 = vmul.f32 %v3529, %v3791
    %v3794 = vmul.f32 %v3530, %v3791
    %v3795 = vmul.f32 %v3531, %v3791
    %v3796 = vmul.f32 %v3532, %v3791
    %v3797 = vmul.f32 %v3533, %v3791
    %v3798 = vmul.f32 %v3534, %v3791
    %v3799 = vmul.f32 %v3535, %v3791
    %v3800 = vmul.f32 %v3536, %v3791
    %v3801 = vmul.f32 %v3537, %v3791
    %v3802 = vmul.f32 %v3538, %v3791
    %v3803 = vmul.f32 %v3539, %v3791
    %v3804 = vmul.f32 %v3540, %v3791
    %v3805 = vmul.f32 %v3541, %v3791
    %v3806 = vmul.f32 %v3542, %v3791
    %v3807 = vmul.f32 %v3543, %v3791
    %v3808 = vmul.f32 %v3544, %v3791
    %v3809 = vmul.f32 %v3545, %v3791
    %v3810 = vmul.f32 %v3546, %v3791
    %v3811 = vmul.f32 %v3547, %v3791
    %v3812 = vmul.f32 %v3548, %v3791
    %v3813 = vmul.f32 %v3549, %v3791
    %v3814 = vmul.f32 %v3550, %v3791
    %v3815 = vmul.f32 %v3551, %v3791
    %v3816 = vmul.f32 %v3552, %v3791
    %v3817 = vmul.f32 %v3553, %v3791
    %v3818 = vmul.f32 %v3554, %v3791
    %v3819 = vmul.f32 %v3555, %v3791
    %v3820 = vmul.f32 %v3556, %v3791
    %v3821 = vmul.f32 %v3557, %v3791
    %v3822 = vmul.f32 %v3558, %v3791
    %v3823 = vmul.f32 %v3559, %v3791
    %v3824 = vmul.f32 %v3560, %v3791
    %v3825 = vmul.f32 %v3561, %v3791
    %v3826 = vmul.f32 %v3562, %v3791
    %v3827 = vmul.f32 %v3563, %v3791
    %v3828 = vmul.f32 %v3564, %v3791
    %v3829 = vmul.f32 %v3565, %v3791
    %v3830 = vmul.f32 %v3566, %v3791
    %v3831 = vmul.f32 %v3567, %v3791
    %v3832 = vmul.f32 %v3568, %v3791
    %v3833 = vmul.f32 %v3569, %v3791
    %v3834 = vmul.f32 %v3570, %v3791
    %v3835 = vmul.f32 %v3571, %v3791
    %v3836 = vmul.f32 %v3572, %v3791
    %v3837 = vmul.f32 %v3573, %v3791
    %v3838 = vmul.f32 %v3574, %v3791
    %v3839 = vmul.f32 %v3575, %v3791
    %v3840 = vmul.f32 %v3576, %v3791
    %v3841 = vmul.f32 %v3577, %v3791
    %v3842 = vmul.f32 %v3578, %v3791
    %v3843 = vmul.f32 %v3579, %v3791
    %v3844 = vmul.f32 %v3580, %v3791
    %v3845 = vmul.f32 %v3581, %v3791
    %v3846 = vmul.f32 %v3582, %v3791
    %v3847 = vmul.f32 %v3583, %v3791
    %v3848 = vmul.f32 %v3584, %v3791
    %v3849 = vmul.f32 %v3585, %v3791
    %v3850 = vmul.f32 %v3586, %v3791
    %v3851 = vmul.f32 %v3587, %v3791
    %v3852 = vmul.f32 %v3588, %v3791
    %v3853 = vmul.f32 %v3589, %v3791
    %v3854 = vmul.f32 %v3590, %v3791
    %v3855 = vmul.f32 %v3591, %v3791
    %3856 = vst.msk [vmem:[#allocation11] sm:$0xff] %vm3392, %v3792
    %3857 = vst.msk [vmem:[#allocation11 + $0x8] sm:$0xff] %vm3392, %v3793
    %3858 = vst.msk [vmem:[#allocation11 + $0x10] sm:$0xff] %vm3392, %v3794
    %3859 = vst.msk [vmem:[#allocation11 + $0x18] sm:$0xff] %vm3392, %v3795
    %3860 = vst.msk [vmem:[#allocation11 + $0x20] sm:$0xff] %vm3392, %v3796
    %3861 = vst.msk [vmem:[#allocation11 + $0x28] sm:$0xff] %vm3392, %v3797
    %3862 = vst.msk [vmem:[#allocation11 + $0x30] sm:$0xff] %vm3392, %v3798
    %3863 = vst.msk [vmem:[#allocation11 + $0x38] sm:$0xff] %vm3392, %v3799
    %3864 = vst.msk [vmem:[#allocation11 + $0x40] sm:$0xff] %vm3392, %v3800
    %3865 = vst.msk [vmem:[#allocation11 + $0x48] sm:$0xff] %vm3392, %v3801
    %3866 = vst.msk [vmem:[#allocation11 + $0x50] sm:$0xff] %vm3392, %v3802
    %3867 = vst.msk [vmem:[#allocation11 + $0x58] sm:$0xff] %vm3392, %v3803
    %3868 = vst.msk [vmem:[#allocation11 + $0x60] sm:$0xff] %vm3392, %v3804
    %3869 = vst.msk [vmem:[#allocation11 + $0x68] sm:$0xff] %vm3392, %v3805
    %3870 = vst.msk [vmem:[#allocation11 + $0x70] sm:$0xff] %vm3392, %v3806
    %3871 = vst.msk [vmem:[#allocation11 + $0x78] sm:$0xff] %vm3392, %v3807
    %3872 = vst.msk [vmem:[#allocation11 + $0x80] sm:$0xff] %vm3392, %v3808
    %3873 = vst.msk [vmem:[#allocation11 + $0x88] sm:$0xff] %vm3392, %v3809
    %3874 = vst.msk [vmem:[#allocation11 + $0x90] sm:$0xff] %vm3392, %v3810
    %3875 = vst.msk [vmem:[#allocation11 + $0x98] sm:$0xff] %vm3392, %v3811
    %3876 = vst.msk [vmem:[#allocation11 + $0xa0] sm:$0xff] %vm3392, %v3812
    %3877 = vst.msk [vmem:[#allocation11 + $0xa8] sm:$0xff] %vm3392, %v3813
    %3878 = vst.msk [vmem:[#allocation11 + $0xb0] sm:$0xff] %vm3392, %v3814
    %3879 = vst.msk [vmem:[#allocation11 + $0xb8] sm:$0xff] %vm3392, %v3815
    %3880 = vst.msk [vmem:[#allocation11 + $0xc0] sm:$0xff] %vm3392, %v3816
    %3881 = vst.msk [vmem:[#allocation11 + $0xc8] sm:$0xff] %vm3392, %v3817
    %3882 = vst.msk [vmem:[#allocation11 + $0xd0] sm:$0xff] %vm3392, %v3818
    %3883 = vst.msk [vmem:[#allocation11 + $0xd8] sm:$0xff] %vm3392, %v3819
    %3884 = vst.msk [vmem:[#allocation11 + $0xe0] sm:$0xff] %vm3392, %v3820
    %3885 = vst.msk [vmem:[#allocation11 + $0xe8] sm:$0xff] %vm3392, %v3821
    %3886 = vst.msk [vmem:[#allocation11 + $0xf0] sm:$0xff] %vm3392, %v3822
    %3887 = vst.msk [vmem:[#allocation11 + $0xf8] sm:$0xff] %vm3392, %v3823
    %3888 = vst.msk [vmem:[#allocation11 + $0x100] sm:$0xff] %vm3392, %v3824
    %3889 = vst.msk [vmem:[#allocation11 + $0x108] sm:$0xff] %vm3392, %v3825
    %3890 = vst.msk [vmem:[#allocation11 + $0x110] sm:$0xff] %vm3392, %v3826
    %3891 = vst.msk [vmem:[#allocation11 + $0x118] sm:$0xff] %vm3392, %v3827
    %3892 = vst.msk [vmem:[#allocation11 + $0x120] sm:$0xff] %vm3392, %v3828
    %3893 = vst.msk [vmem:[#allocation11 + $0x128] sm:$0xff] %vm3392, %v3829
    %3894 = vst.msk [vmem:[#allocation11 + $0x130] sm:$0xff] %vm3392, %v3830
    %3895 = vst.msk [vmem:[#allocation11 + $0x138] sm:$0xff] %vm3392, %v3831
    %3896 = vst.msk [vmem:[#allocation11 + $0x140] sm:$0xff] %vm3392, %v3832
    %3897 = vst.msk [vmem:[#allocation11 + $0x148] sm:$0xff] %vm3392, %v3833
    %3898 = vst.msk [vmem:[#allocation11 + $0x150] sm:$0xff] %vm3392, %v3834
    %3899 = vst.msk [vmem:[#allocation11 + $0x158] sm:$0xff] %vm3392, %v3835
    %3900 = vst.msk [vmem:[#allocation11 + $0x160] sm:$0xff] %vm3392, %v3836
    %3901 = vst.msk [vmem:[#allocation11 + $0x168] sm:$0xff] %vm3392, %v3837
    %3902 = vst.msk [vmem:[#allocation11 + $0x170] sm:$0xff] %vm3392, %v3838
    %3903 = vst.msk [vmem:[#allocation11 + $0x178] sm:$0xff] %vm3392, %v3839
    %3904 = vst.msk [vmem:[#allocation11 + $0x180] sm:$0xff] %vm3392, %v3840
    %3905 = vst.msk [vmem:[#allocation11 + $0x188] sm:$0xff] %vm3392, %v3841
    %3906 = vst.msk [vmem:[#allocation11 + $0x190] sm:$0xff] %vm3392, %v3842
    %3907 = vst.msk [vmem:[#allocation11 + $0x198] sm:$0xff] %vm3392, %v3843
    %3908 = vst.msk [vmem:[#allocation11 + $0x1a0] sm:$0xff] %vm3392, %v3844
    %3909 = vst.msk [vmem:[#allocation11 + $0x1a8] sm:$0xff] %vm3392, %v3845
    %3910 = vst.msk [vmem:[#allocation11 + $0x1b0] sm:$0xff] %vm3392, %v3846
    %3911 = vst.msk [vmem:[#allocation11 + $0x1b8] sm:$0xff] %vm3392, %v3847
    %3912 = vst.msk [vmem:[#allocation11 + $0x1c0] sm:$0xff] %vm3392, %v3848
    %3913 = vst.msk [vmem:[#allocation11 + $0x1c8] sm:$0xff] %vm3392, %v3849
    %3914 = vst.msk [vmem:[#allocation11 + $0x1d0] sm:$0xff] %vm3392, %v3850
    %3915 = vst.msk [vmem:[#allocation11 + $0x1d8] sm:$0xff] %vm3392, %v3851
    %3916 = vst.msk [vmem:[#allocation11 + $0x1e0] sm:$0xff] %vm3392, %v3852
    %3917 = vst.msk [vmem:[#allocation11 + $0x1e8] sm:$0xff] %vm3392, %v3853
    %3918 = vst.msk [vmem:[#allocation11 + $0x1f0] sm:$0xff] %vm3392, %v3854
    %3919 = vst.msk [vmem:[#allocation11 + $0x1f8] sm:$0xff] %vm3392, %v3855
    // Predicated region
    $region38: #{generator_b_forward.5} parent=1 // pred_check
      _
    $region39: #{generator_b_forward.5} parent=1 // pred_check_branch
      %3921 = sbr.rel (0) target = $region41
    $region40: #{generator_b_forward.5} parent=1 // pred_region
      %s3923 = ssub.s32 8192, 8192
      %3924 = vsyncadd [#allocation5], %s3923
      %s3925 = sshll.u32 [#allocation11], 4
      %s3926 = int_to_ptr.vmem [resolvable:$true] %s3925
      %3931 = dma.vmem_to_hbm [thread:$0]  %s3926, 8192, %s5, [#allocation5], 128, 128, 8
    $region41: #{generator_b_forward.5} parent=1 // pred_fallthru
      _
    // Predicated region
    $region42: #{generator_b_forward.5} parent=1 // pred_check
      _
    $region43: #{generator_b_forward.5} parent=1 // pred_check_branch
      %3933 = sbr.rel (0) target = $region45
    $region44: #{generator_b_forward.5} parent=1 // pred_region
      %3934 = dma.done [#allocation5], 8192
    $region45: #{generator_b_forward.5} parent=1 // pred_fallthru
      _
    %3935 = vsyncpa [#allocation4], 1
    %3936 = vsyncpa [#allocation7], 1
    %3937 = vsyncpa [#allocation10], 1
    %3938 = vsyncpa [#allocation5], 1

// kernel: generator_b_forward.4
$region0: #{generator_b_forward.4}
  #allocation0 [shape = 'u32[]', space=smem, size = 0x4, offset = 0x4, fixed_abs, tag = 'smem constant byte address 0x4 - core index']
  #allocation1 [shape = 'u32[144,128]{1,0:T(1,128)}', space=vmem, size = 0x12000, scoped, tag = 'internal scratch']
  %s0 = inlined_call_operand.hbm [shape: f32[2,16,16,16], index: 0, kind: input, shape index: {}]
  %s1 = inlined_call_operand.hbm [shape: f32[144,8], index: 1, kind: input, shape index: {}]
  %s2 = inlined_call_operand.hbm [shape: f32[1,16], index: 2, kind: input, shape index: {}]
  %s3 = inlined_call_operand.hbm [shape: f32[1,16], index: 3, kind: input, shape index: {}]
  %s4 = inlined_call_operand.hbm [shape: f32[1,8], index: 4, kind: input, shape index: {}]
  %s5 = inlined_call_operand.hbm [shape: f32[1,8], index: 5, kind: input, shape index: {}]
  %s6 = inlined_call_operand.hbm [shape: f32[512,8], index: 6, kind: output, shape index: {}]
  %s7 = sld [smem:[#allocation0]]
  $region58: #{generator_b_forward.4} parent=0
    _
  %s9 = ssub.s32 1, %s7
  %s10 = scalar_select 0, %s9, %s7
  $region1: #{generator_b_forward.4} parent=0
    #allocation2 [shape = 'u8[262144]{0}', space=vmem, size = 0x40000, scoped, tag = 'input window, operand 0, single buffered']
    #allocation3 [shape = 's32[1]{0}', space=sflag, size = 0x4, scoped, tag = 'scoped memory for generator_b_forward.4']
    #allocation4 [shape = 's32[1]{0}', space=sflag, size = 0x4, scoped, tag = 'scoped memory for generator_b_forward.4']
    #allocation5 [shape = 'u8[73728]{0}', space=vmem, size = 0x12000, scoped, tag = 'input window, operand 1, single buffered']
    #allocation6 [shape = 's32[1]{0}', space=sflag, size = 0x4, scoped, tag = 'scoped memory for generator_b_forward.4']
    #allocation7 [shape = 'u8[512]{0}', space=vmem, size = 0x400, scoped, tag = 'input window, operand 2, single buffered']
    #allocation8 [shape = 'u8[512]{0}', space=vmem, size = 0x400, scoped, tag = 'input window, operand 3, single buffered']
    #allocation9 [shape = 's32[1]{0}', space=sflag, size = 0x4, scoped, tag = 'scoped memory for generator_b_forward.4']
    #allocation10 [shape = 'u8[512]{0}', space=vmem, size = 0x400, scoped, tag = 'input window, operand 4, single buffered']
    #allocation11 [shape = 'u8[512]{0}', space=vmem, size = 0x400, scoped, tag = 'input window, operand 5, single buffered']
    #allocation12 [shape = 's32[1]{0}', space=sflag, size = 0x4, scoped, tag = 'scoped memory for generator_b_forward.4']
    #allocation13 [shape = 'u8[262144]{0}', space=vmem, size = 0x40000, scoped, tag = 'output window, operand 0, single buffered']
    %11 = vsyncpa [#allocation3], 0
    %12 = vsyncpa [#allocation6], 0
    %13 = vsyncpa [#allocation9], 0
    %14 = vsyncpa [#allocation12], 0
    %15 = vsyncpa [#allocation4], 0
    // Predicated region
    $region2: #{generator_b_forward.4} parent=1 // pred_check
      _
    $region3: #{generator_b_forward.4} parent=1 // pred_check_branch
      %17 = sbr.rel (0) target = $region5
    $region4: #{generator_b_forward.4} parent=1 // pred_region
      %s19 = ssub.s32 8192, 8192
      %20 = vsyncadd [#allocation3], %s19
      %s21 = sshll.u32 [#allocation2], 4
      %s22 = int_to_ptr.vmem [resolvable:$true] %s21
      %27 = dma.hbm_to_vmem [thread:$0]  %s0, 8192, %s22, [#allocation3], 128, 128, 8
    $region5: #{generator_b_forward.4} parent=1 // pred_fallthru
      _
    // Predicated region
    $region6: #{generator_b_forward.4} parent=1 // pred_check
      _
    $region7: #{generator_b_forward.4} parent=1 // pred_check_branch
      %29 = sbr.rel (0) target = $region9
    $region8: #{generator_b_forward.4} parent=1 // pred_region
      %s31 = ssub.s32 2304, 2304
      %32 = vsyncadd [#allocation6], %s31
      %s33 = sshll.u32 [#allocation5], 4
      %s34 = int_to_ptr.vmem [resolvable:$true] %s33
      %39 = dma.hbm_to_vmem [thread:$0]  %s1, 2304, %s34, [#allocation6], 128, 128, 8
    $region9: #{generator_b_forward.4} parent=1 // pred_fallthru
      _
    // Predicated region
    $region10: #{generator_b_forward.4} parent=1 // pred_check
      _
    $region11: #{generator_b_forward.4} parent=1 // pred_check_branch
      %41 = sbr.rel (0) target = $region13
    $region12: #{generator_b_forward.4} parent=1 // pred_region
      %s43 = ssub.s32 16, 16
      %44 = vsyncadd [#allocation6], %s43
      %s46 = sshll.u32 [#allocation7], 4
      %s47 = int_to_ptr.vmem [resolvable:$true] %s46
      %49 = dma.hbm_to_vmem [thread:$0]  %s2, 16, %s47, [#allocation6]
    $region13: #{generator_b_forward.4} parent=1 // pred_fallthru
      _
    // Predicated region
    $region14: #{generator_b_forward.4} parent=1 // pred_check
      _
    $region15: #{generator_b_forward.4} parent=1 // pred_check_branch
      %51 = sbr.rel (0) target = $region17
    $region16: #{generator_b_forward.4} parent=1 // pred_region
      %s53 = ssub.s32 16, 16
      %54 = vsyncadd [#allocation9], %s53
      %s56 = sshll.u32 [#allocation8], 4
      %s57 = int_to_ptr.vmem [resolvable:$true] %s56
      %59 = dma.hbm_to_vmem [thread:$0]  %s3, 16, %s57, [#allocation9]
    $region17: #{generator_b_forward.4} parent=1 // pred_fallthru
      _
    // Predicated region
    $region18: #{generator_b_forward.4} parent=1 // pred_check
      _
    $region19: #{generator_b_forward.4} parent=1 // pred_check_branch
      %61 = sbr.rel (0) target = $region21
    $region20: #{generator_b_forward.4} parent=1 // pred_region
      %s63 = ssub.s32 16, 16
      %64 = vsyncadd [#allocation9], %s63
      %s66 = sshll.u32 [#allocation10], 4
      %s67 = int_to_ptr.vmem [resolvable:$true] %s66
      %69 = dma.hbm_to_vmem [thread:$0]  %s4, 16, %s67, [#allocation9]
    $region21: #{generator_b_forward.4} parent=1 // pred_fallthru
      _
    // Predicated region
    $region22: #{generator_b_forward.4} parent=1 // pred_check
      _
    $region23: #{generator_b_forward.4} parent=1 // pred_check_branch
      %71 = sbr.rel (0) target = $region25
    $region24: #{generator_b_forward.4} parent=1 // pred_region
      %s73 = ssub.s32 16, 16
      %74 = vsyncadd [#allocation12], %s73
      %s76 = sshll.u32 [#allocation11], 4
      %s77 = int_to_ptr.vmem [resolvable:$true] %s76
      %79 = dma.hbm_to_vmem [thread:$0]  %s5, 16, %s77, [#allocation12]
    $region25: #{generator_b_forward.4} parent=1 // pred_fallthru
      _
    // Predicated region
    $region26: #{generator_b_forward.4} parent=1 // pred_check
      _
    $region27: #{generator_b_forward.4} parent=1 // pred_check_branch
      %81 = sbr.rel (0) target = $region29
    $region28: #{generator_b_forward.4} parent=1 // pred_region
      %82 = dma.done [#allocation3], 8192
    $region29: #{generator_b_forward.4} parent=1 // pred_fallthru
      _
    // Predicated region
    $region30: #{generator_b_forward.4} parent=1 // pred_check
      _
    $region31: #{generator_b_forward.4} parent=1 // pred_check_branch
      %84 = sbr.rel (0) target = $region33
    $region32: #{generator_b_forward.4} parent=1 // pred_region
      %85 = dma.done [#allocation6], 2304
    $region33: #{generator_b_forward.4} parent=1 // pred_fallthru
      _
    // Predicated region
    $region34: #{generator_b_forward.4} parent=1 // pred_check
      _
    $region35: #{generator_b_forward.4} parent=1 // pred_check_branch
      %87 = sbr.rel (0) target = $region37
    $region36: #{generator_b_forward.4} parent=1 // pred_region
      %88 = dma.done [#allocation6], 16
    $region37: #{generator_b_forward.4} parent=1 // pred_fallthru
      _
    // Predicated region
    $region38: #{generator_b_forward.4} parent=1 // pred_check
      _
    $region39: #{generator_b_forward.4} parent=1 // pred_check_branch
      %90 = sbr.rel (0) target = $region41
    $region40: #{generator_b_forward.4} parent=1 // pred_region
      %91 = dma.done [#allocation9], 16
    $region41: #{generator_b_forward.4} parent=1 // pred_fallthru
      _
    // Predicated region
    $region42: #{generator_b_forward.4} parent=1 // pred_check
      _
    $region43: #{generator_b_forward.4} parent=1 // pred_check_branch
      %93 = sbr.rel (0) target = $region45
    $region44: #{generator_b_forward.4} parent=1 // pred_region
      %94 = dma.done [#allocation9], 16
    $region45: #{generator_b_forward.4} parent=1 // pred_fallthru
      _
    // Predicated region
    $region46: #{generator_b_forward.4} parent=1 // pred_check
      _
    $region47: #{generator_b_forward.4} parent=1 // pred_check_branch
      %96 = sbr.rel (0) target = $region49
    $region48: #{generator_b_forward.4} parent=1 // pred_region
      %97 = dma.done [#allocation12], 16
    $region49: #{generator_b_forward.4} parent=1 // pred_fallthru
      _
    %v99 = vld [vmem:[#allocation2] sm:$0xff]
    %v100 = vld [vmem:[#allocation2 + $0x8] sm:$0xff]
    %v101 = vld [vmem:[#allocation2 + $0x10] sm:$0xff]
    %v102 = vld [vmem:[#allocation2 + $0x18] sm:$0xff]
    %v103 = vld [vmem:[#allocation2 + $0x20] sm:$0xff]
    %v104 = vld [vmem:[#allocation2 + $0x28] sm:$0xff]
    %v105 = vld [vmem:[#allocation2 + $0x30] sm:$0xff]
    %v106 = vld [vmem:[#allocation2 + $0x38] sm:$0xff]
    %v107 = vld [vmem:[#allocation2 + $0x40] sm:$0xff]
    %v108 = vld [vmem:[#allocation2 + $0x48] sm:$0xff]
    %v109 = vld [vmem:[#allocation2 + $0x50] sm:$0xff]
    %v110 = vld [vmem:[#allocation2 + $0x58] sm:$0xff]
    %v111 = vld [vmem:[#allocation2 + $0x60] sm:$0xff]
    %v112 = vld [vmem:[#allocation2 + $0x68] sm:$0xff]
    %v113 = vld [vmem:[#allocation2 + $0x70] sm:$0xff]
    %v114 = vld [vmem:[#allocation2 + $0x78] sm:$0xff]
    %v115 = vld [vmem:[#allocation2 + $0x80] sm:$0xff]
    %v116 = vld [vmem:[#allocation2 + $0x88] sm:$0xff]
    %v117 = vld [vmem:[#allocation2 + $0x90] sm:$0xff]
    %v118 = vld [vmem:[#allocation2 + $0x98] sm:$0xff]
    %v119 = vld [vmem:[#allocation2 + $0xa0] sm:$0xff]
    %v120 = vld [vmem:[#allocation2 + $0xa8] sm:$0xff]
    %v121 = vld [vmem:[#allocation2 + $0xb0] sm:$0xff]
    %v122 = vld [vmem:[#allocation2 + $0xb8] sm:$0xff]
    %v123 = vld [vmem:[#allocation2 + $0xc0] sm:$0xff]
    %v124 = vld [vmem:[#allocation2 + $0xc8] sm:$0xff]
    %v125 = vld [vmem:[#allocation2 + $0xd0] sm:$0xff]
    %v126 = vld [vmem:[#allocation2 + $0xd8] sm:$0xff]
    %v127 = vld [vmem:[#allocation2 + $0xe0] sm:$0xff]
    %v128 = vld [vmem:[#allocation2 + $0xe8] sm:$0xff]
    %v129 = vld [vmem:[#allocation2 + $0xf0] sm:$0xff]
    %v130 = vld [vmem:[#allocation2 + $0xf8] sm:$0xff]
    %v131 = vld [vmem:[#allocation2 + $0x100] sm:$0xff]
    %v132 = vld [vmem:[#allocation2 + $0x108] sm:$0xff]
    %v133 = vld [vmem:[#allocation2 + $0x110] sm:$0xff]
    %v134 = vld [vmem:[#allocation2 + $0x118] sm:$0xff]
    %v135 = vld [vmem:[#allocation2 + $0x120] sm:$0xff]
    %v136 = vld [vmem:[#allocation2 + $0x128] sm:$0xff]
    %v137 = vld [vmem:[#allocation2 + $0x130] sm:$0xff]
    %v138 = vld [vmem:[#allocation2 + $0x138] sm:$0xff]
    %v139 = vld [vmem:[#allocation2 + $0x140] sm:$0xff]
    %v140 = vld [vmem:[#allocation2 + $0x148] sm:$0xff]
    %v141 = vld [vmem:[#allocation2 + $0x150] sm:$0xff]
    %v142 = vld [vmem:[#allocation2 + $0x158] sm:$0xff]
    %v143 = vld [vmem:[#allocation2 + $0x160] sm:$0xff]
    %v144 = vld [vmem:[#allocation2 + $0x168] sm:$0xff]
    %v145 = vld [vmem:[#allocation2 + $0x170] sm:$0xff]
    %v146 = vld [vmem:[#allocation2 + $0x178] sm:$0xff]
    %v147 = vld [vmem:[#allocation2 + $0x180] sm:$0xff]
    %v148 = vld [vmem:[#allocation2 + $0x188] sm:$0xff]
    %v149 = vld [vmem:[#allocation2 + $0x190] sm:$0xff]
    %v150 = vld [vmem:[#allocation2 + $0x198] sm:$0xff]
    %v151 = vld [vmem:[#allocation2 + $0x1a0] sm:$0xff]
    %v152 = vld [vmem:[#allocation2 + $0x1a8] sm:$0xff]
    %v153 = vld [vmem:[#allocation2 + $0x1b0] sm:$0xff]
    %v154 = vld [vmem:[#allocation2 + $0x1b8] sm:$0xff]
    %v155 = vld [vmem:[#allocation2 + $0x1c0] sm:$0xff]
    %v156 = vld [vmem:[#allocation2 + $0x1c8] sm:$0xff]
    %v157 = vld [vmem:[#allocation2 + $0x1d0] sm:$0xff]
    %v158 = vld [vmem:[#allocation2 + $0x1d8] sm:$0xff]
    %v159 = vld [vmem:[#allocation2 + $0x1e0] sm:$0xff]
    %v160 = vld [vmem:[#allocation2 + $0x1e8] sm:$0xff]
    %v161 = vld [vmem:[#allocation2 + $0x1f0] sm:$0xff]
    %v162 = vld [vmem:[#allocation2 + $0x1f8] sm:$0xff]
    %v163 = vld [vmem:[#allocation7] sm:$0x1]
    %v164 = vld [vmem:[#allocation8] sm:$0x1]
    %vm165 = vcmask 130048
    %v166 = vsel %vm165, %v99, 0.0
    %v167 = vsel %vm165, %v100, 0.0
    %v168 = vadd.f32 %v166, %v167
    %v169 = vsel %vm165, %v101, 0.0
    %v170 = vadd.f32 %v168, %v169
    %v171 = vsel %vm165, %v102, 0.0
    %v172 = vadd.f32 %v170, %v171
    %v173 = vsel %vm165, %v103, 0.0
    %v174 = vadd.f32 %v172, %v173
    %v175 = vsel %vm165, %v104, 0.0
    %v176 = vadd.f32 %v174, %v175
    %v177 = vsel %vm165, %v105, 0.0
    %v178 = vadd.f32 %v176, %v177
    %v179 = vsel %vm165, %v106, 0.0
    %v180 = vadd.f32 %v178, %v179
    %v181 = vsel %vm165, %v107, 0.0
    %v182 = vadd.f32 %v180, %v181
    %v183 = vsel %vm165, %v108, 0.0
    %v184 = vadd.f32 %v182, %v183
    %v185 = vsel %vm165, %v109, 0.0
    %v186 = vadd.f32 %v184, %v185
    %v187 = vsel %vm165, %v110, 0.0
    %v188 = vadd.f32 %v186, %v187
    %v189 = vsel %vm165, %v111, 0.0
    %v190 = vadd.f32 %v188, %v189
    %v191 = vsel %vm165, %v112, 0.0
    %v192 = vadd.f32 %v190, %v191
    %v193 = vsel %vm165, %v113, 0.0
    %v194 = vadd.f32 %v192, %v193
    %v195 = vsel %vm165, %v114, 0.0
    %v196 = vadd.f32 %v194, %v195
    %v197 = vsel %vm165, %v115, 0.0
    %v198 = vadd.f32 %v196, %v197
    %v199 = vsel %vm165, %v116, 0.0
    %v200 = vadd.f32 %v198, %v199
    %v201 = vsel %vm165, %v117, 0.0
    %v202 = vadd.f32 %v200, %v201
    %v203 = vsel %vm165, %v118, 0.0
    %v204 = vadd.f32 %v202, %v203
    %v205 = vsel %vm165, %v119, 0.0
    %v206 = vadd.f32 %v204, %v205
    %v207 = vsel %vm165, %v120, 0.0
    %v208 = vadd.f32 %v206, %v207
    %v209 = vsel %vm165, %v121, 0.0
    %v210 = vadd.f32 %v208, %v209
    %v211 = vsel %vm165, %v122, 0.0
    %v212 = vadd.f32 %v210, %v211
    %v213 = vsel %vm165, %v123, 0.0
    %v214 = vadd.f32 %v212, %v213
    %v215 = vsel %vm165, %v124, 0.0
    %v216 = vadd.f32 %v214, %v215
    %v217 = vsel %vm165, %v125, 0.0
    %v218 = vadd.f32 %v216, %v217
    %v219 = vsel %vm165, %v126, 0.0
    %v220 = vadd.f32 %v218, %v219
    %v221 = vsel %vm165, %v127, 0.0
    %v222 = vadd.f32 %v220, %v221
    %v223 = vsel %vm165, %v128, 0.0
    %v224 = vadd.f32 %v222, %v223
    %v225 = vsel %vm165, %v129, 0.0
    %v226 = vadd.f32 %v224, %v225
    %v227 = vsel %vm165, %v130, 0.0
    %v228 = vadd.f32 %v226, %v227
    %v229 = vsel %vm165, %v131, 0.0
    %v230 = vadd.f32 %v228, %v229
    %v231 = vsel %vm165, %v132, 0.0
    %v232 = vadd.f32 %v230, %v231
    %v233 = vsel %vm165, %v133, 0.0
    %v234 = vadd.f32 %v232, %v233
    %v235 = vsel %vm165, %v134, 0.0
    %v236 = vadd.f32 %v234, %v235
    %v237 = vsel %vm165, %v135, 0.0
    %v238 = vadd.f32 %v236, %v237
    %v239 = vsel %vm165, %v136, 0.0
    %v240 = vadd.f32 %v238, %v239
    %v241 = vsel %vm165, %v137, 0.0
    %v242 = vadd.f32 %v240, %v241
    %v243 = vsel %vm165, %v138, 0.0
    %v244 = vadd.f32 %v242, %v243
    %v245 = vsel %vm165, %v139, 0.0
    %v246 = vadd.f32 %v244, %v245
    %v247 = vsel %vm165, %v140, 0.0
    %v248 = vadd.f32 %v246, %v247
    %v249 = vsel %vm165, %v141, 0.0
    %v250 = vadd.f32 %v248, %v249
    %v251 = vsel %vm165, %v142, 0.0
    %v252 = vadd.f32 %v250, %v251
    %v253 = vsel %vm165, %v143, 0.0
    %v254 = vadd.f32 %v252, %v253
    %v255 = vsel %vm165, %v144, 0.0
    %v256 = vadd.f32 %v254, %v255
    %v257 = vsel %vm165, %v145, 0.0
    %v258 = vadd.f32 %v256, %v257
    %v259 = vsel %vm165, %v146, 0.0
    %v260 = vadd.f32 %v258, %v259
    %v261 = vsel %vm165, %v147, 0.0
    %v262 = vadd.f32 %v260, %v261
    %v263 = vsel %vm165, %v148, 0.0
    %v264 = vadd.f32 %v262, %v263
    %v265 = vsel %vm165, %v149, 0.0
    %v266 = vadd.f32 %v264, %v265
    %v267 = vsel %vm165, %v150, 0.0
    %v268 = vadd.f32 %v266, %v267
    %v269 = vsel %vm165, %v151, 0.0
    %v270 = vadd.f32 %v268, %v269
    %v271 = vsel %vm165, %v152, 0.0
    %v272 = vadd.f32 %v270, %v271
    %v273 = vsel %vm165, %v153, 0.0
    %v274 = vadd.f32 %v272, %v273
    %v275 = vsel %vm165, %v154, 0.0
    %v276 = vadd.f32 %v274, %v275
    %v277 = vsel %vm165, %v155, 0.0
    %v278 = vadd.f32 %v276, %v277
    %v279 = vsel %vm165, %v156, 0.0
    %v280 = vadd.f32 %v278, %v279
    %v281 = vsel %vm165, %v157, 0.0
    %v282 = vadd.f32 %v280, %v281
    %v283 = vsel %vm165, %v158, 0.0
    %v284 = vadd.f32 %v282, %v283
    %v285 = vsel %vm165, %v159, 0.0
    %v286 = vadd.f32 %v284, %v285
    %v287 = vsel %vm165, %v160, 0.0
    %v288 = vadd.f32 %v286, %v287
    %v289 = vsel %vm165, %v161, 0.0
    %v290 = vadd.f32 %v288, %v289
    %v291 = vsel %vm165, %v162, 0.0
    %v292 = vadd.f32 %v290, %v291
    %v293 = vrot.slane %v292, 4
    %v294 = vadd.f32 %v292, %v293
    %v295 = vrot.slane %v294, 2
    %v296 = vadd.f32 %v294, %v295
    %v297 = vrot.slane %v296, 1
    %v298 = vadd.f32 %v296, %v297
    %v299 = vrcp.pop 512.0
    %v300 = vmul.f32 %v298, %v299
    %v301 = vsub.f32 %v99, %v300
    %v302 = vsub.f32 %v100, %v300
    %v303 = vsub.f32 %v101, %v300
    %v304 = vsub.f32 %v102, %v300
    %v305 = vsub.f32 %v103, %v300
    %v306 = vsub.f32 %v104, %v300
    %v307 = vsub.f32 %v105, %v300
    %v308 = vsub.f32 %v106, %v300
    %v309 = vsub.f32 %v107, %v300
    %v310 = vsub.f32 %v108, %v300
    %v311 = vsub.f32 %v109, %v300
    %v312 = vsub.f32 %v110, %v300
    %v313 = vsub.f32 %v111, %v300
    %v314 = vsub.f32 %v112, %v300
    %v315 = vsub.f32 %v113, %v300
    %v316 = vsub.f32 %v114, %v300
    %v317 = vsub.f32 %v115, %v300
    %v318 = vsub.f32 %v116, %v300
    %v319 = vsub.f32 %v117, %v300
    %v320 = vsub.f32 %v118, %v300
    %v321 = vsub.f32 %v119, %v300
    %v322 = vsub.f32 %v120, %v300
    %v323 = vsub.f32 %v121, %v300
    %v324 = vsub.f32 %v122, %v300
    %v325 = vsub.f32 %v123, %v300
    %v326 = vsub.f32 %v124, %v300
    %v327 = vsub.f32 %v125, %v300
    %v328 = vsub.f32 %v126, %v300
    %v329 = vsub.f32 %v127, %v300
    %v330 = vsub.f32 %v128, %v300
    %v331 = vsub.f32 %v129, %v300
    %v332 = vsub.f32 %v130, %v300
    %v333 = vsub.f32 %v131, %v300
    %v334 = vsub.f32 %v132, %v300
    %v335 = vsub.f32 %v133, %v300
    %v336 = vsub.f32 %v134, %v300
    %v337 = vsub.f32 %v135, %v300
    %v338 = vsub.f32 %v136, %v300
    %v339 = vsub.f32 %v137, %v300
    %v340 = vsub.f32 %v138, %v300
    %v341 = vsub.f32 %v139, %v300
    %v342 = vsub.f32 %v140, %v300
    %v343 = vsub.f32 %v141, %v300
    %v344 = vsub.f32 %v142, %v300
    %v345 = vsub.f32 %v143, %v300
    %v346 = vsub.f32 %v144, %v300
    %v347 = vsub.f32 %v145, %v300
    %v348 = vsub.f32 %v146, %v300
    %v349 = vsub.f32 %v147, %v300
    %v350 = vsub.f32 %v148, %v300
    %v351 = vsub.f32 %v149, %v300
    %v352 = vsub.f32 %v150, %v300
    %v353 = vsub.f32 %v151, %v300
    %v354 = vsub.f32 %v152, %v300
    %v355 = vsub.f32 %v153, %v300
    %v356 = vsub.f32 %v154, %v300
    %v357 = vsub.f32 %v155, %v300
    %v358 = vsub.f32 %v156, %v300
    %v359 = vsub.f32 %v157, %v300
    %v360 = vsub.f32 %v158, %v300
    %v361 = vsub.f32 %v159, %v300
    %v362 = vsub.f32 %v160, %v300
    %v363 = vsub.f32 %v161, %v300
    %v364 = vsub.f32 %v162, %v300
    %v365 = vmul.f32 %v301, %v301
    %v366 = vmul.f32 %v302, %v302
    %v367 = vmul.f32 %v303, %v303
    %v368 = vmul.f32 %v304, %v304
    %v369 = vmul.f32 %v305, %v305
    %v370 = vmul.f32 %v306, %v306
    %v371 = vmul.f32 %v307, %v307
    %v372 = vmul.f32 %v308, %v308
    %v373 = vmul.f32 %v309, %v309
    %v374 = vmul.f32 %v310, %v310
    %v375 = vmul.f32 %v311, %v311
    %v376 = vmul.f32 %v312, %v312
    %v377 = vmul.f32 %v313, %v313
    %v378 = vmul.f32 %v314, %v314
    %v379 = vmul.f32 %v315, %v315
    %v380 = vmul.f32 %v316, %v316
    %v381 = vmul.f32 %v317, %v317
    %v382 = vmul.f32 %v318, %v318
    %v383 = vmul.f32 %v319, %v319
    %v384 = vmul.f32 %v320, %v320
    %v385 = vmul.f32 %v321, %v321
    %v386 = vmul.f32 %v322, %v322
    %v387 = vmul.f32 %v323, %v323
    %v388 = vmul.f32 %v324, %v324
    %v389 = vmul.f32 %v325, %v325
    %v390 = vmul.f32 %v326, %v326
    %v391 = vmul.f32 %v327, %v327
    %v392 = vmul.f32 %v328, %v328
    %v393 = vmul.f32 %v329, %v329
    %v394 = vmul.f32 %v330, %v330
    %v395 = vmul.f32 %v331, %v331
    %v396 = vmul.f32 %v332, %v332
    %v397 = vmul.f32 %v333, %v333
    %v398 = vmul.f32 %v334, %v334
    %v399 = vmul.f32 %v335, %v335
    %v400 = vmul.f32 %v336, %v336
    %v401 = vmul.f32 %v337, %v337
    %v402 = vmul.f32 %v338, %v338
    %v403 = vmul.f32 %v339, %v339
    %v404 = vmul.f32 %v340, %v340
    %v405 = vmul.f32 %v341, %v341
    %v406 = vmul.f32 %v342, %v342
    %v407 = vmul.f32 %v343, %v343
    %v408 = vmul.f32 %v344, %v344
    %v409 = vmul.f32 %v345, %v345
    %v410 = vmul.f32 %v346, %v346
    %v411 = vmul.f32 %v347, %v347
    %v412 = vmul.f32 %v348, %v348
    %v413 = vmul.f32 %v349, %v349
    %v414 = vmul.f32 %v350, %v350
    %v415 = vmul.f32 %v351, %v351
    %v416 = vmul.f32 %v352, %v352
    %v417 = vmul.f32 %v353, %v353
    %v418 = vmul.f32 %v354, %v354
    %v419 = vmul.f32 %v355, %v355
    %v420 = vmul.f32 %v356, %v356
    %v421 = vmul.f32 %v357, %v357
    %v422 = vmul.f32 %v358, %v358
    %v423 = vmul.f32 %v359, %v359
    %v424 = vmul.f32 %v360, %v360
    %v425 = vmul.f32 %v361, %v361
    %v426 = vmul.f32 %v362, %v362
    %v427 = vmul.f32 %v363, %v363
    %v428 = vmul.f32 %v364, %v364
    %v429 = vsel %vm165, %v365, 0.0
    %v430 = vsel %vm165, %v366, 0.0
    %v431 = vadd.f32 %v429, %v430
    %v432 = vsel %vm165, %v367, 0.0
    %v433 = vadd.f32 %v431, %v432
    %v434 = vsel %vm165, %v368, 0.0
    %v435 = vadd.f32 %v433, %v434
    %v436 = vsel %vm165, %v369, 0.0
    %v437 = vadd.f32 %v435, %v436
    %v438 = vsel %vm165, %v370, 0.0
    %v439 = vadd.f32 %v437, %v438
    %v440 = vsel %vm165, %v371, 0.0
    %v441 = vadd.f32 %v439, %v440
    %v442 = vsel %vm165, %v372, 0.0
    %v443 = vadd.f32 %v441, %v442
    %v444 = vsel %vm165, %v373, 0.0
    %v445 = vadd.f32 %v443, %v444
    %v446 = vsel %vm165, %v374, 0.0
    %v447 = vadd.f32 %v445, %v446
    %v448 = vsel %vm165, %v375, 0.0
    %v449 = vadd.f32 %v447, %v448
    %v450 = vsel %vm165, %v376, 0.0
    %v451 = vadd.f32 %v449, %v450
    %v452 = vsel %vm165, %v377, 0.0
    %v453 = vadd.f32 %v451, %v452
    %v454 = vsel %vm165, %v378, 0.0
    %v455 = vadd.f32 %v453, %v454
    %v456 = vsel %vm165, %v379, 0.0
    %v457 = vadd.f32 %v455, %v456
    %v458 = vsel %vm165, %v380, 0.0
    %v459 = vadd.f32 %v457, %v458
    %v460 = vsel %vm165, %v381, 0.0
    %v461 = vadd.f32 %v459, %v460
    %v462 = vsel %vm165, %v382, 0.0
    %v463 = vadd.f32 %v461, %v462
    %v464 = vsel %vm165, %v383, 0.0
    %v465 = vadd.f32 %v463, %v464
    %v466 = vsel %vm165, %v384, 0.0
    %v467 = vadd.f32 %v465, %v466
    %v468 = vsel %vm165, %v385, 0.0
    %v469 = vadd.f32 %v467, %v468
    %v470 = vsel %vm165, %v386, 0.0
    %v471 = vadd.f32 %v469, %v470
    %v472 = vsel %vm165, %v387, 0.0
    %v473 = vadd.f32 %v471, %v472
    %v474 = vsel %vm165, %v388, 0.0
    %v475 = vadd.f32 %v473, %v474
    %v476 = vsel %vm165, %v389, 0.0
    %v477 = vadd.f32 %v475, %v476
    %v478 = vsel %vm165, %v390, 0.0
    %v479 = vadd.f32 %v477, %v478
    %v480 = vsel %vm165, %v391, 0.0
    %v481 = vadd.f32 %v479, %v480
    %v482 = vsel %vm165, %v392, 0.0
    %v483 = vadd.f32 %v481, %v482
    %v484 = vsel %vm165, %v393, 0.0
    %v485 = vadd.f32 %v483, %v484
    %v486 = vsel %vm165, %v394, 0.0
    %v487 = vadd.f32 %v485, %v486
    %v488 = vsel %vm165, %v395, 0.0
    %v489 = vadd.f32 %v487, %v488
    %v490 = vsel %vm165, %v396, 0.0
    %v491 = vadd.f32 %v489, %v490
    %v492 = vsel %vm165, %v397, 0.0
    %v493 = vadd.f32 %v491, %v492
    %v494 = vsel %vm165, %v398, 0.0
    %v495 = vadd.f32 %v493, %v494
    %v496 = vsel %vm165, %v399, 0.0
    %v497 = vadd.f32 %v495, %v496
    %v498 = vsel %vm165, %v400, 0.0
    %v499 = vadd.f32 %v497, %v498
    %v500 = vsel %vm165, %v401, 0.0
    %v501 = vadd.f32 %v499, %v500
    %v502 = vsel %vm165, %v402, 0.0
    %v503 = vadd.f32 %v501, %v502
    %v504 = vsel %vm165, %v403, 0.0
    %v505 = vadd.f32 %v503, %v504
    %v506 = vsel %vm165, %v404, 0.0
    %v507 = vadd.f32 %v505, %v506
    %v508 = vsel %vm165, %v405, 0.0
    %v509 = vadd.f32 %v507, %v508
    %v510 = vsel %vm165, %v406, 0.0
    %v511 = vadd.f32 %v509, %v510
    %v512 = vsel %vm165, %v407, 0.0
    %v513 = vadd.f32 %v511, %v512
    %v514 = vsel %vm165, %v408, 0.0
    %v515 = vadd.f32 %v513, %v514
    %v516 = vsel %vm165, %v409, 0.0
    %v517 = vadd.f32 %v515, %v516
    %v518 = vsel %vm165, %v410, 0.0
    %v519 = vadd.f32 %v517, %v518
    %v520 = vsel %vm165, %v411, 0.0
    %v521 = vadd.f32 %v519, %v520
    %v522 = vsel %vm165, %v412, 0.0
    %v523 = vadd.f32 %v521, %v522
    %v524 = vsel %vm165, %v413, 0.0
    %v525 = vadd.f32 %v523, %v524
    %v526 = vsel %vm165, %v414, 0.0
    %v527 = vadd.f32 %v525, %v526
    %v528 = vsel %vm165, %v415, 0.0
    %v529 = vadd.f32 %v527, %v528
    %v530 = vsel %vm165, %v416, 0.0
    %v531 = vadd.f32 %v529, %v530
    %v532 = vsel %vm165, %v417, 0.0
    %v533 = vadd.f32 %v531, %v532
    %v534 = vsel %vm165, %v418, 0.0
    %v535 = vadd.f32 %v533, %v534
    %v536 = vsel %vm165, %v419, 0.0
    %v537 = vadd.f32 %v535, %v536
    %v538 = vsel %vm165, %v420, 0.0
    %v539 = vadd.f32 %v537, %v538
    %v540 = vsel %vm165, %v421, 0.0
    %v541 = vadd.f32 %v539, %v540
    %v542 = vsel %vm165, %v422, 0.0
    %v543 = vadd.f32 %v541, %v542
    %v544 = vsel %vm165, %v423, 0.0
    %v545 = vadd.f32 %v543, %v544
    %v546 = vsel %vm165, %v424, 0.0
    %v547 = vadd.f32 %v545, %v546
    %v548 = vsel %vm165, %v425, 0.0
    %v549 = vadd.f32 %v547, %v548
    %v550 = vsel %vm165, %v426, 0.0
    %v551 = vadd.f32 %v549, %v550
    %v552 = vsel %vm165, %v427, 0.0
    %v553 = vadd.f32 %v551, %v552
    %v554 = vsel %vm165, %v428, 0.0
    %v555 = vadd.f32 %v553, %v554
    %v556 = vrot.slane %v555, 4
    %v557 = vadd.f32 %v555, %v556
    %v558 = vrot.slane %v557, 2
    %v559 = vadd.f32 %v557, %v558
    %v560 = vrot.slane %v559, 1
    %v561 = vadd.f32 %v559, %v560
    %v562 = vmul.f32 %v561, %v299
    %v563 = vadd.f32 %v562, 1e-05
    %v564 = vrsqrt.pop %v563
    %v565 = vmul.f32 %v163, %v564
    %v566 = vmul.f32 %v300, %v565
    %v567 = vsub.f32 %v164, %v566
    %v569 = vlaneseq
    %v570 = vshrl.u32 %v569, 7
    %v571 = vsub.s32 0, %v570
    %v572 = vrot.slane %v565, %v571
    %v574 = vmul.f32 %v99, %v572
    %v575 = vmul.f32 %v100, %v572
    %v576 = vmul.f32 %v101, %v572
    %v577 = vmul.f32 %v102, %v572
    %v578 = vmul.f32 %v103, %v572
    %v579 = vmul.f32 %v104, %v572
    %v580 = vmul.f32 %v105, %v572
    %v581 = vmul.f32 %v106, %v572
    %v582 = vmul.f32 %v107, %v572
    %v583 = vmul.f32 %v108, %v572
    %v584 = vmul.f32 %v109, %v572
    %v585 = vmul.f32 %v110, %v572
    %v586 = vmul.f32 %v111, %v572
    %v587 = vmul.f32 %v112, %v572
    %v588 = vmul.f32 %v113, %v572
    %v589 = vmul.f32 %v114, %v572
    %v590 = vmul.f32 %v115, %v572
    %v591 = vmul.f32 %v116, %v572
    %v592 = vmul.f32 %v117, %v572
    %v593 = vmul.f32 %v118, %v572
    %v594 = vmul.f32 %v119, %v572
    %v595 = vmul.f32 %v120, %v572
    %v596 = vmul.f32 %v121, %v572
    %v597 = vmul.f32 %v122, %v572
    %v598 = vmul.f32 %v123, %v572
    %v599 = vmul.f32 %v124, %v572
    %v600 = vmul.f32 %v125, %v572
    %v601 = vmul.f32 %v126, %v572
    %v602 = vmul.f32 %v127, %v572
    %v603 = vmul.f32 %v128, %v572
    %v604 = vmul.f32 %v129, %v572
    %v605 = vmul.f32 %v130, %v572
    %v606 = vmul.f32 %v131, %v572
    %v607 = vmul.f32 %v132, %v572
    %v608 = vmul.f32 %v133, %v572
    %v609 = vmul.f32 %v134, %v572
    %v610 = vmul.f32 %v135, %v572
    %v611 = vmul.f32 %v136, %v572
    %v612 = vmul.f32 %v137, %v572
    %v613 = vmul.f32 %v138, %v572
    %v614 = vmul.f32 %v139, %v572
    %v615 = vmul.f32 %v140, %v572
    %v616 = vmul.f32 %v141, %v572
    %v617 = vmul.f32 %v142, %v572
    %v618 = vmul.f32 %v143, %v572
    %v619 = vmul.f32 %v144, %v572
    %v620 = vmul.f32 %v145, %v572
    %v621 = vmul.f32 %v146, %v572
    %v622 = vmul.f32 %v147, %v572
    %v623 = vmul.f32 %v148, %v572
    %v624 = vmul.f32 %v149, %v572
    %v625 = vmul.f32 %v150, %v572
    %v626 = vmul.f32 %v151, %v572
    %v627 = vmul.f32 %v152, %v572
    %v628 = vmul.f32 %v153, %v572
    %v629 = vmul.f32 %v154, %v572
    %v630 = vmul.f32 %v155, %v572
    %v631 = vmul.f32 %v156, %v572
    %v632 = vmul.f32 %v157, %v572
    %v633 = vmul.f32 %v158, %v572
    %v634 = vmul.f32 %v159, %v572
    %v635 = vmul.f32 %v160, %v572
    %v636 = vmul.f32 %v161, %v572
    %v637 = vmul.f32 %v162, %v572
    %v639 = vlaneseq
    %v640 = vshrl.u32 %v639, 7
    %v641 = vsub.s32 0, %v640
    %v642 = vrot.slane %v567, %v641
    %v644 = vadd.f32 %v574, %v642
    %v645 = vadd.f32 %v575, %v642
    %v646 = vadd.f32 %v576, %v642
    %v647 = vadd.f32 %v577, %v642
    %v648 = vadd.f32 %v578, %v642
    %v649 = vadd.f32 %v579, %v642
    %v650 = vadd.f32 %v580, %v642
    %v651 = vadd.f32 %v581, %v642
    %v652 = vadd.f32 %v582, %v642
    %v653 = vadd.f32 %v583, %v642
    %v654 = vadd.f32 %v584, %v642
    %v655 = vadd.f32 %v585, %v642
    %v656 = vadd.f32 %v586, %v642
    %v657 = vadd.f32 %v587, %v642
    %v658 = vadd.f32 %v588, %v642
    %v659 = vadd.f32 %v589, %v642
    %v660 = vadd.f32 %v590, %v642
    %v661 = vadd.f32 %v591, %v642
    %v662 = vadd.f32 %v592, %v642
    %v663 = vadd.f32 %v593, %v642
    %v664 = vadd.f32 %v594, %v642
    %v665 = vadd.f32 %v595, %v642
    %v666 = vadd.f32 %v596, %v642
    %v667 = vadd.f32 %v597, %v642
    %v668 = vadd.f32 %v598, %v642
    %v669 = vadd.f32 %v599, %v642
    %v670 = vadd.f32 %v600, %v642
    %v671 = vadd.f32 %v601, %v642
    %v672 = vadd.f32 %v602, %v642
    %v673 = vadd.f32 %v603, %v642
    %v674 = vadd.f32 %v604, %v642
    %v675 = vadd.f32 %v605, %v642
    %v676 = vadd.f32 %v606, %v642
    %v677 = vadd.f32 %v607, %v642
    %v678 = vadd.f32 %v608, %v642
    %v679 = vadd.f32 %v609, %v642
    %v680 = vadd.f32 %v610, %v642
    %v681 = vadd.f32 %v611, %v642
    %v682 = vadd.f32 %v612, %v642
    %v683 = vadd.f32 %v613, %v642
    %v684 = vadd.f32 %v614, %v642
    %v685 = vadd.f32 %v615, %v642
    %v686 = vadd.f32 %v616, %v642
    %v687 = vadd.f32 %v617, %v642
    %v688 = vadd.f32 %v618, %v642
    %v689 = vadd.f32 %v619, %v642
    %v690 = vadd.f32 %v620, %v642
    %v691 = vadd.f32 %v621, %v642
    %v692 = vadd.f32 %v622, %v642
    %v693 = vadd.f32 %v623, %v642
    %v694 = vadd.f32 %v624, %v642
    %v695 = vadd.f32 %v625, %v642
    %v696 = vadd.f32 %v626, %v642
    %v697 = vadd.f32 %v627, %v642
    %v698 = vadd.f32 %v628, %v642
    %v699 = vadd.f32 %v629, %v642
    %v700 = vadd.f32 %v630, %v642
    %v701 = vadd.f32 %v631, %v642
    %v702 = vadd.f32 %v632, %v642
    %v703 = vadd.f32 %v633, %v642
    %v704 = vadd.f32 %v634, %v642
    %v705 = vadd.f32 %v635, %v642
    %v706 = vadd.f32 %v636, %v642
    %v707 = vadd.f32 %v637, %v642
    %v708 = vld [vmem:[#allocation5] sm:$0xff]
    %v709 = vld [vmem:[#allocation5 + $0x8] sm:$0xff]
    %v710 = vld [vmem:[#allocation5 + $0x10] sm:$0xff]
    %v711 = vld [vmem:[#allocation5 + $0x18] sm:$0xff]
    %v712 = vld [vmem:[#allocation5 + $0x20] sm:$0xff]
    %v713 = vld [vmem:[#allocation5 + $0x28] sm:$0xff]
    %v714 = vld [vmem:[#allocation5 + $0x30] sm:$0xff]
    %v715 = vld [vmem:[#allocation5 + $0x38] sm:$0xff]
    %v716 = vld [vmem:[#allocation5 + $0x40] sm:$0xff]
    %v717 = vld [vmem:[#allocation5 + $0x48] sm:$0xff]
    %v718 = vld [vmem:[#allocation5 + $0x50] sm:$0xff]
    %v719 = vld [vmem:[#allocation5 + $0x58] sm:$0xff]
    %v720 = vld [vmem:[#allocation5 + $0x60] sm:$0xff]
    %v721 = vld [vmem:[#allocation5 + $0x68] sm:$0xff]
    %v722 = vld [vmem:[#allocation5 + $0x70] sm:$0xff]
    %v723 = vld [vmem:[#allocation5 + $0x78] sm:$0xff]
    %v724 = vld [vmem:[#allocation5 + $0x80] sm:$0xff]
    %v725 = vld [vmem:[#allocation5 + $0x88] sm:$0xff]
    %vm791 = vcmask 1040384
    %v792 = vrot.slane 0.0, 7
    %v793 = vsel %vm791, %v792, %v792
    %v794 = vrot.slane %v644, 7
    %v795 = vrot.slane %v645, 7
    %v796 = vsel %vm791, %v794, %v795
    %v797 = vrot.slane %v646, 7
    %v798 = vrot.slane %v647, 7
    %v799 = vsel %vm791, %v797, %v798
    %v800 = vrot.slane %v648, 7
    %v801 = vrot.slane %v649, 7
    %v802 = vsel %vm791, %v800, %v801
    %v803 = vrot.slane %v650, 7
    %v804 = vrot.slane %v651, 7
    %v805 = vsel %vm791, %v803, %v804
    %v806 = vrot.slane %v652, 7
    %v807 = vrot.slane %v653, 7
    %v808 = vsel %vm791, %v806, %v807
    %v809 = vrot.slane %v654, 7
    %v810 = vrot.slane %v655, 7
    %v811 = vsel %vm791, %v809, %v810
    %v812 = vrot.slane %v656, 7
    %v813 = vrot.slane %v657, 7
    %v814 = vsel %vm791, %v812, %v813
    %v815 = vrot.slane %v658, 7
    %v816 = vrot.slane %v659, 7
    %v817 = vsel %vm791, %v815, %v816
    %v818 = vrot.slane %v660, 7
    %v819 = vrot.slane %v661, 7
    %v820 = vsel %vm791, %v818, %v819
    %v821 = vrot.slane %v662, 7
    %v822 = vrot.slane %v663, 7
    %v823 = vsel %vm791, %v821, %v822
    %v824 = vrot.slane %v664, 7
    %v825 = vrot.slane %v665, 7
    %v826 = vsel %vm791, %v824, %v825
    %v827 = vrot.slane %v666, 7
    %v828 = vrot.slane %v667, 7
    %v829 = vsel %vm791, %v827, %v828
    %v830 = vrot.slane %v668, 7
    %v831 = vrot.slane %v669, 7
    %v832 = vsel %vm791, %v830, %v831
    %v833 = vrot.slane %v670, 7
    %v834 = vrot.slane %v671, 7
    %v835 = vsel %vm791, %v833, %v834
    %v836 = vrot.slane %v672, 7
    %v837 = vrot.slane %v673, 7
    %v838 = vsel %vm791, %v836, %v837
    %v839 = vrot.slane %v674, 7
    %v840 = vrot.slane %v675, 7
    %v841 = vsel %vm791, %v839, %v840
    %v842 = vrot.slane %v676, 7
    %v843 = vrot.slane %v677, 7
    %v844 = vsel %vm791, %v842, %v843
    %v845 = vrot.slane %v678, 7
    %v846 = vrot.slane %v679, 7
    %v847 = vsel %vm791, %v845, %v846
    %v848 = vrot.slane %v680, 7
    %v849 = vrot.slane %v681, 7
    %v850 = vsel %vm791, %v848, %v849
    %v851 = vrot.slane %v682, 7
    %v852 = vrot.slane %v683, 7
    %v853 = vsel %vm791, %v851, %v852
    %v854 = vrot.slane %v684, 7
    %v855 = vrot.slane %v685, 7
    %v856 = vsel %vm791, %v854, %v855
    %v857 = vrot.slane %v686, 7
    %v858 = vrot.slane %v687, 7
    %v859 = vsel %vm791, %v857, %v858
    %v860 = vrot.slane %v688, 7
    %v861 = vrot.slane %v689, 7
    %v862 = vsel %vm791, %v860, %v861
    %v863 = vrot.slane %v690, 7
    %v864 = vrot.slane %v691, 7
    %v865 = vsel %vm791, %v863, %v864
    %v866 = vrot.slane %v692, 7
    %v867 = vrot.slane %v693, 7
    %v868 = vsel %vm791, %v866, %v867
    %v869 = vrot.slane %v694, 7
    %v870 = vrot.slane %v695, 7
    %v871 = vsel %vm791, %v869, %v870
    %v872 = vrot.slane %v696, 7
    %v873 = vrot.slane %v697, 7
    %v874 = vsel %vm791, %v872, %v873
    %v875 = vrot.slane %v698, 7
    %v876 = vrot.slane %v699, 7
    %v877 = vsel %vm791, %v875, %v876
    %v878 = vrot.slane %v700, 7
    %v879 = vrot.slane %v701, 7
    %v880 = vsel %vm791, %v878, %v879
    %v881 = vrot.slane %v702, 7
    %v882 = vrot.slane %v703, 7
    %v883 = vsel %vm791, %v881, %v882
    %v884 = vrot.slane %v704, 7
    %v885 = vrot.slane %v705, 7
    %v886 = vsel %vm791, %v884, %v885
    %v887 = vrot.slane %v706, 7
    %v888 = vrot.slane %v707, 7
    %v889 = vsel %vm791, %v887, %v888
    %v986 = vsel %vm791, 0.0, %v792
    %v987 = vsel %vm791, 0.0, %v794
    %v988 = vsel %vm791, 0.0, %v797
    %v989 = vsel %vm791, 0.0, %v800
    %v990 = vsel %vm791, 0.0, %v803
    %v991 = vsel %vm791, 0.0, %v806
    %v992 = vsel %vm791, 0.0, %v809
    %v993 = vsel %vm791, 0.0, %v812
    %v994 = vsel %vm791, 0.0, %v815
    %v995 = vsel %vm791, 0.0, %v818
    %v996 = vsel %vm791, 0.0, %v821
    %v997 = vsel %vm791, 0.0, %v824
    %v998 = vsel %vm791, 0.0, %v827
    %v999 = vsel %vm791, 0.0, %v830
    %v1000 = vsel %vm791, 0.0, %v833
    %v1001 = vsel %vm791, 0.0, %v836
    %v1002 = vsel %vm791, 0.0, %v839
    %v1003 = vsel %vm791, 0.0, %v842
    %v1004 = vsel %vm791, 0.0, %v845
    %v1005 = vsel %vm791, 0.0, %v848
    %v1006 = vsel %vm791, 0.0, %v851
    %v1007 = vsel %vm791, 0.0, %v854
    %v1008 = vsel %vm791, 0.0, %v857
    %v1009 = vsel %vm791, 0.0, %v860
    %v1010 = vsel %vm791, 0.0, %v863
    %v1011 = vsel %vm791, 0.0, %v866
    %v1012 = vsel %vm791, 0.0, %v869
    %v1013 = vsel %vm791, 0.0, %v872
    %v1014 = vsel %vm791, 0.0, %v875
    %v1015 = vsel %vm791, 0.0, %v878
    %v1016 = vsel %vm791, 0.0, %v881
    %v1017 = vsel %vm791, 0.0, %v884
    %v1018 = vsel %vm791, 0.0, %v887
    %v1019 = vsel %vm791, %v792, 0.0
    %v1020 = vsel %vm791, %v795, 0.0
    %v1021 = vsel %vm791, %v798, 0.0
    %v1022 = vsel %vm791, %v801, 0.0
    %v1023 = vsel %vm791, %v804, 0.0
    %v1024 = vsel %vm791, %v807, 0.0
    %v1025 = vsel %vm791, %v810, 0.0
    %v1026 = vsel %vm791, %v813, 0.0
    %v1027 = vsel %vm791, %v816, 0.0
    %v1028 = vsel %vm791, %v819, 0.0
    %v1029 = vsel %vm791, %v822, 0.0
    %v1030 = vsel %vm791, %v825, 0.0
    %v1031 = vsel %vm791, %v828, 0.0
    %v1032 = vsel %vm791, %v831, 0.0
    %v1033 = vsel %vm791, %v834, 0.0
    %v1034 = vsel %vm791, %v837, 0.0
    %v1035 = vsel %vm791, %v840, 0.0
    %v1036 = vsel %vm791, %v843, 0.0
    %v1037 = vsel %vm791, %v846, 0.0
    %v1038 = vsel %vm791, %v849, 0.0
    %v1039 = vsel %vm791, %v852, 0.0
    %v1040 = vsel %vm791, %v855, 0.0
    %v1041 = vsel %vm791, %v858, 0.0
    %v1042 = vsel %vm791, %v861, 0.0
    %v1043 = vsel %vm791, %v864, 0.0
    %v1044 = vsel %vm791, %v867, 0.0
    %v1045 = vsel %vm791, %v870, 0.0
    %v1046 = vsel %vm791, %v873, 0.0
    %v1047 = vsel %vm791, %v876, 0.0
    %v1048 = vsel %vm791, %v879, 0.0
    %v1049 = vsel %vm791, %v882, 0.0
    %v1050 = vsel %vm791, %v885, 0.0
    %v1051 = vsel %vm791, %v888, 0.0
    %vm1114 = vcmask 1046528
    %v1115 = vrot.slane %v986, 1
    %v1116 = vrot.slane %v793, 1
    %v1117 = vsel %vm1114, %v1115, %v1116
    %v1118 = vrot.slane %v1019, 1
    %v1119 = vsel %vm1114, %v1116, %v1118
    %v1120 = vrot.slane %v987, 1
    %v1121 = vrot.slane %v796, 1
    %v1122 = vsel %vm1114, %v1120, %v1121
    %v1123 = vrot.slane %v1020, 1
    %v1124 = vsel %vm1114, %v1121, %v1123
    %v1125 = vrot.slane %v988, 1
    %v1126 = vrot.slane %v799, 1
    %v1127 = vsel %vm1114, %v1125, %v1126
    %v1128 = vrot.slane %v1021, 1
    %v1129 = vsel %vm1114, %v1126, %v1128
    %v1130 = vrot.slane %v989, 1
    %v1131 = vrot.slane %v802, 1
    %v1132 = vsel %vm1114, %v1130, %v1131
    %v1133 = vrot.slane %v1022, 1
    %v1134 = vsel %vm1114, %v1131, %v1133
    %v1135 = vrot.slane %v990, 1
    %v1136 = vrot.slane %v805, 1
    %v1137 = vsel %vm1114, %v1135, %v1136
    %v1138 = vrot.slane %v1023, 1
    %v1139 = vsel %vm1114, %v1136, %v1138
    %v1140 = vrot.slane %v991, 1
    %v1141 = vrot.slane %v808, 1
    %v1142 = vsel %vm1114, %v1140, %v1141
    %v1143 = vrot.slane %v1024, 1
    %v1144 = vsel %vm1114, %v1141, %v1143
    %v1145 = vrot.slane %v992, 1
    %v1146 = vrot.slane %v811, 1
    %v1147 = vsel %vm1114, %v1145, %v1146
    %v1148 = vrot.slane %v1025, 1
    %v1149 = vsel %vm1114, %v1146, %v1148
    %v1150 = vrot.slane %v993, 1
    %v1151 = vrot.slane %v814, 1
    %v1152 = vsel %vm1114, %v1150, %v1151
    %v1153 = vrot.slane %v1026, 1
    %v1154 = vsel %vm1114, %v1151, %v1153
    %v1155 = vrot.slane %v994, 1
    %v1156 = vrot.slane %v817, 1
    %v1157 = vsel %vm1114, %v1155, %v1156
    %v1158 = vrot.slane %v1027, 1
    %v1159 = vsel %vm1114, %v1156, %v1158
    %v1160 = vrot.slane %v995, 1
    %v1161 = vrot.slane %v820, 1
    %v1162 = vsel %vm1114, %v1160, %v1161
    %v1163 = vrot.slane %v1028, 1
    %v1164 = vsel %vm1114, %v1161, %v1163
    %v1165 = vrot.slane %v996, 1
    %v1166 = vrot.slane %v823, 1
    %v1167 = vsel %vm1114, %v1165, %v1166
    %v1168 = vrot.slane %v1029, 1
    %v1169 = vsel %vm1114, %v1166, %v1168
    %v1170 = vrot.slane %v997, 1
    %v1171 = vrot.slane %v826, 1
    %v1172 = vsel %vm1114, %v1170, %v1171
    %v1173 = vrot.slane %v1030, 1
    %v1174 = vsel %vm1114, %v1171, %v1173
    %v1175 = vrot.slane %v998, 1
    %v1176 = vrot.slane %v829, 1
    %v1177 = vsel %vm1114, %v1175, %v1176
    %v1178 = vrot.slane %v1031, 1
    %v1179 = vsel %vm1114, %v1176, %v1178
    %v1180 = vrot.slane %v999, 1
    %v1181 = vrot.slane %v832, 1
    %v1182 = vsel %vm1114, %v1180, %v1181
    %v1183 = vrot.slane %v1032, 1
    %v1184 = vsel %vm1114, %v1181, %v1183
    %v1185 = vrot.slane %v1000, 1
    %v1186 = vrot.slane %v835, 1
    %v1187 = vsel %vm1114, %v1185, %v1186
    %v1188 = vrot.slane %v1033, 1
    %v1189 = vsel %vm1114, %v1186, %v1188
    %v1190 = vrot.slane %v1001, 1
    %v1191 = vrot.slane %v838, 1
    %v1192 = vsel %vm1114, %v1190, %v1191
    %v1193 = vrot.slane %v1034, 1
    %v1194 = vsel %vm1114, %v1191, %v1193
    %v1195 = vrot.slane %v1003, 1
    %v1196 = vrot.slane %v844, 1
    %v1197 = vsel %vm1114, %v1195, %v1196
    %v1198 = vrot.slane %v1036, 1
    %v1199 = vsel %vm1114, %v1196, %v1198
    %v1200 = vrot.slane %v1004, 1
    %v1201 = vrot.slane %v847, 1
    %v1202 = vsel %vm1114, %v1200, %v1201
    %v1203 = vrot.slane %v1037, 1
    %v1204 = vsel %vm1114, %v1201, %v1203
    %v1205 = vrot.slane %v1005, 1
    %v1206 = vrot.slane %v850, 1
    %v1207 = vsel %vm1114, %v1205, %v1206
    %v1208 = vrot.slane %v1038, 1
    %v1209 = vsel %vm1114, %v1206, %v1208
    %v1210 = vrot.slane %v1006, 1
    %v1211 = vrot.slane %v853, 1
    %v1212 = vsel %vm1114, %v1210, %v1211
    %v1213 = vrot.slane %v1039, 1
    %v1214 = vsel %vm1114, %v1211, %v1213
    %v1215 = vrot.slane %v1007, 1
    %v1216 = vrot.slane %v856, 1
    %v1217 = vsel %vm1114, %v1215, %v1216
    %v1218 = vrot.slane %v1040, 1
    %v1219 = vsel %vm1114, %v1216, %v1218
    %v1220 = vrot.slane %v1008, 1
    %v1221 = vrot.slane %v859, 1
    %v1222 = vsel %vm1114, %v1220, %v1221
    %v1223 = vrot.slane %v1041, 1
    %v1224 = vsel %vm1114, %v1221, %v1223
    %v1225 = vrot.slane %v1009, 1
    %v1226 = vrot.slane %v862, 1
    %v1227 = vsel %vm1114, %v1225, %v1226
    %v1228 = vrot.slane %v1042, 1
    %v1229 = vsel %vm1114, %v1226, %v1228
    %v1230 = vrot.slane %v1010, 1
    %v1231 = vrot.slane %v865, 1
    %v1232 = vsel %vm1114, %v1230, %v1231
    %v1233 = vrot.slane %v1043, 1
    %v1234 = vsel %vm1114, %v1231, %v1233
    %v1235 = vrot.slane %v1011, 1
    %v1236 = vrot.slane %v868, 1
    %v1237 = vsel %vm1114, %v1235, %v1236
    %v1238 = vrot.slane %v1044, 1
    %v1239 = vsel %vm1114, %v1236, %v1238
    %v1240 = vrot.slane %v1012, 1
    %v1241 = vrot.slane %v871, 1
    %v1242 = vsel %vm1114, %v1240, %v1241
    %v1243 = vrot.slane %v1045, 1
    %v1244 = vsel %vm1114, %v1241, %v1243
    %v1245 = vrot.slane %v1013, 1
    %v1246 = vrot.slane %v874, 1
    %v1247 = vsel %vm1114, %v1245, %v1246
    %v1248 = vrot.slane %v1046, 1
    %v1249 = vsel %vm1114, %v1246, %v1248
    %v1250 = vrot.slane %v1014, 1
    %v1251 = vrot.slane %v877, 1
    %v1252 = vsel %vm1114, %v1250, %v1251
    %v1253 = vrot.slane %v1047, 1
    %v1254 = vsel %vm1114, %v1251, %v1253
    %v1255 = vrot.slane %v1015, 1
    %v1256 = vrot.slane %v880, 1
    %v1257 = vsel %vm1114, %v1255, %v1256
    %v1258 = vrot.slane %v1048, 1
    %v1259 = vsel %vm1114, %v1256, %v1258
    %v1260 = vrot.slane %v1016, 1
    %v1261 = vrot.slane %v883, 1
    %v1262 = vsel %vm1114, %v1260, %v1261
    %v1263 = vrot.slane %v1049, 1
    %v1264 = vsel %vm1114, %v1261, %v1263
    %v1265 = vrot.slane %v1017, 1
    %v1266 = vrot.slane %v886, 1
    %v1267 = vsel %vm1114, %v1265, %v1266
    %v1268 = vrot.slane %v1050, 1
    %v1269 = vsel %vm1114, %v1266, %v1268
    %vm1270 = vcmask 1045504
    %v1271 = vrot.slane %v986, 2
    %v1272 = vrot.slane %v793, 2
    %v1273 = vsel %vm1270, %v1271, %v1272
    %v1274 = vrot.slane %v1019, 2
    %v1275 = vsel %vm1270, %v1272, %v1274
    %v1276 = vrot.slane %v987, 2
    %v1277 = vrot.slane %v796, 2
    %v1278 = vsel %vm1270, %v1276, %v1277
    %v1279 = vrot.slane %v1020, 2
    %v1280 = vsel %vm1270, %v1277, %v1279
    %v1281 = vrot.slane %v988, 2
    %v1282 = vrot.slane %v799, 2
    %v1283 = vsel %vm1270, %v1281, %v1282
    %v1284 = vrot.slane %v1021, 2
    %v1285 = vsel %vm1270, %v1282, %v1284
    %v1286 = vrot.slane %v989, 2
    %v1287 = vrot.slane %v802, 2
    %v1288 = vsel %vm1270, %v1286, %v1287
    %v1289 = vrot.slane %v1022, 2
    %v1290 = vsel %vm1270, %v1287, %v1289
    %v1291 = vrot.slane %v990, 2
    %v1292 = vrot.slane %v805, 2
    %v1293 = vsel %vm1270, %v1291, %v1292
    %v1294 = vrot.slane %v1023, 2
    %v1295 = vsel %vm1270, %v1292, %v1294
    %v1296 = vrot.slane %v991, 2
    %v1297 = vrot.slane %v808, 2
    %v1298 = vsel %vm1270, %v1296, %v1297
    %v1299 = vrot.slane %v1024, 2
    %v1300 = vsel %vm1270, %v1297, %v1299
    %v1301 = vrot.slane %v992, 2
    %v1302 = vrot.slane %v811, 2
    %v1303 = vsel %vm1270, %v1301, %v1302
    %v1304 = vrot.slane %v1025, 2
    %v1305 = vsel %vm1270, %v1302, %v1304
    %v1306 = vrot.slane %v993, 2
    %v1307 = vrot.slane %v814, 2
    %v1308 = vsel %vm1270, %v1306, %v1307
    %v1309 = vrot.slane %v1026, 2
    %v1310 = vsel %vm1270, %v1307, %v1309
    %v1311 = vrot.slane %v994, 2
    %v1312 = vrot.slane %v817, 2
    %v1313 = vsel %vm1270, %v1311, %v1312
    %v1314 = vrot.slane %v1027, 2
    %v1315 = vsel %vm1270, %v1312, %v1314
    %v1316 = vrot.slane %v995, 2
    %v1317 = vrot.slane %v820, 2
    %v1318 = vsel %vm1270, %v1316, %v1317
    %v1319 = vrot.slane %v1028, 2
    %v1320 = vsel %vm1270, %v1317, %v1319
    %v1321 = vrot.slane %v996, 2
    %v1322 = vrot.slane %v823, 2
    %v1323 = vsel %vm1270, %v1321, %v1322
    %v1324 = vrot.slane %v1029, 2
    %v1325 = vsel %vm1270, %v1322, %v1324
    %v1326 = vrot.slane %v997, 2
    %v1327 = vrot.slane %v826, 2
    %v1328 = vsel %vm1270, %v1326, %v1327
    %v1329 = vrot.slane %v1030, 2
    %v1330 = vsel %vm1270, %v1327, %v1329
    %v1331 = vrot.slane %v998, 2
    %v1332 = vrot.slane %v829, 2
    %v1333 = vsel %vm1270, %v1331, %v1332
    %v1334 = vrot.slane %v1031, 2
    %v1335 = vsel %vm1270, %v1332, %v1334
    %v1336 = vrot.slane %v999, 2
    %v1337 = vrot.slane %v832, 2
    %v1338 = vsel %vm1270, %v1336, %v1337
    %v1339 = vrot.slane %v1032, 2
    %v1340 = vsel %vm1270, %v1337, %v1339
    %v1341 = vrot.slane %v1000, 2
    %v1342 = vrot.slane %v835, 2
    %v1343 = vsel %vm1270, %v1341, %v1342
    %v1344 = vrot.slane %v1033, 2
    %v1345 = vsel %vm1270, %v1342, %v1344
    %v1346 = vrot.slane %v1001, 2
    %v1347 = vrot.slane %v838, 2
    %v1348 = vsel %vm1270, %v1346, %v1347
    %v1349 = vrot.slane %v1034, 2
    %v1350 = vsel %vm1270, %v1347, %v1349
    %v1351 = vrot.slane %v1003, 2
    %v1352 = vrot.slane %v844, 2
    %v1353 = vsel %vm1270, %v1351, %v1352
    %v1354 = vrot.slane %v1036, 2
    %v1355 = vsel %vm1270, %v1352, %v1354
    %v1356 = vrot.slane %v1004, 2
    %v1357 = vrot.slane %v847, 2
    %v1358 = vsel %vm1270, %v1356, %v1357
    %v1359 = vrot.slane %v1037, 2
    %v1360 = vsel %vm1270, %v1357, %v1359
    %v1361 = vrot.slane %v1005, 2
    %v1362 = vrot.slane %v850, 2
    %v1363 = vsel %vm1270, %v1361, %v1362
    %v1364 = vrot.slane %v1038, 2
    %v1365 = vsel %vm1270, %v1362, %v1364
    %v1366 = vrot.slane %v1006, 2
    %v1367 = vrot.slane %v853, 2
    %v1368 = vsel %vm1270, %v1366, %v1367
    %v1369 = vrot.slane %v1039, 2
    %v1370 = vsel %vm1270, %v1367, %v1369
    %v1371 = vrot.slane %v1007, 2
    %v1372 = vrot.slane %v856, 2
    %v1373 = vsel %vm1270, %v1371, %v1372
    %v1374 = vrot.slane %v1040, 2
    %v1375 = vsel %vm1270, %v1372, %v1374
    %v1376 = vrot.slane %v1008, 2
    %v1377 = vrot.slane %v859, 2
    %v1378 = vsel %vm1270, %v1376, %v1377
    %v1379 = vrot.slane %v1041, 2
    %v1380 = vsel %vm1270, %v1377, %v1379
    %v1381 = vrot.slane %v1009, 2
    %v1382 = vrot.slane %v862, 2
    %v1383 = vsel %vm1270, %v1381, %v1382
    %v1384 = vrot.slane %v1042, 2
    %v1385 = vsel %vm1270, %v1382, %v1384
    %v1386 = vrot.slane %v1010, 2
    %v1387 = vrot.slane %v865, 2
    %v1388 = vsel %vm1270, %v1386, %v1387
    %v1389 = vrot.slane %v1043, 2
    %v1390 = vsel %vm1270, %v1387, %v1389
    %v1391 = vrot.slane %v1011, 2
    %v1392 = vrot.slane %v868, 2
    %v1393 = vsel %vm1270, %v1391, %v1392
    %v1394 = vrot.slane %v1044, 2
    %v1395 = vsel %vm1270, %v1392, %v1394
    %v1396 = vrot.slane %v1012, 2
    %v1397 = vrot.slane %v871, 2
    %v1398 = vsel %vm1270, %v1396, %v1397
    %v1399 = vrot.slane %v1045, 2
    %v1400 = vsel %vm1270, %v1397, %v1399
    %v1401 = vrot.slane %v1013, 2
    %v1402 = vrot.slane %v874, 2
    %v1403 = vsel %vm1270, %v1401, %v1402
    %v1404 = vrot.slane %v1046, 2
    %v1405 = vsel %vm1270, %v1402, %v1404
    %v1406 = vrot.slane %v1014, 2
    %v1407 = vrot.slane %v877, 2
    %v1408 = vsel %vm1270, %v1406, %v1407
    %v1409 = vrot.slane %v1047, 2
    %v1410 = vsel %vm1270, %v1407, %v1409
    %v1411 = vrot.slane %v1015, 2
    %v1412 = vrot.slane %v880, 2
    %v1413 = vsel %vm1270, %v1411, %v1412
    %v1414 = vrot.slane %v1048, 2
    %v1415 = vsel %vm1270, %v1412, %v1414
    %v1416 = vrot.slane %v1016, 2
    %v1417 = vrot.slane %v883, 2
    %v1418 = vsel %vm1270, %v1416, %v1417
    %v1419 = vrot.slane %v1049, 2
    %v1420 = vsel %vm1270, %v1417, %v1419
    %v1421 = vrot.slane %v1017, 2
    %v1422 = vrot.slane %v886, 2
    %v1423 = vsel %vm1270, %v1421, %v1422
    %v1424 = vrot.slane %v1050, 2
    %v1425 = vsel %vm1270, %v1422, %v1424
    %v1430 = vrot.slane %v1002, 1
    %v1431 = vrot.slane %v841, 1
    %v1432 = vsel %vm1114, %v1430, %v1431
    %v1433 = vrot.slane %v1035, 1
    %v1434 = vsel %vm1114, %v1431, %v1433
    %v1435 = vrot.slane %v1018, 1
    %v1436 = vrot.slane %v889, 1
    %v1437 = vsel %vm1114, %v1435, %v1436
    %v1438 = vrot.slane %v1051, 1
    %v1439 = vsel %vm1114, %v1436, %v1438
    %v1440 = vrot.slane %v1002, 2
    %v1441 = vrot.slane %v841, 2
    %v1442 = vsel %vm1270, %v1440, %v1441
    %v1443 = vrot.slane %v1035, 2
    %v1444 = vsel %vm1270, %v1441, %v1443
    %v1445 = vrot.slane %v1018, 2
    %v1446 = vrot.slane %v889, 2
    %v1447 = vsel %vm1270, %v1445, %v1446
    %v1448 = vrot.slane %v1051, 2
    %v1449 = vsel %vm1270, %v1446, %v1448
    %1512 = vrot.lane.b32.xlu0 %v1117, 16
    %v1513 = vpop.permute.xlu0 %1512
    %1514 = vrot.lane.b32.xlu0 %v1119, 16
    %v1515 = vpop.permute.xlu0 %1514
    %1516 = vrot.lane.b32.xlu0 %v1122, 16
    %v1517 = vpop.permute.xlu0 %1516
    %1518 = vrot.lane.b32.xlu0 %v1124, 16
    %v1519 = vpop.permute.xlu0 %1518
    %1520 = vrot.lane.b32.xlu0 %v1127, 16
    %v1521 = vpop.permute.xlu0 %1520
    %1522 = vrot.lane.b32.xlu0 %v1129, 16
    %v1523 = vpop.permute.xlu0 %1522
    %1524 = vrot.lane.b32.xlu0 %v1132, 16
    %v1525 = vpop.permute.xlu0 %1524
    %1526 = vrot.lane.b32.xlu0 %v1134, 16
    %v1527 = vpop.permute.xlu0 %1526
    %1528 = vrot.lane.b32.xlu0 %v1137, 16
    %v1529 = vpop.permute.xlu0 %1528
    %1530 = vrot.lane.b32.xlu0 %v1139, 16
    %v1531 = vpop.permute.xlu0 %1530
    %1532 = vrot.lane.b32.xlu0 %v1142, 16
    %v1533 = vpop.permute.xlu0 %1532
    %1534 = vrot.lane.b32.xlu0 %v1144, 16
    %v1535 = vpop.permute.xlu0 %1534
    %1536 = vrot.lane.b32.xlu0 %v1147, 16
    %v1537 = vpop.permute.xlu0 %1536
    %1538 = vrot.lane.b32.xlu0 %v1149, 16
    %v1539 = vpop.permute.xlu0 %1538
    %1540 = vrot.lane.b32.xlu0 %v1152, 16
    %v1541 = vpop.permute.xlu0 %1540
    %1542 = vrot.lane.b32.xlu0 %v1154, 16
    %v1543 = vpop.permute.xlu0 %1542
    %1544 = vrot.lane.b32.xlu0 %v1157, 16
    %v1545 = vpop.permute.xlu0 %1544
    %1546 = vrot.lane.b32.xlu0 %v1159, 16
    %v1547 = vpop.permute.xlu0 %1546
    %1548 = vrot.lane.b32.xlu0 %v1162, 16
    %v1549 = vpop.permute.xlu0 %1548
    %1550 = vrot.lane.b32.xlu0 %v1164, 16
    %v1551 = vpop.permute.xlu0 %1550
    %1552 = vrot.lane.b32.xlu0 %v1167, 16
    %v1553 = vpop.permute.xlu0 %1552
    %1554 = vrot.lane.b32.xlu0 %v1169, 16
    %v1555 = vpop.permute.xlu0 %1554
    %1556 = vrot.lane.b32.xlu0 %v1172, 16
    %v1557 = vpop.permute.xlu0 %1556
    %1558 = vrot.lane.b32.xlu0 %v1174, 16
    %v1559 = vpop.permute.xlu0 %1558
    %1560 = vrot.lane.b32.xlu0 %v1177, 16
    %v1561 = vpop.permute.xlu0 %1560
    %1562 = vrot.lane.b32.xlu0 %v1179, 16
    %v1563 = vpop.permute.xlu0 %1562
    %1564 = vrot.lane.b32.xlu0 %v1182, 16
    %v1565 = vpop.permute.xlu0 %1564
    %1566 = vrot.lane.b32.xlu0 %v1184, 16
    %v1567 = vpop.permute.xlu0 %1566
    %1568 = vrot.lane.b32.xlu0 %v1187, 16
    %v1569 = vpop.permute.xlu0 %1568
    %1570 = vrot.lane.b32.xlu0 %v1189, 16
    %v1571 = vpop.permute.xlu0 %1570
    %1572 = vrot.lane.b32.xlu0 %v1192, 16
    %v1573 = vpop.permute.xlu0 %1572
    %1574 = vrot.lane.b32.xlu0 %v1194, 16
    %v1575 = vpop.permute.xlu0 %1574
    %1576 = vrot.lane.b32.xlu0 %v1197, 16
    %v1577 = vpop.permute.xlu0 %1576
    %1578 = vrot.lane.b32.xlu0 %v1199, 16
    %v1579 = vpop.permute.xlu0 %1578
    %1580 = vrot.lane.b32.xlu0 %v1202, 16
    %v1581 = vpop.permute.xlu0 %1580
    %1582 = vrot.lane.b32.xlu0 %v1204, 16
    %v1583 = vpop.permute.xlu0 %1582
    %1584 = vrot.lane.b32.xlu0 %v1207, 16
    %v1585 = vpop.permute.xlu0 %1584
    %1586 = vrot.lane.b32.xlu0 %v1209, 16
    %v1587 = vpop.permute.xlu0 %1586
    %1588 = vrot.lane.b32.xlu0 %v1212, 16
    %v1589 = vpop.permute.xlu0 %1588
    %1590 = vrot.lane.b32.xlu0 %v1214, 16
    %v1591 = vpop.permute.xlu0 %1590
    %1592 = vrot.lane.b32.xlu0 %v1217, 16
    %v1593 = vpop.permute.xlu0 %1592
    %1594 = vrot.lane.b32.xlu0 %v1219, 16
    %v1595 = vpop.permute.xlu0 %1594
    %1596 = vrot.lane.b32.xlu0 %v1222, 16
    %v1597 = vpop.permute.xlu0 %1596
    %1598 = vrot.lane.b32.xlu0 %v1224, 16
    %v1599 = vpop.permute.xlu0 %1598
    %1600 = vrot.lane.b32.xlu0 %v1227, 16
    %v1601 = vpop.permute.xlu0 %1600
    %1602 = vrot.lane.b32.xlu0 %v1229, 16
    %v1603 = vpop.permute.xlu0 %1602
    %1604 = vrot.lane.b32.xlu0 %v1232, 16
    %v1605 = vpop.permute.xlu0 %1604
    %1606 = vrot.lane.b32.xlu0 %v1234, 16
    %v1607 = vpop.permute.xlu0 %1606
    %1608 = vrot.lane.b32.xlu0 %v1237, 16
    %v1609 = vpop.permute.xlu0 %1608
    %1610 = vrot.lane.b32.xlu0 %v1239, 16
    %v1611 = vpop.permute.xlu0 %1610
    %1612 = vrot.lane.b32.xlu0 %v1242, 16
    %v1613 = vpop.permute.xlu0 %1612
    %1614 = vrot.lane.b32.xlu0 %v1244, 16
    %v1615 = vpop.permute.xlu0 %1614
    %1616 = vrot.lane.b32.xlu0 %v1247, 16
    %v1617 = vpop.permute.xlu0 %1616
    %1618 = vrot.lane.b32.xlu0 %v1249, 16
    %v1619 = vpop.permute.xlu0 %1618
    %1620 = vrot.lane.b32.xlu0 %v1252, 16
    %v1621 = vpop.permute.xlu0 %1620
    %1622 = vrot.lane.b32.xlu0 %v1254, 16
    %v1623 = vpop.permute.xlu0 %1622
    %1624 = vrot.lane.b32.xlu0 %v1257, 16
    %v1625 = vpop.permute.xlu0 %1624
    %1626 = vrot.lane.b32.xlu0 %v1259, 16
    %v1627 = vpop.permute.xlu0 %1626
    %1628 = vrot.lane.b32.xlu0 %v1262, 16
    %v1629 = vpop.permute.xlu0 %1628
    %1630 = vrot.lane.b32.xlu0 %v1264, 16
    %v1631 = vpop.permute.xlu0 %1630
    %1632 = vrot.lane.b32.xlu0 %v1267, 16
    %v1633 = vpop.permute.xlu0 %1632
    %1634 = vrot.lane.b32.xlu0 %v1269, 16
    %v1635 = vpop.permute.xlu0 %1634
    %1698 = vrot.lane.b32.xlu0 %v1273, 32
    %v1699 = vpop.permute.xlu0 %1698
    %1700 = vrot.lane.b32.xlu0 %v1275, 32
    %v1701 = vpop.permute.xlu0 %1700
    %1702 = vrot.lane.b32.xlu0 %v1278, 32
    %v1703 = vpop.permute.xlu0 %1702
    %1704 = vrot.lane.b32.xlu0 %v1280, 32
    %v1705 = vpop.permute.xlu0 %1704
    %1706 = vrot.lane.b32.xlu0 %v1283, 32
    %v1707 = vpop.permute.xlu0 %1706
    %1708 = vrot.lane.b32.xlu0 %v1285, 32
    %v1709 = vpop.permute.xlu0 %1708
    %1710 = vrot.lane.b32.xlu0 %v1288, 32
    %v1711 = vpop.permute.xlu0 %1710
    %1712 = vrot.lane.b32.xlu0 %v1290, 32
    %v1713 = vpop.permute.xlu0 %1712
    %1714 = vrot.lane.b32.xlu0 %v1293, 32
    %v1715 = vpop.permute.xlu0 %1714
    %1716 = vrot.lane.b32.xlu0 %v1295, 32
    %v1717 = vpop.permute.xlu0 %1716
    %1718 = vrot.lane.b32.xlu0 %v1298, 32
    %v1719 = vpop.permute.xlu0 %1718
    %1720 = vrot.lane.b32.xlu0 %v1300, 32
    %v1721 = vpop.permute.xlu0 %1720
    %1722 = vrot.lane.b32.xlu0 %v1303, 32
    %v1723 = vpop.permute.xlu0 %1722
    %1724 = vrot.lane.b32.xlu0 %v1305, 32
    %v1725 = vpop.permute.xlu0 %1724
    %1726 = vrot.lane.b32.xlu0 %v1308, 32
    %v1727 = vpop.permute.xlu0 %1726
    %1728 = vrot.lane.b32.xlu0 %v1310, 32
    %v1729 = vpop.permute.xlu0 %1728
    %1730 = vrot.lane.b32.xlu0 %v1313, 32
    %v1731 = vpop.permute.xlu0 %1730
    %1732 = vrot.lane.b32.xlu0 %v1315, 32
    %v1733 = vpop.permute.xlu0 %1732
    %1734 = vrot.lane.b32.xlu0 %v1318, 32
    %v1735 = vpop.permute.xlu0 %1734
    %1736 = vrot.lane.b32.xlu0 %v1320, 32
    %v1737 = vpop.permute.xlu0 %1736
    %1738 = vrot.lane.b32.xlu0 %v1323, 32
    %v1739 = vpop.permute.xlu0 %1738
    %1740 = vrot.lane.b32.xlu0 %v1325, 32
    %v1741 = vpop.permute.xlu0 %1740
    %1742 = vrot.lane.b32.xlu0 %v1328, 32
    %v1743 = vpop.permute.xlu0 %1742
    %1744 = vrot.lane.b32.xlu0 %v1330, 32
    %v1745 = vpop.permute.xlu0 %1744
    %1746 = vrot.lane.b32.xlu0 %v1333, 32
    %v1747 = vpop.permute.xlu0 %1746
    %1748 = vrot.lane.b32.xlu0 %v1335, 32
    %v1749 = vpop.permute.xlu0 %1748
    %1750 = vrot.lane.b32.xlu0 %v1338, 32
    %v1751 = vpop.permute.xlu0 %1750
    %1752 = vrot.lane.b32.xlu0 %v1340, 32
    %v1753 = vpop.permute.xlu0 %1752
    %1754 = vrot.lane.b32.xlu0 %v1343, 32
    %v1755 = vpop.permute.xlu0 %1754
    %1756 = vrot.lane.b32.xlu0 %v1345, 32
    %v1757 = vpop.permute.xlu0 %1756
    %1758 = vrot.lane.b32.xlu0 %v1348, 32
    %v1759 = vpop.permute.xlu0 %1758
    %1760 = vrot.lane.b32.xlu0 %v1350, 32
    %v1761 = vpop.permute.xlu0 %1760
    %1762 = vrot.lane.b32.xlu0 %v1353, 32
    %v1763 = vpop.permute.xlu0 %1762
    %1764 = vrot.lane.b32.xlu0 %v1355, 32
    %v1765 = vpop.permute.xlu0 %1764
    %1766 = vrot.lane.b32.xlu0 %v1358, 32
    %v1767 = vpop.permute.xlu0 %1766
    %1768 = vrot.lane.b32.xlu0 %v1360, 32
    %v1769 = vpop.permute.xlu0 %1768
    %1770 = vrot.lane.b32.xlu0 %v1363, 32
    %v1771 = vpop.permute.xlu0 %1770
    %1772 = vrot.lane.b32.xlu0 %v1365, 32
    %v1773 = vpop.permute.xlu0 %1772
    %1774 = vrot.lane.b32.xlu0 %v1368, 32
    %v1775 = vpop.permute.xlu0 %1774
    %1776 = vrot.lane.b32.xlu0 %v1370, 32
    %v1777 = vpop.permute.xlu0 %1776
    %1778 = vrot.lane.b32.xlu0 %v1373, 32
    %v1779 = vpop.permute.xlu0 %1778
    %1780 = vrot.lane.b32.xlu0 %v1375, 32
    %v1781 = vpop.permute.xlu0 %1780
    %1782 = vrot.lane.b32.xlu0 %v1378, 32
    %v1783 = vpop.permute.xlu0 %1782
    %1784 = vrot.lane.b32.xlu0 %v1380, 32
    %v1785 = vpop.permute.xlu0 %1784
    %1786 = vrot.lane.b32.xlu0 %v1383, 32
    %v1787 = vpop.permute.xlu0 %1786
    %1788 = vrot.lane.b32.xlu0 %v1385, 32
    %v1789 = vpop.permute.xlu0 %1788
    %1790 = vrot.lane.b32.xlu0 %v1388, 32
    %v1791 = vpop.permute.xlu0 %1790
    %1792 = vrot.lane.b32.xlu0 %v1390, 32
    %v1793 = vpop.permute.xlu0 %1792
    %1794 = vrot.lane.b32.xlu0 %v1393, 32
    %v1795 = vpop.permute.xlu0 %1794
    %1796 = vrot.lane.b32.xlu0 %v1395, 32
    %v1797 = vpop.permute.xlu0 %1796
    %1798 = vrot.lane.b32.xlu0 %v1398, 32
    %v1799 = vpop.permute.xlu0 %1798
    %1800 = vrot.lane.b32.xlu0 %v1400, 32
    %v1801 = vpop.permute.xlu0 %1800
    %1802 = vrot.lane.b32.xlu0 %v1403, 32
    %v1803 = vpop.permute.xlu0 %1802
    %1804 = vrot.lane.b32.xlu0 %v1405, 32
    %v1805 = vpop.permute.xlu0 %1804
    %1806 = vrot.lane.b32.xlu0 %v1408, 32
    %v1807 = vpop.permute.xlu0 %1806
    %1808 = vrot.lane.b32.xlu0 %v1410, 32
    %v1809 = vpop.permute.xlu0 %1808
    %1810 = vrot.lane.b32.xlu0 %v1413, 32
    %v1811 = vpop.permute.xlu0 %1810
    %1812 = vrot.lane.b32.xlu0 %v1415, 32
    %v1813 = vpop.permute.xlu0 %1812
    %1814 = vrot.lane.b32.xlu0 %v1418, 32
    %v1815 = vpop.permute.xlu0 %1814
    %1816 = vrot.lane.b32.xlu0 %v1420, 32
    %v1817 = vpop.permute.xlu0 %1816
    %1818 = vrot.lane.b32.xlu0 %v1423, 32
    %v1819 = vpop.permute.xlu0 %1818
    %1820 = vrot.lane.b32.xlu0 %v1425, 32
    %v1821 = vpop.permute.xlu0 %1820
    %1884 = vrot.lane.b32.xlu0 %v987, 48
    %v1885 = vpop.permute.xlu0 %1884
    %1886 = vrot.lane.b32.xlu0 %v796, 48
    %v1887 = vpop.permute.xlu0 %1886
    %1888 = vrot.lane.b32.xlu0 %v988, 48
    %v1889 = vpop.permute.xlu0 %1888
    %1890 = vrot.lane.b32.xlu0 %v799, 48
    %v1891 = vpop.permute.xlu0 %1890
    %1892 = vrot.lane.b32.xlu0 %v989, 48
    %v1893 = vpop.permute.xlu0 %1892
    %1894 = vrot.lane.b32.xlu0 %v802, 48
    %v1895 = vpop.permute.xlu0 %1894
    %1896 = vrot.lane.b32.xlu0 %v990, 48
    %v1897 = vpop.permute.xlu0 %1896
    %1898 = vrot.lane.b32.xlu0 %v805, 48
    %v1899 = vpop.permute.xlu0 %1898
    %1900 = vrot.lane.b32.xlu0 %v991, 48
    %v1901 = vpop.permute.xlu0 %1900
    %1902 = vrot.lane.b32.xlu0 %v808, 48
    %v1903 = vpop.permute.xlu0 %1902
    %1904 = vrot.lane.b32.xlu0 %v992, 48
    %v1905 = vpop.permute.xlu0 %1904
    %1906 = vrot.lane.b32.xlu0 %v811, 48
    %v1907 = vpop.permute.xlu0 %1906
    %1908 = vrot.lane.b32.xlu0 %v993, 48
    %v1909 = vpop.permute.xlu0 %1908
    %1910 = vrot.lane.b32.xlu0 %v814, 48
    %v1911 = vpop.permute.xlu0 %1910
    %1912 = vrot.lane.b32.xlu0 %v994, 48
    %v1913 = vpop.permute.xlu0 %1912
    %1914 = vrot.lane.b32.xlu0 %v817, 48
    %v1915 = vpop.permute.xlu0 %1914
    %1916 = vrot.lane.b32.xlu0 %v995, 48
    %v1917 = vpop.permute.xlu0 %1916
    %1918 = vrot.lane.b32.xlu0 %v820, 48
    %v1919 = vpop.permute.xlu0 %1918
    %1920 = vrot.lane.b32.xlu0 %v996, 48
    %v1921 = vpop.permute.xlu0 %1920
    %1922 = vrot.lane.b32.xlu0 %v823, 48
    %v1923 = vpop.permute.xlu0 %1922
    %1924 = vrot.lane.b32.xlu0 %v997, 48
    %v1925 = vpop.permute.xlu0 %1924
    %1926 = vrot.lane.b32.xlu0 %v826, 48
    %v1927 = vpop.permute.xlu0 %1926
    %1928 = vrot.lane.b32.xlu0 %v998, 48
    %v1929 = vpop.permute.xlu0 %1928
    %1930 = vrot.lane.b32.xlu0 %v829, 48
    %v1931 = vpop.permute.xlu0 %1930
    %1932 = vrot.lane.b32.xlu0 %v999, 48
    %v1933 = vpop.permute.xlu0 %1932
    %1934 = vrot.lane.b32.xlu0 %v832, 48
    %v1935 = vpop.permute.xlu0 %1934
    %1936 = vrot.lane.b32.xlu0 %v1000, 48
    %v1937 = vpop.permute.xlu0 %1936
    %1938 = vrot.lane.b32.xlu0 %v835, 48
    %v1939 = vpop.permute.xlu0 %1938
    %1940 = vrot.lane.b32.xlu0 %v1001, 48
    %v1941 = vpop.permute.xlu0 %1940
    %1942 = vrot.lane.b32.xlu0 %v838, 48
    %v1943 = vpop.permute.xlu0 %1942
    %1944 = vrot.lane.b32.xlu0 %v1002, 48
    %v1945 = vpop.permute.xlu0 %1944
    %1946 = vrot.lane.b32.xlu0 %v841, 48
    %v1947 = vpop.permute.xlu0 %1946
    %1948 = vrot.lane.b32.xlu0 %v1003, 48
    %v1949 = vpop.permute.xlu0 %1948
    %1950 = vrot.lane.b32.xlu0 %v844, 48
    %v1951 = vpop.permute.xlu0 %1950
    %1952 = vrot.lane.b32.xlu0 %v1004, 48
    %v1953 = vpop.permute.xlu0 %1952
    %1954 = vrot.lane.b32.xlu0 %v847, 48
    %v1955 = vpop.permute.xlu0 %1954
    %1956 = vrot.lane.b32.xlu0 %v1005, 48
    %v1957 = vpop.permute.xlu0 %1956
    %1958 = vrot.lane.b32.xlu0 %v850, 48
    %v1959 = vpop.permute.xlu0 %1958
    %1960 = vrot.lane.b32.xlu0 %v1006, 48
    %v1961 = vpop.permute.xlu0 %1960
    %1962 = vrot.lane.b32.xlu0 %v853, 48
    %v1963 = vpop.permute.xlu0 %1962
    %1964 = vrot.lane.b32.xlu0 %v1007, 48
    %v1965 = vpop.permute.xlu0 %1964
    %1966 = vrot.lane.b32.xlu0 %v856, 48
    %v1967 = vpop.permute.xlu0 %1966
    %1968 = vrot.lane.b32.xlu0 %v1008, 48
    %v1969 = vpop.permute.xlu0 %1968
    %1970 = vrot.lane.b32.xlu0 %v859, 48
    %v1971 = vpop.permute.xlu0 %1970
    %1972 = vrot.lane.b32.xlu0 %v1009, 48
    %v1973 = vpop.permute.xlu0 %1972
    %1974 = vrot.lane.b32.xlu0 %v862, 48
    %v1975 = vpop.permute.xlu0 %1974
    %1976 = vrot.lane.b32.xlu0 %v1010, 48
    %v1977 = vpop.permute.xlu0 %1976
    %1978 = vrot.lane.b32.xlu0 %v865, 48
    %v1979 = vpop.permute.xlu0 %1978
    %1980 = vrot.lane.b32.xlu0 %v1011, 48
    %v1981 = vpop.permute.xlu0 %1980
    %1982 = vrot.lane.b32.xlu0 %v868, 48
    %v1983 = vpop.permute.xlu0 %1982
    %1984 = vrot.lane.b32.xlu0 %v1012, 48
    %v1985 = vpop.permute.xlu0 %1984
    %1986 = vrot.lane.b32.xlu0 %v871, 48
    %v1987 = vpop.permute.xlu0 %1986
    %1988 = vrot.lane.b32.xlu0 %v1013, 48
    %v1989 = vpop.permute.xlu0 %1988
    %1990 = vrot.lane.b32.xlu0 %v874, 48
    %v1991 = vpop.permute.xlu0 %1990
    %1992 = vrot.lane.b32.xlu0 %v1014, 48
    %v1993 = vpop.permute.xlu0 %1992
    %1994 = vrot.lane.b32.xlu0 %v877, 48
    %v1995 = vpop.permute.xlu0 %1994
    %1996 = vrot.lane.b32.xlu0 %v1015, 48
    %v1997 = vpop.permute.xlu0 %1996
    %1998 = vrot.lane.b32.xlu0 %v880, 48
    %v1999 = vpop.permute.xlu0 %1998
    %2000 = vrot.lane.b32.xlu0 %v1016, 48
    %v2001 = vpop.permute.xlu0 %2000
    %2002 = vrot.lane.b32.xlu0 %v883, 48
    %v2003 = vpop.permute.xlu0 %2002
    %2004 = vrot.lane.b32.xlu0 %v1017, 48
    %v2005 = vpop.permute.xlu0 %2004
    %2006 = vrot.lane.b32.xlu0 %v886, 48
    %v2007 = vpop.permute.xlu0 %2006
    %2008 = vrot.lane.b32.xlu0 %v1018, 48
    %v2009 = vpop.permute.xlu0 %2008
    %2010 = vrot.lane.b32.xlu0 %v889, 48
    %v2011 = vpop.permute.xlu0 %2010
    %2076 = vrot.lane.b32.xlu0 %v1122, 64
    %v2077 = vpop.permute.xlu0 %2076
    %2078 = vrot.lane.b32.xlu0 %v1124, 64
    %v2079 = vpop.permute.xlu0 %2078
    %2080 = vrot.lane.b32.xlu0 %v1127, 64
    %v2081 = vpop.permute.xlu0 %2080
    %2082 = vrot.lane.b32.xlu0 %v1129, 64
    %v2083 = vpop.permute.xlu0 %2082
    %2084 = vrot.lane.b32.xlu0 %v1132, 64
    %v2085 = vpop.permute.xlu0 %2084
    %2086 = vrot.lane.b32.xlu0 %v1134, 64
    %v2087 = vpop.permute.xlu0 %2086
    %2088 = vrot.lane.b32.xlu0 %v1137, 64
    %v2089 = vpop.permute.xlu0 %2088
    %2090 = vrot.lane.b32.xlu0 %v1139, 64
    %v2091 = vpop.permute.xlu0 %2090
    %2092 = vrot.lane.b32.xlu0 %v1142, 64
    %v2093 = vpop.permute.xlu0 %2092
    %2094 = vrot.lane.b32.xlu0 %v1144, 64
    %v2095 = vpop.permute.xlu0 %2094
    %2096 = vrot.lane.b32.xlu0 %v1147, 64
    %v2097 = vpop.permute.xlu0 %2096
    %2098 = vrot.lane.b32.xlu0 %v1149, 64
    %v2099 = vpop.permute.xlu0 %2098
    %2100 = vrot.lane.b32.xlu0 %v1152, 64
    %v2101 = vpop.permute.xlu0 %2100
    %2102 = vrot.lane.b32.xlu0 %v1154, 64
    %v2103 = vpop.permute.xlu0 %2102
    %2104 = vrot.lane.b32.xlu0 %v1157, 64
    %v2105 = vpop.permute.xlu0 %2104
    %2106 = vrot.lane.b32.xlu0 %v1159, 64
    %v2107 = vpop.permute.xlu0 %2106
    %2108 = vrot.lane.b32.xlu0 %v1162, 64
    %v2109 = vpop.permute.xlu0 %2108
    %2110 = vrot.lane.b32.xlu0 %v1164, 64
    %v2111 = vpop.permute.xlu0 %2110
    %2112 = vrot.lane.b32.xlu0 %v1167, 64
    %v2113 = vpop.permute.xlu0 %2112
    %2114 = vrot.lane.b32.xlu0 %v1169, 64
    %v2115 = vpop.permute.xlu0 %2114
    %2116 = vrot.lane.b32.xlu0 %v1172, 64
    %v2117 = vpop.permute.xlu0 %2116
    %2118 = vrot.lane.b32.xlu0 %v1174, 64
    %v2119 = vpop.permute.xlu0 %2118
    %2120 = vrot.lane.b32.xlu0 %v1177, 64
    %v2121 = vpop.permute.xlu0 %2120
    %2122 = vrot.lane.b32.xlu0 %v1179, 64
    %v2123 = vpop.permute.xlu0 %2122
    %2124 = vrot.lane.b32.xlu0 %v1182, 64
    %v2125 = vpop.permute.xlu0 %2124
    %2126 = vrot.lane.b32.xlu0 %v1184, 64
    %v2127 = vpop.permute.xlu0 %2126
    %2128 = vrot.lane.b32.xlu0 %v1187, 64
    %v2129 = vpop.permute.xlu0 %2128
    %2130 = vrot.lane.b32.xlu0 %v1189, 64
    %v2131 = vpop.permute.xlu0 %2130
    %2132 = vrot.lane.b32.xlu0 %v1192, 64
    %v2133 = vpop.permute.xlu0 %2132
    %2134 = vrot.lane.b32.xlu0 %v1194, 64
    %v2135 = vpop.permute.xlu0 %2134
    %2136 = vrot.lane.b32.xlu0 %v1432, 64
    %v2137 = vpop.permute.xlu0 %2136
    %2138 = vrot.lane.b32.xlu0 %v1434, 64
    %v2139 = vpop.permute.xlu0 %2138
    %2140 = vrot.lane.b32.xlu0 %v1197, 64
    %v2141 = vpop.permute.xlu0 %2140
    %2142 = vrot.lane.b32.xlu0 %v1199, 64
    %v2143 = vpop.permute.xlu0 %2142
    %2144 = vrot.lane.b32.xlu0 %v1202, 64
    %v2145 = vpop.permute.xlu0 %2144
    %2146 = vrot.lane.b32.xlu0 %v1204, 64
    %v2147 = vpop.permute.xlu0 %2146
    %2148 = vrot.lane.b32.xlu0 %v1207, 64
    %v2149 = vpop.permute.xlu0 %2148
    %2150 = vrot.lane.b32.xlu0 %v1209, 64
    %v2151 = vpop.permute.xlu0 %2150
    %2152 = vrot.lane.b32.xlu0 %v1212, 64
    %v2153 = vpop.permute.xlu0 %2152
    %2154 = vrot.lane.b32.xlu0 %v1214, 64
    %v2155 = vpop.permute.xlu0 %2154
    %2156 = vrot.lane.b32.xlu0 %v1217, 64
    %v2157 = vpop.permute.xlu0 %2156
    %2158 = vrot.lane.b32.xlu0 %v1219, 64
    %v2159 = vpop.permute.xlu0 %2158
    %2160 = vrot.lane.b32.xlu0 %v1222, 64
    %v2161 = vpop.permute.xlu0 %2160
    %2162 = vrot.lane.b32.xlu0 %v1224, 64
    %v2163 = vpop.permute.xlu0 %2162
    %2164 = vrot.lane.b32.xlu0 %v1227, 64
    %v2165 = vpop.permute.xlu0 %2164
    %2166 = vrot.lane.b32.xlu0 %v1229, 64
    %v2167 = vpop.permute.xlu0 %2166
    %2168 = vrot.lane.b32.xlu0 %v1232, 64
    %v2169 = vpop.permute.xlu0 %2168
    %2170 = vrot.lane.b32.xlu0 %v1234, 64
    %v2171 = vpop.permute.xlu0 %2170
    %2172 = vrot.lane.b32.xlu0 %v1237, 64
    %v2173 = vpop.permute.xlu0 %2172
    %2174 = vrot.lane.b32.xlu0 %v1239, 64
    %v2175 = vpop.permute.xlu0 %2174
    %2176 = vrot.lane.b32.xlu0 %v1242, 64
    %v2177 = vpop.permute.xlu0 %2176
    %2178 = vrot.lane.b32.xlu0 %v1244, 64
    %v2179 = vpop.permute.xlu0 %2178
    %2180 = vrot.lane.b32.xlu0 %v1247, 64
    %v2181 = vpop.permute.xlu0 %2180
    %2182 = vrot.lane.b32.xlu0 %v1249, 64
    %v2183 = vpop.permute.xlu0 %2182
    %2184 = vrot.lane.b32.xlu0 %v1252, 64
    %v2185 = vpop.permute.xlu0 %2184
    %2186 = vrot.lane.b32.xlu0 %v1254, 64
    %v2187 = vpop.permute.xlu0 %2186
    %2188 = vrot.lane.b32.xlu0 %v1257, 64
    %v2189 = vpop.permute.xlu0 %2188
    %2190 = vrot.lane.b32.xlu0 %v1259, 64
    %v2191 = vpop.permute.xlu0 %2190
    %2192 = vrot.lane.b32.xlu0 %v1262, 64
    %v2193 = vpop.permute.xlu0 %2192
    %2194 = vrot.lane.b32.xlu0 %v1264, 64
    %v2195 = vpop.permute.xlu0 %2194
    %2196 = vrot.lane.b32.xlu0 %v1267, 64
    %v2197 = vpop.permute.xlu0 %2196
    %2198 = vrot.lane.b32.xlu0 %v1269, 64
    %v2199 = vpop.permute.xlu0 %2198
    %2200 = vrot.lane.b32.xlu0 %v1437, 64
    %v2201 = vpop.permute.xlu0 %2200
    %2202 = vrot.lane.b32.xlu0 %v1439, 64
    %v2203 = vpop.permute.xlu0 %2202
    %2268 = vrot.lane.b32.xlu0 %v1278, 80
    %v2269 = vpop.permute.xlu0 %2268
    %2270 = vrot.lane.b32.xlu0 %v1280, 80
    %v2271 = vpop.permute.xlu0 %2270
    %2272 = vrot.lane.b32.xlu0 %v1283, 80
    %v2273 = vpop.permute.xlu0 %2272
    %2274 = vrot.lane.b32.xlu0 %v1285, 80
    %v2275 = vpop.permute.xlu0 %2274
    %2276 = vrot.lane.b32.xlu0 %v1288, 80
    %v2277 = vpop.permute.xlu0 %2276
    %2278 = vrot.lane.b32.xlu0 %v1290, 80
    %v2279 = vpop.permute.xlu0 %2278
    %2280 = vrot.lane.b32.xlu0 %v1293, 80
    %v2281 = vpop.permute.xlu0 %2280
    %2282 = vrot.lane.b32.xlu0 %v1295, 80
    %v2283 = vpop.permute.xlu0 %2282
    %2284 = vrot.lane.b32.xlu0 %v1298, 80
    %v2285 = vpop.permute.xlu0 %2284
    %2286 = vrot.lane.b32.xlu0 %v1300, 80
    %v2287 = vpop.permute.xlu0 %2286
    %2288 = vrot.lane.b32.xlu0 %v1303, 80
    %v2289 = vpop.permute.xlu0 %2288
    %2290 = vrot.lane.b32.xlu0 %v1305, 80
    %v2291 = vpop.permute.xlu0 %2290
    %2292 = vrot.lane.b32.xlu0 %v1308, 80
    %v2293 = vpop.permute.xlu0 %2292
    %2294 = vrot.lane.b32.xlu0 %v1310, 80
    %v2295 = vpop.permute.xlu0 %2294
    %2296 = vrot.lane.b32.xlu0 %v1313, 80
    %v2297 = vpop.permute.xlu0 %2296
    %2298 = vrot.lane.b32.xlu0 %v1315, 80
    %v2299 = vpop.permute.xlu0 %2298
    %2300 = vrot.lane.b32.xlu0 %v1318, 80
    %v2301 = vpop.permute.xlu0 %2300
    %2302 = vrot.lane.b32.xlu0 %v1320, 80
    %v2303 = vpop.permute.xlu0 %2302
    %2304 = vrot.lane.b32.xlu0 %v1323, 80
    %v2305 = vpop.permute.xlu0 %2304
    %2306 = vrot.lane.b32.xlu0 %v1325, 80
    %v2307 = vpop.permute.xlu0 %2306
    %2308 = vrot.lane.b32.xlu0 %v1328, 80
    %v2309 = vpop.permute.xlu0 %2308
    %2310 = vrot.lane.b32.xlu0 %v1330, 80
    %v2311 = vpop.permute.xlu0 %2310
    %2312 = vrot.lane.b32.xlu0 %v1333, 80
    %v2313 = vpop.permute.xlu0 %2312
    %2314 = vrot.lane.b32.xlu0 %v1335, 80
    %v2315 = vpop.permute.xlu0 %2314
    %2316 = vrot.lane.b32.xlu0 %v1338, 80
    %v2317 = vpop.permute.xlu0 %2316
    %2318 = vrot.lane.b32.xlu0 %v1340, 80
    %v2319 = vpop.permute.xlu0 %2318
    %2320 = vrot.lane.b32.xlu0 %v1343, 80
    %v2321 = vpop.permute.xlu0 %2320
    %2322 = vrot.lane.b32.xlu0 %v1345, 80
    %v2323 = vpop.permute.xlu0 %2322
    %2324 = vrot.lane.b32.xlu0 %v1348, 80
    %v2325 = vpop.permute.xlu0 %2324
    %2326 = vrot.lane.b32.xlu0 %v1350, 80
    %v2327 = vpop.permute.xlu0 %2326
    %2328 = vrot.lane.b32.xlu0 %v1442, 80
    %v2329 = vpop.permute.xlu0 %2328
    %2330 = vrot.lane.b32.xlu0 %v1444, 80
    %v2331 = vpop.permute.xlu0 %2330
    %2332 = vrot.lane.b32.xlu0 %v1353, 80
    %v2333 = vpop.permute.xlu0 %2332
    %2334 = vrot.lane.b32.xlu0 %v1355, 80
    %v2335 = vpop.permute.xlu0 %2334
    %2336 = vrot.lane.b32.xlu0 %v1358, 80
    %v2337 = vpop.permute.xlu0 %2336
    %2338 = vrot.lane.b32.xlu0 %v1360, 80
    %v2339 = vpop.permute.xlu0 %2338
    %2340 = vrot.lane.b32.xlu0 %v1363, 80
    %v2341 = vpop.permute.xlu0 %2340
    %2342 = vrot.lane.b32.xlu0 %v1365, 80
    %v2343 = vpop.permute.xlu0 %2342
    %2344 = vrot.lane.b32.xlu0 %v1368, 80
    %v2345 = vpop.permute.xlu0 %2344
    %2346 = vrot.lane.b32.xlu0 %v1370, 80
    %v2347 = vpop.permute.xlu0 %2346
    %2348 = vrot.lane.b32.xlu0 %v1373, 80
    %v2349 = vpop.permute.xlu0 %2348
    %2350 = vrot.lane.b32.xlu0 %v1375, 80
    %v2351 = vpop.permute.xlu0 %2350
    %2352 = vrot.lane.b32.xlu0 %v1378, 80
    %v2353 = vpop.permute.xlu0 %2352
    %2354 = vrot.lane.b32.xlu0 %v1380, 80
    %v2355 = vpop.permute.xlu0 %2354
    %2356 = vrot.lane.b32.xlu0 %v1383, 80
    %v2357 = vpop.permute.xlu0 %2356
    %2358 = vrot.lane.b32.xlu0 %v1385, 80
    %v2359 = vpop.permute.xlu0 %2358
    %2360 = vrot.lane.b32.xlu0 %v1388, 80
    %v2361 = vpop.permute.xlu0 %2360
    %2362 = vrot.lane.b32.xlu0 %v1390, 80
    %v2363 = vpop.permute.xlu0 %2362
    %2364 = vrot.lane.b32.xlu0 %v1393, 80
    %v2365 = vpop.permute.xlu0 %2364
    %2366 = vrot.lane.b32.xlu0 %v1395, 80
    %v2367 = vpop.permute.xlu0 %2366
    %2368 = vrot.lane.b32.xlu0 %v1398, 80
    %v2369 = vpop.permute.xlu0 %2368
    %2370 = vrot.lane.b32.xlu0 %v1400, 80
    %v2371 = vpop.permute.xlu0 %2370
    %2372 = vrot.lane.b32.xlu0 %v1403, 80
    %v2373 = vpop.permute.xlu0 %2372
    %2374 = vrot.lane.b32.xlu0 %v1405, 80
    %v2375 = vpop.permute.xlu0 %2374
    %2376 = vrot.lane.b32.xlu0 %v1408, 80
    %v2377 = vpop.permute.xlu0 %2376
    %2378 = vrot.lane.b32.xlu0 %v1410, 80
    %v2379 = vpop.permute.xlu0 %2378
    %2380 = vrot.lane.b32.xlu0 %v1413, 80
    %v2381 = vpop.permute.xlu0 %2380
    %2382 = vrot.lane.b32.xlu0 %v1415, 80
    %v2383 = vpop.permute.xlu0 %2382
    %2384 = vrot.lane.b32.xlu0 %v1418, 80
    %v2385 = vpop.permute.xlu0 %2384
    %2386 = vrot.lane.b32.xlu0 %v1420, 80
    %v2387 = vpop.permute.xlu0 %2386
    %2388 = vrot.lane.b32.xlu0 %v1423, 80
    %v2389 = vpop.permute.xlu0 %2388
    %2390 = vrot.lane.b32.xlu0 %v1425, 80
    %v2391 = vpop.permute.xlu0 %2390
    %2392 = vrot.lane.b32.xlu0 %v1447, 80
    %v2393 = vpop.permute.xlu0 %2392
    %2394 = vrot.lane.b32.xlu0 %v1449, 80
    %v2395 = vpop.permute.xlu0 %2394
    %2460 = vrot.lane.b32.xlu0 %v988, 96
    %v2461 = vpop.permute.xlu0 %2460
    %2462 = vrot.lane.b32.xlu0 %v799, 96
    %v2463 = vpop.permute.xlu0 %2462
    %2464 = vrot.lane.b32.xlu0 %v989, 96
    %v2465 = vpop.permute.xlu0 %2464
    %2466 = vrot.lane.b32.xlu0 %v802, 96
    %v2467 = vpop.permute.xlu0 %2466
    %2468 = vrot.lane.b32.xlu0 %v990, 96
    %v2469 = vpop.permute.xlu0 %2468
    %2470 = vrot.lane.b32.xlu0 %v805, 96
    %v2471 = vpop.permute.xlu0 %2470
    %2472 = vrot.lane.b32.xlu0 %v991, 96
    %v2473 = vpop.permute.xlu0 %2472
    %2474 = vrot.lane.b32.xlu0 %v808, 96
    %v2475 = vpop.permute.xlu0 %2474
    %2476 = vrot.lane.b32.xlu0 %v992, 96
    %v2477 = vpop.permute.xlu0 %2476
    %2478 = vrot.lane.b32.xlu0 %v811, 96
    %v2479 = vpop.permute.xlu0 %2478
    %2480 = vrot.lane.b32.xlu0 %v993, 96
    %v2481 = vpop.permute.xlu0 %2480
    %2482 = vrot.lane.b32.xlu0 %v814, 96
    %v2483 = vpop.permute.xlu0 %2482
    %2484 = vrot.lane.b32.xlu0 %v994, 96
    %v2485 = vpop.permute.xlu0 %2484
    %2486 = vrot.lane.b32.xlu0 %v817, 96
    %v2487 = vpop.permute.xlu0 %2486
    %2488 = vrot.lane.b32.xlu0 %v995, 96
    %v2489 = vpop.permute.xlu0 %2488
    %2490 = vrot.lane.b32.xlu0 %v820, 96
    %v2491 = vpop.permute.xlu0 %2490
    %2492 = vrot.lane.b32.xlu0 %v996, 96
    %v2493 = vpop.permute.xlu0 %2492
    %2494 = vrot.lane.b32.xlu0 %v823, 96
    %v2495 = vpop.permute.xlu0 %2494
    %2496 = vrot.lane.b32.xlu0 %v997, 96
    %v2497 = vpop.permute.xlu0 %2496
    %2498 = vrot.lane.b32.xlu0 %v826, 96
    %v2499 = vpop.permute.xlu0 %2498
    %2500 = vrot.lane.b32.xlu0 %v998, 96
    %v2501 = vpop.permute.xlu0 %2500
    %2502 = vrot.lane.b32.xlu0 %v829, 96
    %v2503 = vpop.permute.xlu0 %2502
    %2504 = vrot.lane.b32.xlu0 %v999, 96
    %v2505 = vpop.permute.xlu0 %2504
    %2506 = vrot.lane.b32.xlu0 %v832, 96
    %v2507 = vpop.permute.xlu0 %2506
    %2508 = vrot.lane.b32.xlu0 %v1000, 96
    %v2509 = vpop.permute.xlu0 %2508
    %2510 = vrot.lane.b32.xlu0 %v835, 96
    %v2511 = vpop.permute.xlu0 %2510
    %2512 = vrot.lane.b32.xlu0 %v1001, 96
    %v2513 = vpop.permute.xlu0 %2512
    %2514 = vrot.lane.b32.xlu0 %v838, 96
    %v2515 = vpop.permute.xlu0 %2514
    %2516 = vrot.lane.b32.xlu0 %v1002, 96
    %v2517 = vpop.permute.xlu0 %2516
    %2518 = vrot.lane.b32.xlu0 %v841, 96
    %v2519 = vpop.permute.xlu0 %2518
    %2520 = vrot.lane.b32.xlu0 %v986, 96
    %v2521 = vpop.permute.xlu0 %2520
    %2522 = vrot.lane.b32.xlu0 %v793, 96
    %v2523 = vpop.permute.xlu0 %2522
    %2524 = vrot.lane.b32.xlu0 %v1004, 96
    %v2525 = vpop.permute.xlu0 %2524
    %2526 = vrot.lane.b32.xlu0 %v847, 96
    %v2527 = vpop.permute.xlu0 %2526
    %2528 = vrot.lane.b32.xlu0 %v1005, 96
    %v2529 = vpop.permute.xlu0 %2528
    %2530 = vrot.lane.b32.xlu0 %v850, 96
    %v2531 = vpop.permute.xlu0 %2530
    %2532 = vrot.lane.b32.xlu0 %v1006, 96
    %v2533 = vpop.permute.xlu0 %2532
    %2534 = vrot.lane.b32.xlu0 %v853, 96
    %v2535 = vpop.permute.xlu0 %2534
    %2536 = vrot.lane.b32.xlu0 %v1007, 96
    %v2537 = vpop.permute.xlu0 %2536
    %2538 = vrot.lane.b32.xlu0 %v856, 96
    %v2539 = vpop.permute.xlu0 %2538
    %2540 = vrot.lane.b32.xlu0 %v1008, 96
    %v2541 = vpop.permute.xlu0 %2540
    %2542 = vrot.lane.b32.xlu0 %v859, 96
    %v2543 = vpop.permute.xlu0 %2542
    %2544 = vrot.lane.b32.xlu0 %v1009, 96
    %v2545 = vpop.permute.xlu0 %2544
    %2546 = vrot.lane.b32.xlu0 %v862, 96
    %v2547 = vpop.permute.xlu0 %2546
    %2548 = vrot.lane.b32.xlu0 %v1010, 96
    %v2549 = vpop.permute.xlu0 %2548
    %2550 = vrot.lane.b32.xlu0 %v865, 96
    %v2551 = vpop.permute.xlu0 %2550
    %2552 = vrot.lane.b32.xlu0 %v1011, 96
    %v2553 = vpop.permute.xlu0 %2552
    %2554 = vrot.lane.b32.xlu0 %v868, 96
    %v2555 = vpop.permute.xlu0 %2554
    %2556 = vrot.lane.b32.xlu0 %v1012, 96
    %v2557 = vpop.permute.xlu0 %2556
    %2558 = vrot.lane.b32.xlu0 %v871, 96
    %v2559 = vpop.permute.xlu0 %2558
    %2560 = vrot.lane.b32.xlu0 %v1013, 96
    %v2561 = vpop.permute.xlu0 %2560
    %2562 = vrot.lane.b32.xlu0 %v874, 96
    %v2563 = vpop.permute.xlu0 %2562
    %2564 = vrot.lane.b32.xlu0 %v1014, 96
    %v2565 = vpop.permute.xlu0 %2564
    %2566 = vrot.lane.b32.xlu0 %v877, 96
    %v2567 = vpop.permute.xlu0 %2566
    %2568 = vrot.lane.b32.xlu0 %v1015, 96
    %v2569 = vpop.permute.xlu0 %2568
    %2570 = vrot.lane.b32.xlu0 %v880, 96
    %v2571 = vpop.permute.xlu0 %2570
    %2572 = vrot.lane.b32.xlu0 %v1016, 96
    %v2573 = vpop.permute.xlu0 %2572
    %2574 = vrot.lane.b32.xlu0 %v883, 96
    %v2575 = vpop.permute.xlu0 %2574
    %2576 = vrot.lane.b32.xlu0 %v1017, 96
    %v2577 = vpop.permute.xlu0 %2576
    %2578 = vrot.lane.b32.xlu0 %v886, 96
    %v2579 = vpop.permute.xlu0 %2578
    %2580 = vrot.lane.b32.xlu0 %v1018, 96
    %v2581 = vpop.permute.xlu0 %2580
    %2582 = vrot.lane.b32.xlu0 %v889, 96
    %v2583 = vpop.permute.xlu0 %2582
    %2646 = vrot.lane.b32.xlu0 %v1127, 112
    %v2647 = vpop.permute.xlu0 %2646
    %2648 = vrot.lane.b32.xlu0 %v1129, 112
    %v2649 = vpop.permute.xlu0 %2648
    %2650 = vrot.lane.b32.xlu0 %v1132, 112
    %v2651 = vpop.permute.xlu0 %2650
    %2652 = vrot.lane.b32.xlu0 %v1134, 112
    %v2653 = vpop.permute.xlu0 %2652
    %2654 = vrot.lane.b32.xlu0 %v1137, 112
    %v2655 = vpop.permute.xlu0 %2654
    %2656 = vrot.lane.b32.xlu0 %v1139, 112
    %v2657 = vpop.permute.xlu0 %2656
    %2658 = vrot.lane.b32.xlu0 %v1142, 112
    %v2659 = vpop.permute.xlu0 %2658
    %2660 = vrot.lane.b32.xlu0 %v1144, 112
    %v2661 = vpop.permute.xlu0 %2660
    %2662 = vrot.lane.b32.xlu0 %v1147, 112
    %v2663 = vpop.permute.xlu0 %2662
    %2664 = vrot.lane.b32.xlu0 %v1149, 112
    %v2665 = vpop.permute.xlu0 %2664
    %2666 = vrot.lane.b32.xlu0 %v1152, 112
    %v2667 = vpop.permute.xlu0 %2666
    %2668 = vrot.lane.b32.xlu0 %v1154, 112
    %v2669 = vpop.permute.xlu0 %2668
    %2670 = vrot.lane.b32.xlu0 %v1157, 112
    %v2671 = vpop.permute.xlu0 %2670
    %2672 = vrot.lane.b32.xlu0 %v1159, 112
    %v2673 = vpop.permute.xlu0 %2672
    %2674 = vrot.lane.b32.xlu0 %v1162, 112
    %v2675 = vpop.permute.xlu0 %2674
    %2676 = vrot.lane.b32.xlu0 %v1164, 112
    %v2677 = vpop.permute.xlu0 %2676
    %2678 = vrot.lane.b32.xlu0 %v1167, 112
    %v2679 = vpop.permute.xlu0 %2678
    %2680 = vrot.lane.b32.xlu0 %v1169, 112
    %v2681 = vpop.permute.xlu0 %2680
    %2682 = vrot.lane.b32.xlu0 %v1172, 112
    %v2683 = vpop.permute.xlu0 %2682
    %2684 = vrot.lane.b32.xlu0 %v1174, 112
    %v2685 = vpop.permute.xlu0 %2684
    %2686 = vrot.lane.b32.xlu0 %v1177, 112
    %v2687 = vpop.permute.xlu0 %2686
    %2688 = vrot.lane.b32.xlu0 %v1179, 112
    %v2689 = vpop.permute.xlu0 %2688
    %2690 = vrot.lane.b32.xlu0 %v1182, 112
    %v2691 = vpop.permute.xlu0 %2690
    %2692 = vrot.lane.b32.xlu0 %v1184, 112
    %v2693 = vpop.permute.xlu0 %2692
    %2694 = vrot.lane.b32.xlu0 %v1187, 112
    %v2695 = vpop.permute.xlu0 %2694
    %2696 = vrot.lane.b32.xlu0 %v1189, 112
    %v2697 = vpop.permute.xlu0 %2696
    %2698 = vrot.lane.b32.xlu0 %v1192, 112
    %v2699 = vpop.permute.xlu0 %2698
    %2700 = vrot.lane.b32.xlu0 %v1194, 112
    %v2701 = vpop.permute.xlu0 %2700
    %2702 = vrot.lane.b32.xlu0 %v1432, 112
    %v2703 = vpop.permute.xlu0 %2702
    %2704 = vrot.lane.b32.xlu0 %v1434, 112
    %v2705 = vpop.permute.xlu0 %2704
    %2706 = vrot.lane.b32.xlu0 %v1117, 112
    %v2707 = vpop.permute.xlu0 %2706
    %2708 = vrot.lane.b32.xlu0 %v1119, 112
    %v2709 = vpop.permute.xlu0 %2708
    %2710 = vrot.lane.b32.xlu0 %v1202, 112
    %v2711 = vpop.permute.xlu0 %2710
    %2712 = vrot.lane.b32.xlu0 %v1204, 112
    %v2713 = vpop.permute.xlu0 %2712
    %2714 = vrot.lane.b32.xlu0 %v1207, 112
    %v2715 = vpop.permute.xlu0 %2714
    %2716 = vrot.lane.b32.xlu0 %v1209, 112
    %v2717 = vpop.permute.xlu0 %2716
    %2718 = vrot.lane.b32.xlu0 %v1212, 112
    %v2719 = vpop.permute.xlu0 %2718
    %2720 = vrot.lane.b32.xlu0 %v1214, 112
    %v2721 = vpop.permute.xlu0 %2720
    %2722 = vrot.lane.b32.xlu0 %v1217, 112
    %v2723 = vpop.permute.xlu0 %2722
    %2724 = vrot.lane.b32.xlu0 %v1219, 112
    %v2725 = vpop.permute.xlu0 %2724
    %2726 = vrot.lane.b32.xlu0 %v1222, 112
    %v2727 = vpop.permute.xlu0 %2726
    %2728 = vrot.lane.b32.xlu0 %v1224, 112
    %v2729 = vpop.permute.xlu0 %2728
    %2730 = vrot.lane.b32.xlu0 %v1227, 112
    %v2731 = vpop.permute.xlu0 %2730
    %2732 = vrot.lane.b32.xlu0 %v1229, 112
    %v2733 = vpop.permute.xlu0 %2732
    %2734 = vrot.lane.b32.xlu0 %v1232, 112
    %v2735 = vpop.permute.xlu0 %2734
    %2736 = vrot.lane.b32.xlu0 %v1234, 112
    %v2737 = vpop.permute.xlu0 %2736
    %2738 = vrot.lane.b32.xlu0 %v1237, 112
    %v2739 = vpop.permute.xlu0 %2738
    %2740 = vrot.lane.b32.xlu0 %v1239, 112
    %v2741 = vpop.permute.xlu0 %2740
    %2742 = vrot.lane.b32.xlu0 %v1242, 112
    %v2743 = vpop.permute.xlu0 %2742
    %2744 = vrot.lane.b32.xlu0 %v1244, 112
    %v2745 = vpop.permute.xlu0 %2744
    %2746 = vrot.lane.b32.xlu0 %v1247, 112
    %v2747 = vpop.permute.xlu0 %2746
    %2748 = vrot.lane.b32.xlu0 %v1249, 112
    %v2749 = vpop.permute.xlu0 %2748
    %2750 = vrot.lane.b32.xlu0 %v1252, 112
    %v2751 = vpop.permute.xlu0 %2750
    %2752 = vrot.lane.b32.xlu0 %v1254, 112
    %v2753 = vpop.permute.xlu0 %2752
    %2754 = vrot.lane.b32.xlu0 %v1257, 112
    %v2755 = vpop.permute.xlu0 %2754
    %2756 = vrot.lane.b32.xlu0 %v1259, 112
    %v2757 = vpop.permute.xlu0 %2756
    %2758 = vrot.lane.b32.xlu0 %v1262, 112
    %v2759 = vpop.permute.xlu0 %2758
    %2760 = vrot.lane.b32.xlu0 %v1264, 112
    %v2761 = vpop.permute.xlu0 %2760
    %2762 = vrot.lane.b32.xlu0 %v1267, 112
    %v2763 = vpop.permute.xlu0 %2762
    %2764 = vrot.lane.b32.xlu0 %v1269, 112
    %v2765 = vpop.permute.xlu0 %2764
    %2766 = vrot.lane.b32.xlu0 %v1437, 112
    %v2767 = vpop.permute.xlu0 %2766
    %2768 = vrot.lane.b32.xlu0 %v1439, 112
    %v2769 = vpop.permute.xlu0 %2768
    %v2832 = vsel %vm165, %v986, %v1513
    %v2833 = vsel %vm165, %v793, %v1515
    %v2834 = vsel %vm165, %v987, %v1517
    %v2835 = vsel %vm165, %v796, %v1519
    %v2836 = vsel %vm165, %v988, %v1521
    %v2837 = vsel %vm165, %v799, %v1523
    %v2838 = vsel %vm165, %v989, %v1525
    %v2839 = vsel %vm165, %v802, %v1527
    %v2840 = vsel %vm165, %v990, %v1529
    %v2841 = vsel %vm165, %v805, %v1531
    %v2842 = vsel %vm165, %v991, %v1533
    %v2843 = vsel %vm165, %v808, %v1535
    %v2844 = vsel %vm165, %v992, %v1537
    %v2845 = vsel %vm165, %v811, %v1539
    %v2846 = vsel %vm165, %v993, %v1541
    %v2847 = vsel %vm165, %v814, %v1543
    %v2848 = vsel %vm165, %v994, %v1545
    %v2849 = vsel %vm165, %v817, %v1547
    %v2850 = vsel %vm165, %v995, %v1549
    %v2851 = vsel %vm165, %v820, %v1551
    %v2852 = vsel %vm165, %v996, %v1553
    %v2853 = vsel %vm165, %v823, %v1555
    %v2854 = vsel %vm165, %v997, %v1557
    %v2855 = vsel %vm165, %v826, %v1559
    %v2856 = vsel %vm165, %v998, %v1561
    %v2857 = vsel %vm165, %v829, %v1563
    %v2858 = vsel %vm165, %v999, %v1565
    %v2859 = vsel %vm165, %v832, %v1567
    %v2860 = vsel %vm165, %v1000, %v1569
    %v2861 = vsel %vm165, %v835, %v1571
    %v2862 = vsel %vm165, %v1001, %v1573
    %v2863 = vsel %vm165, %v838, %v1575
    %v2864 = vsel %vm165, %v1003, %v1577
    %v2865 = vsel %vm165, %v844, %v1579
    %v2866 = vsel %vm165, %v1004, %v1581
    %v2867 = vsel %vm165, %v847, %v1583
    %v2868 = vsel %vm165, %v1005, %v1585
    %v2869 = vsel %vm165, %v850, %v1587
    %v2870 = vsel %vm165, %v1006, %v1589
    %v2871 = vsel %vm165, %v853, %v1591
    %v2872 = vsel %vm165, %v1007, %v1593
    %v2873 = vsel %vm165, %v856, %v1595
    %v2874 = vsel %vm165, %v1008, %v1597
    %v2875 = vsel %vm165, %v859, %v1599
    %v2876 = vsel %vm165, %v1009, %v1601
    %v2877 = vsel %vm165, %v862, %v1603
    %v2878 = vsel %vm165, %v1010, %v1605
    %v2879 = vsel %vm165, %v865, %v1607
    %v2880 = vsel %vm165, %v1011, %v1609
    %v2881 = vsel %vm165, %v868, %v1611
    %v2882 = vsel %vm165, %v1012, %v1613
    %v2883 = vsel %vm165, %v871, %v1615
    %v2884 = vsel %vm165, %v1013, %v1617
    %v2885 = vsel %vm165, %v874, %v1619
    %v2886 = vsel %vm165, %v1014, %v1621
    %v2887 = vsel %vm165, %v877, %v1623
    %v2888 = vsel %vm165, %v1015, %v1625
    %v2889 = vsel %vm165, %v880, %v1627
    %v2890 = vsel %vm165, %v1016, %v1629
    %v2891 = vsel %vm165, %v883, %v1631
    %v2892 = vsel %vm165, %v1017, %v1633
    %v2893 = vsel %vm165, %v886, %v1635
    %vm2894 = vcmask 261120
    %v2895 = vsel %vm2894, %v2832, %v1699
    %v2896 = vsel %vm2894, %v2833, %v1701
    %v2897 = vsel %vm2894, %v2834, %v1703
    %v2898 = vsel %vm2894, %v2835, %v1705
    %v2899 = vsel %vm2894, %v2836, %v1707
    %v2900 = vsel %vm2894, %v2837, %v1709
    %v2901 = vsel %vm2894, %v2838, %v1711
    %v2902 = vsel %vm2894, %v2839, %v1713
    %v2903 = vsel %vm2894, %v2840, %v1715
    %v2904 = vsel %vm2894, %v2841, %v1717
    %v2905 = vsel %vm2894, %v2842, %v1719
    %v2906 = vsel %vm2894, %v2843, %v1721
    %v2907 = vsel %vm2894, %v2844, %v1723
    %v2908 = vsel %vm2894, %v2845, %v1725
    %v2909 = vsel %vm2894, %v2846, %v1727
    %v2910 = vsel %vm2894, %v2847, %v1729
    %v2911 = vsel %vm2894, %v2848, %v1731
    %v2912 = vsel %vm2894, %v2849, %v1733
    %v2913 = vsel %vm2894, %v2850, %v1735
    %v2914 = vsel %vm2894, %v2851, %v1737
    %v2915 = vsel %vm2894, %v2852, %v1739
    %v2916 = vsel %vm2894, %v2853, %v1741
    %v2917 = vsel %vm2894, %v2854, %v1743
    %v2918 = vsel %vm2894, %v2855, %v1745
    %v2919 = vsel %vm2894, %v2856, %v1747
    %v2920 = vsel %vm2894, %v2857, %v1749
    %v2921 = vsel %vm2894, %v2858, %v1751
    %v2922 = vsel %vm2894, %v2859, %v1753
    %v2923 = vsel %vm2894, %v2860, %v1755
    %v2924 = vsel %vm2894, %v2861, %v1757
    %v2925 = vsel %vm2894, %v2862, %v1759
    %v2926 = vsel %vm2894, %v2863, %v1761
    %v2927 = vsel %vm2894, %v2864, %v1763
    %v2928 = vsel %vm2894, %v2865, %v1765
    %v2929 = vsel %vm2894, %v2866, %v1767
    %v2930 = vsel %vm2894, %v2867, %v1769
    %v2931 = vsel %vm2894, %v2868, %v1771
    %v2932 = vsel %vm2894, %v2869, %v1773
    %v2933 = vsel %vm2894, %v2870, %v1775
    %v2934 = vsel %vm2894, %v2871, %v1777
    %v2935 = vsel %vm2894, %v2872, %v1779
    %v2936 = vsel %vm2894, %v2873, %v1781
    %v2937 = vsel %vm2894, %v2874, %v1783
    %v2938 = vsel %vm2894, %v2875, %v1785
    %v2939 = vsel %vm2894, %v2876, %v1787
    %v2940 = vsel %vm2894, %v2877, %v1789
    %v2941 = vsel %vm2894, %v2878, %v1791
    %v2942 = vsel %vm2894, %v2879, %v1793
    %v2943 = vsel %vm2894, %v2880, %v1795
    %v2944 = vsel %vm2894, %v2881, %v1797
    %v2945 = vsel %vm2894, %v2882, %v1799
    %v2946 = vsel %vm2894, %v2883, %v1801
    %v2947 = vsel %vm2894, %v2884, %v1803
    %v2948 = vsel %vm2894, %v2885, %v1805
    %v2949 = vsel %vm2894, %v2886, %v1807
    %v2950 = vsel %vm2894, %v2887, %v1809
    %v2951 = vsel %vm2894, %v2888, %v1811
    %v2952 = vsel %vm2894, %v2889, %v1813
    %v2953 = vsel %vm2894, %v2890, %v1815
    %v2954 = vsel %vm2894, %v2891, %v1817
    %v2955 = vsel %vm2894, %v2892, %v1819
    %v2956 = vsel %vm2894, %v2893, %v1821
    %vm2957 = vcmask 392192
    %v2958 = vsel %vm2957, %v2895, %v1885
    %v2959 = vsel %vm2957, %v2896, %v1887
    %v2960 = vsel %vm2957, %v2897, %v1889
    %v2961 = vsel %vm2957, %v2898, %v1891
    %v2962 = vsel %vm2957, %v2899, %v1893
    %v2963 = vsel %vm2957, %v2900, %v1895
    %v2964 = vsel %vm2957, %v2901, %v1897
    %v2965 = vsel %vm2957, %v2902, %v1899
    %v2966 = vsel %vm2957, %v2903, %v1901
    %v2967 = vsel %vm2957, %v2904, %v1903
    %v2968 = vsel %vm2957, %v2905, %v1905
    %v2969 = vsel %vm2957, %v2906, %v1907
    %v2970 = vsel %vm2957, %v2907, %v1909
    %v2971 = vsel %vm2957, %v2908, %v1911
    %v2972 = vsel %vm2957, %v2909, %v1913
    %v2973 = vsel %vm2957, %v2910, %v1915
    %v2974 = vsel %vm2957, %v2911, %v1917
    %v2975 = vsel %vm2957, %v2912, %v1919
    %v2976 = vsel %vm2957, %v2913, %v1921
    %v2977 = vsel %vm2957, %v2914, %v1923
    %v2978 = vsel %vm2957, %v2915, %v1925
    %v2979 = vsel %vm2957, %v2916, %v1927
    %v2980 = vsel %vm2957, %v2917, %v1929
    %v2981 = vsel %vm2957, %v2918, %v1931
    %v2982 = vsel %vm2957, %v2919, %v1933
    %v2983 = vsel %vm2957, %v2920, %v1935
    %v2984 = vsel %vm2957, %v2921, %v1937
    %v2985 = vsel %vm2957, %v2922, %v1939
    %v2986 = vsel %vm2957, %v2923, %v1941
    %v2987 = vsel %vm2957, %v2924, %v1943
    %v2988 = vsel %vm2957, %v2925, %v1945
    %v2989 = vsel %vm2957, %v2926, %v1947
    %v2990 = vsel %vm2957, %v2895, %v1949
    %v2991 = vsel %vm2957, %v2896, %v1951
    %v2992 = vsel %vm2957, %v2927, %v1953
    %v2993 = vsel %vm2957, %v2928, %v1955
    %v2994 = vsel %vm2957, %v2929, %v1957
    %v2995 = vsel %vm2957, %v2930, %v1959
    %v2996 = vsel %vm2957, %v2931, %v1961
    %v2997 = vsel %vm2957, %v2932, %v1963
    %v2998 = vsel %vm2957, %v2933, %v1965
    %v2999 = vsel %vm2957, %v2934, %v1967
    %v3000 = vsel %vm2957, %v2935, %v1969
    %v3001 = vsel %vm2957, %v2936, %v1971
    %v3002 = vsel %vm2957, %v2937, %v1973
    %v3003 = vsel %vm2957, %v2938, %v1975
    %v3004 = vsel %vm2957, %v2939, %v1977
    %v3005 = vsel %vm2957, %v2940, %v1979
    %v3006 = vsel %vm2957, %v2941, %v1981
    %v3007 = vsel %vm2957, %v2942, %v1983
    %v3008 = vsel %vm2957, %v2943, %v1985
    %v3009 = vsel %vm2957, %v2944, %v1987
    %v3010 = vsel %vm2957, %v2945, %v1989
    %v3011 = vsel %vm2957, %v2946, %v1991
    %v3012 = vsel %vm2957, %v2947, %v1993
    %v3013 = vsel %vm2957, %v2948, %v1995
    %v3014 = vsel %vm2957, %v2949, %v1997
    %v3015 = vsel %vm2957, %v2950, %v1999
    %v3016 = vsel %vm2957, %v2951, %v2001
    %v3017 = vsel %vm2957, %v2952, %v2003
    %v3018 = vsel %vm2957, %v2953, %v2005
    %v3019 = vsel %vm2957, %v2954, %v2007
    %v3020 = vsel %vm2957, %v2955, %v2009
    %v3021 = vsel %vm2957, %v2956, %v2011
    %vm3022 = vcmask 523264
    %v3023 = vsel %vm3022, %v2958, %v2077
    %v3024 = vsel %vm3022, %v2959, %v2079
    %v3025 = vsel %vm3022, %v2960, %v2081
    %v3026 = vsel %vm3022, %v2961, %v2083
    %v3027 = vsel %vm3022, %v2962, %v2085
    %v3028 = vsel %vm3022, %v2963, %v2087
    %v3029 = vsel %vm3022, %v2964, %v2089
    %v3030 = vsel %vm3022, %v2965, %v2091
    %v3031 = vsel %vm3022, %v2966, %v2093
    %v3032 = vsel %vm3022, %v2967, %v2095
    %v3033 = vsel %vm3022, %v2968, %v2097
    %v3034 = vsel %vm3022, %v2969, %v2099
    %v3035 = vsel %vm3022, %v2970, %v2101
    %v3036 = vsel %vm3022, %v2971, %v2103
    %v3037 = vsel %vm3022, %v2972, %v2105
    %v3038 = vsel %vm3022, %v2973, %v2107
    %v3039 = vsel %vm3022, %v2974, %v2109
    %v3040 = vsel %vm3022, %v2975, %v2111
    %v3041 = vsel %vm3022, %v2976, %v2113
    %v3042 = vsel %vm3022, %v2977, %v2115
    %v3043 = vsel %vm3022, %v2978, %v2117
    %v3044 = vsel %vm3022, %v2979, %v2119
    %v3045 = vsel %vm3022, %v2980, %v2121
    %v3046 = vsel %vm3022, %v2981, %v2123
    %v3047 = vsel %vm3022, %v2982, %v2125
    %v3048 = vsel %vm3022, %v2983, %v2127
    %v3049 = vsel %vm3022, %v2984, %v2129
    %v3050 = vsel %vm3022, %v2985, %v2131
    %v3051 = vsel %vm3022, %v2986, %v2133
    %v3052 = vsel %vm3022, %v2987, %v2135
    %v3053 = vsel %vm3022, %v2988, %v2137
    %v3054 = vsel %vm3022, %v2989, %v2139
    %v3055 = vsel %vm3022, %v2990, %v2141
    %v3056 = vsel %vm3022, %v2991, %v2143
    %v3057 = vsel %vm3022, %v2992, %v2145
    %v3058 = vsel %vm3022, %v2993, %v2147
    %v3059 = vsel %vm3022, %v2994, %v2149
    %v3060 = vsel %vm3022, %v2995, %v2151
    %v3061 = vsel %vm3022, %v2996, %v2153
    %v3062 = vsel %vm3022, %v2997, %v2155
    %v3063 = vsel %vm3022, %v2998, %v2157
    %v3064 = vsel %vm3022, %v2999, %v2159
    %v3065 = vsel %vm3022, %v3000, %v2161
    %v3066 = vsel %vm3022, %v3001, %v2163
    %v3067 = vsel %vm3022, %v3002, %v2165
    %v3068 = vsel %vm3022, %v3003, %v2167
    %v3069 = vsel %vm3022, %v3004, %v2169
    %v3070 = vsel %vm3022, %v3005, %v2171
    %v3071 = vsel %vm3022, %v3006, %v2173
    %v3072 = vsel %vm3022, %v3007, %v2175
    %v3073 = vsel %vm3022, %v3008, %v2177
    %v3074 = vsel %vm3022, %v3009, %v2179
    %v3075 = vsel %vm3022, %v3010, %v2181
    %v3076 = vsel %vm3022, %v3011, %v2183
    %v3077 = vsel %vm3022, %v3012, %v2185
    %v3078 = vsel %vm3022, %v3013, %v2187
    %v3079 = vsel %vm3022, %v3014, %v2189
    %v3080 = vsel %vm3022, %v3015, %v2191
    %v3081 = vsel %vm3022, %v3016, %v2193
    %v3082 = vsel %vm3022, %v3017, %v2195
    %v3083 = vsel %vm3022, %v3018, %v2197
    %v3084 = vsel %vm3022, %v3019, %v2199
    %v3085 = vsel %vm3022, %v3020, %v2201
    %v3086 = vsel %vm3022, %v3021, %v2203
    %vm3087 = vcmask 654336
    %v3088 = vsel %vm3087, %v3023, %v2269
    %v3089 = vsel %vm3087, %v3024, %v2271
    %v3090 = vsel %vm3087, %v3025, %v2273
    %v3091 = vsel %vm3087, %v3026, %v2275
    %v3092 = vsel %vm3087, %v3027, %v2277
    %v3093 = vsel %vm3087, %v3028, %v2279
    %v3094 = vsel %vm3087, %v3029, %v2281
    %v3095 = vsel %vm3087, %v3030, %v2283
    %v3096 = vsel %vm3087, %v3031, %v2285
    %v3097 = vsel %vm3087, %v3032, %v2287
    %v3098 = vsel %vm3087, %v3033, %v2289
    %v3099 = vsel %vm3087, %v3034, %v2291
    %v3100 = vsel %vm3087, %v3035, %v2293
    %v3101 = vsel %vm3087, %v3036, %v2295
    %v3102 = vsel %vm3087, %v3037, %v2297
    %v3103 = vsel %vm3087, %v3038, %v2299
    %v3104 = vsel %vm3087, %v3039, %v2301
    %v3105 = vsel %vm3087, %v3040, %v2303
    %v3106 = vsel %vm3087, %v3041, %v2305
    %v3107 = vsel %vm3087, %v3042, %v2307
    %v3108 = vsel %vm3087, %v3043, %v2309
    %v3109 = vsel %vm3087, %v3044, %v2311
    %v3110 = vsel %vm3087, %v3045, %v2313
    %v3111 = vsel %vm3087, %v3046, %v2315
    %v3112 = vsel %vm3087, %v3047, %v2317
    %v3113 = vsel %vm3087, %v3048, %v2319
    %v3114 = vsel %vm3087, %v3049, %v2321
    %v3115 = vsel %vm3087, %v3050, %v2323
    %v3116 = vsel %vm3087, %v3051, %v2325
    %v3117 = vsel %vm3087, %v3052, %v2327
    %v3118 = vsel %vm3087, %v3053, %v2329
    %v3119 = vsel %vm3087, %v3054, %v2331
    %v3120 = vsel %vm3087, %v3055, %v2333
    %v3121 = vsel %vm3087, %v3056, %v2335
    %v3122 = vsel %vm3087, %v3057, %v2337
    %v3123 = vsel %vm3087, %v3058, %v2339
    %v3124 = vsel %vm3087, %v3059, %v2341
    %v3125 = vsel %vm3087, %v3060, %v2343
    %v3126 = vsel %vm3087, %v3061, %v2345
    %v3127 = vsel %vm3087, %v3062, %v2347
    %v3128 = vsel %vm3087, %v3063, %v2349
    %v3129 = vsel %vm3087, %v3064, %v2351
    %v3130 = vsel %vm3087, %v3065, %v2353
    %v3131 = vsel %vm3087, %v3066, %v2355
    %v3132 = vsel %vm3087, %v3067, %v2357
    %v3133 = vsel %vm3087, %v3068, %v2359
    %v3134 = vsel %vm3087, %v3069, %v2361
    %v3135 = vsel %vm3087, %v3070, %v2363
    %v3136 = vsel %vm3087, %v3071, %v2365
    %v3137 = vsel %vm3087, %v3072, %v2367
    %v3138 = vsel %vm3087, %v3073, %v2369
    %v3139 = vsel %vm3087, %v3074, %v2371
    %v3140 = vsel %vm3087, %v3075, %v2373
    %v3141 = vsel %vm3087, %v3076, %v2375
    %v3142 = vsel %vm3087, %v3077, %v2377
    %v3143 = vsel %vm3087, %v3078, %v2379
    %v3144 = vsel %vm3087, %v3079, %v2381
    %v3145 = vsel %vm3087, %v3080, %v2383
    %v3146 = vsel %vm3087, %v3081, %v2385
    %v3147 = vsel %vm3087, %v3082, %v2387
    %v3148 = vsel %vm3087, %v3083, %v2389
    %v3149 = vsel %vm3087, %v3084, %v2391
    %v3150 = vsel %vm3087, %v3085, %v2393
    %v3151 = vsel %vm3087, %v3086, %v2395
    %vm3152 = vcmask 785408
    %v3153 = vsel %vm3152, %v3088, %v2461
    %v3154 = vsel %vm3152, %v3089, %v2463
    %v3155 = vsel %vm3152, %v3090, %v2465
    %v3156 = vsel %vm3152, %v3091, %v2467
    %v3157 = vsel %vm3152, %v3092, %v2469
    %v3158 = vsel %vm3152, %v3093, %v2471
    %v3159 = vsel %vm3152, %v3094, %v2473
    %v3160 = vsel %vm3152, %v3095, %v2475
    %v3161 = vsel %vm3152, %v3096, %v2477
    %v3162 = vsel %vm3152, %v3097, %v2479
    %v3163 = vsel %vm3152, %v3098, %v2481
    %v3164 = vsel %vm3152, %v3099, %v2483
    %v3165 = vsel %vm3152, %v3100, %v2485
    %v3166 = vsel %vm3152, %v3101, %v2487
    %v3167 = vsel %vm3152, %v3102, %v2489
    %v3168 = vsel %vm3152, %v3103, %v2491
    %v3169 = vsel %vm3152, %v3104, %v2493
    %v3170 = vsel %vm3152, %v3105, %v2495
    %v3171 = vsel %vm3152, %v3106, %v2497
    %v3172 = vsel %vm3152, %v3107, %v2499
    %v3173 = vsel %vm3152, %v3108, %v2501
    %v3174 = vsel %vm3152, %v3109, %v2503
    %v3175 = vsel %vm3152, %v3110, %v2505
    %v3176 = vsel %vm3152, %v3111, %v2507
    %v3177 = vsel %vm3152, %v3112, %v2509
    %v3178 = vsel %vm3152, %v3113, %v2511
    %v3179 = vsel %vm3152, %v3114, %v2513
    %v3180 = vsel %vm3152, %v3115, %v2515
    %v3181 = vsel %vm3152, %v3116, %v2517
    %v3182 = vsel %vm3152, %v3117, %v2519
    %v3183 = vsel %vm3152, %v3118, %v2521
    %v3184 = vsel %vm3152, %v3119, %v2523
    %v3185 = vsel %vm3152, %v3120, %v2525
    %v3186 = vsel %vm3152, %v3121, %v2527
    %v3187 = vsel %vm3152, %v3122, %v2529
    %v3188 = vsel %vm3152, %v3123, %v2531
    %v3189 = vsel %vm3152, %v3124, %v2533
    %v3190 = vsel %vm3152, %v3125, %v2535
    %v3191 = vsel %vm3152, %v3126, %v2537
    %v3192 = vsel %vm3152, %v3127, %v2539
    %v3193 = vsel %vm3152, %v3128, %v2541
    %v3194 = vsel %vm3152, %v3129, %v2543
    %v3195 = vsel %vm3152, %v3130, %v2545
    %v3196 = vsel %vm3152, %v3131, %v2547
    %v3197 = vsel %vm3152, %v3132, %v2549
    %v3198 = vsel %vm3152, %v3133, %v2551
    %v3199 = vsel %vm3152, %v3134, %v2553
    %v3200 = vsel %vm3152, %v3135, %v2555
    %v3201 = vsel %vm3152, %v3136, %v2557
    %v3202 = vsel %vm3152, %v3137, %v2559
    %v3203 = vsel %vm3152, %v3138, %v2561
    %v3204 = vsel %vm3152, %v3139, %v2563
    %v3205 = vsel %vm3152, %v3140, %v2565
    %v3206 = vsel %vm3152, %v3141, %v2567
    %v3207 = vsel %vm3152, %v3142, %v2569
    %v3208 = vsel %vm3152, %v3143, %v2571
    %v3209 = vsel %vm3152, %v3144, %v2573
    %v3210 = vsel %vm3152, %v3145, %v2575
    %v3211 = vsel %vm3152, %v3146, %v2577
    %v3212 = vsel %vm3152, %v3147, %v2579
    %v3213 = vsel %vm3152, %v3148, %v2581
    %v3214 = vsel %vm3152, %v3149, %v2583
    %v3215 = vsel %vm3152, %v3150, %v2521
    %v3216 = vsel %vm3152, %v3151, %v2523
    %vm3217 = vcmask 916480
    %v3218 = vsel %vm3217, %v3153, %v2647
    %v3219 = vsel %vm3217, %v3154, %v2649
    %v3220 = vsel %vm3217, %v3155, %v2651
    %v3221 = vsel %vm3217, %v3156, %v2653
    %v3222 = vsel %vm3217, %v3157, %v2655
    %v3223 = vsel %vm3217, %v3158, %v2657
    %v3224 = vsel %vm3217, %v3159, %v2659
    %v3225 = vsel %vm3217, %v3160, %v2661
    %v3226 = vsel %vm3217, %v3161, %v2663
    %v3227 = vsel %vm3217, %v3162, %v2665
    %v3228 = vsel %vm3217, %v3163, %v2667
    %v3229 = vsel %vm3217, %v3164, %v2669
    %v3230 = vsel %vm3217, %v3165, %v2671
    %v3231 = vsel %vm3217, %v3166, %v2673
    %v3232 = vsel %vm3217, %v3167, %v2675
    %v3233 = vsel %vm3217, %v3168, %v2677
    %v3234 = vsel %vm3217, %v3169, %v2679
    %v3235 = vsel %vm3217, %v3170, %v2681
    %v3236 = vsel %vm3217, %v3171, %v2683
    %v3237 = vsel %vm3217, %v3172, %v2685
    %v3238 = vsel %vm3217, %v3173, %v2687
    %v3239 = vsel %vm3217, %v3174, %v2689
    %v3240 = vsel %vm3217, %v3175, %v2691
    %v3241 = vsel %vm3217, %v3176, %v2693
    %v3242 = vsel %vm3217, %v3177, %v2695
    %v3243 = vsel %vm3217, %v3178, %v2697
    %v3244 = vsel %vm3217, %v3179, %v2699
    %v3245 = vsel %vm3217, %v3180, %v2701
    %v3246 = vsel %vm3217, %v3181, %v2703
    %v3247 = vsel %vm3217, %v3182, %v2705
    %v3248 = vsel %vm3217, %v3183, %v2707
    %v3249 = vsel %vm3217, %v3184, %v2709
    %v3250 = vsel %vm3217, %v3185, %v2711
    %v3251 = vsel %vm3217, %v3186, %v2713
    %v3252 = vsel %vm3217, %v3187, %v2715
    %v3253 = vsel %vm3217, %v3188, %v2717
    %v3254 = vsel %vm3217, %v3189, %v2719
    %v3255 = vsel %vm3217, %v3190, %v2721
    %v3256 = vsel %vm3217, %v3191, %v2723
    %v3257 = vsel %vm3217, %v3192, %v2725
    %v3258 = vsel %vm3217, %v3193, %v2727
    %v3259 = vsel %vm3217, %v3194, %v2729
    %v3260 = vsel %vm3217, %v3195, %v2731
    %v3261 = vsel %vm3217, %v3196, %v2733
    %v3262 = vsel %vm3217, %v3197, %v2735
    %v3263 = vsel %vm3217, %v3198, %v2737
    %v3264 = vsel %vm3217, %v3199, %v2739
    %v3265 = vsel %vm3217, %v3200, %v2741
    %v3266 = vsel %vm3217, %v3201, %v2743
    %v3267 = vsel %vm3217, %v3202, %v2745
    %v3268 = vsel %vm3217, %v3203, %v2747
    %v3269 = vsel %vm3217, %v3204, %v2749
    %v3270 = vsel %vm3217, %v3205, %v2751
    %v3271 = vsel %vm3217, %v3206, %v2753
    %v3272 = vsel %vm3217, %v3207, %v2755
    %v3273 = vsel %vm3217, %v3208, %v2757
    %v3274 = vsel %vm3217, %v3209, %v2759
    %v3275 = vsel %vm3217, %v3210, %v2761
    %v3276 = vsel %vm3217, %v3211, %v2763
    %v3277 = vsel %vm3217, %v3212, %v2765
    %v3278 = vsel %vm3217, %v3213, %v2767
    %v3279 = vsel %vm3217, %v3214, %v2769
    %v3280 = vsel %vm3217, %v3215, %v2707
    %v3281 = vsel %vm3217, %v3216, %v2709
    %v3282 = vpack.c.bf16 %v3219, %v3218
    %v3283 = vpack.c.bf16 %v1285, %v1283
    %v3284 = vpack.c.bf16 %v3221, %v3220
    %v3285 = vpack.c.bf16 %v1290, %v1288
    %v3286 = vpack.c.bf16 %v3223, %v3222
    %v3287 = vpack.c.bf16 %v1295, %v1293
    %v3288 = vpack.c.bf16 %v3225, %v3224
    %v3289 = vpack.c.bf16 %v1300, %v1298
    %v3290 = vpack.c.bf16 %v3227, %v3226
    %v3291 = vpack.c.bf16 %v1305, %v1303
    %v3292 = vpack.c.bf16 %v3229, %v3228
    %v3293 = vpack.c.bf16 %v1310, %v1308
    %v3294 = vpack.c.bf16 %v3231, %v3230
    %v3295 = vpack.c.bf16 %v1315, %v1313
    %v3296 = vpack.c.bf16 %v3233, %v3232
    %v3297 = vpack.c.bf16 %v1320, %v1318
    %v3298 = vpack.c.bf16 %v3235, %v3234
    %v3299 = vpack.c.bf16 %v1325, %v1323
    %v3300 = vpack.c.bf16 %v3237, %v3236
    %v3301 = vpack.c.bf16 %v1330, %v1328
    %v3302 = vpack.c.bf16 %v3239, %v3238
    %v3303 = vpack.c.bf16 %v1335, %v1333
    %v3304 = vpack.c.bf16 %v3241, %v3240
    %v3305 = vpack.c.bf16 %v1340, %v1338
    %v3306 = vpack.c.bf16 %v3243, %v3242
    %v3307 = vpack.c.bf16 %v1345, %v1343
    %v3308 = vpack.c.bf16 %v3245, %v3244
    %v3309 = vpack.c.bf16 %v1350, %v1348
    %v3310 = vpack.c.bf16 %v3247, %v3246
    %v3311 = vpack.c.bf16 %v1444, %v1442
    %v3312 = vpack.c.bf16 %v3249, %v3248
    %v3313 = vpack.c.bf16 %v1275, %v1273
    %v3314 = vpack.c.bf16 %v3251, %v3250
    %v3315 = vpack.c.bf16 %v1360, %v1358
    %v3316 = vpack.c.bf16 %v3253, %v3252
    %v3317 = vpack.c.bf16 %v1365, %v1363
    %v3318 = vpack.c.bf16 %v3255, %v3254
    %v3319 = vpack.c.bf16 %v1370, %v1368
    %v3320 = vpack.c.bf16 %v3257, %v3256
    %v3321 = vpack.c.bf16 %v1375, %v1373
    %v3322 = vpack.c.bf16 %v3259, %v3258
    %v3323 = vpack.c.bf16 %v1380, %v1378
    %v3324 = vpack.c.bf16 %v3261, %v3260
    %v3325 = vpack.c.bf16 %v1385, %v1383
    %v3326 = vpack.c.bf16 %v3263, %v3262
    %v3327 = vpack.c.bf16 %v1390, %v1388
    %v3328 = vpack.c.bf16 %v3265, %v3264
    %v3329 = vpack.c.bf16 %v1395, %v1393
    %v3330 = vpack.c.bf16 %v3267, %v3266
    %v3331 = vpack.c.bf16 %v1400, %v1398
    %v3332 = vpack.c.bf16 %v3269, %v3268
    %v3333 = vpack.c.bf16 %v1405, %v1403
    %v3334 = vpack.c.bf16 %v3271, %v3270
    %v3335 = vpack.c.bf16 %v1410, %v1408
    %v3336 = vpack.c.bf16 %v3273, %v3272
    %v3337 = vpack.c.bf16 %v1415, %v1413
    %v3338 = vpack.c.bf16 %v3275, %v3274
    %v3339 = vpack.c.bf16 %v1420, %v1418
    %v3340 = vpack.c.bf16 %v3277, %v3276
    %v3341 = vpack.c.bf16 %v1425, %v1423
    %v3342 = vpack.c.bf16 %v3279, %v3278
    %v3343 = vpack.c.bf16 %v1449, %v1447
    %v3344 = vpack.c.bf16 %v3281, %v3280
    %v3345 = vpack.c.bf16 %v709, %v708
    %v3346 = vpack.c.bf16 %v711, %v710
    %v3347 = vpack.c.bf16 %v713, %v712
    %v3348 = vpack.c.bf16 %v715, %v714
    %v3349 = vpack.c.bf16 %v717, %v716
    %v3350 = vpack.c.bf16 %v719, %v718
    %v3351 = vpack.c.bf16 %v721, %v720
    %v3352 = vpack.c.bf16 %v723, %v722
    %v3353 = vpack.c.bf16 %v725, %v724
    %v3355 = vsel %vm165, %v3283, 0
    %v3358 = vsel %vm165, %v3285, 0
    %v3361 = vsel %vm165, %v3287, 0
    %v3364 = vsel %vm165, %v3289, 0
    %v3367 = vsel %vm165, %v3291, 0
    %v3370 = vsel %vm165, %v3293, 0
    %v3373 = vsel %vm165, %v3295, 0
    %v3376 = vsel %vm165, %v3297, 0
    %v3379 = vsel %vm165, %v3299, 0
    %v3382 = vsel %vm165, %v3301, 0
    %v3385 = vsel %vm165, %v3303, 0
    %v3388 = vsel %vm165, %v3305, 0
    %v3391 = vsel %vm165, %v3307, 0
    %v3394 = vsel %vm165, %v3309, 0
    %v3397 = vsel %vm165, %v3311, 0
    %v3400 = vsel %vm165, %v3313, 0
    %v3403 = vsel %vm165, %v3315, 0
    %v3406 = vsel %vm165, %v3317, 0
    %v3409 = vsel %vm165, %v3319, 0
    %v3412 = vsel %vm165, %v3321, 0
    %v3415 = vsel %vm165, %v3323, 0
    %v3418 = vsel %vm165, %v3325, 0
    %v3421 = vsel %vm165, %v3327, 0
    %v3424 = vsel %vm165, %v3329, 0
    %v3427 = vsel %vm165, %v3331, 0
    %v3430 = vsel %vm165, %v3333, 0
    %v3433 = vsel %vm165, %v3335, 0
    %v3436 = vsel %vm165, %v3337, 0
    %v3439 = vsel %vm165, %v3339, 0
    %v3442 = vsel %vm165, %v3341, 0
    %v3445 = vsel %vm165, %v3343, 0
    %3447 = vmatprep.subr.bf16.mxu0 0
    %3448 = vmatpush1.bf16.msra.mxu0 %v3345
    %3449 = vmatprep.subr.bf16.mxu0 0
    %3450 = vmatpush1.bf16.msra.mxu0 %v3346
    %3451 = vmatprep.subr.bf16.mxu0 0
    %3452 = vmatpush1.bf16.msra.mxu0 %v3347
    %3453 = vmatprep.subr.bf16.mxu0 0
    %3454 = vmatpush1.bf16.msra.mxu0 %v3348
    %3455 = vmatprep.subr.bf16.mxu0 0
    %3456 = vmatpush1.bf16.msra.mxu0 %v3349
    %3457 = vmatprep.subr.bf16.mxu0 0
    %3458 = vmatpush1.bf16.msra.mxu0 %v3350
    %3459 = vmatprep.subr.bf16.mxu0 0
    %3460 = vmatpush1.bf16.msra.mxu0 %v3351
    %3461 = vmatprep.subr.bf16.mxu0 0
    %3462 = vmatpush1.bf16.msra.mxu0 %v3352
    %3463 = vmatprep.subr.bf16.mxu0 0
    %3464 = vmatpush1.bf16.msra.mxu0 %v3353
    %3465 = vmatprep.subr.bf16.mxu0 0
    %3466 = vmatpush1.bf16.msra.mxu0 0
    %3467 = vmatprep.subr.bf16.mxu0 0
    %3468 = vmatpush1.bf16.msra.mxu0 0
    %3469 = vmatprep.subr.bf16.mxu0 0
    %3470 = vmatpush1.bf16.msra.mxu0 0
    %3471 = vmatprep.subr.bf16.mxu0 0
    %3472 = vmatpush1.bf16.msra.mxu0 0
    %3473 = vmatprep.subr.bf16.mxu0 0
    %3474 = vmatpush1.bf16.msra.mxu0 0
    %3475 = vmatprep.subr.bf16.mxu0 0
    %3476 = vmatpush1.bf16.msra.mxu0 0
    %3477 = vmatprep.subr.bf16.mxu0 0
    %3478 = vmatpush1.bf16.msra.mxu0 0
    %3479 = vmatprep.mubr.bf16.mxu0 %v3355
    %3480 = vmatmul.mubr.bf16.gmra.mrb[0].mxu0 %v3282
    %v3481 = vpop.f32.mrb[0].mxu0
    %v3482 = vadd.f32 0.0, %v3481
    %v3483 = vpop.f32.mrb[0].mxu0
    %v3484 = vpop.f32.mrb[0].mxu0
    %v3485 = vadd.f32 0.0, %v3484
    %v3486 = vpop.f32.mrb[0].mxu0
    %3487 = vmatprep.mubr.bf16.mxu0 %v3358
    %3488 = vmatmul.mubr.bf16.gmra.mrb[0].mxu0 %v3284
    %v3489 = vpop.f32.mrb[0].mxu0
    %v3490 = vadd.f32 0.0, %v3489
    %v3491 = vpop.f32.mrb[0].mxu0
    %v3492 = vpop.f32.mrb[0].mxu0
    %v3493 = vadd.f32 0.0, %v3492
    %v3494 = vpop.f32.mrb[0].mxu0
    %3495 = vmatprep.mubr.bf16.mxu0 %v3361
    %3496 = vmatmul.mubr.bf16.gmra.mrb[0].mxu0 %v3286
    %v3497 = vpop.f32.mrb[0].mxu0
    %v3498 = vadd.f32 0.0, %v3497
    %v3499 = vpop.f32.mrb[0].mxu0
    %v3500 = vpop.f32.mrb[0].mxu0
    %v3501 = vadd.f32 0.0, %v3500
    %v3502 = vpop.f32.mrb[0].mxu0
    %3503 = vmatprep.mubr.bf16.mxu0 %v3364
    %3504 = vmatmul.mubr.bf16.gmra.mrb[0].mxu0 %v3288
    %v3505 = vpop.f32.mrb[0].mxu0
    %v3506 = vadd.f32 0.0, %v3505
    %v3507 = vpop.f32.mrb[0].mxu0
    %v3508 = vpop.f32.mrb[0].mxu0
    %v3509 = vadd.f32 0.0, %v3508
    %v3510 = vpop.f32.mrb[0].mxu0
    %3511 = vmatprep.mubr.bf16.mxu0 %v3367
    %3512 = vmatmul.mubr.bf16.gmra.mrb[0].mxu0 %v3290
    %v3513 = vpop.f32.mrb[0].mxu0
    %v3514 = vadd.f32 0.0, %v3513
    %v3515 = vpop.f32.mrb[0].mxu0
    %v3516 = vpop.f32.mrb[0].mxu0
    %v3517 = vadd.f32 0.0, %v3516
    %v3518 = vpop.f32.mrb[0].mxu0
    %3519 = vmatprep.mubr.bf16.mxu0 %v3370
    %3520 = vmatmul.mubr.bf16.gmra.mrb[0].mxu0 %v3292
    %v3521 = vpop.f32.mrb[0].mxu0
    %v3522 = vadd.f32 0.0, %v3521
    %v3523 = vpop.f32.mrb[0].mxu0
    %v3524 = vpop.f32.mrb[0].mxu0
    %v3525 = vadd.f32 0.0, %v3524
    %v3526 = vpop.f32.mrb[0].mxu0
    %3527 = vmatprep.mubr.bf16.mxu0 %v3373
    %3528 = vmatmul.mubr.bf16.gmra.mrb[0].mxu0 %v3294
    %v3529 = vpop.f32.mrb[0].mxu0
    %v3530 = vadd.f32 0.0, %v3529
    %v3531 = vpop.f32.mrb[0].mxu0
    %v3532 = vpop.f32.mrb[0].mxu0
    %v3533 = vadd.f32 0.0, %v3532
    %v3534 = vpop.f32.mrb[0].mxu0
    %3535 = vmatprep.mubr.bf16.mxu0 %v3376
    %3536 = vmatmul.mubr.bf16.gmra.mrb[0].mxu0 %v3296
    %v3537 = vpop.f32.mrb[0].mxu0
    %v3538 = vadd.f32 0.0, %v3537
    %v3539 = vpop.f32.mrb[0].mxu0
    %v3540 = vpop.f32.mrb[0].mxu0
    %v3541 = vadd.f32 0.0, %v3540
    %v3542 = vpop.f32.mrb[0].mxu0
    %3543 = vmatprep.mubr.bf16.mxu0 %v3379
    %3544 = vmatmul.mubr.bf16.gmra.mrb[0].mxu0 %v3298
    %v3545 = vpop.f32.mrb[0].mxu0
    %v3546 = vadd.f32 0.0, %v3545
    %v3547 = vpop.f32.mrb[0].mxu0
    %v3548 = vpop.f32.mrb[0].mxu0
    %v3549 = vadd.f32 0.0, %v3548
    %v3550 = vpop.f32.mrb[0].mxu0
    %3551 = vmatprep.mubr.bf16.mxu0 %v3382
    %3552 = vmatmul.mubr.bf16.gmra.mrb[0].mxu0 %v3300
    %v3553 = vpop.f32.mrb[0].mxu0
    %v3554 = vadd.f32 0.0, %v3553
    %v3555 = vpop.f32.mrb[0].mxu0
    %v3556 = vpop.f32.mrb[0].mxu0
    %v3557 = vadd.f32 0.0, %v3556
    %v3558 = vpop.f32.mrb[0].mxu0
    %3559 = vmatprep.mubr.bf16.mxu0 %v3385
    %3560 = vmatmul.mubr.bf16.gmra.mrb[0].mxu0 %v3302
    %v3561 = vpop.f32.mrb[0].mxu0
    %v3562 = vadd.f32 0.0, %v3561
    %v3563 = vpop.f32.mrb[0].mxu0
    %v3564 = vpop.f32.mrb[0].mxu0
    %v3565 = vadd.f32 0.0, %v3564
    %v3566 = vpop.f32.mrb[0].mxu0
    %3567 = vmatprep.mubr.bf16.mxu0 %v3388
    %3568 = vmatmul.mubr.bf16.gmra.mrb[0].mxu0 %v3304
    %v3569 = vpop.f32.mrb[0].mxu0
    %v3570 = vadd.f32 0.0, %v3569
    %v3571 = vpop.f32.mrb[0].mxu0
    %v3572 = vpop.f32.mrb[0].mxu0
    %v3573 = vadd.f32 0.0, %v3572
    %v3574 = vpop.f32.mrb[0].mxu0
    %3575 = vmatprep.mubr.bf16.mxu0 %v3391
    %3576 = vmatmul.mubr.bf16.gmra.mrb[0].mxu0 %v3306
    %v3577 = vpop.f32.mrb[0].mxu0
    %v3578 = vadd.f32 0.0, %v3577
    %v3579 = vpop.f32.mrb[0].mxu0
    %v3580 = vpop.f32.mrb[0].mxu0
    %v3581 = vadd.f32 0.0, %v3580
    %v3582 = vpop.f32.mrb[0].mxu0
    %3583 = vmatprep.mubr.bf16.mxu0 %v3394
    %3584 = vmatmul.mubr.bf16.gmra.mrb[0].mxu0 %v3308
    %v3585 = vpop.f32.mrb[0].mxu0
    %v3586 = vadd.f32 0.0, %v3585
    %v3587 = vpop.f32.mrb[0].mxu0
    %v3588 = vpop.f32.mrb[0].mxu0
    %v3589 = vadd.f32 0.0, %v3588
    %v3590 = vpop.f32.mrb[0].mxu0
    %3591 = vmatprep.mubr.bf16.mxu0 %v3397
    %3592 = vmatmul.mubr.bf16.gmra.mrb[0].mxu0 %v3310
    %v3593 = vpop.f32.mrb[0].mxu0
    %v3594 = vadd.f32 0.0, %v3593
    %v3595 = vpop.f32.mrb[0].mxu0
    %v3596 = vpop.f32.mrb[0].mxu0
    %v3597 = vadd.f32 0.0, %v3596
    %v3598 = vpop.f32.mrb[0].mxu0
    %3599 = vmatprep.mubr.bf16.mxu0 %v3400
    %3600 = vmatmul.mubr.bf16.gmra.mrb[0].mxu0 %v3312
    %v3601 = vpop.f32.mrb[0].mxu0
    %v3602 = vadd.f32 0.0, %v3601
    %v3603 = vpop.f32.mrb[0].mxu0
    %v3604 = vpop.f32.mrb[0].mxu0
    %v3605 = vadd.f32 0.0, %v3604
    %v3606 = vpop.f32.mrb[0].mxu0
    %3607 = vmatprep.mubr.bf16.mxu0 %v3403
    %3608 = vmatmul.mubr.bf16.gmra.mrb[0].mxu0 %v3314
    %v3609 = vpop.f32.mrb[0].mxu0
    %v3610 = vadd.f32 0.0, %v3609
    %v3611 = vpop.f32.mrb[0].mxu0
    %v3612 = vpop.f32.mrb[0].mxu0
    %v3613 = vadd.f32 0.0, %v3612
    %v3614 = vpop.f32.mrb[0].mxu0
    %3615 = vmatprep.mubr.bf16.mxu0 %v3406
    %3616 = vmatmul.mubr.bf16.gmra.mrb[0].mxu0 %v3316
    %v3617 = vpop.f32.mrb[0].mxu0
    %v3618 = vadd.f32 0.0, %v3617
    %v3619 = vpop.f32.mrb[0].mxu0
    %v3620 = vpop.f32.mrb[0].mxu0
    %v3621 = vadd.f32 0.0, %v3620
    %v3622 = vpop.f32.mrb[0].mxu0
    %3623 = vmatprep.mubr.bf16.mxu0 %v3409
    %3624 = vmatmul.mubr.bf16.gmra.mrb[0].mxu0 %v3318
    %v3625 = vpop.f32.mrb[0].mxu0
    %v3626 = vadd.f32 0.0, %v3625
    %v3627 = vpop.f32.mrb[0].mxu0
    %v3628 = vpop.f32.mrb[0].mxu0
    %v3629 = vadd.f32 0.0, %v3628
    %v3630 = vpop.f32.mrb[0].mxu0
    %3631 = vmatprep.mubr.bf16.mxu0 %v3412
    %3632 = vmatmul.mubr.bf16.gmra.mrb[0].mxu0 %v3320
    %v3633 = vpop.f32.mrb[0].mxu0
    %v3634 = vadd.f32 0.0, %v3633
    %v3635 = vpop.f32.mrb[0].mxu0
    %v3636 = vpop.f32.mrb[0].mxu0
    %v3637 = vadd.f32 0.0, %v3636
    %v3638 = vpop.f32.mrb[0].mxu0
    %3639 = vmatprep.mubr.bf16.mxu0 %v3415
    %3640 = vmatmul.mubr.bf16.gmra.mrb[0].mxu0 %v3322
    %v3641 = vpop.f32.mrb[0].mxu0
    %v3642 = vadd.f32 0.0, %v3641
    %v3643 = vpop.f32.mrb[0].mxu0
    %v3644 = vpop.f32.mrb[0].mxu0
    %v3645 = vadd.f32 0.0, %v3644
    %v3646 = vpop.f32.mrb[0].mxu0
    %3647 = vmatprep.mubr.bf16.mxu0 %v3418
    %3648 = vmatmul.mubr.bf16.gmra.mrb[0].mxu0 %v3324
    %v3649 = vpop.f32.mrb[0].mxu0
    %v3650 = vadd.f32 0.0, %v3649
    %v3651 = vpop.f32.mrb[0].mxu0
    %v3652 = vpop.f32.mrb[0].mxu0
    %v3653 = vadd.f32 0.0, %v3652
    %v3654 = vpop.f32.mrb[0].mxu0
    %3655 = vmatprep.mubr.bf16.mxu0 %v3421
    %3656 = vmatmul.mubr.bf16.gmra.mrb[0].mxu0 %v3326
    %v3657 = vpop.f32.mrb[0].mxu0
    %v3658 = vadd.f32 0.0, %v3657
    %v3659 = vpop.f32.mrb[0].mxu0
    %v3660 = vpop.f32.mrb[0].mxu0
    %v3661 = vadd.f32 0.0, %v3660
    %v3662 = vpop.f32.mrb[0].mxu0
    %3663 = vmatprep.mubr.bf16.mxu0 %v3424
    %3664 = vmatmul.mubr.bf16.gmra.mrb[0].mxu0 %v3328
    %v3665 = vpop.f32.mrb[0].mxu0
    %v3666 = vadd.f32 0.0, %v3665
    %v3667 = vpop.f32.mrb[0].mxu0
    %v3668 = vpop.f32.mrb[0].mxu0
    %v3669 = vadd.f32 0.0, %v3668
    %v3670 = vpop.f32.mrb[0].mxu0
    %3671 = vmatprep.mubr.bf16.mxu0 %v3427
    %3672 = vmatmul.mubr.bf16.gmra.mrb[0].mxu0 %v3330
    %v3673 = vpop.f32.mrb[0].mxu0
    %v3674 = vadd.f32 0.0, %v3673
    %v3675 = vpop.f32.mrb[0].mxu0
    %v3676 = vpop.f32.mrb[0].mxu0
    %v3677 = vadd.f32 0.0, %v3676
    %v3678 = vpop.f32.mrb[0].mxu0
    %3679 = vmatprep.mubr.bf16.mxu0 %v3430
    %3680 = vmatmul.mubr.bf16.gmra.mrb[0].mxu0 %v3332
    %v3681 = vpop.f32.mrb[0].mxu0
    %v3682 = vadd.f32 0.0, %v3681
    %v3683 = vpop.f32.mrb[0].mxu0
    %v3684 = vpop.f32.mrb[0].mxu0
    %v3685 = vadd.f32 0.0, %v3684
    %v3686 = vpop.f32.mrb[0].mxu0
    %3687 = vmatprep.mubr.bf16.mxu0 %v3433
    %3688 = vmatmul.mubr.bf16.gmra.mrb[0].mxu0 %v3334
    %v3689 = vpop.f32.mrb[0].mxu0
    %v3690 = vadd.f32 0.0, %v3689
    %v3691 = vpop.f32.mrb[0].mxu0
    %v3692 = vpop.f32.mrb[0].mxu0
    %v3693 = vadd.f32 0.0, %v3692
    %v3694 = vpop.f32.mrb[0].mxu0
    %3695 = vmatprep.mubr.bf16.mxu0 %v3436
    %3696 = vmatmul.mubr.bf16.gmra.mrb[0].mxu0 %v3336
    %v3697 = vpop.f32.mrb[0].mxu0
    %v3698 = vadd.f32 0.0, %v3697
    %v3699 = vpop.f32.mrb[0].mxu0
    %v3700 = vpop.f32.mrb[0].mxu0
    %v3701 = vadd.f32 0.0, %v3700
    %v3702 = vpop.f32.mrb[0].mxu0
    %3703 = vmatprep.mubr.bf16.mxu0 %v3439
    %3704 = vmatmul.mubr.bf16.gmra.mrb[0].mxu0 %v3338
    %v3705 = vpop.f32.mrb[0].mxu0
    %v3706 = vadd.f32 0.0, %v3705
    %v3707 = vpop.f32.mrb[0].mxu0
    %v3708 = vpop.f32.mrb[0].mxu0
    %v3709 = vadd.f32 0.0, %v3708
    %v3710 = vpop.f32.mrb[0].mxu0
    %3711 = vmatprep.mubr.bf16.mxu0 %v3442
    %3712 = vmatmul.mubr.bf16.gmra.mrb[0].mxu0 %v3340
    %v3713 = vpop.f32.mrb[0].mxu0
    %v3714 = vadd.f32 0.0, %v3713
    %v3715 = vpop.f32.mrb[0].mxu0
    %v3716 = vpop.f32.mrb[0].mxu0
    %v3717 = vadd.f32 0.0, %v3716
    %v3718 = vpop.f32.mrb[0].mxu0
    %3719 = vmatprep.mubr.bf16.mxu0 %v3445
    %3720 = vmatmul.mubr.bf16.gmra.mrb[0].mxu0 %v3342
    %v3721 = vpop.f32.mrb[0].mxu0
    %v3722 = vadd.f32 0.0, %v3721
    %v3723 = vpop.f32.mrb[0].mxu0
    %v3724 = vpop.f32.mrb[0].mxu0
    %v3725 = vadd.f32 0.0, %v3724
    %v3726 = vpop.f32.mrb[0].mxu0
    %3727 = vmatprep.mubr.bf16.mxu0 %v3400
    %3728 = vmatmul.mubr.bf16.gmra.mrb[0].mxu0 %v3344
    %v3729 = vpop.f32.mrb[0].mxu0
    %v3730 = vadd.f32 0.0, %v3729
    %v3731 = vpop.f32.mrb[0].mxu0
    %v3732 = vpop.f32.mrb[0].mxu0
    %v3733 = vadd.f32 0.0, %v3732
    %v3734 = vpop.f32.mrb[0].mxu0
    %3735 = vdwg.mxu0
    %vm3736 = vcmask 64512
    %v3737 = vsel %vm3736, %v3482, 0.0
    %v3738 = vsel %vm3736, %v3485, 0.0
    %v3739 = vadd.f32 %v3737, %v3738
    %v3740 = vsel %vm3736, %v3490, 0.0
    %v3741 = vadd.f32 %v3739, %v3740
    %v3742 = vsel %vm3736, %v3493, 0.0
    %v3743 = vadd.f32 %v3741, %v3742
    %v3744 = vsel %vm3736, %v3498, 0.0
    %v3745 = vadd.f32 %v3743, %v3744
    %v3746 = vsel %vm3736, %v3501, 0.0
    %v3747 = vadd.f32 %v3745, %v3746
    %v3748 = vsel %vm3736, %v3506, 0.0
    %v3749 = vadd.f32 %v3747, %v3748
    %v3750 = vsel %vm3736, %v3509, 0.0
    %v3751 = vadd.f32 %v3749, %v3750
    %v3752 = vsel %vm3736, %v3514, 0.0
    %v3753 = vadd.f32 %v3751, %v3752
    %v3754 = vsel %vm3736, %v3517, 0.0
    %v3755 = vadd.f32 %v3753, %v3754
    %v3756 = vsel %vm3736, %v3522, 0.0
    %v3757 = vadd.f32 %v3755, %v3756
    %v3758 = vsel %vm3736, %v3525, 0.0
    %v3759 = vadd.f32 %v3757, %v3758
    %v3760 = vsel %vm3736, %v3530, 0.0
    %v3761 = vadd.f32 %v3759, %v3760
    %v3762 = vsel %vm3736, %v3533, 0.0
    %v3763 = vadd.f32 %v3761, %v3762
    %v3764 = vsel %vm3736, %v3538, 0.0
    %v3765 = vadd.f32 %v3763, %v3764
    %v3766 = vsel %vm3736, %v3541, 0.0
    %v3767 = vadd.f32 %v3765, %v3766
    %v3768 = vsel %vm3736, %v3546, 0.0
    %v3769 = vadd.f32 %v3767, %v3768
    %v3770 = vsel %vm3736, %v3549, 0.0
    %v3771 = vadd.f32 %v3769, %v3770
    %v3772 = vsel %vm3736, %v3554, 0.0
    %v3773 = vadd.f32 %v3771, %v3772
    %v3774 = vsel %vm3736, %v3557, 0.0
    %v3775 = vadd.f32 %v3773, %v3774
    %v3776 = vsel %vm3736, %v3562, 0.0
    %v3777 = vadd.f32 %v3775, %v3776
    %v3778 = vsel %vm3736, %v3565, 0.0
    %v3779 = vadd.f32 %v3777, %v3778
    %v3780 = vsel %vm3736, %v3570, 0.0
    %v3781 = vadd.f32 %v3779, %v3780
    %v3782 = vsel %vm3736, %v3573, 0.0
    %v3783 = vadd.f32 %v3781, %v3782
    %v3784 = vsel %vm3736, %v3578, 0.0
    %v3785 = vadd.f32 %v3783, %v3784
    %v3786 = vsel %vm3736, %v3581, 0.0
    %v3787 = vadd.f32 %v3785, %v3786
    %v3788 = vsel %vm3736, %v3586, 0.0
    %v3789 = vadd.f32 %v3787, %v3788
    %v3790 = vsel %vm3736, %v3589, 0.0
    %v3791 = vadd.f32 %v3789, %v3790
    %v3792 = vsel %vm3736, %v3594, 0.0
    %v3793 = vadd.f32 %v3791, %v3792
    %v3794 = vsel %vm3736, %v3597, 0.0
    %v3795 = vadd.f32 %v3793, %v3794
    %v3796 = vsel %vm3736, %v3602, 0.0
    %v3797 = vadd.f32 %v3795, %v3796
    %v3798 = vsel %vm3736, %v3605, 0.0
    %v3799 = vadd.f32 %v3797, %v3798
    %v3800 = vsel %vm3736, %v3610, 0.0
    %v3801 = vadd.f32 %v3799, %v3800
    %v3802 = vsel %vm3736, %v3613, 0.0
    %v3803 = vadd.f32 %v3801, %v3802
    %v3804 = vsel %vm3736, %v3618, 0.0
    %v3805 = vadd.f32 %v3803, %v3804
    %v3806 = vsel %vm3736, %v3621, 0.0
    %v3807 = vadd.f32 %v3805, %v3806
    %v3808 = vsel %vm3736, %v3626, 0.0
    %v3809 = vadd.f32 %v3807, %v3808
    %v3810 = vsel %vm3736, %v3629, 0.0
    %v3811 = vadd.f32 %v3809, %v3810
    %v3812 = vsel %vm3736, %v3634, 0.0
    %v3813 = vadd.f32 %v3811, %v3812
    %v3814 = vsel %vm3736, %v3637, 0.0
    %v3815 = vadd.f32 %v3813, %v3814
    %v3816 = vsel %vm3736, %v3642, 0.0
    %v3817 = vadd.f32 %v3815, %v3816
    %v3818 = vsel %vm3736, %v3645, 0.0
    %v3819 = vadd.f32 %v3817, %v3818
    %v3820 = vsel %vm3736, %v3650, 0.0
    %v3821 = vadd.f32 %v3819, %v3820
    %v3822 = vsel %vm3736, %v3653, 0.0
    %v3823 = vadd.f32 %v3821, %v3822
    %v3824 = vsel %vm3736, %v3658, 0.0
    %v3825 = vadd.f32 %v3823, %v3824
    %v3826 = vsel %vm3736, %v3661, 0.0
    %v3827 = vadd.f32 %v3825, %v3826
    %v3828 = vsel %vm3736, %v3666, 0.0
    %v3829 = vadd.f32 %v3827, %v3828
    %v3830 = vsel %vm3736, %v3669, 0.0
    %v3831 = vadd.f32 %v3829, %v3830
    %v3832 = vsel %vm3736, %v3674, 0.0
    %v3833 = vadd.f32 %v3831, %v3832
    %v3834 = vsel %vm3736, %v3677, 0.0
    %v3835 = vadd.f32 %v3833, %v3834
    %v3836 = vsel %vm3736, %v3682, 0.0
    %v3837 = vadd.f32 %v3835, %v3836
    %v3838 = vsel %vm3736, %v3685, 0.0
    %v3839 = vadd.f32 %v3837, %v3838
    %v3840 = vsel %vm3736, %v3690, 0.0
    %v3841 = vadd.f32 %v3839, %v3840
    %v3842 = vsel %vm3736, %v3693, 0.0
    %v3843 = vadd.f32 %v3841, %v3842
    %v3844 = vsel %vm3736, %v3698, 0.0
    %v3845 = vadd.f32 %v3843, %v3844
    %v3846 = vsel %vm3736, %v3701, 0.0
    %v3847 = vadd.f32 %v3845, %v3846
    %v3848 = vsel %vm3736, %v3706, 0.0
    %v3849 = vadd.f32 %v3847, %v3848
    %v3850 = vsel %vm3736, %v3709, 0.0
    %v3851 = vadd.f32 %v3849, %v3850
    %v3852 = vsel %vm3736, %v3714, 0.0
    %v3853 = vadd.f32 %v3851, %v3852
    %v3854 = vsel %vm3736, %v3717, 0.0
    %v3855 = vadd.f32 %v3853, %v3854
    %v3856 = vsel %vm3736, %v3722, 0.0
    %v3857 = vadd.f32 %v3855, %v3856
    %v3858 = vsel %vm3736, %v3725, 0.0
    %v3859 = vadd.f32 %v3857, %v3858
    %v3860 = vsel %vm3736, %v3730, 0.0
    %v3861 = vadd.f32 %v3859, %v3860
    %v3862 = vsel %vm3736, %v3733, 0.0
    %v3863 = vadd.f32 %v3861, %v3862
    %v3864 = vrot.slane %v3863, 4
    %v3865 = vadd.f32 %v3863, %v3864
    %v3866 = vrot.slane %v3865, 2
    %v3867 = vadd.f32 %v3865, %v3866
    %v3868 = vrot.slane %v3867, 1
    %v3869 = vadd.f32 %v3867, %v3868
    %v3870 = vmul.f32 %v3869, %v299
    %v3871 = vsub.f32 %v3482, %v3870
    %v3872 = vsub.f32 %v3485, %v3870
    %v3873 = vsub.f32 %v3490, %v3870
    %v3874 = vsub.f32 %v3493, %v3870
    %v3875 = vsub.f32 %v3498, %v3870
    %v3876 = vsub.f32 %v3501, %v3870
    %v3877 = vsub.f32 %v3506, %v3870
    %v3878 = vsub.f32 %v3509, %v3870
    %v3879 = vsub.f32 %v3514, %v3870
    %v3880 = vsub.f32 %v3517, %v3870
    %v3881 = vsub.f32 %v3522, %v3870
    %v3882 = vsub.f32 %v3525, %v3870
    %v3883 = vsub.f32 %v3530, %v3870
    %v3884 = vsub.f32 %v3533, %v3870
    %v3885 = vsub.f32 %v3538, %v3870
    %v3886 = vsub.f32 %v3541, %v3870
    %v3887 = vsub.f32 %v3546, %v3870
    %v3888 = vsub.f32 %v3549, %v3870
    %v3889 = vsub.f32 %v3554, %v3870
    %v3890 = vsub.f32 %v3557, %v3870
    %v3891 = vsub.f32 %v3562, %v3870
    %v3892 = vsub.f32 %v3565, %v3870
    %v3893 = vsub.f32 %v3570, %v3870
    %v3894 = vsub.f32 %v3573, %v3870
    %v3895 = vsub.f32 %v3578, %v3870
    %v3896 = vsub.f32 %v3581, %v3870
    %v3897 = vsub.f32 %v3586, %v3870
    %v3898 = vsub.f32 %v3589, %v3870
    %v3899 = vsub.f32 %v3594, %v3870
    %v3900 = vsub.f32 %v3597, %v3870
    %v3901 = vsub.f32 %v3602, %v3870
    %v3902 = vsub.f32 %v3605, %v3870
    %v3903 = vsub.f32 %v3610, %v3870
    %v3904 = vsub.f32 %v3613, %v3870
    %v3905 = vsub.f32 %v3618, %v3870
    %v3906 = vsub.f32 %v3621, %v3870
    %v3907 = vsub.f32 %v3626, %v3870
    %v3908 = vsub.f32 %v3629, %v3870
    %v3909 = vsub.f32 %v3634, %v3870
    %v3910 = vsub.f32 %v3637, %v3870
    %v3911 = vsub.f32 %v3642, %v3870
    %v3912 = vsub.f32 %v3645, %v3870
    %v3913 = vsub.f32 %v3650, %v3870
    %v3914 = vsub.f32 %v3653, %v3870
    %v3915 = vsub.f32 %v3658, %v3870
    %v3916 = vsub.f32 %v3661, %v3870
    %v3917 = vsub.f32 %v3666, %v3870
    %v3918 = vsub.f32 %v3669, %v3870
    %v3919 = vsub.f32 %v3674, %v3870
    %v3920 = vsub.f32 %v3677, %v3870
    %v3921 = vsub.f32 %v3682, %v3870
    %v3922 = vsub.f32 %v3685, %v3870
    %v3923 = vsub.f32 %v3690, %v3870
    %v3924 = vsub.f32 %v3693, %v3870
    %v3925 = vsub.f32 %v3698, %v3870
    %v3926 = vsub.f32 %v3701, %v3870
    %v3927 = vsub.f32 %v3706, %v3870
    %v3928 = vsub.f32 %v3709, %v3870
    %v3929 = vsub.f32 %v3714, %v3870
    %v3930 = vsub.f32 %v3717, %v3870
    %v3931 = vsub.f32 %v3722, %v3870
    %v3932 = vsub.f32 %v3725, %v3870
    %v3933 = vsub.f32 %v3730, %v3870
    %v3934 = vsub.f32 %v3733, %v3870
    %v3935 = vmul.f32 %v3871, %v3871
    %v3936 = vmul.f32 %v3872, %v3872
    %v3937 = vmul.f32 %v3873, %v3873
    %v3938 = vmul.f32 %v3874, %v3874
    %v3939 = vmul.f32 %v3875, %v3875
    %v3940 = vmul.f32 %v3876, %v3876
    %v3941 = vmul.f32 %v3877, %v3877
    %v3942 = vmul.f32 %v3878, %v3878
    %v3943 = vmul.f32 %v3879, %v3879
    %v3944 = vmul.f32 %v3880, %v3880
    %v3945 = vmul.f32 %v3881, %v3881
    %v3946 = vmul.f32 %v3882, %v3882
    %v3947 = vmul.f32 %v3883, %v3883
    %v3948 = vmul.f32 %v3884, %v3884
    %v3949 = vmul.f32 %v3885, %v3885
    %v3950 = vmul.f32 %v3886, %v3886
    %v3951 = vmul.f32 %v3887, %v3887
    %v3952 = vmul.f32 %v3888, %v3888
    %v3953 = vmul.f32 %v3889, %v3889
    %v3954 = vmul.f32 %v3890, %v3890
    %v3955 = vmul.f32 %v3891, %v3891
    %v3956 = vmul.f32 %v3892, %v3892
    %v3957 = vmul.f32 %v3893, %v3893
    %v3958 = vmul.f32 %v3894, %v3894
    %v3959 = vmul.f32 %v3895, %v3895
    %v3960 = vmul.f32 %v3896, %v3896
    %v3961 = vmul.f32 %v3897, %v3897
    %v3962 = vmul.f32 %v3898, %v3898
    %v3963 = vmul.f32 %v3899, %v3899
    %v3964 = vmul.f32 %v3900, %v3900
    %v3965 = vmul.f32 %v3901, %v3901
    %v3966 = vmul.f32 %v3902, %v3902
    %v3967 = vmul.f32 %v3903, %v3903
    %v3968 = vmul.f32 %v3904, %v3904
    %v3969 = vmul.f32 %v3905, %v3905
    %v3970 = vmul.f32 %v3906, %v3906
    %v3971 = vmul.f32 %v3907, %v3907
    %v3972 = vmul.f32 %v3908, %v3908
    %v3973 = vmul.f32 %v3909, %v3909
    %v3974 = vmul.f32 %v3910, %v3910
    %v3975 = vmul.f32 %v3911, %v3911
    %v3976 = vmul.f32 %v3912, %v3912
    %v3977 = vmul.f32 %v3913, %v3913
    %v3978 = vmul.f32 %v3914, %v3914
    %v3979 = vmul.f32 %v3915, %v3915
    %v3980 = vmul.f32 %v3916, %v3916
    %v3981 = vmul.f32 %v3917, %v3917
    %v3982 = vmul.f32 %v3918, %v3918
    %v3983 = vmul.f32 %v3919, %v3919
    %v3984 = vmul.f32 %v3920, %v3920
    %v3985 = vmul.f32 %v3921, %v3921
    %v3986 = vmul.f32 %v3922, %v3922
    %v3987 = vmul.f32 %v3923, %v3923
    %v3988 = vmul.f32 %v3924, %v3924
    %v3989 = vmul.f32 %v3925, %v3925
    %v3990 = vmul.f32 %v3926, %v3926
    %v3991 = vmul.f32 %v3927, %v3927
    %v3992 = vmul.f32 %v3928, %v3928
    %v3993 = vmul.f32 %v3929, %v3929
    %v3994 = vmul.f32 %v3930, %v3930
    %v3995 = vmul.f32 %v3931, %v3931
    %v3996 = vmul.f32 %v3932, %v3932
    %v3997 = vmul.f32 %v3933, %v3933
    %v3998 = vmul.f32 %v3934, %v3934
    %v3999 = vsel %vm3736, %v3935, 0.0
    %v4000 = vsel %vm3736, %v3936, 0.0
    %v4001 = vadd.f32 %v3999, %v4000
    %v4002 = vsel %vm3736, %v3937, 0.0
    %v4003 = vadd.f32 %v4001, %v4002
    %v4004 = vsel %vm3736, %v3938, 0.0
    %v4005 = vadd.f32 %v4003, %v4004
    %v4006 = vsel %vm3736, %v3939, 0.0
    %v4007 = vadd.f32 %v4005, %v4006
    %v4008 = vsel %vm3736, %v3940, 0.0
    %v4009 = vadd.f32 %v4007, %v4008
    %v4010 = vsel %vm3736, %v3941, 0.0
    %v4011 = vadd.f32 %v4009, %v4010
    %v4012 = vsel %vm3736, %v3942, 0.0
    %v4013 = vadd.f32 %v4011, %v4012
    %v4014 = vsel %vm3736, %v3943, 0.0
    %v4015 = vadd.f32 %v4013, %v4014
    %v4016 = vsel %vm3736, %v3944, 0.0
    %v4017 = vadd.f32 %v4015, %v4016
    %v4018 = vsel %vm3736, %v3945, 0.0
    %v4019 = vadd.f32 %v4017, %v4018
    %v4020 = vsel %vm3736, %v3946, 0.0
    %v4021 = vadd.f32 %v4019, %v4020
    %v4022 = vsel %vm3736, %v3947, 0.0
    %v4023 = vadd.f32 %v4021, %v4022
    %v4024 = vsel %vm3736, %v3948, 0.0
    %v4025 = vadd.f32 %v4023, %v4024
    %v4026 = vsel %vm3736, %v3949, 0.0
    %v4027 = vadd.f32 %v4025, %v4026
    %v4028 = vsel %vm3736, %v3950, 0.0
    %v4029 = vadd.f32 %v4027, %v4028
    %v4030 = vsel %vm3736, %v3951, 0.0
    %v4031 = vadd.f32 %v4029, %v4030
    %v4032 = vsel %vm3736, %v3952, 0.0
    %v4033 = vadd.f32 %v4031, %v4032
    %v4034 = vsel %vm3736, %v3953, 0.0
    %v4035 = vadd.f32 %v4033, %v4034
    %v4036 = vsel %vm3736, %v3954, 0.0
    %v4037 = vadd.f32 %v4035, %v4036
    %v4038 = vsel %vm3736, %v3955, 0.0
    %v4039 = vadd.f32 %v4037, %v4038
    %v4040 = vsel %vm3736, %v3956, 0.0
    %v4041 = vadd.f32 %v4039, %v4040
    %v4042 = vsel %vm3736, %v3957, 0.0
    %v4043 = vadd.f32 %v4041, %v4042
    %v4044 = vsel %vm3736, %v3958, 0.0
    %v4045 = vadd.f32 %v4043, %v4044
    %v4046 = vsel %vm3736, %v3959, 0.0
    %v4047 = vadd.f32 %v4045, %v4046
    %v4048 = vsel %vm3736, %v3960, 0.0
    %v4049 = vadd.f32 %v4047, %v4048
    %v4050 = vsel %vm3736, %v3961, 0.0
    %v4051 = vadd.f32 %v4049, %v4050
    %v4052 = vsel %vm3736, %v3962, 0.0
    %v4053 = vadd.f32 %v4051, %v4052
    %v4054 = vsel %vm3736, %v3963, 0.0
    %v4055 = vadd.f32 %v4053, %v4054
    %v4056 = vsel %vm3736, %v3964, 0.0
    %v4057 = vadd.f32 %v4055, %v4056
    %v4058 = vsel %vm3736, %v3965, 0.0
    %v4059 = vadd.f32 %v4057, %v4058
    %v4060 = vsel %vm3736, %v3966, 0.0
    %v4061 = vadd.f32 %v4059, %v4060
    %v4062 = vsel %vm3736, %v3967, 0.0
    %v4063 = vadd.f32 %v4061, %v4062
    %v4064 = vsel %vm3736, %v3968, 0.0
    %v4065 = vadd.f32 %v4063, %v4064
    %v4066 = vsel %vm3736, %v3969, 0.0
    %v4067 = vadd.f32 %v4065, %v4066
    %v4068 = vsel %vm3736, %v3970, 0.0
    %v4069 = vadd.f32 %v4067, %v4068
    %v4070 = vsel %vm3736, %v3971, 0.0
    %v4071 = vadd.f32 %v4069, %v4070
    %v4072 = vsel %vm3736, %v3972, 0.0
    %v4073 = vadd.f32 %v4071, %v4072
    %v4074 = vsel %vm3736, %v3973, 0.0
    %v4075 = vadd.f32 %v4073, %v4074
    %v4076 = vsel %vm3736, %v3974, 0.0
    %v4077 = vadd.f32 %v4075, %v4076
    %v4078 = vsel %vm3736, %v3975, 0.0
    %v4079 = vadd.f32 %v4077, %v4078
    %v4080 = vsel %vm3736, %v3976, 0.0
    %v4081 = vadd.f32 %v4079, %v4080
    %v4082 = vsel %vm3736, %v3977, 0.0
    %v4083 = vadd.f32 %v4081, %v4082
    %v4084 = vsel %vm3736, %v3978, 0.0
    %v4085 = vadd.f32 %v4083, %v4084
    %v4086 = vsel %vm3736, %v3979, 0.0
    %v4087 = vadd.f32 %v4085, %v4086
    %v4088 = vsel %vm3736, %v3980, 0.0
    %v4089 = vadd.f32 %v4087, %v4088
    %v4090 = vsel %vm3736, %v3981, 0.0
    %v4091 = vadd.f32 %v4089, %v4090
    %v4092 = vsel %vm3736, %v3982, 0.0
    %v4093 = vadd.f32 %v4091, %v4092
    %v4094 = vsel %vm3736, %v3983, 0.0
    %v4095 = vadd.f32 %v4093, %v4094
    %v4096 = vsel %vm3736, %v3984, 0.0
    %v4097 = vadd.f32 %v4095, %v4096
    %v4098 = vsel %vm3736, %v3985, 0.0
    %v4099 = vadd.f32 %v4097, %v4098
    %v4100 = vsel %vm3736, %v3986, 0.0
    %v4101 = vadd.f32 %v4099, %v4100
    %v4102 = vsel %vm3736, %v3987, 0.0
    %v4103 = vadd.f32 %v4101, %v4102
    %v4104 = vsel %vm3736, %v3988, 0.0
    %v4105 = vadd.f32 %v4103, %v4104
    %v4106 = vsel %vm3736, %v3989, 0.0
    %v4107 = vadd.f32 %v4105, %v4106
    %v4108 = vsel %vm3736, %v3990, 0.0
    %v4109 = vadd.f32 %v4107, %v4108
    %v4110 = vsel %vm3736, %v3991, 0.0
    %v4111 = vadd.f32 %v4109, %v4110
    %v4112 = vsel %vm3736, %v3992, 0.0
    %v4113 = vadd.f32 %v4111, %v4112
    %v4114 = vsel %vm3736, %v3993, 0.0
    %v4115 = vadd.f32 %v4113, %v4114
    %v4116 = vsel %vm3736, %v3994, 0.0
    %v4117 = vadd.f32 %v4115, %v4116
    %v4118 = vsel %vm3736, %v3995, 0.0
    %v4119 = vadd.f32 %v4117, %v4118
    %v4120 = vsel %vm3736, %v3996, 0.0
    %v4121 = vadd.f32 %v4119, %v4120
    %v4122 = vsel %vm3736, %v3997, 0.0
    %v4123 = vadd.f32 %v4121, %v4122
    %v4124 = vsel %vm3736, %v3998, 0.0
    %v4125 = vadd.f32 %v4123, %v4124
    %v4126 = vrot.slane %v4125, 4
    %v4127 = vadd.f32 %v4125, %v4126
    %v4128 = vrot.slane %v4127, 2
    %v4129 = vadd.f32 %v4127, %v4128
    %v4130 = vrot.slane %v4129, 1
    %v4131 = vadd.f32 %v4129, %v4130
    %v4132 = vmul.f32 %v4131, %v299
    %v4133 = vld [vmem:[#allocation10] sm:$0x1]
    %v4134 = vld [vmem:[#allocation11] sm:$0x1]
    %v4135 = vadd.f32 %v4132, 1e-05
    %v4136 = vrsqrt.pop %v4135
    %v4137 = vmul.f32 %v4133, %v4136
    %v4138 = vmul.f32 %v3870, %v4137
    %v4139 = vsub.f32 %v4134, %v4138
    %v4141 = vlaneseq
    %v4142 = vshrl.u32 %v4141, 7
    %v4143 = vsub.s32 0, %v4142
    %v4144 = vrot.slane %v4137, %v4143
    %v4146 = vmul.f32 %v3482, %v4144
    %v4147 = vmul.f32 %v3485, %v4144
    %v4148 = vmul.f32 %v3490, %v4144
    %v4149 = vmul.f32 %v3493, %v4144
    %v4150 = vmul.f32 %v3498, %v4144
    %v4151 = vmul.f32 %v3501, %v4144
    %v4152 = vmul.f32 %v3506, %v4144
    %v4153 = vmul.f32 %v3509, %v4144
    %v4154 = vmul.f32 %v3514, %v4144
    %v4155 = vmul.f32 %v3517, %v4144
    %v4156 = vmul.f32 %v3522, %v4144
    %v4157 = vmul.f32 %v3525, %v4144
    %v4158 = vmul.f32 %v3530, %v4144
    %v4159 = vmul.f32 %v3533, %v4144
    %v4160 = vmul.f32 %v3538, %v4144
    %v4161 = vmul.f32 %v3541, %v4144
    %v4162 = vmul.f32 %v3546, %v4144
    %v4163 = vmul.f32 %v3549, %v4144
    %v4164 = vmul.f32 %v3554, %v4144
    %v4165 = vmul.f32 %v3557, %v4144
    %v4166 = vmul.f32 %v3562, %v4144
    %v4167 = vmul.f32 %v3565, %v4144
    %v4168 = vmul.f32 %v3570, %v4144
    %v4169 = vmul.f32 %v3573, %v4144
    %v4170 = vmul.f32 %v3578, %v4144
    %v4171 = vmul.f32 %v3581, %v4144
    %v4172 = vmul.f32 %v3586, %v4144
    %v4173 = vmul.f32 %v3589, %v4144
    %v4174 = vmul.f32 %v3594, %v4144
    %v4175 = vmul.f32 %v3597, %v4144
    %v4176 = vmul.f32 %v3602, %v4144
    %v4177 = vmul.f32 %v3605, %v4144
    %v4178 = vmul.f32 %v3610, %v4144
    %v4179 = vmul.f32 %v3613, %v4144
    %v4180 = vmul.f32 %v3618, %v4144
    %v4181 = vmul.f32 %v3621, %v4144
    %v4182 = vmul.f32 %v3626, %v4144
    %v4183 = vmul.f32 %v3629, %v4144
    %v4184 = vmul.f32 %v3634, %v4144
    %v4185 = vmul.f32 %v3637, %v4144
    %v4186 = vmul.f32 %v3642, %v4144
    %v4187 = vmul.f32 %v3645, %v4144
    %v4188 = vmul.f32 %v3650, %v4144
    %v4189 = vmul.f32 %v3653, %v4144
    %v4190 = vmul.f32 %v3658, %v4144
    %v4191 = vmul.f32 %v3661, %v4144
    %v4192 = vmul.f32 %v3666, %v4144
    %v4193 = vmul.f32 %v3669, %v4144
    %v4194 = vmul.f32 %v3674, %v4144
    %v4195 = vmul.f32 %v3677, %v4144
    %v4196 = vmul.f32 %v3682, %v4144
    %v4197 = vmul.f32 %v3685, %v4144
    %v4198 = vmul.f32 %v3690, %v4144
    %v4199 = vmul.f32 %v3693, %v4144
    %v4200 = vmul.f32 %v3698, %v4144
    %v4201 = vmul.f32 %v3701, %v4144
    %v4202 = vmul.f32 %v3706, %v4144
    %v4203 = vmul.f32 %v3709, %v4144
    %v4204 = vmul.f32 %v3714, %v4144
    %v4205 = vmul.f32 %v3717, %v4144
    %v4206 = vmul.f32 %v3722, %v4144
    %v4207 = vmul.f32 %v3725, %v4144
    %v4208 = vmul.f32 %v3730, %v4144
    %v4209 = vmul.f32 %v3733, %v4144
    %v4211 = vlaneseq
    %v4212 = vshrl.u32 %v4211, 7
    %v4213 = vsub.s32 0, %v4212
    %v4214 = vrot.slane %v4139, %v4213
    %v4216 = vadd.f32 %v4146, %v4214
    %v4217 = vadd.f32 %v4147, %v4214
    %v4218 = vadd.f32 %v4148, %v4214
    %v4219 = vadd.f32 %v4149, %v4214
    %v4220 = vadd.f32 %v4150, %v4214
    %v4221 = vadd.f32 %v4151, %v4214
    %v4222 = vadd.f32 %v4152, %v4214
    %v4223 = vadd.f32 %v4153, %v4214
    %v4224 = vadd.f32 %v4154, %v4214
    %v4225 = vadd.f32 %v4155, %v4214
    %v4226 = vadd.f32 %v4156, %v4214
    %v4227 = vadd.f32 %v4157, %v4214
    %v4228 = vadd.f32 %v4158, %v4214
    %v4229 = vadd.f32 %v4159, %v4214
    %v4230 = vadd.f32 %v4160, %v4214
    %v4231 = vadd.f32 %v4161, %v4214
    %v4232 = vadd.f32 %v4162, %v4214
    %v4233 = vadd.f32 %v4163, %v4214
    %v4234 = vadd.f32 %v4164, %v4214
    %v4235 = vadd.f32 %v4165, %v4214
    %v4236 = vadd.f32 %v4166, %v4214
    %v4237 = vadd.f32 %v4167, %v4214
    %v4238 = vadd.f32 %v4168, %v4214
    %v4239 = vadd.f32 %v4169, %v4214
    %v4240 = vadd.f32 %v4170, %v4214
    %v4241 = vadd.f32 %v4171, %v4214
    %v4242 = vadd.f32 %v4172, %v4214
    %v4243 = vadd.f32 %v4173, %v4214
    %v4244 = vadd.f32 %v4174, %v4214
    %v4245 = vadd.f32 %v4175, %v4214
    %v4246 = vadd.f32 %v4176, %v4214
    %v4247 = vadd.f32 %v4177, %v4214
    %v4248 = vadd.f32 %v4178, %v4214
    %v4249 = vadd.f32 %v4179, %v4214
    %v4250 = vadd.f32 %v4180, %v4214
    %v4251 = vadd.f32 %v4181, %v4214
    %v4252 = vadd.f32 %v4182, %v4214
    %v4253 = vadd.f32 %v4183, %v4214
    %v4254 = vadd.f32 %v4184, %v4214
    %v4255 = vadd.f32 %v4185, %v4214
    %v4256 = vadd.f32 %v4186, %v4214
    %v4257 = vadd.f32 %v4187, %v4214
    %v4258 = vadd.f32 %v4188, %v4214
    %v4259 = vadd.f32 %v4189, %v4214
    %v4260 = vadd.f32 %v4190, %v4214
    %v4261 = vadd.f32 %v4191, %v4214
    %v4262 = vadd.f32 %v4192, %v4214
    %v4263 = vadd.f32 %v4193, %v4214
    %v4264 = vadd.f32 %v4194, %v4214
    %v4265 = vadd.f32 %v4195, %v4214
    %v4266 = vadd.f32 %v4196, %v4214
    %v4267 = vadd.f32 %v4197, %v4214
    %v4268 = vadd.f32 %v4198, %v4214
    %v4269 = vadd.f32 %v4199, %v4214
    %v4270 = vadd.f32 %v4200, %v4214
    %v4271 = vadd.f32 %v4201, %v4214
    %v4272 = vadd.f32 %v4202, %v4214
    %v4273 = vadd.f32 %v4203, %v4214
    %v4274 = vadd.f32 %v4204, %v4214
    %v4275 = vadd.f32 %v4205, %v4214
    %v4276 = vadd.f32 %v4206, %v4214
    %v4277 = vadd.f32 %v4207, %v4214
    %v4278 = vadd.f32 %v4208, %v4214
    %v4279 = vadd.f32 %v4209, %v4214
    %vm4280 = vcmp.gt.f32.partialorder %v4216, 0.0
    %vm4281 = vcmp.gt.f32.partialorder %v4217, 0.0
    %vm4282 = vcmp.gt.f32.partialorder %v4218, 0.0
    %vm4283 = vcmp.gt.f32.partialorder %v4219, 0.0
    %vm4284 = vcmp.gt.f32.partialorder %v4220, 0.0
    %vm4285 = vcmp.gt.f32.partialorder %v4221, 0.0
    %vm4286 = vcmp.gt.f32.partialorder %v4222, 0.0
    %vm4287 = vcmp.gt.f32.partialorder %v4223, 0.0
    %vm4288 = vcmp.gt.f32.partialorder %v4224, 0.0
    %vm4289 = vcmp.gt.f32.partialorder %v4225, 0.0
    %vm4290 = vcmp.gt.f32.partialorder %v4226, 0.0
    %vm4291 = vcmp.gt.f32.partialorder %v4227, 0.0
    %vm4292 = vcmp.gt.f32.partialorder %v4228, 0.0
    %vm4293 = vcmp.gt.f32.partialorder %v4229, 0.0
    %vm4294 = vcmp.gt.f32.partialorder %v4230, 0.0
    %vm4295 = vcmp.gt.f32.partialorder %v4231, 0.0
    %vm4296 = vcmp.gt.f32.partialorder %v4232, 0.0
    %vm4297 = vcmp.gt.f32.partialorder %v4233, 0.0
    %vm4298 = vcmp.gt.f32.partialorder %v4234, 0.0
    %vm4299 = vcmp.gt.f32.partialorder %v4235, 0.0
    %vm4300 = vcmp.gt.f32.partialorder %v4236, 0.0
    %vm4301 = vcmp.gt.f32.partialorder %v4237, 0.0
    %vm4302 = vcmp.gt.f32.partialorder %v4238, 0.0
    %vm4303 = vcmp.gt.f32.partialorder %v4239, 0.0
    %vm4304 = vcmp.gt.f32.partialorder %v4240, 0.0
    %vm4305 = vcmp.gt.f32.partialorder %v4241, 0.0
    %vm4306 = vcmp.gt.f32.partialorder %v4242, 0.0
    %vm4307 = vcmp.gt.f32.partialorder %v4243, 0.0
    %vm4308 = vcmp.gt.f32.partialorder %v4244, 0.0
    %vm4309 = vcmp.gt.f32.partialorder %v4245, 0.0
    %vm4310 = vcmp.gt.f32.partialorder %v4246, 0.0
    %vm4311 = vcmp.gt.f32.partialorder %v4247, 0.0
    %vm4312 = vcmp.gt.f32.partialorder %v4248, 0.0
    %vm4313 = vcmp.gt.f32.partialorder %v4249, 0.0
    %vm4314 = vcmp.gt.f32.partialorder %v4250, 0.0
    %vm4315 = vcmp.gt.f32.partialorder %v4251, 0.0
    %vm4316 = vcmp.gt.f32.partialorder %v4252, 0.0
    %vm4317 = vcmp.gt.f32.partialorder %v4253, 0.0
    %vm4318 = vcmp.gt.f32.partialorder %v4254, 0.0
    %vm4319 = vcmp.gt.f32.partialorder %v4255, 0.0
    %vm4320 = vcmp.gt.f32.partialorder %v4256, 0.0
    %vm4321 = vcmp.gt.f32.partialorder %v4257, 0.0
    %vm4322 = vcmp.gt.f32.partialorder %v4258, 0.0
    %vm4323 = vcmp.gt.f32.partialorder %v4259, 0.0
    %vm4324 = vcmp.gt.f32.partialorder %v4260, 0.0
    %vm4325 = vcmp.gt.f32.partialorder %v4261, 0.0
    %vm4326 = vcmp.gt.f32.partialorder %v4262, 0.0
    %vm4327 = vcmp.gt.f32.partialorder %v4263, 0.0
    %vm4328 = vcmp.gt.f32.partialorder %v4264, 0.0
    %vm4329 = vcmp.gt.f32.partialorder %v4265, 0.0
    %vm4330 = vcmp.gt.f32.partialorder %v4266, 0.0
    %vm4331 = vcmp.gt.f32.partialorder %v4267, 0.0
    %vm4332 = vcmp.gt.f32.partialorder %v4268, 0.0
    %vm4333 = vcmp.gt.f32.partialorder %v4269, 0.0
    %vm4334 = vcmp.gt.f32.partialorder %v4270, 0.0
    %vm4335 = vcmp.gt.f32.partialorder %v4271, 0.0
    %vm4336 = vcmp.gt.f32.partialorder %v4272, 0.0
    %vm4337 = vcmp.gt.f32.partialorder %v4273, 0.0
    %vm4338 = vcmp.gt.f32.partialorder %v4274, 0.0
    %vm4339 = vcmp.gt.f32.partialorder %v4275, 0.0
    %vm4340 = vcmp.gt.f32.partialorder %v4276, 0.0
    %vm4341 = vcmp.gt.f32.partialorder %v4277, 0.0
    %vm4342 = vcmp.gt.f32.partialorder %v4278, 0.0
    %vm4343 = vcmp.gt.f32.partialorder %v4279, 0.0
    %v4344 = vmul.f32 %v4216, 0.2
    %v4345 = vmul.f32 %v4217, 0.2
    %v4346 = vmul.f32 %v4218, 0.2
    %v4347 = vmul.f32 %v4219, 0.2
    %v4348 = vmul.f32 %v4220, 0.2
    %v4349 = vmul.f32 %v4221, 0.2
    %v4350 = vmul.f32 %v4222, 0.2
    %v4351 = vmul.f32 %v4223, 0.2
    %v4352 = vmul.f32 %v4224, 0.2
    %v4353 = vmul.f32 %v4225, 0.2
    %v4354 = vmul.f32 %v4226, 0.2
    %v4355 = vmul.f32 %v4227, 0.2
    %v4356 = vmul.f32 %v4228, 0.2
    %v4357 = vmul.f32 %v4229, 0.2
    %v4358 = vmul.f32 %v4230, 0.2
    %v4359 = vmul.f32 %v4231, 0.2
    %v4360 = vmul.f32 %v4232, 0.2
    %v4361 = vmul.f32 %v4233, 0.2
    %v4362 = vmul.f32 %v4234, 0.2
    %v4363 = vmul.f32 %v4235, 0.2
    %v4364 = vmul.f32 %v4236, 0.2
    %v4365 = vmul.f32 %v4237, 0.2
    %v4366 = vmul.f32 %v4238, 0.2
    %v4367 = vmul.f32 %v4239, 0.2
    %v4368 = vmul.f32 %v4240, 0.2
    %v4369 = vmul.f32 %v4241, 0.2
    %v4370 = vmul.f32 %v4242, 0.2
    %v4371 = vmul.f32 %v4243, 0.2
    %v4372 = vmul.f32 %v4244, 0.2
    %v4373 = vmul.f32 %v4245, 0.2
    %v4374 = vmul.f32 %v4246, 0.2
    %v4375 = vmul.f32 %v4247, 0.2
    %v4376 = vmul.f32 %v4248, 0.2
    %v4377 = vmul.f32 %v4249, 0.2
    %v4378 = vmul.f32 %v4250, 0.2
    %v4379 = vmul.f32 %v4251, 0.2
    %v4380 = vmul.f32 %v4252, 0.2
    %v4381 = vmul.f32 %v4253, 0.2
    %v4382 = vmul.f32 %v4254, 0.2
    %v4383 = vmul.f32 %v4255, 0.2
    %v4384 = vmul.f32 %v4256, 0.2
    %v4385 = vmul.f32 %v4257, 0.2
    %v4386 = vmul.f32 %v4258, 0.2
    %v4387 = vmul.f32 %v4259, 0.2
    %v4388 = vmul.f32 %v4260, 0.2
    %v4389 = vmul.f32 %v4261, 0.2
    %v4390 = vmul.f32 %v4262, 0.2
    %v4391 = vmul.f32 %v4263, 0.2
    %v4392 = vmul.f32 %v4264, 0.2
    %v4393 = vmul.f32 %v4265, 0.2
    %v4394 = vmul.f32 %v4266, 0.2
    %v4395 = vmul.f32 %v4267, 0.2
    %v4396 = vmul.f32 %v4268, 0.2
    %v4397 = vmul.f32 %v4269, 0.2
    %v4398 = vmul.f32 %v4270, 0.2
    %v4399 = vmul.f32 %v4271, 0.2
    %v4400 = vmul.f32 %v4272, 0.2
    %v4401 = vmul.f32 %v4273, 0.2
    %v4402 = vmul.f32 %v4274, 0.2
    %v4403 = vmul.f32 %v4275, 0.2
    %v4404 = vmul.f32 %v4276, 0.2
    %v4405 = vmul.f32 %v4277, 0.2
    %v4406 = vmul.f32 %v4278, 0.2
    %v4407 = vmul.f32 %v4279, 0.2
    %v4408 = vsel %vm4280, %v4216, %v4344
    %v4409 = vsel %vm4281, %v4217, %v4345
    %v4410 = vsel %vm4282, %v4218, %v4346
    %v4411 = vsel %vm4283, %v4219, %v4347
    %v4412 = vsel %vm4284, %v4220, %v4348
    %v4413 = vsel %vm4285, %v4221, %v4349
    %v4414 = vsel %vm4286, %v4222, %v4350
    %v4415 = vsel %vm4287, %v4223, %v4351
    %v4416 = vsel %vm4288, %v4224, %v4352
    %v4417 = vsel %vm4289, %v4225, %v4353
    %v4418 = vsel %vm4290, %v4226, %v4354
    %v4419 = vsel %vm4291, %v4227, %v4355
    %v4420 = vsel %vm4292, %v4228, %v4356
    %v4421 = vsel %vm4293, %v4229, %v4357
    %v4422 = vsel %vm4294, %v4230, %v4358
    %v4423 = vsel %vm4295, %v4231, %v4359
    %v4424 = vsel %vm4296, %v4232, %v4360
    %v4425 = vsel %vm4297, %v4233, %v4361
    %v4426 = vsel %vm4298, %v4234, %v4362
    %v4427 = vsel %vm4299, %v4235, %v4363
    %v4428 = vsel %vm4300, %v4236, %v4364
    %v4429 = vsel %vm4301, %v4237, %v4365
    %v4430 = vsel %vm4302, %v4238, %v4366
    %v4431 = vsel %vm4303, %v4239, %v4367
    %v4432 = vsel %vm4304, %v4240, %v4368
    %v4433 = vsel %vm4305, %v4241, %v4369
    %v4434 = vsel %vm4306, %v4242, %v4370
    %v4435 = vsel %vm4307, %v4243, %v4371
    %v4436 = vsel %vm4308, %v4244, %v4372
    %v4437 = vsel %vm4309, %v4245, %v4373
    %v4438 = vsel %vm4310, %v4246, %v4374
    %v4439 = vsel %vm4311, %v4247, %v4375
    %v4440 = vsel %vm4312, %v4248, %v4376
    %v4441 = vsel %vm4313, %v4249, %v4377
    %v4442 = vsel %vm4314, %v4250, %v4378
    %v4443 = vsel %vm4315, %v4251, %v4379
    %v4444 = vsel %vm4316, %v4252, %v4380
    %v4445 = vsel %vm4317, %v4253, %v4381
    %v4446 = vsel %vm4318, %v4254, %v4382
    %v4447 = vsel %vm4319, %v4255, %v4383
    %v4448 = vsel %vm4320, %v4256, %v4384
    %v4449 = vsel %vm4321, %v4257, %v4385
    %v4450 = vsel %vm4322, %v4258, %v4386
    %v4451 = vsel %vm4323, %v4259, %v4387
    %v4452 = vsel %vm4324, %v4260, %v4388
    %v4453 = vsel %vm4325, %v4261, %v4389
    %v4454 = vsel %vm4326, %v4262, %v4390
    %v4455 = vsel %vm4327, %v4263, %v4391
    %v4456 = vsel %vm4328, %v4264, %v4392
    %v4457 = vsel %vm4329, %v4265, %v4393
    %v4458 = vsel %vm4330, %v4266, %v4394
    %v4459 = vsel %vm4331, %v4267, %v4395
    %v4460 = vsel %vm4332, %v4268, %v4396
    %v4461 = vsel %vm4333, %v4269, %v4397
    %v4462 = vsel %vm4334, %v4270, %v4398
    %v4463 = vsel %vm4335, %v4271, %v4399
    %v4464 = vsel %vm4336, %v4272, %v4400
    %v4465 = vsel %vm4337, %v4273, %v4401
    %v4466 = vsel %vm4338, %v4274, %v4402
    %v4467 = vsel %vm4339, %v4275, %v4403
    %v4468 = vsel %vm4340, %v4276, %v4404
    %v4469 = vsel %vm4341, %v4277, %v4405
    %v4470 = vsel %vm4342, %v4278, %v4406
    %v4471 = vsel %vm4343, %v4279, %v4407
    %4472 = vst.msk [vmem:[#allocation13] sm:$0xff] %vm3736, %v4408
    %4473 = vst.msk [vmem:[#allocation13 + $0x8] sm:$0xff] %vm3736, %v4409
    %4474 = vst.msk [vmem:[#allocation13 + $0x10] sm:$0xff] %vm3736, %v4410
    %4475 = vst.msk [vmem:[#allocation13 + $0x18] sm:$0xff] %vm3736, %v4411
    %4476 = vst.msk [vmem:[#allocation13 + $0x20] sm:$0xff] %vm3736, %v4412
    %4477 = vst.msk [vmem:[#allocation13 + $0x28] sm:$0xff] %vm3736, %v4413
    %4478 = vst.msk [vmem:[#allocation13 + $0x30] sm:$0xff] %vm3736, %v4414
    %4479 = vst.msk [vmem:[#allocation13 + $0x38] sm:$0xff] %vm3736, %v4415
    %4480 = vst.msk [vmem:[#allocation13 + $0x40] sm:$0xff] %vm3736, %v4416
    %4481 = vst.msk [vmem:[#allocation13 + $0x48] sm:$0xff] %vm3736, %v4417
    %4482 = vst.msk [vmem:[#allocation13 + $0x50] sm:$0xff] %vm3736, %v4418
    %4483 = vst.msk [vmem:[#allocation13 + $0x58] sm:$0xff] %vm3736, %v4419
    %4484 = vst.msk [vmem:[#allocation13 + $0x60] sm:$0xff] %vm3736, %v4420
    %4485 = vst.msk [vmem:[#allocation13 + $0x68] sm:$0xff] %vm3736, %v4421
    %4486 = vst.msk [vmem:[#allocation13 + $0x70] sm:$0xff] %vm3736, %v4422
    %4487 = vst.msk [vmem:[#allocation13 + $0x78] sm:$0xff] %vm3736, %v4423
    %4488 = vst.msk [vmem:[#allocation13 + $0x80] sm:$0xff] %vm3736, %v4424
    %4489 = vst.msk [vmem:[#allocation13 + $0x88] sm:$0xff] %vm3736, %v4425
    %4490 = vst.msk [vmem:[#allocation13 + $0x90] sm:$0xff] %vm3736, %v4426
    %4491 = vst.msk [vmem:[#allocation13 + $0x98] sm:$0xff] %vm3736, %v4427
    %4492 = vst.msk [vmem:[#allocation13 + $0xa0] sm:$0xff] %vm3736, %v4428
    %4493 = vst.msk [vmem:[#allocation13 + $0xa8] sm:$0xff] %vm3736, %v4429
    %4494 = vst.msk [vmem:[#allocation13 + $0xb0] sm:$0xff] %vm3736, %v4430
    %4495 = vst.msk [vmem:[#allocation13 + $0xb8] sm:$0xff] %vm3736, %v4431
    %4496 = vst.msk [vmem:[#allocation13 + $0xc0] sm:$0xff] %vm3736, %v4432
    %4497 = vst.msk [vmem:[#allocation13 + $0xc8] sm:$0xff] %vm3736, %v4433
    %4498 = vst.msk [vmem:[#allocation13 + $0xd0] sm:$0xff] %vm3736, %v4434
    %4499 = vst.msk [vmem:[#allocation13 + $0xd8] sm:$0xff] %vm3736, %v4435
    %4500 = vst.msk [vmem:[#allocation13 + $0xe0] sm:$0xff] %vm3736, %v4436
    %4501 = vst.msk [vmem:[#allocation13 + $0xe8] sm:$0xff] %vm3736, %v4437
    %4502 = vst.msk [vmem:[#allocation13 + $0xf0] sm:$0xff] %vm3736, %v4438
    %4503 = vst.msk [vmem:[#allocation13 + $0xf8] sm:$0xff] %vm3736, %v4439
    %4504 = vst.msk [vmem:[#allocation13 + $0x100] sm:$0xff] %vm3736, %v4440
    %4505 = vst.msk [vmem:[#allocation13 + $0x108] sm:$0xff] %vm3736, %v4441
    %4506 = vst.msk [vmem:[#allocation13 + $0x110] sm:$0xff] %vm3736, %v4442
    %4507 = vst.msk [vmem:[#allocation13 + $0x118] sm:$0xff] %vm3736, %v4443
    %4508 = vst.msk [vmem:[#allocation13 + $0x120] sm:$0xff] %vm3736, %v4444
    %4509 = vst.msk [vmem:[#allocation13 + $0x128] sm:$0xff] %vm3736, %v4445
    %4510 = vst.msk [vmem:[#allocation13 + $0x130] sm:$0xff] %vm3736, %v4446
    %4511 = vst.msk [vmem:[#allocation13 + $0x138] sm:$0xff] %vm3736, %v4447
    %4512 = vst.msk [vmem:[#allocation13 + $0x140] sm:$0xff] %vm3736, %v4448
    %4513 = vst.msk [vmem:[#allocation13 + $0x148] sm:$0xff] %vm3736, %v4449
    %4514 = vst.msk [vmem:[#allocation13 + $0x150] sm:$0xff] %vm3736, %v4450
    %4515 = vst.msk [vmem:[#allocation13 + $0x158] sm:$0xff] %vm3736, %v4451
    %4516 = vst.msk [vmem:[#allocation13 + $0x160] sm:$0xff] %vm3736, %v4452
    %4517 = vst.msk [vmem:[#allocation13 + $0x168] sm:$0xff] %vm3736, %v4453
    %4518 = vst.msk [vmem:[#allocation13 + $0x170] sm:$0xff] %vm3736, %v4454
    %4519 = vst.msk [vmem:[#allocation13 + $0x178] sm:$0xff] %vm3736, %v4455
    %4520 = vst.msk [vmem:[#allocation13 + $0x180] sm:$0xff] %vm3736, %v4456
    %4521 = vst.msk [vmem:[#allocation13 + $0x188] sm:$0xff] %vm3736, %v4457
    %4522 = vst.msk [vmem:[#allocation13 + $0x190] sm:$0xff] %vm3736, %v4458
    %4523 = vst.msk [vmem:[#allocation13 + $0x198] sm:$0xff] %vm3736, %v4459
    %4524 = vst.msk [vmem:[#allocation13 + $0x1a0] sm:$0xff] %vm3736, %v4460
    %4525 = vst.msk [vmem:[#allocation13 + $0x1a8] sm:$0xff] %vm3736, %v4461
    %4526 = vst.msk [vmem:[#allocation13 + $0x1b0] sm:$0xff] %vm3736, %v4462
    %4527 = vst.msk [vmem:[#allocation13 + $0x1b8] sm:$0xff] %vm3736, %v4463
    %4528 = vst.msk [vmem:[#allocation13 + $0x1c0] sm:$0xff] %vm3736, %v4464
    %4529 = vst.msk [vmem:[#allocation13 + $0x1c8] sm:$0xff] %vm3736, %v4465
    %4530 = vst.msk [vmem:[#allocation13 + $0x1d0] sm:$0xff] %vm3736, %v4466
    %4531 = vst.msk [vmem:[#allocation13 + $0x1d8] sm:$0xff] %vm3736, %v4467
    %4532 = vst.msk [vmem:[#allocation13 + $0x1e0] sm:$0xff] %vm3736, %v4468
    %4533 = vst.msk [vmem:[#allocation13 + $0x1e8] sm:$0xff] %vm3736, %v4469
    %4534 = vst.msk [vmem:[#allocation13 + $0x1f0] sm:$0xff] %vm3736, %v4470
    %4535 = vst.msk [vmem:[#allocation13 + $0x1f8] sm:$0xff] %vm3736, %v4471
    // Predicated region
    $region50: #{generator_b_forward.4} parent=1 // pred_check
      _
    $region51: #{generator_b_forward.4} parent=1 // pred_check_branch
      %4537 = sbr.rel (0) target = $region53
    $region52: #{generator_b_forward.4} parent=1 // pred_region
      %s4539 = ssub.s32 8192, 8192
      %4540 = vsyncadd [#allocation4], %s4539
      %s4541 = sshll.u32 [#allocation13], 4
      %s4542 = int_to_ptr.vmem [resolvable:$true] %s4541
      %4547 = dma.vmem_to_hbm [thread:$0]  %s4542, 8192, %s6, [#allocation4], 128, 128, 8
    $region53: #{generator_b_forward.4} parent=1 // pred_fallthru
      _
    // Predicated region
    $region54: #{generator_b_forward.4} parent=1 // pred_check
      _
    $region55: #{generator_b_forward.4} parent=1 // pred_check_branch
      %4549 = sbr.rel (0) target = $region57
    $region56: #{generator_b_forward.4} parent=1 // pred_region
      %4550 = dma.done [#allocation4], 8192
    $region57: #{generator_b_forward.4} parent=1 // pred_fallthru
      _
    %4551 = vsyncpa [#allocation3], 1
    %4552 = vsyncpa [#allocation6], 1
    %4553 = vsyncpa [#allocation9], 1
    %4554 = vsyncpa [#allocation12], 1
    %4555 = vsyncpa [#allocation4], 1

</llo_original>
